<compile_context>
chip_gen: v6e
topology: v6e:2x2x1
jax: 0.10.0
libtpu: 0.0.40
codegen_flags: <defaults>
</compile_context>

<pallas_src>
import jax
import jax.numpy as jnp
from jax.experimental import pallas as pl
from jax.experimental.pallas import tpu as pltpu


# ------------------------------- constants --------------------------------- #

K1 = 3 * 128 * 128       # 49152 flattened features (fixed by the module's first Linear)
N1, N2 = 1024, 512
NCORE = 2                # layer-1 output columns split into 2 halves (v7x dual-TensorCore)
N1H = N1 // NCORE        # 512 columns per half
N3_PAD = 128             # 11 logits padded to a lane-aligned 128
B_PAD = 8                # sublane alignment for the tiny batch
TK = 8192                # layer-1 reduction tile: 49152 / 8192 = 6 steps; 4 MiB int8 tile / half


# --------------------------- kernel 1: layer 1 ------------------------------ #

def layer1_kernel(x_ref, w1q_ref, s1_ref, t1_ref, h1_ref, acc_ref):
    """Layer-1 (49152 -> 1024) matmul with int8-streamed weights.

    grid = (column-half j [parallel], K-reduction k [arbitrary]).
    """
    k = pl.program_id(1)

    @pl.when(k == 0)
    def _():
        acc_ref[...] = jnp.zeros_like(acc_ref)

    # Slice the VMEM-resident activations; offset is a compile-time multiple of TK.
    kk = pl.multiple_of(k * TK, TK)
    x_tile = x_ref[:, pl.ds(kk, TK)]                       # (B, TK) bf16

    # int8 -> bf16 cast is the whole "dequant": the per-column scale is folded into s1.
    w_tile = w1q_ref[...].astype(jnp.bfloat16)             # (TK, N1H)
    acc_ref[...] += jnp.dot(x_tile, w_tile, preferred_element_type=jnp.float32)

    @pl.when(k == pl.num_programs(1) - 1)
    def _():
        # Folded (int8 dequant * BN scale) and (bias + BN shift), then ReLU. Dropout = identity.
        h1 = jnp.maximum(acc_ref[...] * s1_ref[...] + t1_ref[...], 0.0)
        h1_ref[...] = h1.astype(h1_ref.dtype)


def layer1_pallas(x_flat, w1q, s1, t1):
    """x_flat: (B_PAD, 49152) bf16 -> h1: (B_PAD, 1024) f32 (post BN+ReLU)."""
    B, K = x_flat.shape
    assert K == K1 and K % TK == 0

    flops = 2 * B_PAD * K1 * N1
    bytes_accessed = (K1 * N1            # int8 w1 stream (1 byte/elem)
                      + B_PAD * K1 * 2   # bf16 activations
                      + B_PAD * N1 * 4)  # f32 h1 writeback

    return pl.pallas_call(
        layer1_kernel,
        out_shape=jax.ShapeDtypeStruct((B, N1), jnp.float32),
        grid_spec=pltpu.PrefetchScalarGridSpec(
            num_scalar_prefetch=0,
            grid=(NCORE, K // TK),
            in_specs=[
                # Activations: fully VMEM-resident (768 KiB bf16), constant index map.
                pl.BlockSpec((B, K1), lambda j, k: (0, 0)),
                # int8 w1 stream, one contiguous (TK, 512) tile per (half, k) step.
                pl.BlockSpec((None, TK, N1H), lambda j, k: (j, k, 0)),
                # Folded per-column scale / shift for this half.
                pl.BlockSpec((None, 1, N1H), lambda j, k: (j, 0, 0)),
                pl.BlockSpec((None, 1, N1H), lambda j, k: (j, 0, 0)),
            ],
            out_specs=pl.BlockSpec((B, N1H), lambda j, k: (0, j)),
            scratch_shapes=[pltpu.VMEM((B, N1H), jnp.float32)],   # f32 accumulator (per half)
        ),
        compiler_params=pltpu.CompilerParams(
            dimension_semantics=("parallel", "arbitrary"),
            vmem_limit_bytes=40 << 20,   # actual footprint ~10 MiB; safe on v7x 64 MiB VMEM
        ),
        cost_estimate=pl.CostEstimate(flops=flops, transcendentals=0,
                                      bytes_accessed=bytes_accessed),
    )(x_flat, w1q, s1, t1)


# ------------------------ kernel 2: layers 2 and 3 -------------------------- #

def layers23_kernel(h1_ref, w2_ref, t2_ref, w3_ref, t3_ref, o_ref):
    """Layer 2 (Linear+BN+ReLU, BN scale pre-folded into w2) and layer 3 (Linear)."""
    h1 = h1_ref[...].astype(jnp.bfloat16)
    h2 = jnp.dot(h1, w2_ref[...], preferred_element_type=jnp.float32)
    h2 = jnp.maximum(h2 + t2_ref[...], 0.0)                 # Dropout = identity (eval)
    h3 = jnp.dot(h2.astype(jnp.bfloat16), w3_ref[...], preferred_element_type=jnp.float32)
    o_ref[...] = h3 + t3_ref[...]


def layers23_pallas(h1, w2, t2, w3, t3):
    B = h1.shape[0]
    return pl.pallas_call(
        layers23_kernel,
        out_shape=jax.ShapeDtypeStruct((B, N3_PAD), jnp.float32),
        grid_spec=pltpu.PrefetchScalarGridSpec(
            num_scalar_prefetch=0,
            grid=(1,),
            in_specs=[
                pl.BlockSpec((B, N1), lambda i: (0, 0)),
                pl.BlockSpec((N1, N2), lambda i: (0, 0)),       # w2 (BN scale folded), ~1 MiB bf16
                pl.BlockSpec((1, N2), lambda i: (0, 0)),
                pl.BlockSpec((N2, N3_PAD), lambda i: (0, 0)),   # w3 padded, 128 KiB bf16
                pl.BlockSpec((1, N3_PAD), lambda i: (0, 0)),
            ],
            out_specs=pl.BlockSpec((B, N3_PAD), lambda i: (0, 0)),
        ),
        compiler_params=pltpu.CompilerParams(
            dimension_semantics=("arbitrary",),
        ),
    )(h1, w2, t2, w3, t3)


# --------------------------- parameter creation ----------------------------- #

def init_params(key):
    """PyTorch-default-style init; w1 quantized to int8 (per-column), w2/w3 in bf16."""
    eps = 1e-5

    def linear_init(k, fan_in, fan_out):
        k_w, k_b = jax.random.split(k)
        bound = 1.0 / jnp.sqrt(fan_in)
        w = jax.random.uniform(k_w, (fan_in, fan_out), jnp.float32, -bound, bound)
        b = jax.random.uniform(k_b, (1, fan_out), jnp.float32, -bound, bound)
        return w, b

    k1, k2, k3 = jax.random.split(key, 3)
    w1, b1 = linear_init(k1, K1, N1)
    w2, b2 = linear_init(k2, N1, N2)
    w3, b3 = linear_init(k3, N2, 11)

    # BatchNorm1d (inference): gamma=1, beta=0, running_mean=0, running_var=1.
    # y = (x@W + b - mean)*g/sqrt(var+eps) + beta = (x@W)*scale + (b*scale + beta - mean*scale)
    def bn_fold(bias, n):
        gamma = jnp.ones((1, n), jnp.float32)
        beta = jnp.zeros((1, n), jnp.float32)
        mean = jnp.zeros((1, n), jnp.float32)
        var = jnp.ones((1, n), jnp.float32)
        scale = gamma / jnp.sqrt(var + eps)
        shift = bias * scale + (beta - mean * scale)
        return scale, shift

    s1_bn, t1 = bn_fold(b1, N1)
    s2_bn, t2 = bn_fold(b2, N2)

    # ---- int8 symmetric per-output-column quantization of w1 ----
    q_scale = jnp.maximum(jnp.max(jnp.abs(w1), axis=0, keepdims=True), 1e-8) / 127.0
    w1_q = jnp.clip(jnp.round(w1 / q_scale), -127, 127).astype(jnp.int8)    # (K1, N1)
    s1 = q_scale * s1_bn                                                    # dequant folded into BN scale

    # Pre-split layer-1 columns into 2 contiguous halves (one per TensorCore on v7x).
    w1q2 = w1_q.reshape(K1, NCORE, N1H).transpose(1, 0, 2)                  # (2, K1, 512)
    s1_2 = s1.reshape(1, NCORE, N1H).transpose(1, 0, 2)                     # (2, 1, 512)
    t1_2 = t1.reshape(1, NCORE, N1H).transpose(1, 0, 2)                     # (2, 1, 512)

    # Fold the layer-2 BN scale into w2's columns in f32, then cast to bf16.
    w2_eff = (w2 * s2_bn).astype(jnp.bfloat16)

    # Final layer has no BN; pad N=11 -> 128 for a lane-aligned output block.
    w3p = jnp.pad(w3, ((0, 0), (0, N3_PAD - 11))).astype(jnp.bfloat16)
    t3 = jnp.pad(b3, ((0, 0), (0, N3_PAD - 11)))

    return dict(w1q=w1q2, s1=s1_2, t1=t1_2, w2=w2_eff, t2=t2, w3=w3p, t3=t3)


# -------------------------------- forward ----------------------------------- #

def dnn_forward(x, params):
    B = x.shape[0]
    assert B <= B_PAD
    h = x.reshape(B, -1)                            # Flatten (NCHW row-major == torch.nn.Flatten)
    h = jnp.pad(h, ((0, B_PAD - B), (0, 0)))        # pad rows produce garbage logits; sliced off below
    h = h.astype(jnp.bfloat16)
    h1 = layer1_pallas(h, params["w1q"], params["s1"], params["t1"])
    out = layers23_pallas(h1, params["w2"], params["t2"], params["w3"], params["t3"])
    return out[:B, :11]


# ---------------------------------- main ------------------------------------ #

if __name__ == "__main__":
    key = jax.random.PRNGKey(0)
    k_param, k_x = jax.random.split(key)

    params = init_params(k_param)
    # The module's first Linear fixes the flattened feature count to 3*128*128, so the
    # smallest consistent input is (batch=2, 3, 128, 128) in NCHW.
    x = jax.random.normal(k_x, (2, 3, 128, 128), jnp.float32)

    out = dnn_forward(x, params)
    out = jax.block_until_ready(out)

    # Pure-JAX reference of the same quantized-weight / f32-accumulate path.
    def ref(x, p):
        f32 = lambda a: a.astype(jnp.float32)
        hi = jax.lax.Precision.HIGHEST
        # Reconstruct full-width layer-1 params from the per-core-half split.
        w1q = p["w1q"].transpose(1, 0, 2).reshape(K1, N1)
        s1 = p["s1"].transpose(1, 0, 2).reshape(1, N1)
        t1 = p["t1"].transpose(1, 0, 2).reshape(1, N1)

        h = x.reshape(x.shape[0], -1).astype(jnp.bfloat16)
        h1 = jnp.dot(f32(h), f32(w1q), precision=hi) * s1 + t1
        h1 = jnp.maximum(h1, 0.0).astype(jnp.bfloat16)
        h2 = jnp.dot(f32(h1), f32(p["w2"]), precision=hi) + p["t2"]
        h2 = jnp.maximum(h2, 0.0).astype(jnp.bfloat16)
        h3 = jnp.dot(f32(h2), f32(p["w3"]), precision=hi) + p["t3"]
        return h3[:, :11]

    ref_out = ref(x, params)
    assert out.shape == (2, 11), out.shape
    assert jnp.allclose(out, ref_out, atol=2e-2, rtol=2e-2), (
        float(jnp.max(jnp.abs(out - ref_out))))

    print("KERNEL_OK")
</pallas_src>

<mosaic_0001>
module attributes {stable_mosaic.version = 11 : i64} {
  func.func @layer1_kernel(%arg0: i32, %arg1: i32, %arg2: memref<8x49152xbf16, #tpu.memory_space<vmem>>, %arg3: memref<1x8192x512xi8, #tpu.memory_space<vmem>>, %arg4: memref<1x1x512xf32, #tpu.memory_space<vmem>>, %arg5: memref<1x1x512xf32, #tpu.memory_space<vmem>>, %arg6: memref<8x512xf32, #tpu.memory_space<vmem>>, %arg7: memref<8x512xf32, #tpu.memory_space<vmem>>) attributes {dimension_semantics = [#tpu.dimension_semantics<parallel>, #tpu.dimension_semantics<arbitrary>], iteration_bounds = array<i64: 2, 6>, scalar_prefetch = 0 : i64, scratch_operands = 1 : i64, tpu.core_type = #tpu.core_type<tc>, window_params = [{pipeline_mode = #tpu.pipeline_mode<synchronous>, transform_indices = @transform_0, window_bounds = array<i64: 8, 49152>}, {transform_indices = @transform_1, window_bounds = array<i64: 1, 8192, 512>}, {transform_indices = @transform_2, window_bounds = array<i64: 1, 1, 512>}, {transform_indices = @transform_3, window_bounds = array<i64: 1, 1, 512>}, {transform_indices = @transform_4, window_bounds = array<i64: 8, 512>}]} {
    %c0_i32 = arith.constant 0 : i32
    %0 = arith.cmpi eq, %arg1, %c0_i32 : i32
    %1 = arith.extui %0 : i1 to i32
    %c0_i32_0 = arith.constant 0 : i32
    %2 = arith.cmpi ne, %1, %c0_i32_0 : i32
    scf.if %2 {
      %cst_9 = arith.constant 0.000000e+00 : f32
      %17 = vector.broadcast %cst_9 : f32 to vector<8x512xf32>
      %c0_10 = arith.constant 0 : index
      %c0_11 = arith.constant 0 : index
      %18 = vector.load %arg7[%c0_10, %c0_11] : memref<8x512xf32, #tpu.memory_space<vmem>>, vector<8x512xf32>
      tpu.vector_store %arg7[%c0_10, %c0_11], %17 {strides = array<i32>} : memref<8x512xf32, #tpu.memory_space<vmem>>, vector<8x512xf32>,
    } else {
    }
    %c8192_i32 = arith.constant 8192 : i32
    %3 = arith.muli %arg1, %c8192_i32 : i32
    %4 = tpu.assume_multiple %3, 8192 : i32
    %c0 = arith.constant 0 : index
    %5 = arith.index_cast %4 : i32 to index
    %6 = vector.load %arg2[%c0, %5] : memref<8x49152xbf16, #tpu.memory_space<vmem>>, vector<8x8192xbf16>
    %c0_1 = arith.constant 0 : index
    %c0_2 = arith.constant 0 : index
    %c0_3 = arith.constant 0 : index
    %7 = vector.load %arg3[%c0_1, %c0_2, %c0_3] : memref<1x8192x512xi8, #tpu.memory_space<vmem>>, vector<1x8192x512xi8>
    %8 = vector.shape_cast %7 : vector<1x8192x512xi8> to vector<8192x512xi8>
    %9 = arith.sitofp %8 : vector<8192x512xi8> to vector<8192x512xbf16>
    %c0_4 = arith.constant 0 : index
    %c0_5 = arith.constant 0 : index
    %10 = vector.load %arg7[%c0_4, %c0_5] : memref<8x512xf32, #tpu.memory_space<vmem>>, vector<8x512xf32>
    %cst = arith.constant dense<0.000000e+00> : vector<8x512xf32>
    %11 = tpu.matmul %6, %9, %cst {dimension_numbers = #tpu.dot_dimension_numbers<[1], [0], [0], [1], [0, 0, 1, 1], [], []>} : vector<8x8192xbf16>, vector<8192x512xbf16>, vector<8x512xf32> -> vector<8x512xf32>
    %12 = arith.addf %10, %11 : vector<8x512xf32>
    %c0_6 = arith.constant 0 : index
    %c0_7 = arith.constant 0 : index
    %13 = vector.load %arg7[%c0_6, %c0_7] : memref<8x512xf32, #tpu.memory_space<vmem>>, vector<8x512xf32>
    tpu.vector_store %arg7[%c0_6, %c0_7], %12 {strides = array<i32>} : memref<8x512xf32, #tpu.memory_space<vmem>>, vector<8x512xf32>,
    %c5_i32 = arith.constant 5 : i32
    %14 = arith.cmpi eq, %arg1, %c5_i32 : i32
    %15 = arith.extui %14 : i1 to i32
    %c0_i32_8 = arith.constant 0 : i32
    %16 = arith.cmpi ne, %15, %c0_i32_8 : i32
    scf.if %16 {
      %c0_9 = arith.constant 0 : index
      %c0_10 = arith.constant 0 : index
      %17 = vector.load %arg7[%c0_9, %c0_10] : memref<8x512xf32, #tpu.memory_space<vmem>>, vector<8x512xf32>
      %c0_11 = arith.constant 0 : index
      %c0_12 = arith.constant 0 : index
      %c0_13 = arith.constant 0 : index
      %18 = vector.load %arg4[%c0_11, %c0_12, %c0_13] : memref<1x1x512xf32, #tpu.memory_space<vmem>>, vector<1x1x512xf32>
      %19 = vector.shape_cast %18 : vector<1x1x512xf32> to vector<1x512xf32>
      %20 = vector.broadcast %19 : vector<1x512xf32> to vector<8x512xf32>
      %21 = arith.mulf %17, %20 : vector<8x512xf32>
      %c0_14 = arith.constant 0 : index
      %c0_15 = arith.constant 0 : index
      %c0_16 = arith.constant 0 : index
      %22 = vector.load %arg5[%c0_14, %c0_15, %c0_16] : memref<1x1x512xf32, #tpu.memory_space<vmem>>, vector<1x1x512xf32>
      %23 = vector.shape_cast %22 : vector<1x1x512xf32> to vector<1x512xf32>
      %24 = vector.broadcast %23 : vector<1x512xf32> to vector<8x512xf32>
      %25 = arith.addf %21, %24 : vector<8x512xf32>
      %cst_17 = arith.constant 0.000000e+00 : f32
      %26 = vector.broadcast %cst_17 : f32 to vector<8x512xf32>
      %27 = arith.maximumf %25, %26 : vector<8x512xf32>
      %c0_18 = arith.constant 0 : index
      %c0_19 = arith.constant 0 : index
      %28 = vector.load %arg6[%c0_18, %c0_19] : memref<8x512xf32, #tpu.memory_space<vmem>>, vector<8x512xf32>
      tpu.vector_store %arg6[%c0_18, %c0_19], %27 {strides = array<i32>} : memref<8x512xf32, #tpu.memory_space<vmem>>, vector<8x512xf32>,
    } else {
    }
    return
  }
  func.func @transform_0(%arg0: i32, %arg1: i32) -> (i32, i32) {
    %c0_i32 = arith.constant 0 : i32
    %c0_i32_0 = arith.constant 0 : i32
    %c0_i32_1 = arith.constant 0 : i32
    return %c0_i32, %c0_i32_0 : i32, i32
  }
  func.func @transform_1(%arg0: i32, %arg1: i32) -> (i32, i32, i32) {
    %c0_i32 = arith.constant 0 : i32
    %c0_i32_0 = arith.constant 0 : i32
    return %arg0, %arg1, %c0_i32 : i32, i32, i32
  }
  func.func @transform_2(%arg0: i32, %arg1: i32) -> (i32, i32, i32) {
    %c0_i32 = arith.constant 0 : i32
    %c0_i32_0 = arith.constant 0 : i32
    %c0_i32_1 = arith.constant 0 : i32
    return %arg0, %c0_i32, %c0_i32_0 : i32, i32, i32
  }
  func.func @transform_3(%arg0: i32, %arg1: i32) -> (i32, i32, i32) {
    %c0_i32 = arith.constant 0 : i32
    %c0_i32_0 = arith.constant 0 : i32
    %c0_i32_1 = arith.constant 0 : i32
    return %arg0, %c0_i32, %c0_i32_0 : i32, i32, i32
  }
  func.func @transform_4(%arg0: i32, %arg1: i32) -> (i32, i32) {
    %c0_i32 = arith.constant 0 : i32
    %c0_i32_0 = arith.constant 0 : i32
    return %c0_i32, %arg0 : i32, i32
  }
}

</mosaic_0001>

<llo_original>
// kernel: tpu_custom_call.1
$region0: #{tpu_custom_call.1}
  #allocation0 [shape = 'u32[]', space=smem, size = 0x4, offset = 0x4, fixed_abs, tag = 'smem constant byte address 0x4 - core index']
  #allocation1 [shape = 'u32[144,128]{1,0:T(1,128)}', space=vmem, size = 0x12000, scoped, tag = 'internal scratch']
  #allocation2 [shape = 'f32[8,512]{1,0:T(8,128)}', space=vmem, size = 0x4000, scoped, tag = 'scratch operand']
  %s0 = inlined_call_operand.hbm [shape: bf16[8,49152], index: 0, kind: input, shape index: {}]
  %s1 = inlined_call_operand.hbm [shape: s8[2,49152,512], index: 1, kind: input, shape index: {}]
  %s2 = inlined_call_operand.hbm [shape: f32[2,1,512], index: 2, kind: input, shape index: {}]
  %s3 = inlined_call_operand.hbm [shape: f32[2,1,512], index: 3, kind: input, shape index: {}]
  %s4 = inlined_call_operand.hbm [shape: f32[8,1024], index: 4, kind: output, shape index: {}]
  %s5 = sld [smem:[#allocation0]]
  $region73: #{tpu_custom_call.1} parent=0
    _
  %s7 = ssub.s32 1, %s5
  %s8 = scalar_select 0, %s7, %s5
  $region1: #{tpu_custom_call.1} parent=0
    #allocation3 [shape = 'u8[786432]{0}', space=vmem, size = 0xc0000, scoped, tag = 'input window, operand 0, single buffered']
    #allocation4 [shape = 's32[2]{0}', space=sflag, size = 0x8, scoped, tag = 'scoped memory for tpu_custom_call.1']
    #allocation5 [shape = 's32[2]{0}', space=sflag, size = 0x8, scoped, tag = 'scoped memory for tpu_custom_call.1']
    #allocation6 [shape = 'u8[8388608]{0}', space=vmem, size = 0x800000, scoped, tag = 'input window, operand 1']
    #allocation7 [shape = 's32[2]{0}', space=sflag, size = 0x8, scoped, tag = 'scoped memory for tpu_custom_call.1']
    #allocation8 [shape = 'u8[4096]{0}', space=vmem, size = 0x1000, scoped, tag = 'input window, operand 2']
    #allocation9 [shape = 'u8[4096]{0}', space=vmem, size = 0x1000, scoped, tag = 'input window, operand 3']
    #allocation10 [shape = 's32[2]{0}', space=sflag, size = 0x8, scoped, tag = 'scoped memory for tpu_custom_call.1']
    #allocation11 [shape = 'u8[32768]{0}', space=vmem, size = 0x8000, scoped, tag = 'output window, operand 0']
    %9 = vsyncpa [#allocation4], 0
    %10 = vsyncpa [#allocation7], 0
    %s11 = scalar_lea.sflag [#allocation7], 1
    %12 = vsyncpa %s11, 0
    %13 = vsyncpa [#allocation10], 0
    %s14 = scalar_lea.sflag [#allocation10], 1
    %15 = vsyncpa %s14, 0
    %16 = vsyncpa [#allocation5], 0
    %s17 = scalar_lea.sflag [#allocation5], 1
    %18 = vsyncpa %s17, 0
    loop: start=0, step=1, limit=14
    $region2: #{tpu_custom_call.1} parent=1 // loop_pre_header
      _
    $region3: #{tpu_custom_call.1} parent=1 // loop_header
      %s20 = sphi 0, %s24
      %p21 = scmp.ge.s32.totalorder %s20, 14
      %s27 = sphi 0, %s39
      %s28 = sphi 0, %s35
      %s29 = sphi 0, %s27
      %s30 = sphi 0, %s28
      %s31 = sphi 0, %s29
      %s32 = sphi 0, %s30
      %s40 = sphi 0, %s40
      %s42 = sphi 0, %s40
      %s43 = sphi 0, %s42
      %s57 = sphi 0, %s43
      %s65 = sphi 0, %s67
      %s68 = sphi 0, %s65
      %s69 = sphi 0, %s68
      %s85 = sphi 0, %s69
      %s91 = sphi 0, %s93
      %s94 = sphi 0, %s91
      %s95 = sphi 0, %s94
      %s111 = sphi 0, %s95
      %s117 = sphi 0, %s119
      %s120 = sphi 0, %s117
      %s121 = sphi 0, %s120
      %s137 = sphi 0, %s121
      %s143 = sphi 0, %s145
      %s146 = sphi 0, %s143
      %s147 = sphi 0, %s146
      %s163 = sphi 0, %s147
    $region4: #{tpu_custom_call.1} parent=1 // loop_header_branch
      %23 = sbr.rel (%p21) target = $region8
    $region5: #{tpu_custom_call.1} parent=1 // loop_body
      %s25 = ssub.s32 %s20, 1
      %s26 = ssub.s32 %s20, 2
      %s33 = sadd.s32 1, %s28
      %p34 = scmp.ge.s32.totalorder %s33, 6
      %s35 = scalar_select %p34, 0, %s33
      %s36 = sadd.s32 1, %s27
      %s37 = scalar_select %p34, %s36, %s27
      %p38 = scmp.ge.s32.totalorder %s37, 2
      %s39 = scalar_select %p38, 0, %s37
      %s41 = sadd.s32 %s40, 1
      %p44 = scmp.eq.s32.totalorder %s20, 11
      %p45 = scmp.ne.s32.totalorder %s40, %s42
      %p46 = scmp.eq.s32.totalorder %s20, 0
      %p47 = por %p45, %p46
      %p48 = scmp.ne.s32.totalorder %s40, %s42
      %p49 = scmp.eq.s32.totalorder %s25, 11
      %p50 = por %p48, %p49
      %p51 = scmp.ne.s32.totalorder %s42, %s43
      %p52 = scmp.eq.s32.totalorder %s25, 0
      %p53 = por %p51, %p52
      %p54 = scmp.ne.s32.totalorder %s42, %s43
      %p55 = scmp.eq.s32.totalorder %s26, 11
      %p56 = por %p54, %p55
      %p58 = scmp.ne.s32.totalorder %s43, %s57
      %p59 = scmp.eq.s32.totalorder %s26, 0
      %p60 = por %p58, %p59
      %s61 = ssub.s32 %s27, %s39
      %s62 = ssub.s32 %s28, %s35
      %s63 = sor.u32 %s61, %s62
      %p64 = scmp.eq.s32.totalorder %s63, 0
      %s66 = sadd.s32 %s65, 1
      %s67 = scalar_select %p64, %s65, %s66
      %p70 = pneg %p64
      %p71 = scmp.eq.s32.totalorder %s20, 11
      %p72 = por %p70, %p71
      %p73 = scmp.ne.s32.totalorder %s65, %s68
      %p74 = scmp.eq.s32.totalorder %s20, 0
      %p75 = por %p73, %p74
      %p76 = scmp.ne.s32.totalorder %s65, %s68
      %p77 = scmp.eq.s32.totalorder %s25, 11
      %p78 = por %p76, %p77
      %p79 = scmp.ne.s32.totalorder %s68, %s69
      %p80 = scmp.eq.s32.totalorder %s25, 0
      %p81 = por %p79, %p80
      %p82 = scmp.ne.s32.totalorder %s68, %s69
      %p83 = scmp.eq.s32.totalorder %s26, 11
      %p84 = por %p82, %p83
      %p86 = scmp.ne.s32.totalorder %s69, %s85
      %p87 = scmp.eq.s32.totalorder %s26, 0
      %p88 = por %p86, %p87
      %s89 = ssub.s32 %s27, %s39
      %p90 = scmp.eq.s32.totalorder %s89, 0
      %s92 = sadd.s32 %s91, 1
      %s93 = scalar_select %p90, %s91, %s92
      %p96 = pneg %p90
      %p97 = scmp.eq.s32.totalorder %s20, 11
      %p98 = por %p96, %p97
      %p99 = scmp.ne.s32.totalorder %s91, %s94
      %p100 = scmp.eq.s32.totalorder %s20, 0
      %p101 = por %p99, %p100
      %p102 = scmp.ne.s32.totalorder %s91, %s94
      %p103 = scmp.eq.s32.totalorder %s25, 11
      %p104 = por %p102, %p103
      %p105 = scmp.ne.s32.totalorder %s94, %s95
      %p106 = scmp.eq.s32.totalorder %s25, 0
      %p107 = por %p105, %p106
      %p108 = scmp.ne.s32.totalorder %s94, %s95
      %p109 = scmp.eq.s32.totalorder %s26, 11
      %p110 = por %p108, %p109
      %p112 = scmp.ne.s32.totalorder %s95, %s111
      %p113 = scmp.eq.s32.totalorder %s26, 0
      %p114 = por %p112, %p113
      %s115 = ssub.s32 %s27, %s39
      %p116 = scmp.eq.s32.totalorder %s115, 0
      %s118 = sadd.s32 %s117, 1
      %s119 = scalar_select %p116, %s117, %s118
      %p122 = pneg %p116
      %p123 = scmp.eq.s32.totalorder %s20, 11
      %p124 = por %p122, %p123
      %p125 = scmp.ne.s32.totalorder %s117, %s120
      %p126 = scmp.eq.s32.totalorder %s20, 0
      %p127 = por %p125, %p126
      %p128 = scmp.ne.s32.totalorder %s117, %s120
      %p129 = scmp.eq.s32.totalorder %s25, 11
      %p130 = por %p128, %p129
      %p131 = scmp.ne.s32.totalorder %s120, %s121
      %p132 = scmp.eq.s32.totalorder %s25, 0
      %p133 = por %p131, %p132
      %p134 = scmp.ne.s32.totalorder %s120, %s121
      %p135 = scmp.eq.s32.totalorder %s26, 11
      %p136 = por %p134, %p135
      %p138 = scmp.ne.s32.totalorder %s121, %s137
      %p139 = scmp.eq.s32.totalorder %s26, 0
      %p140 = por %p138, %p139
      %s141 = ssub.s32 %s27, %s39
      %p142 = scmp.eq.s32.totalorder %s141, 0
      %s144 = sadd.s32 %s143, 1
      %s145 = scalar_select %p142, %s143, %s144
      %p148 = pneg %p142
      %p149 = scmp.eq.s32.totalorder %s20, 11
      %p150 = por %p148, %p149
      %p151 = scmp.ne.s32.totalorder %s143, %s146
      %p152 = scmp.eq.s32.totalorder %s20, 0
      %p153 = por %p151, %p152
      %p154 = scmp.ne.s32.totalorder %s143, %s146
      %p155 = scmp.eq.s32.totalorder %s25, 11
      %p156 = por %p154, %p155
      %p157 = scmp.ne.s32.totalorder %s146, %s147
      %p158 = scmp.eq.s32.totalorder %s25, 0
      %p159 = por %p157, %p158
      %p160 = scmp.ne.s32.totalorder %s146, %s147
      %p161 = scmp.eq.s32.totalorder %s26, 11
      %p162 = por %p160, %p161
      %p164 = scmp.ne.s32.totalorder %s147, %s163
      %p165 = scmp.eq.s32.totalorder %s26, 0
      %p166 = por %p164, %p165
      %p167 = scmp.le.s32.totalorder 1, %s20
      %p168 = scmp.lt.s32.totalorder %s20, 13
      %p169 = pnand %p167, %p168
      %p170 = pneg %p169
      // Predicated region
      $region9: #{tpu_custom_call.1} parent=5 // pred_check
        _
      $region10: #{tpu_custom_call.1} parent=5 // pred_check_branch
        %172 = sbr.rel (%p169) target = $region12
      $region11: #{tpu_custom_call.1} parent=5 // pred_region
        %s173 = ssub.s32 %s20, 1
        // Predicated region
        $region13: #{tpu_custom_call.1} parent=11 // pred_check
          %p174 = pneg %p53
        $region14: #{tpu_custom_call.1} parent=11 // pred_check_branch
          %176 = sbr.rel (%p174) target = $region16
        $region15: #{tpu_custom_call.1} parent=11 // pred_region
          %s178 = ssub.s32 24576, 24576
          %179 = vsyncadd [#allocation4], %s178
          %s181 = sshll.u32 [#allocation3], 4
          %s182 = int_to_ptr.vmem [resolvable:$true] %s181
          %184 = dma.hbm_to_vmem [thread:$0]  %s0, 24576, %s182, [#allocation4]
        $region16: #{tpu_custom_call.1} parent=11 // pred_fallthru
          _
      $region12: #{tpu_custom_call.1} parent=5 // pred_fallthru
        _
      %p185 = scmp.lt.s32.totalorder %s20, 12
      // Predicated region
      $region17: #{tpu_custom_call.1} parent=5 // pred_check
        %p186 = pneg %p185
      $region18: #{tpu_custom_call.1} parent=5 // pred_check_branch
        %188 = sbr.rel (%p186) target = $region20
      $region19: #{tpu_custom_call.1} parent=5 // pred_region
        // Predicated region
        $region21: #{tpu_custom_call.1} parent=19 // pred_check
          %p189 = pneg %p75
        $region22: #{tpu_custom_call.1} parent=19 // pred_check_branch
          %191 = sbr.rel (%p189) target = $region24
        $region23: #{tpu_custom_call.1} parent=19 // pred_region
          %s192 = sand.u32 %s20, 1
          %s193 = scalar_lea.sflag [#allocation7], %s192
          %s194 = sand.u32 %s65, 1
          %s195 = smul.addr %s194, 8192
          %s196 = scalar_lea.vmem [#allocation6], %s195
          %s197 = smul.u32 256, %s28
          %s199 = ssub.s32 131072, 131072
          %200 = vsyncadd %s193, %s199
          %s201 = smul.addr %s197, 4
          %s202 = smul.addr %s27, 6144
          %s203 = sadd.s32 %s201, %s202
          %s204 = smul.addr %s203, 128
          %s205 = scalar_lea.hbm %s1, %s204
          %s206 = sshll.u32 %s196, 4
          %s207 = int_to_ptr.vmem [resolvable:$true] %s206
          %212 = dma.hbm_to_vmem [thread:$0]  %s205, 131072, %s207, %s193, 512, 512, 32
        $region24: #{tpu_custom_call.1} parent=19 // pred_fallthru
          _
        // Predicated region
        $region25: #{tpu_custom_call.1} parent=19 // pred_check
          %p213 = pneg %p101
        $region26: #{tpu_custom_call.1} parent=19 // pred_check_branch
          %215 = sbr.rel (%p213) target = $region28
        $region27: #{tpu_custom_call.1} parent=19 // pred_region
          %s216 = sand.u32 %s20, 1
          %s217 = scalar_lea.sflag [#allocation7], %s216
          %s218 = sand.u32 %s91, 1
          %s219 = smul.addr %s218, 4
          %s220 = scalar_lea.vmem [#allocation8], %s219
          %s222 = ssub.s32 64, 64
          %223 = vsyncadd %s217, %s222
          %s224 = smul.addr %s27, 4
          %s225 = smul.addr %s224, 16
          %s226 = scalar_lea.hbm %s2, %s225
          %s228 = sshll.u32 %s220, 4
          %s229 = int_to_ptr.vmem [resolvable:$true] %s228
          %231 = dma.hbm_to_vmem [thread:$0]  %s226, 64, %s229, %s217
        $region28: #{tpu_custom_call.1} parent=19 // pred_fallthru
          _
        // Predicated region
        $region29: #{tpu_custom_call.1} parent=19 // pred_check
          %p232 = pneg %p127
        $region30: #{tpu_custom_call.1} parent=19 // pred_check_branch
          %234 = sbr.rel (%p232) target = $region32
        $region31: #{tpu_custom_call.1} parent=19 // pred_region
          %s235 = sand.u32 %s117, 1
          %s236 = scalar_lea.sflag [#allocation10], %s235
          %s237 = sand.u32 %s117, 1
          %s238 = smul.addr %s237, 4
          %s239 = scalar_lea.vmem [#allocation9], %s238
          %s241 = ssub.s32 64, 64
          %242 = vsyncadd %s236, %s241
          %s243 = smul.addr %s27, 4
          %s244 = smul.addr %s243, 16
          %s245 = scalar_lea.hbm %s3, %s244
          %s247 = sshll.u32 %s239, 4
          %s248 = int_to_ptr.vmem [resolvable:$true] %s247
          %250 = dma.hbm_to_vmem [thread:$0]  %s245, 64, %s248, %s236
        $region32: #{tpu_custom_call.1} parent=19 // pred_fallthru
          _
      $region20: #{tpu_custom_call.1} parent=5 // pred_fallthru
        _
      %p251 = scmp.le.s32.totalorder 1, %s20
      %p252 = scmp.lt.s32.totalorder %s20, 13
      %p253 = pnand %p251, %p252
      %p254 = pneg %p253
      // Predicated region
      $region33: #{tpu_custom_call.1} parent=5 // pred_check
        _
      $region34: #{tpu_custom_call.1} parent=5 // pred_check_branch
        %256 = sbr.rel (%p253) target = $region36
      $region35: #{tpu_custom_call.1} parent=5 // pred_region
        %s257 = ssub.s32 %s20, 1
        // Predicated region
        $region37: #{tpu_custom_call.1} parent=35 // pred_check
          %p258 = pneg %p53
        $region38: #{tpu_custom_call.1} parent=35 // pred_check_branch
          %260 = sbr.rel (%p258) target = $region40
        $region39: #{tpu_custom_call.1} parent=35 // pred_region
          %261 = dma.done [#allocation4], 24576
        $region40: #{tpu_custom_call.1} parent=35 // pred_fallthru
          _
        %s262 = sand.u32 %s25, 1
        %s263 = scalar_lea.sflag [#allocation7], %s262
        %s264 = sand.u32 %s68, 1
        %s265 = smul.addr %s264, 8192
        %s266 = scalar_lea.vmem [#allocation6], %s265
        // Predicated region
        $region41: #{tpu_custom_call.1} parent=35 // pred_check
          %p267 = pneg %p81
        $region42: #{tpu_custom_call.1} parent=35 // pred_check_branch
          %269 = sbr.rel (%p267) target = $region44
        $region43: #{tpu_custom_call.1} parent=35 // pred_region
          %270 = dma.done %s263, 131072
        $region44: #{tpu_custom_call.1} parent=35 // pred_fallthru
          _
        %s271 = sand.u32 %s25, 1
        %s272 = scalar_lea.sflag [#allocation7], %s271
        %s273 = sand.u32 %s94, 1
        %s274 = smul.addr %s273, 4
        %s275 = scalar_lea.vmem [#allocation8], %s274
        // Predicated region
        $region45: #{tpu_custom_call.1} parent=35 // pred_check
          %p276 = pneg %p107
        $region46: #{tpu_custom_call.1} parent=35 // pred_check_branch
          %278 = sbr.rel (%p276) target = $region48
        $region47: #{tpu_custom_call.1} parent=35 // pred_region
          %279 = dma.done %s272, 64
        $region48: #{tpu_custom_call.1} parent=35 // pred_fallthru
          _
        %s280 = sand.u32 %s120, 1
        %s281 = scalar_lea.sflag [#allocation10], %s280
        %s282 = sand.u32 %s120, 1
        %s283 = smul.addr %s282, 4
        %s284 = scalar_lea.vmem [#allocation9], %s283
        // Predicated region
        $region49: #{tpu_custom_call.1} parent=35 // pred_check
          %p285 = pneg %p133
        $region50: #{tpu_custom_call.1} parent=35 // pred_check_branch
          %287 = sbr.rel (%p285) target = $region52
        $region51: #{tpu_custom_call.1} parent=35 // pred_region
          %288 = dma.done %s281, 64
        $region52: #{tpu_custom_call.1} parent=35 // pred_fallthru
          _
        %p289 = pneg %p53
        %p290 = pneg %p50
        %s291 = sand.u32 %s25, 1
        %s292 = scalar_lea.sflag [#allocation7], %s291
        %s293 = sand.u32 %s68, 1
        %s294 = smul.addr %s293, 8192
        %s295 = scalar_lea.vmem [#allocation6], %s294
        %p296 = pneg %p81
        %p297 = pneg %p78
        %s298 = sand.u32 %s25, 1
        %s299 = scalar_lea.sflag [#allocation7], %s298
        %s300 = sand.u32 %s94, 1
        %s301 = smul.addr %s300, 4
        %s302 = scalar_lea.vmem [#allocation8], %s301
        %p303 = pneg %p107
        %p304 = pneg %p104
        %s305 = sand.u32 %s120, 1
        %s306 = scalar_lea.sflag [#allocation10], %s305
        %s307 = sand.u32 %s120, 1
        %s308 = smul.addr %s307, 4
        %s309 = scalar_lea.vmem [#allocation9], %s308
        %p310 = pneg %p133
        %p311 = pneg %p130
        %p312 = pneg %p159
        %p313 = pneg %p156
        %s314 = sand.u32 %s146, 1
        %s315 = scalar_lea.sflag [#allocation5], %s314
        %s316 = sand.u32 %s146, 1
        %s317 = smul.addr %s316, 32
        %s318 = scalar_lea.vmem [#allocation11], %s317
        %s319 = smul.u32 256, %s30
        %s320 = smul.u32 4, %s29
        %p321 = scmp.eq.s32.totalorder %s30, 0
        // Predicated region
        $region53: #{tpu_custom_call.1} parent=35 // pred_check
          %p322 = pneg %p321
        $region54: #{tpu_custom_call.1} parent=35 // pred_check_branch
          %324 = sbr.rel (%p322) target = $region56
        $region55: #{tpu_custom_call.1} parent=35 // pred_region
          %325 = vst [vmem:[#allocation2] sm:$0xff] 0.0
          %326 = vst [vmem:[#allocation2 + $0x8] sm:$0xff] 0.0
          %327 = vst [vmem:[#allocation2 + $0x10] sm:$0xff] 0.0
          %328 = vst [vmem:[#allocation2 + $0x18] sm:$0xff] 0.0
        $region56: #{tpu_custom_call.1} parent=35 // pred_fallthru
          _
        %s329 = smul.u32 %s30, 8192
        %s330 = sshra.s32 %s329, 7
        %s331 = sand.u32 %s329, 127
        %s332 = smul.addr %s330, 4
        %s333 = scalar_lea.vmem [#allocation3], %s332
        %v334 = vld [vmem:[%s333] sm:$0xff]
        %v335 = vld [vmem:[%s333 + $0x8] sm:$0xff]
        %v336 = vld [vmem:[%s333 + $0x10] sm:$0xff]
        %v337 = vld [vmem:[%s333 + $0x18] sm:$0xff]
        %v338 = vld [vmem:[%s333 + $0x20] sm:$0xff]
        %v339 = vld [vmem:[%s333 + $0x28] sm:$0xff]
        %v340 = vld [vmem:[%s333 + $0x30] sm:$0xff]
        %v341 = vld [vmem:[%s333 + $0x38] sm:$0xff]
        %v342 = vld [vmem:[%s333 + $0x40] sm:$0xff]
        %v343 = vld [vmem:[%s333 + $0x48] sm:$0xff]
        %v344 = vld [vmem:[%s333 + $0x50] sm:$0xff]
        %v345 = vld [vmem:[%s333 + $0x58] sm:$0xff]
        %v346 = vld [vmem:[%s333 + $0x60] sm:$0xff]
        %v347 = vld [vmem:[%s333 + $0x68] sm:$0xff]
        %v348 = vld [vmem:[%s333 + $0x70] sm:$0xff]
        %v349 = vld [vmem:[%s333 + $0x78] sm:$0xff]
        %v350 = vld [vmem:[%s333 + $0x80] sm:$0xff]
        %v351 = vld [vmem:[%s333 + $0x88] sm:$0xff]
        %v352 = vld [vmem:[%s333 + $0x90] sm:$0xff]
        %v353 = vld [vmem:[%s333 + $0x98] sm:$0xff]
        %v354 = vld [vmem:[%s333 + $0xa0] sm:$0xff]
        %v355 = vld [vmem:[%s333 + $0xa8] sm:$0xff]
        %v356 = vld [vmem:[%s333 + $0xb0] sm:$0xff]
        %v357 = vld [vmem:[%s333 + $0xb8] sm:$0xff]
        %v358 = vld [vmem:[%s333 + $0xc0] sm:$0xff]
        %v359 = vld [vmem:[%s333 + $0xc8] sm:$0xff]
        %v360 = vld [vmem:[%s333 + $0xd0] sm:$0xff]
        %v361 = vld [vmem:[%s333 + $0xd8] sm:$0xff]
        %v362 = vld [vmem:[%s333 + $0xe0] sm:$0xff]
        %v363 = vld [vmem:[%s333 + $0xe8] sm:$0xff]
        %v364 = vld [vmem:[%s333 + $0xf0] sm:$0xff]
        %v365 = vld [vmem:[%s333 + $0xf8] sm:$0xff]
        %v366 = vld [vmem:[%s266] sm:$0xff]
        %v367 = vld [vmem:[%s266 + $0x8] sm:$0xff]
        %v368 = vld [vmem:[%s266 + $0x10] sm:$0xff]
        %v369 = vld [vmem:[%s266 + $0x18] sm:$0xff]
        %v370 = vld [vmem:[%s266 + $0x20] sm:$0xff]
        %v371 = vld [vmem:[%s266 + $0x28] sm:$0xff]
        %v372 = vld [vmem:[%s266 + $0x30] sm:$0xff]
        %v373 = vld [vmem:[%s266 + $0x38] sm:$0xff]
        %v374 = vld [vmem:[%s266 + $0x40] sm:$0xff]
        %v375 = vld [vmem:[%s266 + $0x48] sm:$0xff]
        %v376 = vld [vmem:[%s266 + $0x50] sm:$0xff]
        %v377 = vld [vmem:[%s266 + $0x58] sm:$0xff]
        %v378 = vld [vmem:[%s266 + $0x60] sm:$0xff]
        %v379 = vld [vmem:[%s266 + $0x68] sm:$0xff]
        %v380 = vld [vmem:[%s266 + $0x70] sm:$0xff]
        %v381 = vld [vmem:[%s266 + $0x78] sm:$0xff]
        %v382 = vld [vmem:[%s266 + $0x80] sm:$0xff]
        %v383 = vld [vmem:[%s266 + $0x88] sm:$0xff]
        %v384 = vld [vmem:[%s266 + $0x90] sm:$0xff]
        %v385 = vld [vmem:[%s266 + $0x98] sm:$0xff]
        %v386 = vld [vmem:[%s266 + $0xa0] sm:$0xff]
        %v387 = vld [vmem:[%s266 + $0xa8] sm:$0xff]
        %v388 = vld [vmem:[%s266 + $0xb0] sm:$0xff]
        %v389 = vld [vmem:[%s266 + $0xb8] sm:$0xff]
        %v390 = vld [vmem:[%s266 + $0xc0] sm:$0xff]
        %v391 = vld [vmem:[%s266 + $0xc8] sm:$0xff]
        %v392 = vld [vmem:[%s266 + $0xd0] sm:$0xff]
        %v393 = vld [vmem:[%s266 + $0xd8] sm:$0xff]
        %v394 = vld [vmem:[%s266 + $0xe0] sm:$0xff]
        %v395 = vld [vmem:[%s266 + $0xe8] sm:$0xff]
        %v396 = vld [vmem:[%s266 + $0xf0] sm:$0xff]
        %v397 = vld [vmem:[%s266 + $0xf8] sm:$0xff]
        %v398 = vld [vmem:[%s266 + $0x100] sm:$0xff]
        %v399 = vld [vmem:[%s266 + $0x108] sm:$0xff]
        %v400 = vld [vmem:[%s266 + $0x110] sm:$0xff]
        %v401 = vld [vmem:[%s266 + $0x118] sm:$0xff]
        %v402 = vld [vmem:[%s266 + $0x120] sm:$0xff]
        %v403 = vld [vmem:[%s266 + $0x128] sm:$0xff]
        %v404 = vld [vmem:[%s266 + $0x130] sm:$0xff]
        %v405 = vld [vmem:[%s266 + $0x138] sm:$0xff]
        %v406 = vld [vmem:[%s266 + $0x140] sm:$0xff]
        %v407 = vld [vmem:[%s266 + $0x148] sm:$0xff]
        %v408 = vld [vmem:[%s266 + $0x150] sm:$0xff]
        %v409 = vld [vmem:[%s266 + $0x158] sm:$0xff]
        %v410 = vld [vmem:[%s266 + $0x160] sm:$0xff]
        %v411 = vld [vmem:[%s266 + $0x168] sm:$0xff]
        %v412 = vld [vmem:[%s266 + $0x170] sm:$0xff]
        %v413 = vld [vmem:[%s266 + $0x178] sm:$0xff]
        %v414 = vld [vmem:[%s266 + $0x180] sm:$0xff]
        %v415 = vld [vmem:[%s266 + $0x188] sm:$0xff]
        %v416 = vld [vmem:[%s266 + $0x190] sm:$0xff]
        %v417 = vld [vmem:[%s266 + $0x198] sm:$0xff]
        %v418 = vld [vmem:[%s266 + $0x1a0] sm:$0xff]
        %v419 = vld [vmem:[%s266 + $0x1a8] sm:$0xff]
        %v420 = vld [vmem:[%s266 + $0x1b0] sm:$0xff]
        %v421 = vld [vmem:[%s266 + $0x1b8] sm:$0xff]
        %v422 = vld [vmem:[%s266 + $0x1c0] sm:$0xff]
        %v423 = vld [vmem:[%s266 + $0x1c8] sm:$0xff]
        %v424 = vld [vmem:[%s266 + $0x1d0] sm:$0xff]
        %v425 = vld [vmem:[%s266 + $0x1d8] sm:$0xff]
        %v426 = vld [vmem:[%s266 + $0x1e0] sm:$0xff]
        %v427 = vld [vmem:[%s266 + $0x1e8] sm:$0xff]
        %v428 = vld [vmem:[%s266 + $0x1f0] sm:$0xff]
        %v429 = vld [vmem:[%s266 + $0x1f8] sm:$0xff]
        %v430 = vld [vmem:[%s266 + $0x200] sm:$0xff]
        %v431 = vld [vmem:[%s266 + $0x208] sm:$0xff]
        %v432 = vld [vmem:[%s266 + $0x210] sm:$0xff]
        %v433 = vld [vmem:[%s266 + $0x218] sm:$0xff]
        %v434 = vld [vmem:[%s266 + $0x220] sm:$0xff]
        %v435 = vld [vmem:[%s266 + $0x228] sm:$0xff]
        %v436 = vld [vmem:[%s266 + $0x230] sm:$0xff]
        %v437 = vld [vmem:[%s266 + $0x238] sm:$0xff]
        %v438 = vld [vmem:[%s266 + $0x240] sm:$0xff]
        %v439 = vld [vmem:[%s266 + $0x248] sm:$0xff]
        %v440 = vld [vmem:[%s266 + $0x250] sm:$0xff]
        %v441 = vld [vmem:[%s266 + $0x258] sm:$0xff]
        %v442 = vld [vmem:[%s266 + $0x260] sm:$0xff]
        %v443 = vld [vmem:[%s266 + $0x268] sm:$0xff]
        %v444 = vld [vmem:[%s266 + $0x270] sm:$0xff]
        %v445 = vld [vmem:[%s266 + $0x278] sm:$0xff]
        %v446 = vld [vmem:[%s266 + $0x280] sm:$0xff]
        %v447 = vld [vmem:[%s266 + $0x288] sm:$0xff]
        %v448 = vld [vmem:[%s266 + $0x290] sm:$0xff]
        %v449 = vld [vmem:[%s266 + $0x298] sm:$0xff]
        %v450 = vld [vmem:[%s266 + $0x2a0] sm:$0xff]
        %v451 = vld [vmem:[%s266 + $0x2a8] sm:$0xff]
        %v452 = vld [vmem:[%s266 + $0x2b0] sm:$0xff]
        %v453 = vld [vmem:[%s266 + $0x2b8] sm:$0xff]
        %v454 = vld [vmem:[%s266 + $0x2c0] sm:$0xff]
        %v455 = vld [vmem:[%s266 + $0x2c8] sm:$0xff]
        %v456 = vld [vmem:[%s266 + $0x2d0] sm:$0xff]
        %v457 = vld [vmem:[%s266 + $0x2d8] sm:$0xff]
        %v458 = vld [vmem:[%s266 + $0x2e0] sm:$0xff]
        %v459 = vld [vmem:[%s266 + $0x2e8] sm:$0xff]
        %v460 = vld [vmem:[%s266 + $0x2f0] sm:$0xff]
        %v461 = vld [vmem:[%s266 + $0x2f8] sm:$0xff]
        %v462 = vld [vmem:[%s266 + $0x300] sm:$0xff]
        %v463 = vld [vmem:[%s266 + $0x308] sm:$0xff]
        %v464 = vld [vmem:[%s266 + $0x310] sm:$0xff]
        %v465 = vld [vmem:[%s266 + $0x318] sm:$0xff]
        %v466 = vld [vmem:[%s266 + $0x320] sm:$0xff]
        %v467 = vld [vmem:[%s266 + $0x328] sm:$0xff]
        %v468 = vld [vmem:[%s266 + $0x330] sm:$0xff]
        %v469 = vld [vmem:[%s266 + $0x338] sm:$0xff]
        %v470 = vld [vmem:[%s266 + $0x340] sm:$0xff]
        %v471 = vld [vmem:[%s266 + $0x348] sm:$0xff]
        %v472 = vld [vmem:[%s266 + $0x350] sm:$0xff]
        %v473 = vld [vmem:[%s266 + $0x358] sm:$0xff]
        %v474 = vld [vmem:[%s266 + $0x360] sm:$0xff]
        %v475 = vld [vmem:[%s266 + $0x368] sm:$0xff]
        %v476 = vld [vmem:[%s266 + $0x370] sm:$0xff]
        %v477 = vld [vmem:[%s266 + $0x378] sm:$0xff]
        %v478 = vld [vmem:[%s266 + $0x380] sm:$0xff]
        %v479 = vld [vmem:[%s266 + $0x388] sm:$0xff]
        %v480 = vld [vmem:[%s266 + $0x390] sm:$0xff]
        %v481 = vld [vmem:[%s266 + $0x398] sm:$0xff]
        %v482 = vld [vmem:[%s266 + $0x3a0] sm:$0xff]
        %v483 = vld [vmem:[%s266 + $0x3a8] sm:$0xff]
        %v484 = vld [vmem:[%s266 + $0x3b0] sm:$0xff]
        %v485 = vld [vmem:[%s266 + $0x3b8] sm:$0xff]
        %v486 = vld [vmem:[%s266 + $0x3c0] sm:$0xff]
        %v487 = vld [vmem:[%s266 + $0x3c8] sm:$0xff]
        %v488 = vld [vmem:[%s266 + $0x3d0] sm:$0xff]
        %v489 = vld [vmem:[%s266 + $0x3d8] sm:$0xff]
        %v490 = vld [vmem:[%s266 + $0x3e0] sm:$0xff]
        %v491 = vld [vmem:[%s266 + $0x3e8] sm:$0xff]
        %v492 = vld [vmem:[%s266 + $0x3f0] sm:$0xff]
        %v493 = vld [vmem:[%s266 + $0x3f8] sm:$0xff]
        %v494 = vld [vmem:[%s266 + $0x400] sm:$0xff]
        %v495 = vld [vmem:[%s266 + $0x408] sm:$0xff]
        %v496 = vld [vmem:[%s266 + $0x410] sm:$0xff]
        %v497 = vld [vmem:[%s266 + $0x418] sm:$0xff]
        %v498 = vld [vmem:[%s266 + $0x420] sm:$0xff]
        %v499 = vld [vmem:[%s266 + $0x428] sm:$0xff]
        %v500 = vld [vmem:[%s266 + $0x430] sm:$0xff]
        %v501 = vld [vmem:[%s266 + $0x438] sm:$0xff]
        %v502 = vld [vmem:[%s266 + $0x440] sm:$0xff]
        %v503 = vld [vmem:[%s266 + $0x448] sm:$0xff]
        %v504 = vld [vmem:[%s266 + $0x450] sm:$0xff]
        %v505 = vld [vmem:[%s266 + $0x458] sm:$0xff]
        %v506 = vld [vmem:[%s266 + $0x460] sm:$0xff]
        %v507 = vld [vmem:[%s266 + $0x468] sm:$0xff]
        %v508 = vld [vmem:[%s266 + $0x470] sm:$0xff]
        %v509 = vld [vmem:[%s266 + $0x478] sm:$0xff]
        %v510 = vld [vmem:[%s266 + $0x480] sm:$0xff]
        %v511 = vld [vmem:[%s266 + $0x488] sm:$0xff]
        %v512 = vld [vmem:[%s266 + $0x490] sm:$0xff]
        %v513 = vld [vmem:[%s266 + $0x498] sm:$0xff]
        %v514 = vld [vmem:[%s266 + $0x4a0] sm:$0xff]
        %v515 = vld [vmem:[%s266 + $0x4a8] sm:$0xff]
        %v516 = vld [vmem:[%s266 + $0x4b0] sm:$0xff]
        %v517 = vld [vmem:[%s266 + $0x4b8] sm:$0xff]
        %v518 = vld [vmem:[%s266 + $0x4c0] sm:$0xff]
        %v519 = vld [vmem:[%s266 + $0x4c8] sm:$0xff]
        %v520 = vld [vmem:[%s266 + $0x4d0] sm:$0xff]
        %v521 = vld [vmem:[%s266 + $0x4d8] sm:$0xff]
        %v522 = vld [vmem:[%s266 + $0x4e0] sm:$0xff]
        %v523 = vld [vmem:[%s266 + $0x4e8] sm:$0xff]
        %v524 = vld [vmem:[%s266 + $0x4f0] sm:$0xff]
        %v525 = vld [vmem:[%s266 + $0x4f8] sm:$0xff]
        %v526 = vld [vmem:[%s266 + $0x500] sm:$0xff]
        %v527 = vld [vmem:[%s266 + $0x508] sm:$0xff]
        %v528 = vld [vmem:[%s266 + $0x510] sm:$0xff]
        %v529 = vld [vmem:[%s266 + $0x518] sm:$0xff]
        %v530 = vld [vmem:[%s266 + $0x520] sm:$0xff]
        %v531 = vld [vmem:[%s266 + $0x528] sm:$0xff]
        %v532 = vld [vmem:[%s266 + $0x530] sm:$0xff]
        %v533 = vld [vmem:[%s266 + $0x538] sm:$0xff]
        %v534 = vld [vmem:[%s266 + $0x540] sm:$0xff]
        %v535 = vld [vmem:[%s266 + $0x548] sm:$0xff]
        %v536 = vld [vmem:[%s266 + $0x550] sm:$0xff]
        %v537 = vld [vmem:[%s266 + $0x558] sm:$0xff]
        %v538 = vld [vmem:[%s266 + $0x560] sm:$0xff]
        %v539 = vld [vmem:[%s266 + $0x568] sm:$0xff]
        %v540 = vld [vmem:[%s266 + $0x570] sm:$0xff]
        %v541 = vld [vmem:[%s266 + $0x578] sm:$0xff]
        %v542 = vld [vmem:[%s266 + $0x580] sm:$0xff]
        %v543 = vld [vmem:[%s266 + $0x588] sm:$0xff]
        %v544 = vld [vmem:[%s266 + $0x590] sm:$0xff]
        %v545 = vld [vmem:[%s266 + $0x598] sm:$0xff]
        %v546 = vld [vmem:[%s266 + $0x5a0] sm:$0xff]
        %v547 = vld [vmem:[%s266 + $0x5a8] sm:$0xff]
        %v548 = vld [vmem:[%s266 + $0x5b0] sm:$0xff]
        %v549 = vld [vmem:[%s266 + $0x5b8] sm:$0xff]
        %v550 = vld [vmem:[%s266 + $0x5c0] sm:$0xff]
        %v551 = vld [vmem:[%s266 + $0x5c8] sm:$0xff]
        %v552 = vld [vmem:[%s266 + $0x5d0] sm:$0xff]
        %v553 = vld [vmem:[%s266 + $0x5d8] sm:$0xff]
        %v554 = vld [vmem:[%s266 + $0x5e0] sm:$0xff]
        %v555 = vld [vmem:[%s266 + $0x5e8] sm:$0xff]
        %v556 = vld [vmem:[%s266 + $0x5f0] sm:$0xff]
        %v557 = vld [vmem:[%s266 + $0x5f8] sm:$0xff]
        %v558 = vld [vmem:[%s266 + $0x600] sm:$0xff]
        %v559 = vld [vmem:[%s266 + $0x608] sm:$0xff]
        %v560 = vld [vmem:[%s266 + $0x610] sm:$0xff]
        %v561 = vld [vmem:[%s266 + $0x618] sm:$0xff]
        %v562 = vld [vmem:[%s266 + $0x620] sm:$0xff]
        %v563 = vld [vmem:[%s266 + $0x628] sm:$0xff]
        %v564 = vld [vmem:[%s266 + $0x630] sm:$0xff]
        %v565 = vld [vmem:[%s266 + $0x638] sm:$0xff]
        %v566 = vld [vmem:[%s266 + $0x640] sm:$0xff]
        %v567 = vld [vmem:[%s266 + $0x648] sm:$0xff]
        %v568 = vld [vmem:[%s266 + $0x650] sm:$0xff]
        %v569 = vld [vmem:[%s266 + $0x658] sm:$0xff]
        %v570 = vld [vmem:[%s266 + $0x660] sm:$0xff]
        %v571 = vld [vmem:[%s266 + $0x668] sm:$0xff]
        %v572 = vld [vmem:[%s266 + $0x670] sm:$0xff]
        %v573 = vld [vmem:[%s266 + $0x678] sm:$0xff]
        %v574 = vld [vmem:[%s266 + $0x680] sm:$0xff]
        %v575 = vld [vmem:[%s266 + $0x688] sm:$0xff]
        %v576 = vld [vmem:[%s266 + $0x690] sm:$0xff]
        %v577 = vld [vmem:[%s266 + $0x698] sm:$0xff]
        %v578 = vld [vmem:[%s266 + $0x6a0] sm:$0xff]
        %v579 = vld [vmem:[%s266 + $0x6a8] sm:$0xff]
        %v580 = vld [vmem:[%s266 + $0x6b0] sm:$0xff]
        %v581 = vld [vmem:[%s266 + $0x6b8] sm:$0xff]
        %v582 = vld [vmem:[%s266 + $0x6c0] sm:$0xff]
        %v583 = vld [vmem:[%s266 + $0x6c8] sm:$0xff]
        %v584 = vld [vmem:[%s266 + $0x6d0] sm:$0xff]
        %v585 = vld [vmem:[%s266 + $0x6d8] sm:$0xff]
        %v586 = vld [vmem:[%s266 + $0x6e0] sm:$0xff]
        %v587 = vld [vmem:[%s266 + $0x6e8] sm:$0xff]
        %v588 = vld [vmem:[%s266 + $0x6f0] sm:$0xff]
        %v589 = vld [vmem:[%s266 + $0x6f8] sm:$0xff]
        %v590 = vld [vmem:[%s266 + $0x700] sm:$0xff]
        %v591 = vld [vmem:[%s266 + $0x708] sm:$0xff]
        %v592 = vld [vmem:[%s266 + $0x710] sm:$0xff]
        %v593 = vld [vmem:[%s266 + $0x718] sm:$0xff]
        %v594 = vld [vmem:[%s266 + $0x720] sm:$0xff]
        %v595 = vld [vmem:[%s266 + $0x728] sm:$0xff]
        %v596 = vld [vmem:[%s266 + $0x730] sm:$0xff]
        %v597 = vld [vmem:[%s266 + $0x738] sm:$0xff]
        %v598 = vld [vmem:[%s266 + $0x740] sm:$0xff]
        %v599 = vld [vmem:[%s266 + $0x748] sm:$0xff]
        %v600 = vld [vmem:[%s266 + $0x750] sm:$0xff]
        %v601 = vld [vmem:[%s266 + $0x758] sm:$0xff]
        %v602 = vld [vmem:[%s266 + $0x760] sm:$0xff]
        %v603 = vld [vmem:[%s266 + $0x768] sm:$0xff]
        %v604 = vld [vmem:[%s266 + $0x770] sm:$0xff]
        %v605 = vld [vmem:[%s266 + $0x778] sm:$0xff]
        %v606 = vld [vmem:[%s266 + $0x780] sm:$0xff]
        %v607 = vld [vmem:[%s266 + $0x788] sm:$0xff]
        %v608 = vld [vmem:[%s266 + $0x790] sm:$0xff]
        %v609 = vld [vmem:[%s266 + $0x798] sm:$0xff]
        %v610 = vld [vmem:[%s266 + $0x7a0] sm:$0xff]
        %v611 = vld [vmem:[%s266 + $0x7a8] sm:$0xff]
        %v612 = vld [vmem:[%s266 + $0x7b0] sm:$0xff]
        %v613 = vld [vmem:[%s266 + $0x7b8] sm:$0xff]
        %v614 = vld [vmem:[%s266 + $0x7c0] sm:$0xff]
        %v615 = vld [vmem:[%s266 + $0x7c8] sm:$0xff]
        %v616 = vld [vmem:[%s266 + $0x7d0] sm:$0xff]
        %v617 = vld [vmem:[%s266 + $0x7d8] sm:$0xff]
        %v618 = vld [vmem:[%s266 + $0x7e0] sm:$0xff]
        %v619 = vld [vmem:[%s266 + $0x7e8] sm:$0xff]
        %v620 = vld [vmem:[%s266 + $0x7f0] sm:$0xff]
        %v621 = vld [vmem:[%s266 + $0x7f8] sm:$0xff]
        %v622 = vld [vmem:[%s266 + $0x800] sm:$0xff]
        %v623 = vld [vmem:[%s266 + $0x808] sm:$0xff]
        %v624 = vld [vmem:[%s266 + $0x810] sm:$0xff]
        %v625 = vld [vmem:[%s266 + $0x818] sm:$0xff]
        %v626 = vld [vmem:[%s266 + $0x820] sm:$0xff]
        %v627 = vld [vmem:[%s266 + $0x828] sm:$0xff]
        %v628 = vld [vmem:[%s266 + $0x830] sm:$0xff]
        %v629 = vld [vmem:[%s266 + $0x838] sm:$0xff]
        %v630 = vld [vmem:[%s266 + $0x840] sm:$0xff]
        %v631 = vld [vmem:[%s266 + $0x848] sm:$0xff]
        %v632 = vld [vmem:[%s266 + $0x850] sm:$0xff]
        %v633 = vld [vmem:[%s266 + $0x858] sm:$0xff]
        %v634 = vld [vmem:[%s266 + $0x860] sm:$0xff]
        %v635 = vld [vmem:[%s266 + $0x868] sm:$0xff]
        %v636 = vld [vmem:[%s266 + $0x870] sm:$0xff]
        %v637 = vld [vmem:[%s266 + $0x878] sm:$0xff]
        %v638 = vld [vmem:[%s266 + $0x880] sm:$0xff]
        %v639 = vld [vmem:[%s266 + $0x888] sm:$0xff]
        %v640 = vld [vmem:[%s266 + $0x890] sm:$0xff]
        %v641 = vld [vmem:[%s266 + $0x898] sm:$0xff]
        %v642 = vld [vmem:[%s266 + $0x8a0] sm:$0xff]
        %v643 = vld [vmem:[%s266 + $0x8a8] sm:$0xff]
        %v644 = vld [vmem:[%s266 + $0x8b0] sm:$0xff]
        %v645 = vld [vmem:[%s266 + $0x8b8] sm:$0xff]
        %v646 = vld [vmem:[%s266 + $0x8c0] sm:$0xff]
        %v647 = vld [vmem:[%s266 + $0x8c8] sm:$0xff]
        %v648 = vld [vmem:[%s266 + $0x8d0] sm:$0xff]
        %v649 = vld [vmem:[%s266 + $0x8d8] sm:$0xff]
        %v650 = vld [vmem:[%s266 + $0x8e0] sm:$0xff]
        %v651 = vld [vmem:[%s266 + $0x8e8] sm:$0xff]
        %v652 = vld [vmem:[%s266 + $0x8f0] sm:$0xff]
        %v653 = vld [vmem:[%s266 + $0x8f8] sm:$0xff]
        %v654 = vld [vmem:[%s266 + $0x900] sm:$0xff]
        %v655 = vld [vmem:[%s266 + $0x908] sm:$0xff]
        %v656 = vld [vmem:[%s266 + $0x910] sm:$0xff]
        %v657 = vld [vmem:[%s266 + $0x918] sm:$0xff]
        %v658 = vld [vmem:[%s266 + $0x920] sm:$0xff]
        %v659 = vld [vmem:[%s266 + $0x928] sm:$0xff]
        %v660 = vld [vmem:[%s266 + $0x930] sm:$0xff]
        %v661 = vld [vmem:[%s266 + $0x938] sm:$0xff]
        %v662 = vld [vmem:[%s266 + $0x940] sm:$0xff]
        %v663 = vld [vmem:[%s266 + $0x948] sm:$0xff]
        %v664 = vld [vmem:[%s266 + $0x950] sm:$0xff]
        %v665 = vld [vmem:[%s266 + $0x958] sm:$0xff]
        %v666 = vld [vmem:[%s266 + $0x960] sm:$0xff]
        %v667 = vld [vmem:[%s266 + $0x968] sm:$0xff]
        %v668 = vld [vmem:[%s266 + $0x970] sm:$0xff]
        %v669 = vld [vmem:[%s266 + $0x978] sm:$0xff]
        %v670 = vld [vmem:[%s266 + $0x980] sm:$0xff]
        %v671 = vld [vmem:[%s266 + $0x988] sm:$0xff]
        %v672 = vld [vmem:[%s266 + $0x990] sm:$0xff]
        %v673 = vld [vmem:[%s266 + $0x998] sm:$0xff]
        %v674 = vld [vmem:[%s266 + $0x9a0] sm:$0xff]
        %v675 = vld [vmem:[%s266 + $0x9a8] sm:$0xff]
        %v676 = vld [vmem:[%s266 + $0x9b0] sm:$0xff]
        %v677 = vld [vmem:[%s266 + $0x9b8] sm:$0xff]
        %v678 = vld [vmem:[%s266 + $0x9c0] sm:$0xff]
        %v679 = vld [vmem:[%s266 + $0x9c8] sm:$0xff]
        %v680 = vld [vmem:[%s266 + $0x9d0] sm:$0xff]
        %v681 = vld [vmem:[%s266 + $0x9d8] sm:$0xff]
        %v682 = vld [vmem:[%s266 + $0x9e0] sm:$0xff]
        %v683 = vld [vmem:[%s266 + $0x9e8] sm:$0xff]
        %v684 = vld [vmem:[%s266 + $0x9f0] sm:$0xff]
        %v685 = vld [vmem:[%s266 + $0x9f8] sm:$0xff]
        %v686 = vld [vmem:[%s266 + $0xa00] sm:$0xff]
        %v687 = vld [vmem:[%s266 + $0xa08] sm:$0xff]
        %v688 = vld [vmem:[%s266 + $0xa10] sm:$0xff]
        %v689 = vld [vmem:[%s266 + $0xa18] sm:$0xff]
        %v690 = vld [vmem:[%s266 + $0xa20] sm:$0xff]
        %v691 = vld [vmem:[%s266 + $0xa28] sm:$0xff]
        %v692 = vld [vmem:[%s266 + $0xa30] sm:$0xff]
        %v693 = vld [vmem:[%s266 + $0xa38] sm:$0xff]
        %v694 = vld [vmem:[%s266 + $0xa40] sm:$0xff]
        %v695 = vld [vmem:[%s266 + $0xa48] sm:$0xff]
        %v696 = vld [vmem:[%s266 + $0xa50] sm:$0xff]
        %v697 = vld [vmem:[%s266 + $0xa58] sm:$0xff]
        %v698 = vld [vmem:[%s266 + $0xa60] sm:$0xff]
        %v699 = vld [vmem:[%s266 + $0xa68] sm:$0xff]
        %v700 = vld [vmem:[%s266 + $0xa70] sm:$0xff]
        %v701 = vld [vmem:[%s266 + $0xa78] sm:$0xff]
        %v702 = vld [vmem:[%s266 + $0xa80] sm:$0xff]
        %v703 = vld [vmem:[%s266 + $0xa88] sm:$0xff]
        %v704 = vld [vmem:[%s266 + $0xa90] sm:$0xff]
        %v705 = vld [vmem:[%s266 + $0xa98] sm:$0xff]
        %v706 = vld [vmem:[%s266 + $0xaa0] sm:$0xff]
        %v707 = vld [vmem:[%s266 + $0xaa8] sm:$0xff]
        %v708 = vld [vmem:[%s266 + $0xab0] sm:$0xff]
        %v709 = vld [vmem:[%s266 + $0xab8] sm:$0xff]
        %v710 = vld [vmem:[%s266 + $0xac0] sm:$0xff]
        %v711 = vld [vmem:[%s266 + $0xac8] sm:$0xff]
        %v712 = vld [vmem:[%s266 + $0xad0] sm:$0xff]
        %v713 = vld [vmem:[%s266 + $0xad8] sm:$0xff]
        %v714 = vld [vmem:[%s266 + $0xae0] sm:$0xff]
        %v715 = vld [vmem:[%s266 + $0xae8] sm:$0xff]
        %v716 = vld [vmem:[%s266 + $0xaf0] sm:$0xff]
        %v717 = vld [vmem:[%s266 + $0xaf8] sm:$0xff]
        %v718 = vld [vmem:[%s266 + $0xb00] sm:$0xff]
        %v719 = vld [vmem:[%s266 + $0xb08] sm:$0xff]
        %v720 = vld [vmem:[%s266 + $0xb10] sm:$0xff]
        %v721 = vld [vmem:[%s266 + $0xb18] sm:$0xff]
        %v722 = vld [vmem:[%s266 + $0xb20] sm:$0xff]
        %v723 = vld [vmem:[%s266 + $0xb28] sm:$0xff]
        %v724 = vld [vmem:[%s266 + $0xb30] sm:$0xff]
        %v725 = vld [vmem:[%s266 + $0xb38] sm:$0xff]
        %v726 = vld [vmem:[%s266 + $0xb40] sm:$0xff]
        %v727 = vld [vmem:[%s266 + $0xb48] sm:$0xff]
        %v728 = vld [vmem:[%s266 + $0xb50] sm:$0xff]
        %v729 = vld [vmem:[%s266 + $0xb58] sm:$0xff]
        %v730 = vld [vmem:[%s266 + $0xb60] sm:$0xff]
        %v731 = vld [vmem:[%s266 + $0xb68] sm:$0xff]
        %v732 = vld [vmem:[%s266 + $0xb70] sm:$0xff]
        %v733 = vld [vmem:[%s266 + $0xb78] sm:$0xff]
        %v734 = vld [vmem:[%s266 + $0xb80] sm:$0xff]
        %v735 = vld [vmem:[%s266 + $0xb88] sm:$0xff]
        %v736 = vld [vmem:[%s266 + $0xb90] sm:$0xff]
        %v737 = vld [vmem:[%s266 + $0xb98] sm:$0xff]
        %v738 = vld [vmem:[%s266 + $0xba0] sm:$0xff]
        %v739 = vld [vmem:[%s266 + $0xba8] sm:$0xff]
        %v740 = vld [vmem:[%s266 + $0xbb0] sm:$0xff]
        %v741 = vld [vmem:[%s266 + $0xbb8] sm:$0xff]
        %v742 = vld [vmem:[%s266 + $0xbc0] sm:$0xff]
        %v743 = vld [vmem:[%s266 + $0xbc8] sm:$0xff]
        %v744 = vld [vmem:[%s266 + $0xbd0] sm:$0xff]
        %v745 = vld [vmem:[%s266 + $0xbd8] sm:$0xff]
        %v746 = vld [vmem:[%s266 + $0xbe0] sm:$0xff]
        %v747 = vld [vmem:[%s266 + $0xbe8] sm:$0xff]
        %v748 = vld [vmem:[%s266 + $0xbf0] sm:$0xff]
        %v749 = vld [vmem:[%s266 + $0xbf8] sm:$0xff]
        %v750 = vld [vmem:[%s266 + $0xc00] sm:$0xff]
        %v751 = vld [vmem:[%s266 + $0xc08] sm:$0xff]
        %v752 = vld [vmem:[%s266 + $0xc10] sm:$0xff]
        %v753 = vld [vmem:[%s266 + $0xc18] sm:$0xff]
        %v754 = vld [vmem:[%s266 + $0xc20] sm:$0xff]
        %v755 = vld [vmem:[%s266 + $0xc28] sm:$0xff]
        %v756 = vld [vmem:[%s266 + $0xc30] sm:$0xff]
        %v757 = vld [vmem:[%s266 + $0xc38] sm:$0xff]
        %v758 = vld [vmem:[%s266 + $0xc40] sm:$0xff]
        %v759 = vld [vmem:[%s266 + $0xc48] sm:$0xff]
        %v760 = vld [vmem:[%s266 + $0xc50] sm:$0xff]
        %v761 = vld [vmem:[%s266 + $0xc58] sm:$0xff]
        %v762 = vld [vmem:[%s266 + $0xc60] sm:$0xff]
        %v763 = vld [vmem:[%s266 + $0xc68] sm:$0xff]
        %v764 = vld [vmem:[%s266 + $0xc70] sm:$0xff]
        %v765 = vld [vmem:[%s266 + $0xc78] sm:$0xff]
        %v766 = vld [vmem:[%s266 + $0xc80] sm:$0xff]
        %v767 = vld [vmem:[%s266 + $0xc88] sm:$0xff]
        %v768 = vld [vmem:[%s266 + $0xc90] sm:$0xff]
        %v769 = vld [vmem:[%s266 + $0xc98] sm:$0xff]
        %v770 = vld [vmem:[%s266 + $0xca0] sm:$0xff]
        %v771 = vld [vmem:[%s266 + $0xca8] sm:$0xff]
        %v772 = vld [vmem:[%s266 + $0xcb0] sm:$0xff]
        %v773 = vld [vmem:[%s266 + $0xcb8] sm:$0xff]
        %v774 = vld [vmem:[%s266 + $0xcc0] sm:$0xff]
        %v775 = vld [vmem:[%s266 + $0xcc8] sm:$0xff]
        %v776 = vld [vmem:[%s266 + $0xcd0] sm:$0xff]
        %v777 = vld [vmem:[%s266 + $0xcd8] sm:$0xff]
        %v778 = vld [vmem:[%s266 + $0xce0] sm:$0xff]
        %v779 = vld [vmem:[%s266 + $0xce8] sm:$0xff]
        %v780 = vld [vmem:[%s266 + $0xcf0] sm:$0xff]
        %v781 = vld [vmem:[%s266 + $0xcf8] sm:$0xff]
        %v782 = vld [vmem:[%s266 + $0xd00] sm:$0xff]
        %v783 = vld [vmem:[%s266 + $0xd08] sm:$0xff]
        %v784 = vld [vmem:[%s266 + $0xd10] sm:$0xff]
        %v785 = vld [vmem:[%s266 + $0xd18] sm:$0xff]
        %v786 = vld [vmem:[%s266 + $0xd20] sm:$0xff]
        %v787 = vld [vmem:[%s266 + $0xd28] sm:$0xff]
        %v788 = vld [vmem:[%s266 + $0xd30] sm:$0xff]
        %v789 = vld [vmem:[%s266 + $0xd38] sm:$0xff]
        %v790 = vld [vmem:[%s266 + $0xd40] sm:$0xff]
        %v791 = vld [vmem:[%s266 + $0xd48] sm:$0xff]
        %v792 = vld [vmem:[%s266 + $0xd50] sm:$0xff]
        %v793 = vld [vmem:[%s266 + $0xd58] sm:$0xff]
        %v794 = vld [vmem:[%s266 + $0xd60] sm:$0xff]
        %v795 = vld [vmem:[%s266 + $0xd68] sm:$0xff]
        %v796 = vld [vmem:[%s266 + $0xd70] sm:$0xff]
        %v797 = vld [vmem:[%s266 + $0xd78] sm:$0xff]
        %v798 = vld [vmem:[%s266 + $0xd80] sm:$0xff]
        %v799 = vld [vmem:[%s266 + $0xd88] sm:$0xff]
        %v800 = vld [vmem:[%s266 + $0xd90] sm:$0xff]
        %v801 = vld [vmem:[%s266 + $0xd98] sm:$0xff]
        %v802 = vld [vmem:[%s266 + $0xda0] sm:$0xff]
        %v803 = vld [vmem:[%s266 + $0xda8] sm:$0xff]
        %v804 = vld [vmem:[%s266 + $0xdb0] sm:$0xff]
        %v805 = vld [vmem:[%s266 + $0xdb8] sm:$0xff]
        %v806 = vld [vmem:[%s266 + $0xdc0] sm:$0xff]
        %v807 = vld [vmem:[%s266 + $0xdc8] sm:$0xff]
        %v808 = vld [vmem:[%s266 + $0xdd0] sm:$0xff]
        %v809 = vld [vmem:[%s266 + $0xdd8] sm:$0xff]
        %v810 = vld [vmem:[%s266 + $0xde0] sm:$0xff]
        %v811 = vld [vmem:[%s266 + $0xde8] sm:$0xff]
        %v812 = vld [vmem:[%s266 + $0xdf0] sm:$0xff]
        %v813 = vld [vmem:[%s266 + $0xdf8] sm:$0xff]
        %v814 = vld [vmem:[%s266 + $0xe00] sm:$0xff]
        %v815 = vld [vmem:[%s266 + $0xe08] sm:$0xff]
        %v816 = vld [vmem:[%s266 + $0xe10] sm:$0xff]
        %v817 = vld [vmem:[%s266 + $0xe18] sm:$0xff]
        %v818 = vld [vmem:[%s266 + $0xe20] sm:$0xff]
        %v819 = vld [vmem:[%s266 + $0xe28] sm:$0xff]
        %v820 = vld [vmem:[%s266 + $0xe30] sm:$0xff]
        %v821 = vld [vmem:[%s266 + $0xe38] sm:$0xff]
        %v822 = vld [vmem:[%s266 + $0xe40] sm:$0xff]
        %v823 = vld [vmem:[%s266 + $0xe48] sm:$0xff]
        %v824 = vld [vmem:[%s266 + $0xe50] sm:$0xff]
        %v825 = vld [vmem:[%s266 + $0xe58] sm:$0xff]
        %v826 = vld [vmem:[%s266 + $0xe60] sm:$0xff]
        %v827 = vld [vmem:[%s266 + $0xe68] sm:$0xff]
        %v828 = vld [vmem:[%s266 + $0xe70] sm:$0xff]
        %v829 = vld [vmem:[%s266 + $0xe78] sm:$0xff]
        %v830 = vld [vmem:[%s266 + $0xe80] sm:$0xff]
        %v831 = vld [vmem:[%s266 + $0xe88] sm:$0xff]
        %v832 = vld [vmem:[%s266 + $0xe90] sm:$0xff]
        %v833 = vld [vmem:[%s266 + $0xe98] sm:$0xff]
        %v834 = vld [vmem:[%s266 + $0xea0] sm:$0xff]
        %v835 = vld [vmem:[%s266 + $0xea8] sm:$0xff]
        %v836 = vld [vmem:[%s266 + $0xeb0] sm:$0xff]
        %v837 = vld [vmem:[%s266 + $0xeb8] sm:$0xff]
        %v838 = vld [vmem:[%s266 + $0xec0] sm:$0xff]
        %v839 = vld [vmem:[%s266 + $0xec8] sm:$0xff]
        %v840 = vld [vmem:[%s266 + $0xed0] sm:$0xff]
        %v841 = vld [vmem:[%s266 + $0xed8] sm:$0xff]
        %v842 = vld [vmem:[%s266 + $0xee0] sm:$0xff]
        %v843 = vld [vmem:[%s266 + $0xee8] sm:$0xff]
        %v844 = vld [vmem:[%s266 + $0xef0] sm:$0xff]
        %v845 = vld [vmem:[%s266 + $0xef8] sm:$0xff]
        %v846 = vld [vmem:[%s266 + $0xf00] sm:$0xff]
        %v847 = vld [vmem:[%s266 + $0xf08] sm:$0xff]
        %v848 = vld [vmem:[%s266 + $0xf10] sm:$0xff]
        %v849 = vld [vmem:[%s266 + $0xf18] sm:$0xff]
        %v850 = vld [vmem:[%s266 + $0xf20] sm:$0xff]
        %v851 = vld [vmem:[%s266 + $0xf28] sm:$0xff]
        %v852 = vld [vmem:[%s266 + $0xf30] sm:$0xff]
        %v853 = vld [vmem:[%s266 + $0xf38] sm:$0xff]
        %v854 = vld [vmem:[%s266 + $0xf40] sm:$0xff]
        %v855 = vld [vmem:[%s266 + $0xf48] sm:$0xff]
        %v856 = vld [vmem:[%s266 + $0xf50] sm:$0xff]
        %v857 = vld [vmem:[%s266 + $0xf58] sm:$0xff]
        %v858 = vld [vmem:[%s266 + $0xf60] sm:$0xff]
        %v859 = vld [vmem:[%s266 + $0xf68] sm:$0xff]
        %v860 = vld [vmem:[%s266 + $0xf70] sm:$0xff]
        %v861 = vld [vmem:[%s266 + $0xf78] sm:$0xff]
        %v862 = vld [vmem:[%s266 + $0xf80] sm:$0xff]
        %v863 = vld [vmem:[%s266 + $0xf88] sm:$0xff]
        %v864 = vld [vmem:[%s266 + $0xf90] sm:$0xff]
        %v865 = vld [vmem:[%s266 + $0xf98] sm:$0xff]
        %v866 = vld [vmem:[%s266 + $0xfa0] sm:$0xff]
        %v867 = vld [vmem:[%s266 + $0xfa8] sm:$0xff]
        %v868 = vld [vmem:[%s266 + $0xfb0] sm:$0xff]
        %v869 = vld [vmem:[%s266 + $0xfb8] sm:$0xff]
        %v870 = vld [vmem:[%s266 + $0xfc0] sm:$0xff]
        %v871 = vld [vmem:[%s266 + $0xfc8] sm:$0xff]
        %v872 = vld [vmem:[%s266 + $0xfd0] sm:$0xff]
        %v873 = vld [vmem:[%s266 + $0xfd8] sm:$0xff]
        %v874 = vld [vmem:[%s266 + $0xfe0] sm:$0xff]
        %v875 = vld [vmem:[%s266 + $0xfe8] sm:$0xff]
        %v876 = vld [vmem:[%s266 + $0xff0] sm:$0xff]
        %v877 = vld [vmem:[%s266 + $0xff8] sm:$0xff]
        %v878 = vld [vmem:[%s266 + $0x1000] sm:$0xff]
        %v879 = vld [vmem:[%s266 + $0x1008] sm:$0xff]
        %v880 = vld [vmem:[%s266 + $0x1010] sm:$0xff]
        %v881 = vld [vmem:[%s266 + $0x1018] sm:$0xff]
        %v882 = vld [vmem:[%s266 + $0x1020] sm:$0xff]
        %v883 = vld [vmem:[%s266 + $0x1028] sm:$0xff]
        %v884 = vld [vmem:[%s266 + $0x1030] sm:$0xff]
        %v885 = vld [vmem:[%s266 + $0x1038] sm:$0xff]
        %v886 = vld [vmem:[%s266 + $0x1040] sm:$0xff]
        %v887 = vld [vmem:[%s266 + $0x1048] sm:$0xff]
        %v888 = vld [vmem:[%s266 + $0x1050] sm:$0xff]
        %v889 = vld [vmem:[%s266 + $0x1058] sm:$0xff]
        %v890 = vld [vmem:[%s266 + $0x1060] sm:$0xff]
        %v891 = vld [vmem:[%s266 + $0x1068] sm:$0xff]
        %v892 = vld [vmem:[%s266 + $0x1070] sm:$0xff]
        %v893 = vld [vmem:[%s266 + $0x1078] sm:$0xff]
        %v894 = vld [vmem:[%s266 + $0x1080] sm:$0xff]
        %v895 = vld [vmem:[%s266 + $0x1088] sm:$0xff]
        %v896 = vld [vmem:[%s266 + $0x1090] sm:$0xff]
        %v897 = vld [vmem:[%s266 + $0x1098] sm:$0xff]
        %v898 = vld [vmem:[%s266 + $0x10a0] sm:$0xff]
        %v899 = vld [vmem:[%s266 + $0x10a8] sm:$0xff]
        %v900 = vld [vmem:[%s266 + $0x10b0] sm:$0xff]
        %v901 = vld [vmem:[%s266 + $0x10b8] sm:$0xff]
        %v902 = vld [vmem:[%s266 + $0x10c0] sm:$0xff]
        %v903 = vld [vmem:[%s266 + $0x10c8] sm:$0xff]
        %v904 = vld [vmem:[%s266 + $0x10d0] sm:$0xff]
        %v905 = vld [vmem:[%s266 + $0x10d8] sm:$0xff]
        %v906 = vld [vmem:[%s266 + $0x10e0] sm:$0xff]
        %v907 = vld [vmem:[%s266 + $0x10e8] sm:$0xff]
        %v908 = vld [vmem:[%s266 + $0x10f0] sm:$0xff]
        %v909 = vld [vmem:[%s266 + $0x10f8] sm:$0xff]
        %v910 = vld [vmem:[%s266 + $0x1100] sm:$0xff]
        %v911 = vld [vmem:[%s266 + $0x1108] sm:$0xff]
        %v912 = vld [vmem:[%s266 + $0x1110] sm:$0xff]
        %v913 = vld [vmem:[%s266 + $0x1118] sm:$0xff]
        %v914 = vld [vmem:[%s266 + $0x1120] sm:$0xff]
        %v915 = vld [vmem:[%s266 + $0x1128] sm:$0xff]
        %v916 = vld [vmem:[%s266 + $0x1130] sm:$0xff]
        %v917 = vld [vmem:[%s266 + $0x1138] sm:$0xff]
        %v918 = vld [vmem:[%s266 + $0x1140] sm:$0xff]
        %v919 = vld [vmem:[%s266 + $0x1148] sm:$0xff]
        %v920 = vld [vmem:[%s266 + $0x1150] sm:$0xff]
        %v921 = vld [vmem:[%s266 + $0x1158] sm:$0xff]
        %v922 = vld [vmem:[%s266 + $0x1160] sm:$0xff]
        %v923 = vld [vmem:[%s266 + $0x1168] sm:$0xff]
        %v924 = vld [vmem:[%s266 + $0x1170] sm:$0xff]
        %v925 = vld [vmem:[%s266 + $0x1178] sm:$0xff]
        %v926 = vld [vmem:[%s266 + $0x1180] sm:$0xff]
        %v927 = vld [vmem:[%s266 + $0x1188] sm:$0xff]
        %v928 = vld [vmem:[%s266 + $0x1190] sm:$0xff]
        %v929 = vld [vmem:[%s266 + $0x1198] sm:$0xff]
        %v930 = vld [vmem:[%s266 + $0x11a0] sm:$0xff]
        %v931 = vld [vmem:[%s266 + $0x11a8] sm:$0xff]
        %v932 = vld [vmem:[%s266 + $0x11b0] sm:$0xff]
        %v933 = vld [vmem:[%s266 + $0x11b8] sm:$0xff]
        %v934 = vld [vmem:[%s266 + $0x11c0] sm:$0xff]
        %v935 = vld [vmem:[%s266 + $0x11c8] sm:$0xff]
        %v936 = vld [vmem:[%s266 + $0x11d0] sm:$0xff]
        %v937 = vld [vmem:[%s266 + $0x11d8] sm:$0xff]
        %v938 = vld [vmem:[%s266 + $0x11e0] sm:$0xff]
        %v939 = vld [vmem:[%s266 + $0x11e8] sm:$0xff]
        %v940 = vld [vmem:[%s266 + $0x11f0] sm:$0xff]
        %v941 = vld [vmem:[%s266 + $0x11f8] sm:$0xff]
        %v942 = vld [vmem:[%s266 + $0x1200] sm:$0xff]
        %v943 = vld [vmem:[%s266 + $0x1208] sm:$0xff]
        %v944 = vld [vmem:[%s266 + $0x1210] sm:$0xff]
        %v945 = vld [vmem:[%s266 + $0x1218] sm:$0xff]
        %v946 = vld [vmem:[%s266 + $0x1220] sm:$0xff]
        %v947 = vld [vmem:[%s266 + $0x1228] sm:$0xff]
        %v948 = vld [vmem:[%s266 + $0x1230] sm:$0xff]
        %v949 = vld [vmem:[%s266 + $0x1238] sm:$0xff]
        %v950 = vld [vmem:[%s266 + $0x1240] sm:$0xff]
        %v951 = vld [vmem:[%s266 + $0x1248] sm:$0xff]
        %v952 = vld [vmem:[%s266 + $0x1250] sm:$0xff]
        %v953 = vld [vmem:[%s266 + $0x1258] sm:$0xff]
        %v954 = vld [vmem:[%s266 + $0x1260] sm:$0xff]
        %v955 = vld [vmem:[%s266 + $0x1268] sm:$0xff]
        %v956 = vld [vmem:[%s266 + $0x1270] sm:$0xff]
        %v957 = vld [vmem:[%s266 + $0x1278] sm:$0xff]
        %v958 = vld [vmem:[%s266 + $0x1280] sm:$0xff]
        %v959 = vld [vmem:[%s266 + $0x1288] sm:$0xff]
        %v960 = vld [vmem:[%s266 + $0x1290] sm:$0xff]
        %v961 = vld [vmem:[%s266 + $0x1298] sm:$0xff]
        %v962 = vld [vmem:[%s266 + $0x12a0] sm:$0xff]
        %v963 = vld [vmem:[%s266 + $0x12a8] sm:$0xff]
        %v964 = vld [vmem:[%s266 + $0x12b0] sm:$0xff]
        %v965 = vld [vmem:[%s266 + $0x12b8] sm:$0xff]
        %v966 = vld [vmem:[%s266 + $0x12c0] sm:$0xff]
        %v967 = vld [vmem:[%s266 + $0x12c8] sm:$0xff]
        %v968 = vld [vmem:[%s266 + $0x12d0] sm:$0xff]
        %v969 = vld [vmem:[%s266 + $0x12d8] sm:$0xff]
        %v970 = vld [vmem:[%s266 + $0x12e0] sm:$0xff]
        %v971 = vld [vmem:[%s266 + $0x12e8] sm:$0xff]
        %v972 = vld [vmem:[%s266 + $0x12f0] sm:$0xff]
        %v973 = vld [vmem:[%s266 + $0x12f8] sm:$0xff]
        %v974 = vld [vmem:[%s266 + $0x1300] sm:$0xff]
        %v975 = vld [vmem:[%s266 + $0x1308] sm:$0xff]
        %v976 = vld [vmem:[%s266 + $0x1310] sm:$0xff]
        %v977 = vld [vmem:[%s266 + $0x1318] sm:$0xff]
        %v978 = vld [vmem:[%s266 + $0x1320] sm:$0xff]
        %v979 = vld [vmem:[%s266 + $0x1328] sm:$0xff]
        %v980 = vld [vmem:[%s266 + $0x1330] sm:$0xff]
        %v981 = vld [vmem:[%s266 + $0x1338] sm:$0xff]
        %v982 = vld [vmem:[%s266 + $0x1340] sm:$0xff]
        %v983 = vld [vmem:[%s266 + $0x1348] sm:$0xff]
        %v984 = vld [vmem:[%s266 + $0x1350] sm:$0xff]
        %v985 = vld [vmem:[%s266 + $0x1358] sm:$0xff]
        %v986 = vld [vmem:[%s266 + $0x1360] sm:$0xff]
        %v987 = vld [vmem:[%s266 + $0x1368] sm:$0xff]
        %v988 = vld [vmem:[%s266 + $0x1370] sm:$0xff]
        %v989 = vld [vmem:[%s266 + $0x1378] sm:$0xff]
        %v990 = vld [vmem:[%s266 + $0x1380] sm:$0xff]
        %v991 = vld [vmem:[%s266 + $0x1388] sm:$0xff]
        %v992 = vld [vmem:[%s266 + $0x1390] sm:$0xff]
        %v993 = vld [vmem:[%s266 + $0x1398] sm:$0xff]
        %v994 = vld [vmem:[%s266 + $0x13a0] sm:$0xff]
        %v995 = vld [vmem:[%s266 + $0x13a8] sm:$0xff]
        %v996 = vld [vmem:[%s266 + $0x13b0] sm:$0xff]
        %v997 = vld [vmem:[%s266 + $0x13b8] sm:$0xff]
        %v998 = vld [vmem:[%s266 + $0x13c0] sm:$0xff]
        %v999 = vld [vmem:[%s266 + $0x13c8] sm:$0xff]
        %v1000 = vld [vmem:[%s266 + $0x13d0] sm:$0xff]
        %v1001 = vld [vmem:[%s266 + $0x13d8] sm:$0xff]
        %v1002 = vld [vmem:[%s266 + $0x13e0] sm:$0xff]
        %v1003 = vld [vmem:[%s266 + $0x13e8] sm:$0xff]
        %v1004 = vld [vmem:[%s266 + $0x13f0] sm:$0xff]
        %v1005 = vld [vmem:[%s266 + $0x13f8] sm:$0xff]
        %v1006 = vld [vmem:[%s266 + $0x1400] sm:$0xff]
        %v1007 = vld [vmem:[%s266 + $0x1408] sm:$0xff]
        %v1008 = vld [vmem:[%s266 + $0x1410] sm:$0xff]
        %v1009 = vld [vmem:[%s266 + $0x1418] sm:$0xff]
        %v1010 = vld [vmem:[%s266 + $0x1420] sm:$0xff]
        %v1011 = vld [vmem:[%s266 + $0x1428] sm:$0xff]
        %v1012 = vld [vmem:[%s266 + $0x1430] sm:$0xff]
        %v1013 = vld [vmem:[%s266 + $0x1438] sm:$0xff]
        %v1014 = vld [vmem:[%s266 + $0x1440] sm:$0xff]
        %v1015 = vld [vmem:[%s266 + $0x1448] sm:$0xff]
        %v1016 = vld [vmem:[%s266 + $0x1450] sm:$0xff]
        %v1017 = vld [vmem:[%s266 + $0x1458] sm:$0xff]
        %v1018 = vld [vmem:[%s266 + $0x1460] sm:$0xff]
        %v1019 = vld [vmem:[%s266 + $0x1468] sm:$0xff]
        %v1020 = vld [vmem:[%s266 + $0x1470] sm:$0xff]
        %v1021 = vld [vmem:[%s266 + $0x1478] sm:$0xff]
        %v1022 = vld [vmem:[%s266 + $0x1480] sm:$0xff]
        %v1023 = vld [vmem:[%s266 + $0x1488] sm:$0xff]
        %v1024 = vld [vmem:[%s266 + $0x1490] sm:$0xff]
        %v1025 = vld [vmem:[%s266 + $0x1498] sm:$0xff]
        %v1026 = vld [vmem:[%s266 + $0x14a0] sm:$0xff]
        %v1027 = vld [vmem:[%s266 + $0x14a8] sm:$0xff]
        %v1028 = vld [vmem:[%s266 + $0x14b0] sm:$0xff]
        %v1029 = vld [vmem:[%s266 + $0x14b8] sm:$0xff]
        %v1030 = vld [vmem:[%s266 + $0x14c0] sm:$0xff]
        %v1031 = vld [vmem:[%s266 + $0x14c8] sm:$0xff]
        %v1032 = vld [vmem:[%s266 + $0x14d0] sm:$0xff]
        %v1033 = vld [vmem:[%s266 + $0x14d8] sm:$0xff]
        %v1034 = vld [vmem:[%s266 + $0x14e0] sm:$0xff]
        %v1035 = vld [vmem:[%s266 + $0x14e8] sm:$0xff]
        %v1036 = vld [vmem:[%s266 + $0x14f0] sm:$0xff]
        %v1037 = vld [vmem:[%s266 + $0x14f8] sm:$0xff]
        %v1038 = vld [vmem:[%s266 + $0x1500] sm:$0xff]
        %v1039 = vld [vmem:[%s266 + $0x1508] sm:$0xff]
        %v1040 = vld [vmem:[%s266 + $0x1510] sm:$0xff]
        %v1041 = vld [vmem:[%s266 + $0x1518] sm:$0xff]
        %v1042 = vld [vmem:[%s266 + $0x1520] sm:$0xff]
        %v1043 = vld [vmem:[%s266 + $0x1528] sm:$0xff]
        %v1044 = vld [vmem:[%s266 + $0x1530] sm:$0xff]
        %v1045 = vld [vmem:[%s266 + $0x1538] sm:$0xff]
        %v1046 = vld [vmem:[%s266 + $0x1540] sm:$0xff]
        %v1047 = vld [vmem:[%s266 + $0x1548] sm:$0xff]
        %v1048 = vld [vmem:[%s266 + $0x1550] sm:$0xff]
        %v1049 = vld [vmem:[%s266 + $0x1558] sm:$0xff]
        %v1050 = vld [vmem:[%s266 + $0x1560] sm:$0xff]
        %v1051 = vld [vmem:[%s266 + $0x1568] sm:$0xff]
        %v1052 = vld [vmem:[%s266 + $0x1570] sm:$0xff]
        %v1053 = vld [vmem:[%s266 + $0x1578] sm:$0xff]
        %v1054 = vld [vmem:[%s266 + $0x1580] sm:$0xff]
        %v1055 = vld [vmem:[%s266 + $0x1588] sm:$0xff]
        %v1056 = vld [vmem:[%s266 + $0x1590] sm:$0xff]
        %v1057 = vld [vmem:[%s266 + $0x1598] sm:$0xff]
        %v1058 = vld [vmem:[%s266 + $0x15a0] sm:$0xff]
        %v1059 = vld [vmem:[%s266 + $0x15a8] sm:$0xff]
        %v1060 = vld [vmem:[%s266 + $0x15b0] sm:$0xff]
        %v1061 = vld [vmem:[%s266 + $0x15b8] sm:$0xff]
        %v1062 = vld [vmem:[%s266 + $0x15c0] sm:$0xff]
        %v1063 = vld [vmem:[%s266 + $0x15c8] sm:$0xff]
        %v1064 = vld [vmem:[%s266 + $0x15d0] sm:$0xff]
        %v1065 = vld [vmem:[%s266 + $0x15d8] sm:$0xff]
        %v1066 = vld [vmem:[%s266 + $0x15e0] sm:$0xff]
        %v1067 = vld [vmem:[%s266 + $0x15e8] sm:$0xff]
        %v1068 = vld [vmem:[%s266 + $0x15f0] sm:$0xff]
        %v1069 = vld [vmem:[%s266 + $0x15f8] sm:$0xff]
        %v1070 = vld [vmem:[%s266 + $0x1600] sm:$0xff]
        %v1071 = vld [vmem:[%s266 + $0x1608] sm:$0xff]
        %v1072 = vld [vmem:[%s266 + $0x1610] sm:$0xff]
        %v1073 = vld [vmem:[%s266 + $0x1618] sm:$0xff]
        %v1074 = vld [vmem:[%s266 + $0x1620] sm:$0xff]
        %v1075 = vld [vmem:[%s266 + $0x1628] sm:$0xff]
        %v1076 = vld [vmem:[%s266 + $0x1630] sm:$0xff]
        %v1077 = vld [vmem:[%s266 + $0x1638] sm:$0xff]
        %v1078 = vld [vmem:[%s266 + $0x1640] sm:$0xff]
        %v1079 = vld [vmem:[%s266 + $0x1648] sm:$0xff]
        %v1080 = vld [vmem:[%s266 + $0x1650] sm:$0xff]
        %v1081 = vld [vmem:[%s266 + $0x1658] sm:$0xff]
        %v1082 = vld [vmem:[%s266 + $0x1660] sm:$0xff]
        %v1083 = vld [vmem:[%s266 + $0x1668] sm:$0xff]
        %v1084 = vld [vmem:[%s266 + $0x1670] sm:$0xff]
        %v1085 = vld [vmem:[%s266 + $0x1678] sm:$0xff]
        %v1086 = vld [vmem:[%s266 + $0x1680] sm:$0xff]
        %v1087 = vld [vmem:[%s266 + $0x1688] sm:$0xff]
        %v1088 = vld [vmem:[%s266 + $0x1690] sm:$0xff]
        %v1089 = vld [vmem:[%s266 + $0x1698] sm:$0xff]
        %v1090 = vld [vmem:[%s266 + $0x16a0] sm:$0xff]
        %v1091 = vld [vmem:[%s266 + $0x16a8] sm:$0xff]
        %v1092 = vld [vmem:[%s266 + $0x16b0] sm:$0xff]
        %v1093 = vld [vmem:[%s266 + $0x16b8] sm:$0xff]
        %v1094 = vld [vmem:[%s266 + $0x16c0] sm:$0xff]
        %v1095 = vld [vmem:[%s266 + $0x16c8] sm:$0xff]
        %v1096 = vld [vmem:[%s266 + $0x16d0] sm:$0xff]
        %v1097 = vld [vmem:[%s266 + $0x16d8] sm:$0xff]
        %v1098 = vld [vmem:[%s266 + $0x16e0] sm:$0xff]
        %v1099 = vld [vmem:[%s266 + $0x16e8] sm:$0xff]
        %v1100 = vld [vmem:[%s266 + $0x16f0] sm:$0xff]
        %v1101 = vld [vmem:[%s266 + $0x16f8] sm:$0xff]
        %v1102 = vld [vmem:[%s266 + $0x1700] sm:$0xff]
        %v1103 = vld [vmem:[%s266 + $0x1708] sm:$0xff]
        %v1104 = vld [vmem:[%s266 + $0x1710] sm:$0xff]
        %v1105 = vld [vmem:[%s266 + $0x1718] sm:$0xff]
        %v1106 = vld [vmem:[%s266 + $0x1720] sm:$0xff]
        %v1107 = vld [vmem:[%s266 + $0x1728] sm:$0xff]
        %v1108 = vld [vmem:[%s266 + $0x1730] sm:$0xff]
        %v1109 = vld [vmem:[%s266 + $0x1738] sm:$0xff]
        %v1110 = vld [vmem:[%s266 + $0x1740] sm:$0xff]
        %v1111 = vld [vmem:[%s266 + $0x1748] sm:$0xff]
        %v1112 = vld [vmem:[%s266 + $0x1750] sm:$0xff]
        %v1113 = vld [vmem:[%s266 + $0x1758] sm:$0xff]
        %v1114 = vld [vmem:[%s266 + $0x1760] sm:$0xff]
        %v1115 = vld [vmem:[%s266 + $0x1768] sm:$0xff]
        %v1116 = vld [vmem:[%s266 + $0x1770] sm:$0xff]
        %v1117 = vld [vmem:[%s266 + $0x1778] sm:$0xff]
        %v1118 = vld [vmem:[%s266 + $0x1780] sm:$0xff]
        %v1119 = vld [vmem:[%s266 + $0x1788] sm:$0xff]
        %v1120 = vld [vmem:[%s266 + $0x1790] sm:$0xff]
        %v1121 = vld [vmem:[%s266 + $0x1798] sm:$0xff]
        %v1122 = vld [vmem:[%s266 + $0x17a0] sm:$0xff]
        %v1123 = vld [vmem:[%s266 + $0x17a8] sm:$0xff]
        %v1124 = vld [vmem:[%s266 + $0x17b0] sm:$0xff]
        %v1125 = vld [vmem:[%s266 + $0x17b8] sm:$0xff]
        %v1126 = vld [vmem:[%s266 + $0x17c0] sm:$0xff]
        %v1127 = vld [vmem:[%s266 + $0x17c8] sm:$0xff]
        %v1128 = vld [vmem:[%s266 + $0x17d0] sm:$0xff]
        %v1129 = vld [vmem:[%s266 + $0x17d8] sm:$0xff]
        %v1130 = vld [vmem:[%s266 + $0x17e0] sm:$0xff]
        %v1131 = vld [vmem:[%s266 + $0x17e8] sm:$0xff]
        %v1132 = vld [vmem:[%s266 + $0x17f0] sm:$0xff]
        %v1133 = vld [vmem:[%s266 + $0x17f8] sm:$0xff]
        %v1134 = vld [vmem:[%s266 + $0x1800] sm:$0xff]
        %v1135 = vld [vmem:[%s266 + $0x1808] sm:$0xff]
        %v1136 = vld [vmem:[%s266 + $0x1810] sm:$0xff]
        %v1137 = vld [vmem:[%s266 + $0x1818] sm:$0xff]
        %v1138 = vld [vmem:[%s266 + $0x1820] sm:$0xff]
        %v1139 = vld [vmem:[%s266 + $0x1828] sm:$0xff]
        %v1140 = vld [vmem:[%s266 + $0x1830] sm:$0xff]
        %v1141 = vld [vmem:[%s266 + $0x1838] sm:$0xff]
        %v1142 = vld [vmem:[%s266 + $0x1840] sm:$0xff]
        %v1143 = vld [vmem:[%s266 + $0x1848] sm:$0xff]
        %v1144 = vld [vmem:[%s266 + $0x1850] sm:$0xff]
        %v1145 = vld [vmem:[%s266 + $0x1858] sm:$0xff]
        %v1146 = vld [vmem:[%s266 + $0x1860] sm:$0xff]
        %v1147 = vld [vmem:[%s266 + $0x1868] sm:$0xff]
        %v1148 = vld [vmem:[%s266 + $0x1870] sm:$0xff]
        %v1149 = vld [vmem:[%s266 + $0x1878] sm:$0xff]
        %v1150 = vld [vmem:[%s266 + $0x1880] sm:$0xff]
        %v1151 = vld [vmem:[%s266 + $0x1888] sm:$0xff]
        %v1152 = vld [vmem:[%s266 + $0x1890] sm:$0xff]
        %v1153 = vld [vmem:[%s266 + $0x1898] sm:$0xff]
        %v1154 = vld [vmem:[%s266 + $0x18a0] sm:$0xff]
        %v1155 = vld [vmem:[%s266 + $0x18a8] sm:$0xff]
        %v1156 = vld [vmem:[%s266 + $0x18b0] sm:$0xff]
        %v1157 = vld [vmem:[%s266 + $0x18b8] sm:$0xff]
        %v1158 = vld [vmem:[%s266 + $0x18c0] sm:$0xff]
        %v1159 = vld [vmem:[%s266 + $0x18c8] sm:$0xff]
        %v1160 = vld [vmem:[%s266 + $0x18d0] sm:$0xff]
        %v1161 = vld [vmem:[%s266 + $0x18d8] sm:$0xff]
        %v1162 = vld [vmem:[%s266 + $0x18e0] sm:$0xff]
        %v1163 = vld [vmem:[%s266 + $0x18e8] sm:$0xff]
        %v1164 = vld [vmem:[%s266 + $0x18f0] sm:$0xff]
        %v1165 = vld [vmem:[%s266 + $0x18f8] sm:$0xff]
        %v1166 = vld [vmem:[%s266 + $0x1900] sm:$0xff]
        %v1167 = vld [vmem:[%s266 + $0x1908] sm:$0xff]
        %v1168 = vld [vmem:[%s266 + $0x1910] sm:$0xff]
        %v1169 = vld [vmem:[%s266 + $0x1918] sm:$0xff]
        %v1170 = vld [vmem:[%s266 + $0x1920] sm:$0xff]
        %v1171 = vld [vmem:[%s266 + $0x1928] sm:$0xff]
        %v1172 = vld [vmem:[%s266 + $0x1930] sm:$0xff]
        %v1173 = vld [vmem:[%s266 + $0x1938] sm:$0xff]
        %v1174 = vld [vmem:[%s266 + $0x1940] sm:$0xff]
        %v1175 = vld [vmem:[%s266 + $0x1948] sm:$0xff]
        %v1176 = vld [vmem:[%s266 + $0x1950] sm:$0xff]
        %v1177 = vld [vmem:[%s266 + $0x1958] sm:$0xff]
        %v1178 = vld [vmem:[%s266 + $0x1960] sm:$0xff]
        %v1179 = vld [vmem:[%s266 + $0x1968] sm:$0xff]
        %v1180 = vld [vmem:[%s266 + $0x1970] sm:$0xff]
        %v1181 = vld [vmem:[%s266 + $0x1978] sm:$0xff]
        %v1182 = vld [vmem:[%s266 + $0x1980] sm:$0xff]
        %v1183 = vld [vmem:[%s266 + $0x1988] sm:$0xff]
        %v1184 = vld [vmem:[%s266 + $0x1990] sm:$0xff]
        %v1185 = vld [vmem:[%s266 + $0x1998] sm:$0xff]
        %v1186 = vld [vmem:[%s266 + $0x19a0] sm:$0xff]
        %v1187 = vld [vmem:[%s266 + $0x19a8] sm:$0xff]
        %v1188 = vld [vmem:[%s266 + $0x19b0] sm:$0xff]
        %v1189 = vld [vmem:[%s266 + $0x19b8] sm:$0xff]
        %v1190 = vld [vmem:[%s266 + $0x19c0] sm:$0xff]
        %v1191 = vld [vmem:[%s266 + $0x19c8] sm:$0xff]
        %v1192 = vld [vmem:[%s266 + $0x19d0] sm:$0xff]
        %v1193 = vld [vmem:[%s266 + $0x19d8] sm:$0xff]
        %v1194 = vld [vmem:[%s266 + $0x19e0] sm:$0xff]
        %v1195 = vld [vmem:[%s266 + $0x19e8] sm:$0xff]
        %v1196 = vld [vmem:[%s266 + $0x19f0] sm:$0xff]
        %v1197 = vld [vmem:[%s266 + $0x19f8] sm:$0xff]
        %v1198 = vld [vmem:[%s266 + $0x1a00] sm:$0xff]
        %v1199 = vld [vmem:[%s266 + $0x1a08] sm:$0xff]
        %v1200 = vld [vmem:[%s266 + $0x1a10] sm:$0xff]
        %v1201 = vld [vmem:[%s266 + $0x1a18] sm:$0xff]
        %v1202 = vld [vmem:[%s266 + $0x1a20] sm:$0xff]
        %v1203 = vld [vmem:[%s266 + $0x1a28] sm:$0xff]
        %v1204 = vld [vmem:[%s266 + $0x1a30] sm:$0xff]
        %v1205 = vld [vmem:[%s266 + $0x1a38] sm:$0xff]
        %v1206 = vld [vmem:[%s266 + $0x1a40] sm:$0xff]
        %v1207 = vld [vmem:[%s266 + $0x1a48] sm:$0xff]
        %v1208 = vld [vmem:[%s266 + $0x1a50] sm:$0xff]
        %v1209 = vld [vmem:[%s266 + $0x1a58] sm:$0xff]
        %v1210 = vld [vmem:[%s266 + $0x1a60] sm:$0xff]
        %v1211 = vld [vmem:[%s266 + $0x1a68] sm:$0xff]
        %v1212 = vld [vmem:[%s266 + $0x1a70] sm:$0xff]
        %v1213 = vld [vmem:[%s266 + $0x1a78] sm:$0xff]
        %v1214 = vld [vmem:[%s266 + $0x1a80] sm:$0xff]
        %v1215 = vld [vmem:[%s266 + $0x1a88] sm:$0xff]
        %v1216 = vld [vmem:[%s266 + $0x1a90] sm:$0xff]
        %v1217 = vld [vmem:[%s266 + $0x1a98] sm:$0xff]
        %v1218 = vld [vmem:[%s266 + $0x1aa0] sm:$0xff]
        %v1219 = vld [vmem:[%s266 + $0x1aa8] sm:$0xff]
        %v1220 = vld [vmem:[%s266 + $0x1ab0] sm:$0xff]
        %v1221 = vld [vmem:[%s266 + $0x1ab8] sm:$0xff]
        %v1222 = vld [vmem:[%s266 + $0x1ac0] sm:$0xff]
        %v1223 = vld [vmem:[%s266 + $0x1ac8] sm:$0xff]
        %v1224 = vld [vmem:[%s266 + $0x1ad0] sm:$0xff]
        %v1225 = vld [vmem:[%s266 + $0x1ad8] sm:$0xff]
        %v1226 = vld [vmem:[%s266 + $0x1ae0] sm:$0xff]
        %v1227 = vld [vmem:[%s266 + $0x1ae8] sm:$0xff]
        %v1228 = vld [vmem:[%s266 + $0x1af0] sm:$0xff]
        %v1229 = vld [vmem:[%s266 + $0x1af8] sm:$0xff]
        %v1230 = vld [vmem:[%s266 + $0x1b00] sm:$0xff]
        %v1231 = vld [vmem:[%s266 + $0x1b08] sm:$0xff]
        %v1232 = vld [vmem:[%s266 + $0x1b10] sm:$0xff]
        %v1233 = vld [vmem:[%s266 + $0x1b18] sm:$0xff]
        %v1234 = vld [vmem:[%s266 + $0x1b20] sm:$0xff]
        %v1235 = vld [vmem:[%s266 + $0x1b28] sm:$0xff]
        %v1236 = vld [vmem:[%s266 + $0x1b30] sm:$0xff]
        %v1237 = vld [vmem:[%s266 + $0x1b38] sm:$0xff]
        %v1238 = vld [vmem:[%s266 + $0x1b40] sm:$0xff]
        %v1239 = vld [vmem:[%s266 + $0x1b48] sm:$0xff]
        %v1240 = vld [vmem:[%s266 + $0x1b50] sm:$0xff]
        %v1241 = vld [vmem:[%s266 + $0x1b58] sm:$0xff]
        %v1242 = vld [vmem:[%s266 + $0x1b60] sm:$0xff]
        %v1243 = vld [vmem:[%s266 + $0x1b68] sm:$0xff]
        %v1244 = vld [vmem:[%s266 + $0x1b70] sm:$0xff]
        %v1245 = vld [vmem:[%s266 + $0x1b78] sm:$0xff]
        %v1246 = vld [vmem:[%s266 + $0x1b80] sm:$0xff]
        %v1247 = vld [vmem:[%s266 + $0x1b88] sm:$0xff]
        %v1248 = vld [vmem:[%s266 + $0x1b90] sm:$0xff]
        %v1249 = vld [vmem:[%s266 + $0x1b98] sm:$0xff]
        %v1250 = vld [vmem:[%s266 + $0x1ba0] sm:$0xff]
        %v1251 = vld [vmem:[%s266 + $0x1ba8] sm:$0xff]
        %v1252 = vld [vmem:[%s266 + $0x1bb0] sm:$0xff]
        %v1253 = vld [vmem:[%s266 + $0x1bb8] sm:$0xff]
        %v1254 = vld [vmem:[%s266 + $0x1bc0] sm:$0xff]
        %v1255 = vld [vmem:[%s266 + $0x1bc8] sm:$0xff]
        %v1256 = vld [vmem:[%s266 + $0x1bd0] sm:$0xff]
        %v1257 = vld [vmem:[%s266 + $0x1bd8] sm:$0xff]
        %v1258 = vld [vmem:[%s266 + $0x1be0] sm:$0xff]
        %v1259 = vld [vmem:[%s266 + $0x1be8] sm:$0xff]
        %v1260 = vld [vmem:[%s266 + $0x1bf0] sm:$0xff]
        %v1261 = vld [vmem:[%s266 + $0x1bf8] sm:$0xff]
        %v1262 = vld [vmem:[%s266 + $0x1c00] sm:$0xff]
        %v1263 = vld [vmem:[%s266 + $0x1c08] sm:$0xff]
        %v1264 = vld [vmem:[%s266 + $0x1c10] sm:$0xff]
        %v1265 = vld [vmem:[%s266 + $0x1c18] sm:$0xff]
        %v1266 = vld [vmem:[%s266 + $0x1c20] sm:$0xff]
        %v1267 = vld [vmem:[%s266 + $0x1c28] sm:$0xff]
        %v1268 = vld [vmem:[%s266 + $0x1c30] sm:$0xff]
        %v1269 = vld [vmem:[%s266 + $0x1c38] sm:$0xff]
        %v1270 = vld [vmem:[%s266 + $0x1c40] sm:$0xff]
        %v1271 = vld [vmem:[%s266 + $0x1c48] sm:$0xff]
        %v1272 = vld [vmem:[%s266 + $0x1c50] sm:$0xff]
        %v1273 = vld [vmem:[%s266 + $0x1c58] sm:$0xff]
        %v1274 = vld [vmem:[%s266 + $0x1c60] sm:$0xff]
        %v1275 = vld [vmem:[%s266 + $0x1c68] sm:$0xff]
        %v1276 = vld [vmem:[%s266 + $0x1c70] sm:$0xff]
        %v1277 = vld [vmem:[%s266 + $0x1c78] sm:$0xff]
        %v1278 = vld [vmem:[%s266 + $0x1c80] sm:$0xff]
        %v1279 = vld [vmem:[%s266 + $0x1c88] sm:$0xff]
        %v1280 = vld [vmem:[%s266 + $0x1c90] sm:$0xff]
        %v1281 = vld [vmem:[%s266 + $0x1c98] sm:$0xff]
        %v1282 = vld [vmem:[%s266 + $0x1ca0] sm:$0xff]
        %v1283 = vld [vmem:[%s266 + $0x1ca8] sm:$0xff]
        %v1284 = vld [vmem:[%s266 + $0x1cb0] sm:$0xff]
        %v1285 = vld [vmem:[%s266 + $0x1cb8] sm:$0xff]
        %v1286 = vld [vmem:[%s266 + $0x1cc0] sm:$0xff]
        %v1287 = vld [vmem:[%s266 + $0x1cc8] sm:$0xff]
        %v1288 = vld [vmem:[%s266 + $0x1cd0] sm:$0xff]
        %v1289 = vld [vmem:[%s266 + $0x1cd8] sm:$0xff]
        %v1290 = vld [vmem:[%s266 + $0x1ce0] sm:$0xff]
        %v1291 = vld [vmem:[%s266 + $0x1ce8] sm:$0xff]
        %v1292 = vld [vmem:[%s266 + $0x1cf0] sm:$0xff]
        %v1293 = vld [vmem:[%s266 + $0x1cf8] sm:$0xff]
        %v1294 = vld [vmem:[%s266 + $0x1d00] sm:$0xff]
        %v1295 = vld [vmem:[%s266 + $0x1d08] sm:$0xff]
        %v1296 = vld [vmem:[%s266 + $0x1d10] sm:$0xff]
        %v1297 = vld [vmem:[%s266 + $0x1d18] sm:$0xff]
        %v1298 = vld [vmem:[%s266 + $0x1d20] sm:$0xff]
        %v1299 = vld [vmem:[%s266 + $0x1d28] sm:$0xff]
        %v1300 = vld [vmem:[%s266 + $0x1d30] sm:$0xff]
        %v1301 = vld [vmem:[%s266 + $0x1d38] sm:$0xff]
        %v1302 = vld [vmem:[%s266 + $0x1d40] sm:$0xff]
        %v1303 = vld [vmem:[%s266 + $0x1d48] sm:$0xff]
        %v1304 = vld [vmem:[%s266 + $0x1d50] sm:$0xff]
        %v1305 = vld [vmem:[%s266 + $0x1d58] sm:$0xff]
        %v1306 = vld [vmem:[%s266 + $0x1d60] sm:$0xff]
        %v1307 = vld [vmem:[%s266 + $0x1d68] sm:$0xff]
        %v1308 = vld [vmem:[%s266 + $0x1d70] sm:$0xff]
        %v1309 = vld [vmem:[%s266 + $0x1d78] sm:$0xff]
        %v1310 = vld [vmem:[%s266 + $0x1d80] sm:$0xff]
        %v1311 = vld [vmem:[%s266 + $0x1d88] sm:$0xff]
        %v1312 = vld [vmem:[%s266 + $0x1d90] sm:$0xff]
        %v1313 = vld [vmem:[%s266 + $0x1d98] sm:$0xff]
        %v1314 = vld [vmem:[%s266 + $0x1da0] sm:$0xff]
        %v1315 = vld [vmem:[%s266 + $0x1da8] sm:$0xff]
        %v1316 = vld [vmem:[%s266 + $0x1db0] sm:$0xff]
        %v1317 = vld [vmem:[%s266 + $0x1db8] sm:$0xff]
        %v1318 = vld [vmem:[%s266 + $0x1dc0] sm:$0xff]
        %v1319 = vld [vmem:[%s266 + $0x1dc8] sm:$0xff]
        %v1320 = vld [vmem:[%s266 + $0x1dd0] sm:$0xff]
        %v1321 = vld [vmem:[%s266 + $0x1dd8] sm:$0xff]
        %v1322 = vld [vmem:[%s266 + $0x1de0] sm:$0xff]
        %v1323 = vld [vmem:[%s266 + $0x1de8] sm:$0xff]
        %v1324 = vld [vmem:[%s266 + $0x1df0] sm:$0xff]
        %v1325 = vld [vmem:[%s266 + $0x1df8] sm:$0xff]
        %v1326 = vld [vmem:[%s266 + $0x1e00] sm:$0xff]
        %v1327 = vld [vmem:[%s266 + $0x1e08] sm:$0xff]
        %v1328 = vld [vmem:[%s266 + $0x1e10] sm:$0xff]
        %v1329 = vld [vmem:[%s266 + $0x1e18] sm:$0xff]
        %v1330 = vld [vmem:[%s266 + $0x1e20] sm:$0xff]
        %v1331 = vld [vmem:[%s266 + $0x1e28] sm:$0xff]
        %v1332 = vld [vmem:[%s266 + $0x1e30] sm:$0xff]
        %v1333 = vld [vmem:[%s266 + $0x1e38] sm:$0xff]
        %v1334 = vld [vmem:[%s266 + $0x1e40] sm:$0xff]
        %v1335 = vld [vmem:[%s266 + $0x1e48] sm:$0xff]
        %v1336 = vld [vmem:[%s266 + $0x1e50] sm:$0xff]
        %v1337 = vld [vmem:[%s266 + $0x1e58] sm:$0xff]
        %v1338 = vld [vmem:[%s266 + $0x1e60] sm:$0xff]
        %v1339 = vld [vmem:[%s266 + $0x1e68] sm:$0xff]
        %v1340 = vld [vmem:[%s266 + $0x1e70] sm:$0xff]
        %v1341 = vld [vmem:[%s266 + $0x1e78] sm:$0xff]
        %v1342 = vld [vmem:[%s266 + $0x1e80] sm:$0xff]
        %v1343 = vld [vmem:[%s266 + $0x1e88] sm:$0xff]
        %v1344 = vld [vmem:[%s266 + $0x1e90] sm:$0xff]
        %v1345 = vld [vmem:[%s266 + $0x1e98] sm:$0xff]
        %v1346 = vld [vmem:[%s266 + $0x1ea0] sm:$0xff]
        %v1347 = vld [vmem:[%s266 + $0x1ea8] sm:$0xff]
        %v1348 = vld [vmem:[%s266 + $0x1eb0] sm:$0xff]
        %v1349 = vld [vmem:[%s266 + $0x1eb8] sm:$0xff]
        %v1350 = vld [vmem:[%s266 + $0x1ec0] sm:$0xff]
        %v1351 = vld [vmem:[%s266 + $0x1ec8] sm:$0xff]
        %v1352 = vld [vmem:[%s266 + $0x1ed0] sm:$0xff]
        %v1353 = vld [vmem:[%s266 + $0x1ed8] sm:$0xff]
        %v1354 = vld [vmem:[%s266 + $0x1ee0] sm:$0xff]
        %v1355 = vld [vmem:[%s266 + $0x1ee8] sm:$0xff]
        %v1356 = vld [vmem:[%s266 + $0x1ef0] sm:$0xff]
        %v1357 = vld [vmem:[%s266 + $0x1ef8] sm:$0xff]
        %v1358 = vld [vmem:[%s266 + $0x1f00] sm:$0xff]
        %v1359 = vld [vmem:[%s266 + $0x1f08] sm:$0xff]
        %v1360 = vld [vmem:[%s266 + $0x1f10] sm:$0xff]
        %v1361 = vld [vmem:[%s266 + $0x1f18] sm:$0xff]
        %v1362 = vld [vmem:[%s266 + $0x1f20] sm:$0xff]
        %v1363 = vld [vmem:[%s266 + $0x1f28] sm:$0xff]
        %v1364 = vld [vmem:[%s266 + $0x1f30] sm:$0xff]
        %v1365 = vld [vmem:[%s266 + $0x1f38] sm:$0xff]
        %v1366 = vld [vmem:[%s266 + $0x1f40] sm:$0xff]
        %v1367 = vld [vmem:[%s266 + $0x1f48] sm:$0xff]
        %v1368 = vld [vmem:[%s266 + $0x1f50] sm:$0xff]
        %v1369 = vld [vmem:[%s266 + $0x1f58] sm:$0xff]
        %v1370 = vld [vmem:[%s266 + $0x1f60] sm:$0xff]
        %v1371 = vld [vmem:[%s266 + $0x1f68] sm:$0xff]
        %v1372 = vld [vmem:[%s266 + $0x1f70] sm:$0xff]
        %v1373 = vld [vmem:[%s266 + $0x1f78] sm:$0xff]
        %v1374 = vld [vmem:[%s266 + $0x1f80] sm:$0xff]
        %v1375 = vld [vmem:[%s266 + $0x1f88] sm:$0xff]
        %v1376 = vld [vmem:[%s266 + $0x1f90] sm:$0xff]
        %v1377 = vld [vmem:[%s266 + $0x1f98] sm:$0xff]
        %v1378 = vld [vmem:[%s266 + $0x1fa0] sm:$0xff]
        %v1379 = vld [vmem:[%s266 + $0x1fa8] sm:$0xff]
        %v1380 = vld [vmem:[%s266 + $0x1fb0] sm:$0xff]
        %v1381 = vld [vmem:[%s266 + $0x1fb8] sm:$0xff]
        %v1382 = vld [vmem:[%s266 + $0x1fc0] sm:$0xff]
        %v1383 = vld [vmem:[%s266 + $0x1fc8] sm:$0xff]
        %v1384 = vld [vmem:[%s266 + $0x1fd0] sm:$0xff]
        %v1385 = vld [vmem:[%s266 + $0x1fd8] sm:$0xff]
        %v1386 = vld [vmem:[%s266 + $0x1fe0] sm:$0xff]
        %v1387 = vld [vmem:[%s266 + $0x1fe8] sm:$0xff]
        %v1388 = vld [vmem:[%s266 + $0x1ff0] sm:$0xff]
        %v1389 = vld [vmem:[%s266 + $0x1ff8] sm:$0xff]
        %v1390 = vunpack.c.l.s8.bf16 %v366
        %v1391 = vunpack.c.l.s8.bf16 %v367
        %v1392 = vunpack.c.l.s8.bf16 %v368
        %v1393 = vunpack.c.l.s8.bf16 %v369
        %v1394 = vunpack.c.h.s8.bf16 %v366
        %v1395 = vunpack.c.h.s8.bf16 %v367
        %v1396 = vunpack.c.h.s8.bf16 %v368
        %v1397 = vunpack.c.h.s8.bf16 %v369
        %v1398 = vunpack.c.l.s8.bf16 %v370
        %v1399 = vunpack.c.l.s8.bf16 %v371
        %v1400 = vunpack.c.l.s8.bf16 %v372
        %v1401 = vunpack.c.l.s8.bf16 %v373
        %v1402 = vunpack.c.h.s8.bf16 %v370
        %v1403 = vunpack.c.h.s8.bf16 %v371
        %v1404 = vunpack.c.h.s8.bf16 %v372
        %v1405 = vunpack.c.h.s8.bf16 %v373
        %v1406 = vunpack.c.l.s8.bf16 %v374
        %v1407 = vunpack.c.l.s8.bf16 %v375
        %v1408 = vunpack.c.l.s8.bf16 %v376
        %v1409 = vunpack.c.l.s8.bf16 %v377
        %v1410 = vunpack.c.h.s8.bf16 %v374
        %v1411 = vunpack.c.h.s8.bf16 %v375
        %v1412 = vunpack.c.h.s8.bf16 %v376
        %v1413 = vunpack.c.h.s8.bf16 %v377
        %v1414 = vunpack.c.l.s8.bf16 %v378
        %v1415 = vunpack.c.l.s8.bf16 %v379
        %v1416 = vunpack.c.l.s8.bf16 %v380
        %v1417 = vunpack.c.l.s8.bf16 %v381
        %v1418 = vunpack.c.h.s8.bf16 %v378
        %v1419 = vunpack.c.h.s8.bf16 %v379
        %v1420 = vunpack.c.h.s8.bf16 %v380
        %v1421 = vunpack.c.h.s8.bf16 %v381
        %v1422 = vunpack.c.l.s8.bf16 %v382
        %v1423 = vunpack.c.l.s8.bf16 %v383
        %v1424 = vunpack.c.l.s8.bf16 %v384
        %v1425 = vunpack.c.l.s8.bf16 %v385
        %v1426 = vunpack.c.h.s8.bf16 %v382
        %v1427 = vunpack.c.h.s8.bf16 %v383
        %v1428 = vunpack.c.h.s8.bf16 %v384
        %v1429 = vunpack.c.h.s8.bf16 %v385
        %v1430 = vunpack.c.l.s8.bf16 %v386
        %v1431 = vunpack.c.l.s8.bf16 %v387
        %v1432 = vunpack.c.l.s8.bf16 %v388
        %v1433 = vunpack.c.l.s8.bf16 %v389
        %v1434 = vunpack.c.h.s8.bf16 %v386
        %v1435 = vunpack.c.h.s8.bf16 %v387
        %v1436 = vunpack.c.h.s8.bf16 %v388
        %v1437 = vunpack.c.h.s8.bf16 %v389
        %v1438 = vunpack.c.l.s8.bf16 %v390
        %v1439 = vunpack.c.l.s8.bf16 %v391
        %v1440 = vunpack.c.l.s8.bf16 %v392
        %v1441 = vunpack.c.l.s8.bf16 %v393
        %v1442 = vunpack.c.h.s8.bf16 %v390
        %v1443 = vunpack.c.h.s8.bf16 %v391
        %v1444 = vunpack.c.h.s8.bf16 %v392
        %v1445 = vunpack.c.h.s8.bf16 %v393
        %v1446 = vunpack.c.l.s8.bf16 %v394
        %v1447 = vunpack.c.l.s8.bf16 %v395
        %v1448 = vunpack.c.l.s8.bf16 %v396
        %v1449 = vunpack.c.l.s8.bf16 %v397
        %v1450 = vunpack.c.h.s8.bf16 %v394
        %v1451 = vunpack.c.h.s8.bf16 %v395
        %v1452 = vunpack.c.h.s8.bf16 %v396
        %v1453 = vunpack.c.h.s8.bf16 %v397
        %v1454 = vunpack.c.l.s8.bf16 %v398
        %v1455 = vunpack.c.l.s8.bf16 %v399
        %v1456 = vunpack.c.l.s8.bf16 %v400
        %v1457 = vunpack.c.l.s8.bf16 %v401
        %v1458 = vunpack.c.h.s8.bf16 %v398
        %v1459 = vunpack.c.h.s8.bf16 %v399
        %v1460 = vunpack.c.h.s8.bf16 %v400
        %v1461 = vunpack.c.h.s8.bf16 %v401
        %v1462 = vunpack.c.l.s8.bf16 %v402
        %v1463 = vunpack.c.l.s8.bf16 %v403
        %v1464 = vunpack.c.l.s8.bf16 %v404
        %v1465 = vunpack.c.l.s8.bf16 %v405
        %v1466 = vunpack.c.h.s8.bf16 %v402
        %v1467 = vunpack.c.h.s8.bf16 %v403
        %v1468 = vunpack.c.h.s8.bf16 %v404
        %v1469 = vunpack.c.h.s8.bf16 %v405
        %v1470 = vunpack.c.l.s8.bf16 %v406
        %v1471 = vunpack.c.l.s8.bf16 %v407
        %v1472 = vunpack.c.l.s8.bf16 %v408
        %v1473 = vunpack.c.l.s8.bf16 %v409
        %v1474 = vunpack.c.h.s8.bf16 %v406
        %v1475 = vunpack.c.h.s8.bf16 %v407
        %v1476 = vunpack.c.h.s8.bf16 %v408
        %v1477 = vunpack.c.h.s8.bf16 %v409
        %v1478 = vunpack.c.l.s8.bf16 %v410
        %v1479 = vunpack.c.l.s8.bf16 %v411
        %v1480 = vunpack.c.l.s8.bf16 %v412
        %v1481 = vunpack.c.l.s8.bf16 %v413
        %v1482 = vunpack.c.h.s8.bf16 %v410
        %v1483 = vunpack.c.h.s8.bf16 %v411
        %v1484 = vunpack.c.h.s8.bf16 %v412
        %v1485 = vunpack.c.h.s8.bf16 %v413
        %v1486 = vunpack.c.l.s8.bf16 %v414
        %v1487 = vunpack.c.l.s8.bf16 %v415
        %v1488 = vunpack.c.l.s8.bf16 %v416
        %v1489 = vunpack.c.l.s8.bf16 %v417
        %v1490 = vunpack.c.h.s8.bf16 %v414
        %v1491 = vunpack.c.h.s8.bf16 %v415
        %v1492 = vunpack.c.h.s8.bf16 %v416
        %v1493 = vunpack.c.h.s8.bf16 %v417
        %v1494 = vunpack.c.l.s8.bf16 %v418
        %v1495 = vunpack.c.l.s8.bf16 %v419
        %v1496 = vunpack.c.l.s8.bf16 %v420
        %v1497 = vunpack.c.l.s8.bf16 %v421
        %v1498 = vunpack.c.h.s8.bf16 %v418
        %v1499 = vunpack.c.h.s8.bf16 %v419
        %v1500 = vunpack.c.h.s8.bf16 %v420
        %v1501 = vunpack.c.h.s8.bf16 %v421
        %v1502 = vunpack.c.l.s8.bf16 %v422
        %v1503 = vunpack.c.l.s8.bf16 %v423
        %v1504 = vunpack.c.l.s8.bf16 %v424
        %v1505 = vunpack.c.l.s8.bf16 %v425
        %v1506 = vunpack.c.h.s8.bf16 %v422
        %v1507 = vunpack.c.h.s8.bf16 %v423
        %v1508 = vunpack.c.h.s8.bf16 %v424
        %v1509 = vunpack.c.h.s8.bf16 %v425
        %v1510 = vunpack.c.l.s8.bf16 %v426
        %v1511 = vunpack.c.l.s8.bf16 %v427
        %v1512 = vunpack.c.l.s8.bf16 %v428
        %v1513 = vunpack.c.l.s8.bf16 %v429
        %v1514 = vunpack.c.h.s8.bf16 %v426
        %v1515 = vunpack.c.h.s8.bf16 %v427
        %v1516 = vunpack.c.h.s8.bf16 %v428
        %v1517 = vunpack.c.h.s8.bf16 %v429
        %v1518 = vunpack.c.l.s8.bf16 %v430
        %v1519 = vunpack.c.l.s8.bf16 %v431
        %v1520 = vunpack.c.l.s8.bf16 %v432
        %v1521 = vunpack.c.l.s8.bf16 %v433
        %v1522 = vunpack.c.h.s8.bf16 %v430
        %v1523 = vunpack.c.h.s8.bf16 %v431
        %v1524 = vunpack.c.h.s8.bf16 %v432
        %v1525 = vunpack.c.h.s8.bf16 %v433
        %v1526 = vunpack.c.l.s8.bf16 %v434
        %v1527 = vunpack.c.l.s8.bf16 %v435
        %v1528 = vunpack.c.l.s8.bf16 %v436
        %v1529 = vunpack.c.l.s8.bf16 %v437
        %v1530 = vunpack.c.h.s8.bf16 %v434
        %v1531 = vunpack.c.h.s8.bf16 %v435
        %v1532 = vunpack.c.h.s8.bf16 %v436
        %v1533 = vunpack.c.h.s8.bf16 %v437
        %v1534 = vunpack.c.l.s8.bf16 %v438
        %v1535 = vunpack.c.l.s8.bf16 %v439
        %v1536 = vunpack.c.l.s8.bf16 %v440
        %v1537 = vunpack.c.l.s8.bf16 %v441
        %v1538 = vunpack.c.h.s8.bf16 %v438
        %v1539 = vunpack.c.h.s8.bf16 %v439
        %v1540 = vunpack.c.h.s8.bf16 %v440
        %v1541 = vunpack.c.h.s8.bf16 %v441
        %v1542 = vunpack.c.l.s8.bf16 %v442
        %v1543 = vunpack.c.l.s8.bf16 %v443
        %v1544 = vunpack.c.l.s8.bf16 %v444
        %v1545 = vunpack.c.l.s8.bf16 %v445
        %v1546 = vunpack.c.h.s8.bf16 %v442
        %v1547 = vunpack.c.h.s8.bf16 %v443
        %v1548 = vunpack.c.h.s8.bf16 %v444
        %v1549 = vunpack.c.h.s8.bf16 %v445
        %v1550 = vunpack.c.l.s8.bf16 %v446
        %v1551 = vunpack.c.l.s8.bf16 %v447
        %v1552 = vunpack.c.l.s8.bf16 %v448
        %v1553 = vunpack.c.l.s8.bf16 %v449
        %v1554 = vunpack.c.h.s8.bf16 %v446
        %v1555 = vunpack.c.h.s8.bf16 %v447
        %v1556 = vunpack.c.h.s8.bf16 %v448
        %v1557 = vunpack.c.h.s8.bf16 %v449
        %v1558 = vunpack.c.l.s8.bf16 %v450
        %v1559 = vunpack.c.l.s8.bf16 %v451
        %v1560 = vunpack.c.l.s8.bf16 %v452
        %v1561 = vunpack.c.l.s8.bf16 %v453
        %v1562 = vunpack.c.h.s8.bf16 %v450
        %v1563 = vunpack.c.h.s8.bf16 %v451
        %v1564 = vunpack.c.h.s8.bf16 %v452
        %v1565 = vunpack.c.h.s8.bf16 %v453
        %v1566 = vunpack.c.l.s8.bf16 %v454
        %v1567 = vunpack.c.l.s8.bf16 %v455
        %v1568 = vunpack.c.l.s8.bf16 %v456
        %v1569 = vunpack.c.l.s8.bf16 %v457
        %v1570 = vunpack.c.h.s8.bf16 %v454
        %v1571 = vunpack.c.h.s8.bf16 %v455
        %v1572 = vunpack.c.h.s8.bf16 %v456
        %v1573 = vunpack.c.h.s8.bf16 %v457
        %v1574 = vunpack.c.l.s8.bf16 %v458
        %v1575 = vunpack.c.l.s8.bf16 %v459
        %v1576 = vunpack.c.l.s8.bf16 %v460
        %v1577 = vunpack.c.l.s8.bf16 %v461
        %v1578 = vunpack.c.h.s8.bf16 %v458
        %v1579 = vunpack.c.h.s8.bf16 %v459
        %v1580 = vunpack.c.h.s8.bf16 %v460
        %v1581 = vunpack.c.h.s8.bf16 %v461
        %v1582 = vunpack.c.l.s8.bf16 %v462
        %v1583 = vunpack.c.l.s8.bf16 %v463
        %v1584 = vunpack.c.l.s8.bf16 %v464
        %v1585 = vunpack.c.l.s8.bf16 %v465
        %v1586 = vunpack.c.h.s8.bf16 %v462
        %v1587 = vunpack.c.h.s8.bf16 %v463
        %v1588 = vunpack.c.h.s8.bf16 %v464
        %v1589 = vunpack.c.h.s8.bf16 %v465
        %v1590 = vunpack.c.l.s8.bf16 %v466
        %v1591 = vunpack.c.l.s8.bf16 %v467
        %v1592 = vunpack.c.l.s8.bf16 %v468
        %v1593 = vunpack.c.l.s8.bf16 %v469
        %v1594 = vunpack.c.h.s8.bf16 %v466
        %v1595 = vunpack.c.h.s8.bf16 %v467
        %v1596 = vunpack.c.h.s8.bf16 %v468
        %v1597 = vunpack.c.h.s8.bf16 %v469
        %v1598 = vunpack.c.l.s8.bf16 %v470
        %v1599 = vunpack.c.l.s8.bf16 %v471
        %v1600 = vunpack.c.l.s8.bf16 %v472
        %v1601 = vunpack.c.l.s8.bf16 %v473
        %v1602 = vunpack.c.h.s8.bf16 %v470
        %v1603 = vunpack.c.h.s8.bf16 %v471
        %v1604 = vunpack.c.h.s8.bf16 %v472
        %v1605 = vunpack.c.h.s8.bf16 %v473
        %v1606 = vunpack.c.l.s8.bf16 %v474
        %v1607 = vunpack.c.l.s8.bf16 %v475
        %v1608 = vunpack.c.l.s8.bf16 %v476
        %v1609 = vunpack.c.l.s8.bf16 %v477
        %v1610 = vunpack.c.h.s8.bf16 %v474
        %v1611 = vunpack.c.h.s8.bf16 %v475
        %v1612 = vunpack.c.h.s8.bf16 %v476
        %v1613 = vunpack.c.h.s8.bf16 %v477
        %v1614 = vunpack.c.l.s8.bf16 %v478
        %v1615 = vunpack.c.l.s8.bf16 %v479
        %v1616 = vunpack.c.l.s8.bf16 %v480
        %v1617 = vunpack.c.l.s8.bf16 %v481
        %v1618 = vunpack.c.h.s8.bf16 %v478
        %v1619 = vunpack.c.h.s8.bf16 %v479
        %v1620 = vunpack.c.h.s8.bf16 %v480
        %v1621 = vunpack.c.h.s8.bf16 %v481
        %v1622 = vunpack.c.l.s8.bf16 %v482
        %v1623 = vunpack.c.l.s8.bf16 %v483
        %v1624 = vunpack.c.l.s8.bf16 %v484
        %v1625 = vunpack.c.l.s8.bf16 %v485
        %v1626 = vunpack.c.h.s8.bf16 %v482
        %v1627 = vunpack.c.h.s8.bf16 %v483
        %v1628 = vunpack.c.h.s8.bf16 %v484
        %v1629 = vunpack.c.h.s8.bf16 %v485
        %v1630 = vunpack.c.l.s8.bf16 %v486
        %v1631 = vunpack.c.l.s8.bf16 %v487
        %v1632 = vunpack.c.l.s8.bf16 %v488
        %v1633 = vunpack.c.l.s8.bf16 %v489
        %v1634 = vunpack.c.h.s8.bf16 %v486
        %v1635 = vunpack.c.h.s8.bf16 %v487
        %v1636 = vunpack.c.h.s8.bf16 %v488
        %v1637 = vunpack.c.h.s8.bf16 %v489
        %v1638 = vunpack.c.l.s8.bf16 %v490
        %v1639 = vunpack.c.l.s8.bf16 %v491
        %v1640 = vunpack.c.l.s8.bf16 %v492
        %v1641 = vunpack.c.l.s8.bf16 %v493
        %v1642 = vunpack.c.h.s8.bf16 %v490
        %v1643 = vunpack.c.h.s8.bf16 %v491
        %v1644 = vunpack.c.h.s8.bf16 %v492
        %v1645 = vunpack.c.h.s8.bf16 %v493
        %v1646 = vunpack.c.l.s8.bf16 %v494
        %v1647 = vunpack.c.l.s8.bf16 %v495
        %v1648 = vunpack.c.l.s8.bf16 %v496
        %v1649 = vunpack.c.l.s8.bf16 %v497
        %v1650 = vunpack.c.h.s8.bf16 %v494
        %v1651 = vunpack.c.h.s8.bf16 %v495
        %v1652 = vunpack.c.h.s8.bf16 %v496
        %v1653 = vunpack.c.h.s8.bf16 %v497
        %v1654 = vunpack.c.l.s8.bf16 %v498
        %v1655 = vunpack.c.l.s8.bf16 %v499
        %v1656 = vunpack.c.l.s8.bf16 %v500
        %v1657 = vunpack.c.l.s8.bf16 %v501
        %v1658 = vunpack.c.h.s8.bf16 %v498
        %v1659 = vunpack.c.h.s8.bf16 %v499
        %v1660 = vunpack.c.h.s8.bf16 %v500
        %v1661 = vunpack.c.h.s8.bf16 %v501
        %v1662 = vunpack.c.l.s8.bf16 %v502
        %v1663 = vunpack.c.l.s8.bf16 %v503
        %v1664 = vunpack.c.l.s8.bf16 %v504
        %v1665 = vunpack.c.l.s8.bf16 %v505
        %v1666 = vunpack.c.h.s8.bf16 %v502
        %v1667 = vunpack.c.h.s8.bf16 %v503
        %v1668 = vunpack.c.h.s8.bf16 %v504
        %v1669 = vunpack.c.h.s8.bf16 %v505
        %v1670 = vunpack.c.l.s8.bf16 %v506
        %v1671 = vunpack.c.l.s8.bf16 %v507
        %v1672 = vunpack.c.l.s8.bf16 %v508
        %v1673 = vunpack.c.l.s8.bf16 %v509
        %v1674 = vunpack.c.h.s8.bf16 %v506
        %v1675 = vunpack.c.h.s8.bf16 %v507
        %v1676 = vunpack.c.h.s8.bf16 %v508
        %v1677 = vunpack.c.h.s8.bf16 %v509
        %v1678 = vunpack.c.l.s8.bf16 %v510
        %v1679 = vunpack.c.l.s8.bf16 %v511
        %v1680 = vunpack.c.l.s8.bf16 %v512
        %v1681 = vunpack.c.l.s8.bf16 %v513
        %v1682 = vunpack.c.h.s8.bf16 %v510
        %v1683 = vunpack.c.h.s8.bf16 %v511
        %v1684 = vunpack.c.h.s8.bf16 %v512
        %v1685 = vunpack.c.h.s8.bf16 %v513
        %v1686 = vunpack.c.l.s8.bf16 %v514
        %v1687 = vunpack.c.l.s8.bf16 %v515
        %v1688 = vunpack.c.l.s8.bf16 %v516
        %v1689 = vunpack.c.l.s8.bf16 %v517
        %v1690 = vunpack.c.h.s8.bf16 %v514
        %v1691 = vunpack.c.h.s8.bf16 %v515
        %v1692 = vunpack.c.h.s8.bf16 %v516
        %v1693 = vunpack.c.h.s8.bf16 %v517
        %v1694 = vunpack.c.l.s8.bf16 %v518
        %v1695 = vunpack.c.l.s8.bf16 %v519
        %v1696 = vunpack.c.l.s8.bf16 %v520
        %v1697 = vunpack.c.l.s8.bf16 %v521
        %v1698 = vunpack.c.h.s8.bf16 %v518
        %v1699 = vunpack.c.h.s8.bf16 %v519
        %v1700 = vunpack.c.h.s8.bf16 %v520
        %v1701 = vunpack.c.h.s8.bf16 %v521
        %v1702 = vunpack.c.l.s8.bf16 %v522
        %v1703 = vunpack.c.l.s8.bf16 %v523
        %v1704 = vunpack.c.l.s8.bf16 %v524
        %v1705 = vunpack.c.l.s8.bf16 %v525
        %v1706 = vunpack.c.h.s8.bf16 %v522
        %v1707 = vunpack.c.h.s8.bf16 %v523
        %v1708 = vunpack.c.h.s8.bf16 %v524
        %v1709 = vunpack.c.h.s8.bf16 %v525
        %v1710 = vunpack.c.l.s8.bf16 %v526
        %v1711 = vunpack.c.l.s8.bf16 %v527
        %v1712 = vunpack.c.l.s8.bf16 %v528
        %v1713 = vunpack.c.l.s8.bf16 %v529
        %v1714 = vunpack.c.h.s8.bf16 %v526
        %v1715 = vunpack.c.h.s8.bf16 %v527
        %v1716 = vunpack.c.h.s8.bf16 %v528
        %v1717 = vunpack.c.h.s8.bf16 %v529
        %v1718 = vunpack.c.l.s8.bf16 %v530
        %v1719 = vunpack.c.l.s8.bf16 %v531
        %v1720 = vunpack.c.l.s8.bf16 %v532
        %v1721 = vunpack.c.l.s8.bf16 %v533
        %v1722 = vunpack.c.h.s8.bf16 %v530
        %v1723 = vunpack.c.h.s8.bf16 %v531
        %v1724 = vunpack.c.h.s8.bf16 %v532
        %v1725 = vunpack.c.h.s8.bf16 %v533
        %v1726 = vunpack.c.l.s8.bf16 %v534
        %v1727 = vunpack.c.l.s8.bf16 %v535
        %v1728 = vunpack.c.l.s8.bf16 %v536
        %v1729 = vunpack.c.l.s8.bf16 %v537
        %v1730 = vunpack.c.h.s8.bf16 %v534
        %v1731 = vunpack.c.h.s8.bf16 %v535
        %v1732 = vunpack.c.h.s8.bf16 %v536
        %v1733 = vunpack.c.h.s8.bf16 %v537
        %v1734 = vunpack.c.l.s8.bf16 %v538
        %v1735 = vunpack.c.l.s8.bf16 %v539
        %v1736 = vunpack.c.l.s8.bf16 %v540
        %v1737 = vunpack.c.l.s8.bf16 %v541
        %v1738 = vunpack.c.h.s8.bf16 %v538
        %v1739 = vunpack.c.h.s8.bf16 %v539
        %v1740 = vunpack.c.h.s8.bf16 %v540
        %v1741 = vunpack.c.h.s8.bf16 %v541
        %v1742 = vunpack.c.l.s8.bf16 %v542
        %v1743 = vunpack.c.l.s8.bf16 %v543
        %v1744 = vunpack.c.l.s8.bf16 %v544
        %v1745 = vunpack.c.l.s8.bf16 %v545
        %v1746 = vunpack.c.h.s8.bf16 %v542
        %v1747 = vunpack.c.h.s8.bf16 %v543
        %v1748 = vunpack.c.h.s8.bf16 %v544
        %v1749 = vunpack.c.h.s8.bf16 %v545
        %v1750 = vunpack.c.l.s8.bf16 %v546
        %v1751 = vunpack.c.l.s8.bf16 %v547
        %v1752 = vunpack.c.l.s8.bf16 %v548
        %v1753 = vunpack.c.l.s8.bf16 %v549
        %v1754 = vunpack.c.h.s8.bf16 %v546
        %v1755 = vunpack.c.h.s8.bf16 %v547
        %v1756 = vunpack.c.h.s8.bf16 %v548
        %v1757 = vunpack.c.h.s8.bf16 %v549
        %v1758 = vunpack.c.l.s8.bf16 %v550
        %v1759 = vunpack.c.l.s8.bf16 %v551
        %v1760 = vunpack.c.l.s8.bf16 %v552
        %v1761 = vunpack.c.l.s8.bf16 %v553
        %v1762 = vunpack.c.h.s8.bf16 %v550
        %v1763 = vunpack.c.h.s8.bf16 %v551
        %v1764 = vunpack.c.h.s8.bf16 %v552
        %v1765 = vunpack.c.h.s8.bf16 %v553
        %v1766 = vunpack.c.l.s8.bf16 %v554
        %v1767 = vunpack.c.l.s8.bf16 %v555
        %v1768 = vunpack.c.l.s8.bf16 %v556
        %v1769 = vunpack.c.l.s8.bf16 %v557
        %v1770 = vunpack.c.h.s8.bf16 %v554
        %v1771 = vunpack.c.h.s8.bf16 %v555
        %v1772 = vunpack.c.h.s8.bf16 %v556
        %v1773 = vunpack.c.h.s8.bf16 %v557
        %v1774 = vunpack.c.l.s8.bf16 %v558
        %v1775 = vunpack.c.l.s8.bf16 %v559
        %v1776 = vunpack.c.l.s8.bf16 %v560
        %v1777 = vunpack.c.l.s8.bf16 %v561
        %v1778 = vunpack.c.h.s8.bf16 %v558
        %v1779 = vunpack.c.h.s8.bf16 %v559
        %v1780 = vunpack.c.h.s8.bf16 %v560
        %v1781 = vunpack.c.h.s8.bf16 %v561
        %v1782 = vunpack.c.l.s8.bf16 %v562
        %v1783 = vunpack.c.l.s8.bf16 %v563
        %v1784 = vunpack.c.l.s8.bf16 %v564
        %v1785 = vunpack.c.l.s8.bf16 %v565
        %v1786 = vunpack.c.h.s8.bf16 %v562
        %v1787 = vunpack.c.h.s8.bf16 %v563
        %v1788 = vunpack.c.h.s8.bf16 %v564
        %v1789 = vunpack.c.h.s8.bf16 %v565
        %v1790 = vunpack.c.l.s8.bf16 %v566
        %v1791 = vunpack.c.l.s8.bf16 %v567
        %v1792 = vunpack.c.l.s8.bf16 %v568
        %v1793 = vunpack.c.l.s8.bf16 %v569
        %v1794 = vunpack.c.h.s8.bf16 %v566
        %v1795 = vunpack.c.h.s8.bf16 %v567
        %v1796 = vunpack.c.h.s8.bf16 %v568
        %v1797 = vunpack.c.h.s8.bf16 %v569
        %v1798 = vunpack.c.l.s8.bf16 %v570
        %v1799 = vunpack.c.l.s8.bf16 %v571
        %v1800 = vunpack.c.l.s8.bf16 %v572
        %v1801 = vunpack.c.l.s8.bf16 %v573
        %v1802 = vunpack.c.h.s8.bf16 %v570
        %v1803 = vunpack.c.h.s8.bf16 %v571
        %v1804 = vunpack.c.h.s8.bf16 %v572
        %v1805 = vunpack.c.h.s8.bf16 %v573
        %v1806 = vunpack.c.l.s8.bf16 %v574
        %v1807 = vunpack.c.l.s8.bf16 %v575
        %v1808 = vunpack.c.l.s8.bf16 %v576
        %v1809 = vunpack.c.l.s8.bf16 %v577
        %v1810 = vunpack.c.h.s8.bf16 %v574
        %v1811 = vunpack.c.h.s8.bf16 %v575
        %v1812 = vunpack.c.h.s8.bf16 %v576
        %v1813 = vunpack.c.h.s8.bf16 %v577
        %v1814 = vunpack.c.l.s8.bf16 %v578
        %v1815 = vunpack.c.l.s8.bf16 %v579
        %v1816 = vunpack.c.l.s8.bf16 %v580
        %v1817 = vunpack.c.l.s8.bf16 %v581
        %v1818 = vunpack.c.h.s8.bf16 %v578
        %v1819 = vunpack.c.h.s8.bf16 %v579
        %v1820 = vunpack.c.h.s8.bf16 %v580
        %v1821 = vunpack.c.h.s8.bf16 %v581
        %v1822 = vunpack.c.l.s8.bf16 %v582
        %v1823 = vunpack.c.l.s8.bf16 %v583
        %v1824 = vunpack.c.l.s8.bf16 %v584
        %v1825 = vunpack.c.l.s8.bf16 %v585
        %v1826 = vunpack.c.h.s8.bf16 %v582
        %v1827 = vunpack.c.h.s8.bf16 %v583
        %v1828 = vunpack.c.h.s8.bf16 %v584
        %v1829 = vunpack.c.h.s8.bf16 %v585
        %v1830 = vunpack.c.l.s8.bf16 %v586
        %v1831 = vunpack.c.l.s8.bf16 %v587
        %v1832 = vunpack.c.l.s8.bf16 %v588
        %v1833 = vunpack.c.l.s8.bf16 %v589
        %v1834 = vunpack.c.h.s8.bf16 %v586
        %v1835 = vunpack.c.h.s8.bf16 %v587
        %v1836 = vunpack.c.h.s8.bf16 %v588
        %v1837 = vunpack.c.h.s8.bf16 %v589
        %v1838 = vunpack.c.l.s8.bf16 %v590
        %v1839 = vunpack.c.l.s8.bf16 %v591
        %v1840 = vunpack.c.l.s8.bf16 %v592
        %v1841 = vunpack.c.l.s8.bf16 %v593
        %v1842 = vunpack.c.h.s8.bf16 %v590
        %v1843 = vunpack.c.h.s8.bf16 %v591
        %v1844 = vunpack.c.h.s8.bf16 %v592
        %v1845 = vunpack.c.h.s8.bf16 %v593
        %v1846 = vunpack.c.l.s8.bf16 %v594
        %v1847 = vunpack.c.l.s8.bf16 %v595
        %v1848 = vunpack.c.l.s8.bf16 %v596
        %v1849 = vunpack.c.l.s8.bf16 %v597
        %v1850 = vunpack.c.h.s8.bf16 %v594
        %v1851 = vunpack.c.h.s8.bf16 %v595
        %v1852 = vunpack.c.h.s8.bf16 %v596
        %v1853 = vunpack.c.h.s8.bf16 %v597
        %v1854 = vunpack.c.l.s8.bf16 %v598
        %v1855 = vunpack.c.l.s8.bf16 %v599
        %v1856 = vunpack.c.l.s8.bf16 %v600
        %v1857 = vunpack.c.l.s8.bf16 %v601
        %v1858 = vunpack.c.h.s8.bf16 %v598
        %v1859 = vunpack.c.h.s8.bf16 %v599
        %v1860 = vunpack.c.h.s8.bf16 %v600
        %v1861 = vunpack.c.h.s8.bf16 %v601
        %v1862 = vunpack.c.l.s8.bf16 %v602
        %v1863 = vunpack.c.l.s8.bf16 %v603
        %v1864 = vunpack.c.l.s8.bf16 %v604
        %v1865 = vunpack.c.l.s8.bf16 %v605
        %v1866 = vunpack.c.h.s8.bf16 %v602
        %v1867 = vunpack.c.h.s8.bf16 %v603
        %v1868 = vunpack.c.h.s8.bf16 %v604
        %v1869 = vunpack.c.h.s8.bf16 %v605
        %v1870 = vunpack.c.l.s8.bf16 %v606
        %v1871 = vunpack.c.l.s8.bf16 %v607
        %v1872 = vunpack.c.l.s8.bf16 %v608
        %v1873 = vunpack.c.l.s8.bf16 %v609
        %v1874 = vunpack.c.h.s8.bf16 %v606
        %v1875 = vunpack.c.h.s8.bf16 %v607
        %v1876 = vunpack.c.h.s8.bf16 %v608
        %v1877 = vunpack.c.h.s8.bf16 %v609
        %v1878 = vunpack.c.l.s8.bf16 %v610
        %v1879 = vunpack.c.l.s8.bf16 %v611
        %v1880 = vunpack.c.l.s8.bf16 %v612
        %v1881 = vunpack.c.l.s8.bf16 %v613
        %v1882 = vunpack.c.h.s8.bf16 %v610
        %v1883 = vunpack.c.h.s8.bf16 %v611
        %v1884 = vunpack.c.h.s8.bf16 %v612
        %v1885 = vunpack.c.h.s8.bf16 %v613
        %v1886 = vunpack.c.l.s8.bf16 %v614
        %v1887 = vunpack.c.l.s8.bf16 %v615
        %v1888 = vunpack.c.l.s8.bf16 %v616
        %v1889 = vunpack.c.l.s8.bf16 %v617
        %v1890 = vunpack.c.h.s8.bf16 %v614
        %v1891 = vunpack.c.h.s8.bf16 %v615
        %v1892 = vunpack.c.h.s8.bf16 %v616
        %v1893 = vunpack.c.h.s8.bf16 %v617
        %v1894 = vunpack.c.l.s8.bf16 %v618
        %v1895 = vunpack.c.l.s8.bf16 %v619
        %v1896 = vunpack.c.l.s8.bf16 %v620
        %v1897 = vunpack.c.l.s8.bf16 %v621
        %v1898 = vunpack.c.h.s8.bf16 %v618
        %v1899 = vunpack.c.h.s8.bf16 %v619
        %v1900 = vunpack.c.h.s8.bf16 %v620
        %v1901 = vunpack.c.h.s8.bf16 %v621
        %v1902 = vunpack.c.l.s8.bf16 %v622
        %v1903 = vunpack.c.l.s8.bf16 %v623
        %v1904 = vunpack.c.l.s8.bf16 %v624
        %v1905 = vunpack.c.l.s8.bf16 %v625
        %v1906 = vunpack.c.h.s8.bf16 %v622
        %v1907 = vunpack.c.h.s8.bf16 %v623
        %v1908 = vunpack.c.h.s8.bf16 %v624
        %v1909 = vunpack.c.h.s8.bf16 %v625
        %v1910 = vunpack.c.l.s8.bf16 %v626
        %v1911 = vunpack.c.l.s8.bf16 %v627
        %v1912 = vunpack.c.l.s8.bf16 %v628
        %v1913 = vunpack.c.l.s8.bf16 %v629
        %v1914 = vunpack.c.h.s8.bf16 %v626
        %v1915 = vunpack.c.h.s8.bf16 %v627
        %v1916 = vunpack.c.h.s8.bf16 %v628
        %v1917 = vunpack.c.h.s8.bf16 %v629
        %v1918 = vunpack.c.l.s8.bf16 %v630
        %v1919 = vunpack.c.l.s8.bf16 %v631
        %v1920 = vunpack.c.l.s8.bf16 %v632
        %v1921 = vunpack.c.l.s8.bf16 %v633
        %v1922 = vunpack.c.h.s8.bf16 %v630
        %v1923 = vunpack.c.h.s8.bf16 %v631
        %v1924 = vunpack.c.h.s8.bf16 %v632
        %v1925 = vunpack.c.h.s8.bf16 %v633
        %v1926 = vunpack.c.l.s8.bf16 %v634
        %v1927 = vunpack.c.l.s8.bf16 %v635
        %v1928 = vunpack.c.l.s8.bf16 %v636
        %v1929 = vunpack.c.l.s8.bf16 %v637
        %v1930 = vunpack.c.h.s8.bf16 %v634
        %v1931 = vunpack.c.h.s8.bf16 %v635
        %v1932 = vunpack.c.h.s8.bf16 %v636
        %v1933 = vunpack.c.h.s8.bf16 %v637
        %v1934 = vunpack.c.l.s8.bf16 %v638
        %v1935 = vunpack.c.l.s8.bf16 %v639
        %v1936 = vunpack.c.l.s8.bf16 %v640
        %v1937 = vunpack.c.l.s8.bf16 %v641
        %v1938 = vunpack.c.h.s8.bf16 %v638
        %v1939 = vunpack.c.h.s8.bf16 %v639
        %v1940 = vunpack.c.h.s8.bf16 %v640
        %v1941 = vunpack.c.h.s8.bf16 %v641
        %v1942 = vunpack.c.l.s8.bf16 %v642
        %v1943 = vunpack.c.l.s8.bf16 %v643
        %v1944 = vunpack.c.l.s8.bf16 %v644
        %v1945 = vunpack.c.l.s8.bf16 %v645
        %v1946 = vunpack.c.h.s8.bf16 %v642
        %v1947 = vunpack.c.h.s8.bf16 %v643
        %v1948 = vunpack.c.h.s8.bf16 %v644
        %v1949 = vunpack.c.h.s8.bf16 %v645
        %v1950 = vunpack.c.l.s8.bf16 %v646
        %v1951 = vunpack.c.l.s8.bf16 %v647
        %v1952 = vunpack.c.l.s8.bf16 %v648
        %v1953 = vunpack.c.l.s8.bf16 %v649
        %v1954 = vunpack.c.h.s8.bf16 %v646
        %v1955 = vunpack.c.h.s8.bf16 %v647
        %v1956 = vunpack.c.h.s8.bf16 %v648
        %v1957 = vunpack.c.h.s8.bf16 %v649
        %v1958 = vunpack.c.l.s8.bf16 %v650
        %v1959 = vunpack.c.l.s8.bf16 %v651
        %v1960 = vunpack.c.l.s8.bf16 %v652
        %v1961 = vunpack.c.l.s8.bf16 %v653
        %v1962 = vunpack.c.h.s8.bf16 %v650
        %v1963 = vunpack.c.h.s8.bf16 %v651
        %v1964 = vunpack.c.h.s8.bf16 %v652
        %v1965 = vunpack.c.h.s8.bf16 %v653
        %v1966 = vunpack.c.l.s8.bf16 %v654
        %v1967 = vunpack.c.l.s8.bf16 %v655
        %v1968 = vunpack.c.l.s8.bf16 %v656
        %v1969 = vunpack.c.l.s8.bf16 %v657
        %v1970 = vunpack.c.h.s8.bf16 %v654
        %v1971 = vunpack.c.h.s8.bf16 %v655
        %v1972 = vunpack.c.h.s8.bf16 %v656
        %v1973 = vunpack.c.h.s8.bf16 %v657
        %v1974 = vunpack.c.l.s8.bf16 %v658
        %v1975 = vunpack.c.l.s8.bf16 %v659
        %v1976 = vunpack.c.l.s8.bf16 %v660
        %v1977 = vunpack.c.l.s8.bf16 %v661
        %v1978 = vunpack.c.h.s8.bf16 %v658
        %v1979 = vunpack.c.h.s8.bf16 %v659
        %v1980 = vunpack.c.h.s8.bf16 %v660
        %v1981 = vunpack.c.h.s8.bf16 %v661
        %v1982 = vunpack.c.l.s8.bf16 %v662
        %v1983 = vunpack.c.l.s8.bf16 %v663
        %v1984 = vunpack.c.l.s8.bf16 %v664
        %v1985 = vunpack.c.l.s8.bf16 %v665
        %v1986 = vunpack.c.h.s8.bf16 %v662
        %v1987 = vunpack.c.h.s8.bf16 %v663
        %v1988 = vunpack.c.h.s8.bf16 %v664
        %v1989 = vunpack.c.h.s8.bf16 %v665
        %v1990 = vunpack.c.l.s8.bf16 %v666
        %v1991 = vunpack.c.l.s8.bf16 %v667
        %v1992 = vunpack.c.l.s8.bf16 %v668
        %v1993 = vunpack.c.l.s8.bf16 %v669
        %v1994 = vunpack.c.h.s8.bf16 %v666
        %v1995 = vunpack.c.h.s8.bf16 %v667
        %v1996 = vunpack.c.h.s8.bf16 %v668
        %v1997 = vunpack.c.h.s8.bf16 %v669
        %v1998 = vunpack.c.l.s8.bf16 %v670
        %v1999 = vunpack.c.l.s8.bf16 %v671
        %v2000 = vunpack.c.l.s8.bf16 %v672
        %v2001 = vunpack.c.l.s8.bf16 %v673
        %v2002 = vunpack.c.h.s8.bf16 %v670
        %v2003 = vunpack.c.h.s8.bf16 %v671
        %v2004 = vunpack.c.h.s8.bf16 %v672
        %v2005 = vunpack.c.h.s8.bf16 %v673
        %v2006 = vunpack.c.l.s8.bf16 %v674
        %v2007 = vunpack.c.l.s8.bf16 %v675
        %v2008 = vunpack.c.l.s8.bf16 %v676
        %v2009 = vunpack.c.l.s8.bf16 %v677
        %v2010 = vunpack.c.h.s8.bf16 %v674
        %v2011 = vunpack.c.h.s8.bf16 %v675
        %v2012 = vunpack.c.h.s8.bf16 %v676
        %v2013 = vunpack.c.h.s8.bf16 %v677
        %v2014 = vunpack.c.l.s8.bf16 %v678
        %v2015 = vunpack.c.l.s8.bf16 %v679
        %v2016 = vunpack.c.l.s8.bf16 %v680
        %v2017 = vunpack.c.l.s8.bf16 %v681
        %v2018 = vunpack.c.h.s8.bf16 %v678
        %v2019 = vunpack.c.h.s8.bf16 %v679
        %v2020 = vunpack.c.h.s8.bf16 %v680
        %v2021 = vunpack.c.h.s8.bf16 %v681
        %v2022 = vunpack.c.l.s8.bf16 %v682
        %v2023 = vunpack.c.l.s8.bf16 %v683
        %v2024 = vunpack.c.l.s8.bf16 %v684
        %v2025 = vunpack.c.l.s8.bf16 %v685
        %v2026 = vunpack.c.h.s8.bf16 %v682
        %v2027 = vunpack.c.h.s8.bf16 %v683
        %v2028 = vunpack.c.h.s8.bf16 %v684
        %v2029 = vunpack.c.h.s8.bf16 %v685
        %v2030 = vunpack.c.l.s8.bf16 %v686
        %v2031 = vunpack.c.l.s8.bf16 %v687
        %v2032 = vunpack.c.l.s8.bf16 %v688
        %v2033 = vunpack.c.l.s8.bf16 %v689
        %v2034 = vunpack.c.h.s8.bf16 %v686
        %v2035 = vunpack.c.h.s8.bf16 %v687
        %v2036 = vunpack.c.h.s8.bf16 %v688
        %v2037 = vunpack.c.h.s8.bf16 %v689
        %v2038 = vunpack.c.l.s8.bf16 %v690
        %v2039 = vunpack.c.l.s8.bf16 %v691
        %v2040 = vunpack.c.l.s8.bf16 %v692
        %v2041 = vunpack.c.l.s8.bf16 %v693
        %v2042 = vunpack.c.h.s8.bf16 %v690
        %v2043 = vunpack.c.h.s8.bf16 %v691
        %v2044 = vunpack.c.h.s8.bf16 %v692
        %v2045 = vunpack.c.h.s8.bf16 %v693
        %v2046 = vunpack.c.l.s8.bf16 %v694
        %v2047 = vunpack.c.l.s8.bf16 %v695
        %v2048 = vunpack.c.l.s8.bf16 %v696
        %v2049 = vunpack.c.l.s8.bf16 %v697
        %v2050 = vunpack.c.h.s8.bf16 %v694
        %v2051 = vunpack.c.h.s8.bf16 %v695
        %v2052 = vunpack.c.h.s8.bf16 %v696
        %v2053 = vunpack.c.h.s8.bf16 %v697
        %v2054 = vunpack.c.l.s8.bf16 %v698
        %v2055 = vunpack.c.l.s8.bf16 %v699
        %v2056 = vunpack.c.l.s8.bf16 %v700
        %v2057 = vunpack.c.l.s8.bf16 %v701
        %v2058 = vunpack.c.h.s8.bf16 %v698
        %v2059 = vunpack.c.h.s8.bf16 %v699
        %v2060 = vunpack.c.h.s8.bf16 %v700
        %v2061 = vunpack.c.h.s8.bf16 %v701
        %v2062 = vunpack.c.l.s8.bf16 %v702
        %v2063 = vunpack.c.l.s8.bf16 %v703
        %v2064 = vunpack.c.l.s8.bf16 %v704
        %v2065 = vunpack.c.l.s8.bf16 %v705
        %v2066 = vunpack.c.h.s8.bf16 %v702
        %v2067 = vunpack.c.h.s8.bf16 %v703
        %v2068 = vunpack.c.h.s8.bf16 %v704
        %v2069 = vunpack.c.h.s8.bf16 %v705
        %v2070 = vunpack.c.l.s8.bf16 %v706
        %v2071 = vunpack.c.l.s8.bf16 %v707
        %v2072 = vunpack.c.l.s8.bf16 %v708
        %v2073 = vunpack.c.l.s8.bf16 %v709
        %v2074 = vunpack.c.h.s8.bf16 %v706
        %v2075 = vunpack.c.h.s8.bf16 %v707
        %v2076 = vunpack.c.h.s8.bf16 %v708
        %v2077 = vunpack.c.h.s8.bf16 %v709
        %v2078 = vunpack.c.l.s8.bf16 %v710
        %v2079 = vunpack.c.l.s8.bf16 %v711
        %v2080 = vunpack.c.l.s8.bf16 %v712
        %v2081 = vunpack.c.l.s8.bf16 %v713
        %v2082 = vunpack.c.h.s8.bf16 %v710
        %v2083 = vunpack.c.h.s8.bf16 %v711
        %v2084 = vunpack.c.h.s8.bf16 %v712
        %v2085 = vunpack.c.h.s8.bf16 %v713
        %v2086 = vunpack.c.l.s8.bf16 %v714
        %v2087 = vunpack.c.l.s8.bf16 %v715
        %v2088 = vunpack.c.l.s8.bf16 %v716
        %v2089 = vunpack.c.l.s8.bf16 %v717
        %v2090 = vunpack.c.h.s8.bf16 %v714
        %v2091 = vunpack.c.h.s8.bf16 %v715
        %v2092 = vunpack.c.h.s8.bf16 %v716
        %v2093 = vunpack.c.h.s8.bf16 %v717
        %v2094 = vunpack.c.l.s8.bf16 %v718
        %v2095 = vunpack.c.l.s8.bf16 %v719
        %v2096 = vunpack.c.l.s8.bf16 %v720
        %v2097 = vunpack.c.l.s8.bf16 %v721
        %v2098 = vunpack.c.h.s8.bf16 %v718
        %v2099 = vunpack.c.h.s8.bf16 %v719
        %v2100 = vunpack.c.h.s8.bf16 %v720
        %v2101 = vunpack.c.h.s8.bf16 %v721
        %v2102 = vunpack.c.l.s8.bf16 %v722
        %v2103 = vunpack.c.l.s8.bf16 %v723
        %v2104 = vunpack.c.l.s8.bf16 %v724
        %v2105 = vunpack.c.l.s8.bf16 %v725
        %v2106 = vunpack.c.h.s8.bf16 %v722
        %v2107 = vunpack.c.h.s8.bf16 %v723
        %v2108 = vunpack.c.h.s8.bf16 %v724
        %v2109 = vunpack.c.h.s8.bf16 %v725
        %v2110 = vunpack.c.l.s8.bf16 %v726
        %v2111 = vunpack.c.l.s8.bf16 %v727
        %v2112 = vunpack.c.l.s8.bf16 %v728
        %v2113 = vunpack.c.l.s8.bf16 %v729
        %v2114 = vunpack.c.h.s8.bf16 %v726
        %v2115 = vunpack.c.h.s8.bf16 %v727
        %v2116 = vunpack.c.h.s8.bf16 %v728
        %v2117 = vunpack.c.h.s8.bf16 %v729
        %v2118 = vunpack.c.l.s8.bf16 %v730
        %v2119 = vunpack.c.l.s8.bf16 %v731
        %v2120 = vunpack.c.l.s8.bf16 %v732
        %v2121 = vunpack.c.l.s8.bf16 %v733
        %v2122 = vunpack.c.h.s8.bf16 %v730
        %v2123 = vunpack.c.h.s8.bf16 %v731
        %v2124 = vunpack.c.h.s8.bf16 %v732
        %v2125 = vunpack.c.h.s8.bf16 %v733
        %v2126 = vunpack.c.l.s8.bf16 %v734
        %v2127 = vunpack.c.l.s8.bf16 %v735
        %v2128 = vunpack.c.l.s8.bf16 %v736
        %v2129 = vunpack.c.l.s8.bf16 %v737
        %v2130 = vunpack.c.h.s8.bf16 %v734
        %v2131 = vunpack.c.h.s8.bf16 %v735
        %v2132 = vunpack.c.h.s8.bf16 %v736
        %v2133 = vunpack.c.h.s8.bf16 %v737
        %v2134 = vunpack.c.l.s8.bf16 %v738
        %v2135 = vunpack.c.l.s8.bf16 %v739
        %v2136 = vunpack.c.l.s8.bf16 %v740
        %v2137 = vunpack.c.l.s8.bf16 %v741
        %v2138 = vunpack.c.h.s8.bf16 %v738
        %v2139 = vunpack.c.h.s8.bf16 %v739
        %v2140 = vunpack.c.h.s8.bf16 %v740
        %v2141 = vunpack.c.h.s8.bf16 %v741
        %v2142 = vunpack.c.l.s8.bf16 %v742
        %v2143 = vunpack.c.l.s8.bf16 %v743
        %v2144 = vunpack.c.l.s8.bf16 %v744
        %v2145 = vunpack.c.l.s8.bf16 %v745
        %v2146 = vunpack.c.h.s8.bf16 %v742
        %v2147 = vunpack.c.h.s8.bf16 %v743
        %v2148 = vunpack.c.h.s8.bf16 %v744
        %v2149 = vunpack.c.h.s8.bf16 %v745
        %v2150 = vunpack.c.l.s8.bf16 %v746
        %v2151 = vunpack.c.l.s8.bf16 %v747
        %v2152 = vunpack.c.l.s8.bf16 %v748
        %v2153 = vunpack.c.l.s8.bf16 %v749
        %v2154 = vunpack.c.h.s8.bf16 %v746
        %v2155 = vunpack.c.h.s8.bf16 %v747
        %v2156 = vunpack.c.h.s8.bf16 %v748
        %v2157 = vunpack.c.h.s8.bf16 %v749
        %v2158 = vunpack.c.l.s8.bf16 %v750
        %v2159 = vunpack.c.l.s8.bf16 %v751
        %v2160 = vunpack.c.l.s8.bf16 %v752
        %v2161 = vunpack.c.l.s8.bf16 %v753
        %v2162 = vunpack.c.h.s8.bf16 %v750
        %v2163 = vunpack.c.h.s8.bf16 %v751
        %v2164 = vunpack.c.h.s8.bf16 %v752
        %v2165 = vunpack.c.h.s8.bf16 %v753
        %v2166 = vunpack.c.l.s8.bf16 %v754
        %v2167 = vunpack.c.l.s8.bf16 %v755
        %v2168 = vunpack.c.l.s8.bf16 %v756
        %v2169 = vunpack.c.l.s8.bf16 %v757
        %v2170 = vunpack.c.h.s8.bf16 %v754
        %v2171 = vunpack.c.h.s8.bf16 %v755
        %v2172 = vunpack.c.h.s8.bf16 %v756
        %v2173 = vunpack.c.h.s8.bf16 %v757
        %v2174 = vunpack.c.l.s8.bf16 %v758
        %v2175 = vunpack.c.l.s8.bf16 %v759
        %v2176 = vunpack.c.l.s8.bf16 %v760
        %v2177 = vunpack.c.l.s8.bf16 %v761
        %v2178 = vunpack.c.h.s8.bf16 %v758
        %v2179 = vunpack.c.h.s8.bf16 %v759
        %v2180 = vunpack.c.h.s8.bf16 %v760
        %v2181 = vunpack.c.h.s8.bf16 %v761
        %v2182 = vunpack.c.l.s8.bf16 %v762
        %v2183 = vunpack.c.l.s8.bf16 %v763
        %v2184 = vunpack.c.l.s8.bf16 %v764
        %v2185 = vunpack.c.l.s8.bf16 %v765
        %v2186 = vunpack.c.h.s8.bf16 %v762
        %v2187 = vunpack.c.h.s8.bf16 %v763
        %v2188 = vunpack.c.h.s8.bf16 %v764
        %v2189 = vunpack.c.h.s8.bf16 %v765
        %v2190 = vunpack.c.l.s8.bf16 %v766
        %v2191 = vunpack.c.l.s8.bf16 %v767
        %v2192 = vunpack.c.l.s8.bf16 %v768
        %v2193 = vunpack.c.l.s8.bf16 %v769
        %v2194 = vunpack.c.h.s8.bf16 %v766
        %v2195 = vunpack.c.h.s8.bf16 %v767
        %v2196 = vunpack.c.h.s8.bf16 %v768
        %v2197 = vunpack.c.h.s8.bf16 %v769
        %v2198 = vunpack.c.l.s8.bf16 %v770
        %v2199 = vunpack.c.l.s8.bf16 %v771
        %v2200 = vunpack.c.l.s8.bf16 %v772
        %v2201 = vunpack.c.l.s8.bf16 %v773
        %v2202 = vunpack.c.h.s8.bf16 %v770
        %v2203 = vunpack.c.h.s8.bf16 %v771
        %v2204 = vunpack.c.h.s8.bf16 %v772
        %v2205 = vunpack.c.h.s8.bf16 %v773
        %v2206 = vunpack.c.l.s8.bf16 %v774
        %v2207 = vunpack.c.l.s8.bf16 %v775
        %v2208 = vunpack.c.l.s8.bf16 %v776
        %v2209 = vunpack.c.l.s8.bf16 %v777
        %v2210 = vunpack.c.h.s8.bf16 %v774
        %v2211 = vunpack.c.h.s8.bf16 %v775
        %v2212 = vunpack.c.h.s8.bf16 %v776
        %v2213 = vunpack.c.h.s8.bf16 %v777
        %v2214 = vunpack.c.l.s8.bf16 %v778
        %v2215 = vunpack.c.l.s8.bf16 %v779
        %v2216 = vunpack.c.l.s8.bf16 %v780
        %v2217 = vunpack.c.l.s8.bf16 %v781
        %v2218 = vunpack.c.h.s8.bf16 %v778
        %v2219 = vunpack.c.h.s8.bf16 %v779
        %v2220 = vunpack.c.h.s8.bf16 %v780
        %v2221 = vunpack.c.h.s8.bf16 %v781
        %v2222 = vunpack.c.l.s8.bf16 %v782
        %v2223 = vunpack.c.l.s8.bf16 %v783
        %v2224 = vunpack.c.l.s8.bf16 %v784
        %v2225 = vunpack.c.l.s8.bf16 %v785
        %v2226 = vunpack.c.h.s8.bf16 %v782
        %v2227 = vunpack.c.h.s8.bf16 %v783
        %v2228 = vunpack.c.h.s8.bf16 %v784
        %v2229 = vunpack.c.h.s8.bf16 %v785
        %v2230 = vunpack.c.l.s8.bf16 %v786
        %v2231 = vunpack.c.l.s8.bf16 %v787
        %v2232 = vunpack.c.l.s8.bf16 %v788
        %v2233 = vunpack.c.l.s8.bf16 %v789
        %v2234 = vunpack.c.h.s8.bf16 %v786
        %v2235 = vunpack.c.h.s8.bf16 %v787
        %v2236 = vunpack.c.h.s8.bf16 %v788
        %v2237 = vunpack.c.h.s8.bf16 %v789
        %v2238 = vunpack.c.l.s8.bf16 %v790
        %v2239 = vunpack.c.l.s8.bf16 %v791
        %v2240 = vunpack.c.l.s8.bf16 %v792
        %v2241 = vunpack.c.l.s8.bf16 %v793
        %v2242 = vunpack.c.h.s8.bf16 %v790
        %v2243 = vunpack.c.h.s8.bf16 %v791
        %v2244 = vunpack.c.h.s8.bf16 %v792
        %v2245 = vunpack.c.h.s8.bf16 %v793
        %v2246 = vunpack.c.l.s8.bf16 %v794
        %v2247 = vunpack.c.l.s8.bf16 %v795
        %v2248 = vunpack.c.l.s8.bf16 %v796
        %v2249 = vunpack.c.l.s8.bf16 %v797
        %v2250 = vunpack.c.h.s8.bf16 %v794
        %v2251 = vunpack.c.h.s8.bf16 %v795
        %v2252 = vunpack.c.h.s8.bf16 %v796
        %v2253 = vunpack.c.h.s8.bf16 %v797
        %v2254 = vunpack.c.l.s8.bf16 %v798
        %v2255 = vunpack.c.l.s8.bf16 %v799
        %v2256 = vunpack.c.l.s8.bf16 %v800
        %v2257 = vunpack.c.l.s8.bf16 %v801
        %v2258 = vunpack.c.h.s8.bf16 %v798
        %v2259 = vunpack.c.h.s8.bf16 %v799
        %v2260 = vunpack.c.h.s8.bf16 %v800
        %v2261 = vunpack.c.h.s8.bf16 %v801
        %v2262 = vunpack.c.l.s8.bf16 %v802
        %v2263 = vunpack.c.l.s8.bf16 %v803
        %v2264 = vunpack.c.l.s8.bf16 %v804
        %v2265 = vunpack.c.l.s8.bf16 %v805
        %v2266 = vunpack.c.h.s8.bf16 %v802
        %v2267 = vunpack.c.h.s8.bf16 %v803
        %v2268 = vunpack.c.h.s8.bf16 %v804
        %v2269 = vunpack.c.h.s8.bf16 %v805
        %v2270 = vunpack.c.l.s8.bf16 %v806
        %v2271 = vunpack.c.l.s8.bf16 %v807
        %v2272 = vunpack.c.l.s8.bf16 %v808
        %v2273 = vunpack.c.l.s8.bf16 %v809
        %v2274 = vunpack.c.h.s8.bf16 %v806
        %v2275 = vunpack.c.h.s8.bf16 %v807
        %v2276 = vunpack.c.h.s8.bf16 %v808
        %v2277 = vunpack.c.h.s8.bf16 %v809
        %v2278 = vunpack.c.l.s8.bf16 %v810
        %v2279 = vunpack.c.l.s8.bf16 %v811
        %v2280 = vunpack.c.l.s8.bf16 %v812
        %v2281 = vunpack.c.l.s8.bf16 %v813
        %v2282 = vunpack.c.h.s8.bf16 %v810
        %v2283 = vunpack.c.h.s8.bf16 %v811
        %v2284 = vunpack.c.h.s8.bf16 %v812
        %v2285 = vunpack.c.h.s8.bf16 %v813
        %v2286 = vunpack.c.l.s8.bf16 %v814
        %v2287 = vunpack.c.l.s8.bf16 %v815
        %v2288 = vunpack.c.l.s8.bf16 %v816
        %v2289 = vunpack.c.l.s8.bf16 %v817
        %v2290 = vunpack.c.h.s8.bf16 %v814
        %v2291 = vunpack.c.h.s8.bf16 %v815
        %v2292 = vunpack.c.h.s8.bf16 %v816
        %v2293 = vunpack.c.h.s8.bf16 %v817
        %v2294 = vunpack.c.l.s8.bf16 %v818
        %v2295 = vunpack.c.l.s8.bf16 %v819
        %v2296 = vunpack.c.l.s8.bf16 %v820
        %v2297 = vunpack.c.l.s8.bf16 %v821
        %v2298 = vunpack.c.h.s8.bf16 %v818
        %v2299 = vunpack.c.h.s8.bf16 %v819
        %v2300 = vunpack.c.h.s8.bf16 %v820
        %v2301 = vunpack.c.h.s8.bf16 %v821
        %v2302 = vunpack.c.l.s8.bf16 %v822
        %v2303 = vunpack.c.l.s8.bf16 %v823
        %v2304 = vunpack.c.l.s8.bf16 %v824
        %v2305 = vunpack.c.l.s8.bf16 %v825
        %v2306 = vunpack.c.h.s8.bf16 %v822
        %v2307 = vunpack.c.h.s8.bf16 %v823
        %v2308 = vunpack.c.h.s8.bf16 %v824
        %v2309 = vunpack.c.h.s8.bf16 %v825
        %v2310 = vunpack.c.l.s8.bf16 %v826
        %v2311 = vunpack.c.l.s8.bf16 %v827
        %v2312 = vunpack.c.l.s8.bf16 %v828
        %v2313 = vunpack.c.l.s8.bf16 %v829
        %v2314 = vunpack.c.h.s8.bf16 %v826
        %v2315 = vunpack.c.h.s8.bf16 %v827
        %v2316 = vunpack.c.h.s8.bf16 %v828
        %v2317 = vunpack.c.h.s8.bf16 %v829
        %v2318 = vunpack.c.l.s8.bf16 %v830
        %v2319 = vunpack.c.l.s8.bf16 %v831
        %v2320 = vunpack.c.l.s8.bf16 %v832
        %v2321 = vunpack.c.l.s8.bf16 %v833
        %v2322 = vunpack.c.h.s8.bf16 %v830
        %v2323 = vunpack.c.h.s8.bf16 %v831
        %v2324 = vunpack.c.h.s8.bf16 %v832
        %v2325 = vunpack.c.h.s8.bf16 %v833
        %v2326 = vunpack.c.l.s8.bf16 %v834
        %v2327 = vunpack.c.l.s8.bf16 %v835
        %v2328 = vunpack.c.l.s8.bf16 %v836
        %v2329 = vunpack.c.l.s8.bf16 %v837
        %v2330 = vunpack.c.h.s8.bf16 %v834
        %v2331 = vunpack.c.h.s8.bf16 %v835
        %v2332 = vunpack.c.h.s8.bf16 %v836
        %v2333 = vunpack.c.h.s8.bf16 %v837
        %v2334 = vunpack.c.l.s8.bf16 %v838
        %v2335 = vunpack.c.l.s8.bf16 %v839
        %v2336 = vunpack.c.l.s8.bf16 %v840
        %v2337 = vunpack.c.l.s8.bf16 %v841
        %v2338 = vunpack.c.h.s8.bf16 %v838
        %v2339 = vunpack.c.h.s8.bf16 %v839
        %v2340 = vunpack.c.h.s8.bf16 %v840
        %v2341 = vunpack.c.h.s8.bf16 %v841
        %v2342 = vunpack.c.l.s8.bf16 %v842
        %v2343 = vunpack.c.l.s8.bf16 %v843
        %v2344 = vunpack.c.l.s8.bf16 %v844
        %v2345 = vunpack.c.l.s8.bf16 %v845
        %v2346 = vunpack.c.h.s8.bf16 %v842
        %v2347 = vunpack.c.h.s8.bf16 %v843
        %v2348 = vunpack.c.h.s8.bf16 %v844
        %v2349 = vunpack.c.h.s8.bf16 %v845
        %v2350 = vunpack.c.l.s8.bf16 %v846
        %v2351 = vunpack.c.l.s8.bf16 %v847
        %v2352 = vunpack.c.l.s8.bf16 %v848
        %v2353 = vunpack.c.l.s8.bf16 %v849
        %v2354 = vunpack.c.h.s8.bf16 %v846
        %v2355 = vunpack.c.h.s8.bf16 %v847
        %v2356 = vunpack.c.h.s8.bf16 %v848
        %v2357 = vunpack.c.h.s8.bf16 %v849
        %v2358 = vunpack.c.l.s8.bf16 %v850
        %v2359 = vunpack.c.l.s8.bf16 %v851
        %v2360 = vunpack.c.l.s8.bf16 %v852
        %v2361 = vunpack.c.l.s8.bf16 %v853
        %v2362 = vunpack.c.h.s8.bf16 %v850
        %v2363 = vunpack.c.h.s8.bf16 %v851
        %v2364 = vunpack.c.h.s8.bf16 %v852
        %v2365 = vunpack.c.h.s8.bf16 %v853
        %v2366 = vunpack.c.l.s8.bf16 %v854
        %v2367 = vunpack.c.l.s8.bf16 %v855
        %v2368 = vunpack.c.l.s8.bf16 %v856
        %v2369 = vunpack.c.l.s8.bf16 %v857
        %v2370 = vunpack.c.h.s8.bf16 %v854
        %v2371 = vunpack.c.h.s8.bf16 %v855
        %v2372 = vunpack.c.h.s8.bf16 %v856
        %v2373 = vunpack.c.h.s8.bf16 %v857
        %v2374 = vunpack.c.l.s8.bf16 %v858
        %v2375 = vunpack.c.l.s8.bf16 %v859
        %v2376 = vunpack.c.l.s8.bf16 %v860
        %v2377 = vunpack.c.l.s8.bf16 %v861
        %v2378 = vunpack.c.h.s8.bf16 %v858
        %v2379 = vunpack.c.h.s8.bf16 %v859
        %v2380 = vunpack.c.h.s8.bf16 %v860
        %v2381 = vunpack.c.h.s8.bf16 %v861
        %v2382 = vunpack.c.l.s8.bf16 %v862
        %v2383 = vunpack.c.l.s8.bf16 %v863
        %v2384 = vunpack.c.l.s8.bf16 %v864
        %v2385 = vunpack.c.l.s8.bf16 %v865
        %v2386 = vunpack.c.h.s8.bf16 %v862
        %v2387 = vunpack.c.h.s8.bf16 %v863
        %v2388 = vunpack.c.h.s8.bf16 %v864
        %v2389 = vunpack.c.h.s8.bf16 %v865
        %v2390 = vunpack.c.l.s8.bf16 %v866
        %v2391 = vunpack.c.l.s8.bf16 %v867
        %v2392 = vunpack.c.l.s8.bf16 %v868
        %v2393 = vunpack.c.l.s8.bf16 %v869
        %v2394 = vunpack.c.h.s8.bf16 %v866
        %v2395 = vunpack.c.h.s8.bf16 %v867
        %v2396 = vunpack.c.h.s8.bf16 %v868
        %v2397 = vunpack.c.h.s8.bf16 %v869
        %v2398 = vunpack.c.l.s8.bf16 %v870
        %v2399 = vunpack.c.l.s8.bf16 %v871
        %v2400 = vunpack.c.l.s8.bf16 %v872
        %v2401 = vunpack.c.l.s8.bf16 %v873
        %v2402 = vunpack.c.h.s8.bf16 %v870
        %v2403 = vunpack.c.h.s8.bf16 %v871
        %v2404 = vunpack.c.h.s8.bf16 %v872
        %v2405 = vunpack.c.h.s8.bf16 %v873
        %v2406 = vunpack.c.l.s8.bf16 %v874
        %v2407 = vunpack.c.l.s8.bf16 %v875
        %v2408 = vunpack.c.l.s8.bf16 %v876
        %v2409 = vunpack.c.l.s8.bf16 %v877
        %v2410 = vunpack.c.h.s8.bf16 %v874
        %v2411 = vunpack.c.h.s8.bf16 %v875
        %v2412 = vunpack.c.h.s8.bf16 %v876
        %v2413 = vunpack.c.h.s8.bf16 %v877
        %v2414 = vunpack.c.l.s8.bf16 %v878
        %v2415 = vunpack.c.l.s8.bf16 %v879
        %v2416 = vunpack.c.l.s8.bf16 %v880
        %v2417 = vunpack.c.l.s8.bf16 %v881
        %v2418 = vunpack.c.h.s8.bf16 %v878
        %v2419 = vunpack.c.h.s8.bf16 %v879
        %v2420 = vunpack.c.h.s8.bf16 %v880
        %v2421 = vunpack.c.h.s8.bf16 %v881
        %v2422 = vunpack.c.l.s8.bf16 %v882
        %v2423 = vunpack.c.l.s8.bf16 %v883
        %v2424 = vunpack.c.l.s8.bf16 %v884
        %v2425 = vunpack.c.l.s8.bf16 %v885
        %v2426 = vunpack.c.h.s8.bf16 %v882
        %v2427 = vunpack.c.h.s8.bf16 %v883
        %v2428 = vunpack.c.h.s8.bf16 %v884
        %v2429 = vunpack.c.h.s8.bf16 %v885
        %v2430 = vunpack.c.l.s8.bf16 %v886
        %v2431 = vunpack.c.l.s8.bf16 %v887
        %v2432 = vunpack.c.l.s8.bf16 %v888
        %v2433 = vunpack.c.l.s8.bf16 %v889
        %v2434 = vunpack.c.h.s8.bf16 %v886
        %v2435 = vunpack.c.h.s8.bf16 %v887
        %v2436 = vunpack.c.h.s8.bf16 %v888
        %v2437 = vunpack.c.h.s8.bf16 %v889
        %v2438 = vunpack.c.l.s8.bf16 %v890
        %v2439 = vunpack.c.l.s8.bf16 %v891
        %v2440 = vunpack.c.l.s8.bf16 %v892
        %v2441 = vunpack.c.l.s8.bf16 %v893
        %v2442 = vunpack.c.h.s8.bf16 %v890
        %v2443 = vunpack.c.h.s8.bf16 %v891
        %v2444 = vunpack.c.h.s8.bf16 %v892
        %v2445 = vunpack.c.h.s8.bf16 %v893
        %v2446 = vunpack.c.l.s8.bf16 %v894
        %v2447 = vunpack.c.l.s8.bf16 %v895
        %v2448 = vunpack.c.l.s8.bf16 %v896
        %v2449 = vunpack.c.l.s8.bf16 %v897
        %v2450 = vunpack.c.h.s8.bf16 %v894
        %v2451 = vunpack.c.h.s8.bf16 %v895
        %v2452 = vunpack.c.h.s8.bf16 %v896
        %v2453 = vunpack.c.h.s8.bf16 %v897
        %v2454 = vunpack.c.l.s8.bf16 %v898
        %v2455 = vunpack.c.l.s8.bf16 %v899
        %v2456 = vunpack.c.l.s8.bf16 %v900
        %v2457 = vunpack.c.l.s8.bf16 %v901
        %v2458 = vunpack.c.h.s8.bf16 %v898
        %v2459 = vunpack.c.h.s8.bf16 %v899
        %v2460 = vunpack.c.h.s8.bf16 %v900
        %v2461 = vunpack.c.h.s8.bf16 %v901
        %v2462 = vunpack.c.l.s8.bf16 %v902
        %v2463 = vunpack.c.l.s8.bf16 %v903
        %v2464 = vunpack.c.l.s8.bf16 %v904
        %v2465 = vunpack.c.l.s8.bf16 %v905
        %v2466 = vunpack.c.h.s8.bf16 %v902
        %v2467 = vunpack.c.h.s8.bf16 %v903
        %v2468 = vunpack.c.h.s8.bf16 %v904
        %v2469 = vunpack.c.h.s8.bf16 %v905
        %v2470 = vunpack.c.l.s8.bf16 %v906
        %v2471 = vunpack.c.l.s8.bf16 %v907
        %v2472 = vunpack.c.l.s8.bf16 %v908
        %v2473 = vunpack.c.l.s8.bf16 %v909
        %v2474 = vunpack.c.h.s8.bf16 %v906
        %v2475 = vunpack.c.h.s8.bf16 %v907
        %v2476 = vunpack.c.h.s8.bf16 %v908
        %v2477 = vunpack.c.h.s8.bf16 %v909
        %v2478 = vunpack.c.l.s8.bf16 %v910
        %v2479 = vunpack.c.l.s8.bf16 %v911
        %v2480 = vunpack.c.l.s8.bf16 %v912
        %v2481 = vunpack.c.l.s8.bf16 %v913
        %v2482 = vunpack.c.h.s8.bf16 %v910
        %v2483 = vunpack.c.h.s8.bf16 %v911
        %v2484 = vunpack.c.h.s8.bf16 %v912
        %v2485 = vunpack.c.h.s8.bf16 %v913
        %v2486 = vunpack.c.l.s8.bf16 %v914
        %v2487 = vunpack.c.l.s8.bf16 %v915
        %v2488 = vunpack.c.l.s8.bf16 %v916
        %v2489 = vunpack.c.l.s8.bf16 %v917
        %v2490 = vunpack.c.h.s8.bf16 %v914
        %v2491 = vunpack.c.h.s8.bf16 %v915
        %v2492 = vunpack.c.h.s8.bf16 %v916
        %v2493 = vunpack.c.h.s8.bf16 %v917
        %v2494 = vunpack.c.l.s8.bf16 %v918
        %v2495 = vunpack.c.l.s8.bf16 %v919
        %v2496 = vunpack.c.l.s8.bf16 %v920
        %v2497 = vunpack.c.l.s8.bf16 %v921
        %v2498 = vunpack.c.h.s8.bf16 %v918
        %v2499 = vunpack.c.h.s8.bf16 %v919
        %v2500 = vunpack.c.h.s8.bf16 %v920
        %v2501 = vunpack.c.h.s8.bf16 %v921
        %v2502 = vunpack.c.l.s8.bf16 %v922
        %v2503 = vunpack.c.l.s8.bf16 %v923
        %v2504 = vunpack.c.l.s8.bf16 %v924
        %v2505 = vunpack.c.l.s8.bf16 %v925
        %v2506 = vunpack.c.h.s8.bf16 %v922
        %v2507 = vunpack.c.h.s8.bf16 %v923
        %v2508 = vunpack.c.h.s8.bf16 %v924
        %v2509 = vunpack.c.h.s8.bf16 %v925
        %v2510 = vunpack.c.l.s8.bf16 %v926
        %v2511 = vunpack.c.l.s8.bf16 %v927
        %v2512 = vunpack.c.l.s8.bf16 %v928
        %v2513 = vunpack.c.l.s8.bf16 %v929
        %v2514 = vunpack.c.h.s8.bf16 %v926
        %v2515 = vunpack.c.h.s8.bf16 %v927
        %v2516 = vunpack.c.h.s8.bf16 %v928
        %v2517 = vunpack.c.h.s8.bf16 %v929
        %v2518 = vunpack.c.l.s8.bf16 %v930
        %v2519 = vunpack.c.l.s8.bf16 %v931
        %v2520 = vunpack.c.l.s8.bf16 %v932
        %v2521 = vunpack.c.l.s8.bf16 %v933
        %v2522 = vunpack.c.h.s8.bf16 %v930
        %v2523 = vunpack.c.h.s8.bf16 %v931
        %v2524 = vunpack.c.h.s8.bf16 %v932
        %v2525 = vunpack.c.h.s8.bf16 %v933
        %v2526 = vunpack.c.l.s8.bf16 %v934
        %v2527 = vunpack.c.l.s8.bf16 %v935
        %v2528 = vunpack.c.l.s8.bf16 %v936
        %v2529 = vunpack.c.l.s8.bf16 %v937
        %v2530 = vunpack.c.h.s8.bf16 %v934
        %v2531 = vunpack.c.h.s8.bf16 %v935
        %v2532 = vunpack.c.h.s8.bf16 %v936
        %v2533 = vunpack.c.h.s8.bf16 %v937
        %v2534 = vunpack.c.l.s8.bf16 %v938
        %v2535 = vunpack.c.l.s8.bf16 %v939
        %v2536 = vunpack.c.l.s8.bf16 %v940
        %v2537 = vunpack.c.l.s8.bf16 %v941
        %v2538 = vunpack.c.h.s8.bf16 %v938
        %v2539 = vunpack.c.h.s8.bf16 %v939
        %v2540 = vunpack.c.h.s8.bf16 %v940
        %v2541 = vunpack.c.h.s8.bf16 %v941
        %v2542 = vunpack.c.l.s8.bf16 %v942
        %v2543 = vunpack.c.l.s8.bf16 %v943
        %v2544 = vunpack.c.l.s8.bf16 %v944
        %v2545 = vunpack.c.l.s8.bf16 %v945
        %v2546 = vunpack.c.h.s8.bf16 %v942
        %v2547 = vunpack.c.h.s8.bf16 %v943
        %v2548 = vunpack.c.h.s8.bf16 %v944
        %v2549 = vunpack.c.h.s8.bf16 %v945
        %v2550 = vunpack.c.l.s8.bf16 %v946
        %v2551 = vunpack.c.l.s8.bf16 %v947
        %v2552 = vunpack.c.l.s8.bf16 %v948
        %v2553 = vunpack.c.l.s8.bf16 %v949
        %v2554 = vunpack.c.h.s8.bf16 %v946
        %v2555 = vunpack.c.h.s8.bf16 %v947
        %v2556 = vunpack.c.h.s8.bf16 %v948
        %v2557 = vunpack.c.h.s8.bf16 %v949
        %v2558 = vunpack.c.l.s8.bf16 %v950
        %v2559 = vunpack.c.l.s8.bf16 %v951
        %v2560 = vunpack.c.l.s8.bf16 %v952
        %v2561 = vunpack.c.l.s8.bf16 %v953
        %v2562 = vunpack.c.h.s8.bf16 %v950
        %v2563 = vunpack.c.h.s8.bf16 %v951
        %v2564 = vunpack.c.h.s8.bf16 %v952
        %v2565 = vunpack.c.h.s8.bf16 %v953
        %v2566 = vunpack.c.l.s8.bf16 %v954
        %v2567 = vunpack.c.l.s8.bf16 %v955
        %v2568 = vunpack.c.l.s8.bf16 %v956
        %v2569 = vunpack.c.l.s8.bf16 %v957
        %v2570 = vunpack.c.h.s8.bf16 %v954
        %v2571 = vunpack.c.h.s8.bf16 %v955
        %v2572 = vunpack.c.h.s8.bf16 %v956
        %v2573 = vunpack.c.h.s8.bf16 %v957
        %v2574 = vunpack.c.l.s8.bf16 %v958
        %v2575 = vunpack.c.l.s8.bf16 %v959
        %v2576 = vunpack.c.l.s8.bf16 %v960
        %v2577 = vunpack.c.l.s8.bf16 %v961
        %v2578 = vunpack.c.h.s8.bf16 %v958
        %v2579 = vunpack.c.h.s8.bf16 %v959
        %v2580 = vunpack.c.h.s8.bf16 %v960
        %v2581 = vunpack.c.h.s8.bf16 %v961
        %v2582 = vunpack.c.l.s8.bf16 %v962
        %v2583 = vunpack.c.l.s8.bf16 %v963
        %v2584 = vunpack.c.l.s8.bf16 %v964
        %v2585 = vunpack.c.l.s8.bf16 %v965
        %v2586 = vunpack.c.h.s8.bf16 %v962
        %v2587 = vunpack.c.h.s8.bf16 %v963
        %v2588 = vunpack.c.h.s8.bf16 %v964
        %v2589 = vunpack.c.h.s8.bf16 %v965
        %v2590 = vunpack.c.l.s8.bf16 %v966
        %v2591 = vunpack.c.l.s8.bf16 %v967
        %v2592 = vunpack.c.l.s8.bf16 %v968
        %v2593 = vunpack.c.l.s8.bf16 %v969
        %v2594 = vunpack.c.h.s8.bf16 %v966
        %v2595 = vunpack.c.h.s8.bf16 %v967
        %v2596 = vunpack.c.h.s8.bf16 %v968
        %v2597 = vunpack.c.h.s8.bf16 %v969
        %v2598 = vunpack.c.l.s8.bf16 %v970
        %v2599 = vunpack.c.l.s8.bf16 %v971
        %v2600 = vunpack.c.l.s8.bf16 %v972
        %v2601 = vunpack.c.l.s8.bf16 %v973
        %v2602 = vunpack.c.h.s8.bf16 %v970
        %v2603 = vunpack.c.h.s8.bf16 %v971
        %v2604 = vunpack.c.h.s8.bf16 %v972
        %v2605 = vunpack.c.h.s8.bf16 %v973
        %v2606 = vunpack.c.l.s8.bf16 %v974
        %v2607 = vunpack.c.l.s8.bf16 %v975
        %v2608 = vunpack.c.l.s8.bf16 %v976
        %v2609 = vunpack.c.l.s8.bf16 %v977
        %v2610 = vunpack.c.h.s8.bf16 %v974
        %v2611 = vunpack.c.h.s8.bf16 %v975
        %v2612 = vunpack.c.h.s8.bf16 %v976
        %v2613 = vunpack.c.h.s8.bf16 %v977
        %v2614 = vunpack.c.l.s8.bf16 %v978
        %v2615 = vunpack.c.l.s8.bf16 %v979
        %v2616 = vunpack.c.l.s8.bf16 %v980
        %v2617 = vunpack.c.l.s8.bf16 %v981
        %v2618 = vunpack.c.h.s8.bf16 %v978
        %v2619 = vunpack.c.h.s8.bf16 %v979
        %v2620 = vunpack.c.h.s8.bf16 %v980
        %v2621 = vunpack.c.h.s8.bf16 %v981
        %v2622 = vunpack.c.l.s8.bf16 %v982
        %v2623 = vunpack.c.l.s8.bf16 %v983
        %v2624 = vunpack.c.l.s8.bf16 %v984
        %v2625 = vunpack.c.l.s8.bf16 %v985
        %v2626 = vunpack.c.h.s8.bf16 %v982
        %v2627 = vunpack.c.h.s8.bf16 %v983
        %v2628 = vunpack.c.h.s8.bf16 %v984
        %v2629 = vunpack.c.h.s8.bf16 %v985
        %v2630 = vunpack.c.l.s8.bf16 %v986
        %v2631 = vunpack.c.l.s8.bf16 %v987
        %v2632 = vunpack.c.l.s8.bf16 %v988
        %v2633 = vunpack.c.l.s8.bf16 %v989
        %v2634 = vunpack.c.h.s8.bf16 %v986
        %v2635 = vunpack.c.h.s8.bf16 %v987
        %v2636 = vunpack.c.h.s8.bf16 %v988
        %v2637 = vunpack.c.h.s8.bf16 %v989
        %v2638 = vunpack.c.l.s8.bf16 %v990
        %v2639 = vunpack.c.l.s8.bf16 %v991
        %v2640 = vunpack.c.l.s8.bf16 %v992
        %v2641 = vunpack.c.l.s8.bf16 %v993
        %v2642 = vunpack.c.h.s8.bf16 %v990
        %v2643 = vunpack.c.h.s8.bf16 %v991
        %v2644 = vunpack.c.h.s8.bf16 %v992
        %v2645 = vunpack.c.h.s8.bf16 %v993
        %v2646 = vunpack.c.l.s8.bf16 %v994
        %v2647 = vunpack.c.l.s8.bf16 %v995
        %v2648 = vunpack.c.l.s8.bf16 %v996
        %v2649 = vunpack.c.l.s8.bf16 %v997
        %v2650 = vunpack.c.h.s8.bf16 %v994
        %v2651 = vunpack.c.h.s8.bf16 %v995
        %v2652 = vunpack.c.h.s8.bf16 %v996
        %v2653 = vunpack.c.h.s8.bf16 %v997
        %v2654 = vunpack.c.l.s8.bf16 %v998
        %v2655 = vunpack.c.l.s8.bf16 %v999
        %v2656 = vunpack.c.l.s8.bf16 %v1000
        %v2657 = vunpack.c.l.s8.bf16 %v1001
        %v2658 = vunpack.c.h.s8.bf16 %v998
        %v2659 = vunpack.c.h.s8.bf16 %v999
        %v2660 = vunpack.c.h.s8.bf16 %v1000
        %v2661 = vunpack.c.h.s8.bf16 %v1001
        %v2662 = vunpack.c.l.s8.bf16 %v1002
        %v2663 = vunpack.c.l.s8.bf16 %v1003
        %v2664 = vunpack.c.l.s8.bf16 %v1004
        %v2665 = vunpack.c.l.s8.bf16 %v1005
        %v2666 = vunpack.c.h.s8.bf16 %v1002
        %v2667 = vunpack.c.h.s8.bf16 %v1003
        %v2668 = vunpack.c.h.s8.bf16 %v1004
        %v2669 = vunpack.c.h.s8.bf16 %v1005
        %v2670 = vunpack.c.l.s8.bf16 %v1006
        %v2671 = vunpack.c.l.s8.bf16 %v1007
        %v2672 = vunpack.c.l.s8.bf16 %v1008
        %v2673 = vunpack.c.l.s8.bf16 %v1009
        %v2674 = vunpack.c.h.s8.bf16 %v1006
        %v2675 = vunpack.c.h.s8.bf16 %v1007
        %v2676 = vunpack.c.h.s8.bf16 %v1008
        %v2677 = vunpack.c.h.s8.bf16 %v1009
        %v2678 = vunpack.c.l.s8.bf16 %v1010
        %v2679 = vunpack.c.l.s8.bf16 %v1011
        %v2680 = vunpack.c.l.s8.bf16 %v1012
        %v2681 = vunpack.c.l.s8.bf16 %v1013
        %v2682 = vunpack.c.h.s8.bf16 %v1010
        %v2683 = vunpack.c.h.s8.bf16 %v1011
        %v2684 = vunpack.c.h.s8.bf16 %v1012
        %v2685 = vunpack.c.h.s8.bf16 %v1013
        %v2686 = vunpack.c.l.s8.bf16 %v1014
        %v2687 = vunpack.c.l.s8.bf16 %v1015
        %v2688 = vunpack.c.l.s8.bf16 %v1016
        %v2689 = vunpack.c.l.s8.bf16 %v1017
        %v2690 = vunpack.c.h.s8.bf16 %v1014
        %v2691 = vunpack.c.h.s8.bf16 %v1015
        %v2692 = vunpack.c.h.s8.bf16 %v1016
        %v2693 = vunpack.c.h.s8.bf16 %v1017
        %v2694 = vunpack.c.l.s8.bf16 %v1018
        %v2695 = vunpack.c.l.s8.bf16 %v1019
        %v2696 = vunpack.c.l.s8.bf16 %v1020
        %v2697 = vunpack.c.l.s8.bf16 %v1021
        %v2698 = vunpack.c.h.s8.bf16 %v1018
        %v2699 = vunpack.c.h.s8.bf16 %v1019
        %v2700 = vunpack.c.h.s8.bf16 %v1020
        %v2701 = vunpack.c.h.s8.bf16 %v1021
        %v2702 = vunpack.c.l.s8.bf16 %v1022
        %v2703 = vunpack.c.l.s8.bf16 %v1023
        %v2704 = vunpack.c.l.s8.bf16 %v1024
        %v2705 = vunpack.c.l.s8.bf16 %v1025
        %v2706 = vunpack.c.h.s8.bf16 %v1022
        %v2707 = vunpack.c.h.s8.bf16 %v1023
        %v2708 = vunpack.c.h.s8.bf16 %v1024
        %v2709 = vunpack.c.h.s8.bf16 %v1025
        %v2710 = vunpack.c.l.s8.bf16 %v1026
        %v2711 = vunpack.c.l.s8.bf16 %v1027
        %v2712 = vunpack.c.l.s8.bf16 %v1028
        %v2713 = vunpack.c.l.s8.bf16 %v1029
        %v2714 = vunpack.c.h.s8.bf16 %v1026
        %v2715 = vunpack.c.h.s8.bf16 %v1027
        %v2716 = vunpack.c.h.s8.bf16 %v1028
        %v2717 = vunpack.c.h.s8.bf16 %v1029
        %v2718 = vunpack.c.l.s8.bf16 %v1030
        %v2719 = vunpack.c.l.s8.bf16 %v1031
        %v2720 = vunpack.c.l.s8.bf16 %v1032
        %v2721 = vunpack.c.l.s8.bf16 %v1033
        %v2722 = vunpack.c.h.s8.bf16 %v1030
        %v2723 = vunpack.c.h.s8.bf16 %v1031
        %v2724 = vunpack.c.h.s8.bf16 %v1032
        %v2725 = vunpack.c.h.s8.bf16 %v1033
        %v2726 = vunpack.c.l.s8.bf16 %v1034
        %v2727 = vunpack.c.l.s8.bf16 %v1035
        %v2728 = vunpack.c.l.s8.bf16 %v1036
        %v2729 = vunpack.c.l.s8.bf16 %v1037
        %v2730 = vunpack.c.h.s8.bf16 %v1034
        %v2731 = vunpack.c.h.s8.bf16 %v1035
        %v2732 = vunpack.c.h.s8.bf16 %v1036
        %v2733 = vunpack.c.h.s8.bf16 %v1037
        %v2734 = vunpack.c.l.s8.bf16 %v1038
        %v2735 = vunpack.c.l.s8.bf16 %v1039
        %v2736 = vunpack.c.l.s8.bf16 %v1040
        %v2737 = vunpack.c.l.s8.bf16 %v1041
        %v2738 = vunpack.c.h.s8.bf16 %v1038
        %v2739 = vunpack.c.h.s8.bf16 %v1039
        %v2740 = vunpack.c.h.s8.bf16 %v1040
        %v2741 = vunpack.c.h.s8.bf16 %v1041
        %v2742 = vunpack.c.l.s8.bf16 %v1042
        %v2743 = vunpack.c.l.s8.bf16 %v1043
        %v2744 = vunpack.c.l.s8.bf16 %v1044
        %v2745 = vunpack.c.l.s8.bf16 %v1045
        %v2746 = vunpack.c.h.s8.bf16 %v1042
        %v2747 = vunpack.c.h.s8.bf16 %v1043
        %v2748 = vunpack.c.h.s8.bf16 %v1044
        %v2749 = vunpack.c.h.s8.bf16 %v1045
        %v2750 = vunpack.c.l.s8.bf16 %v1046
        %v2751 = vunpack.c.l.s8.bf16 %v1047
        %v2752 = vunpack.c.l.s8.bf16 %v1048
        %v2753 = vunpack.c.l.s8.bf16 %v1049
        %v2754 = vunpack.c.h.s8.bf16 %v1046
        %v2755 = vunpack.c.h.s8.bf16 %v1047
        %v2756 = vunpack.c.h.s8.bf16 %v1048
        %v2757 = vunpack.c.h.s8.bf16 %v1049
        %v2758 = vunpack.c.l.s8.bf16 %v1050
        %v2759 = vunpack.c.l.s8.bf16 %v1051
        %v2760 = vunpack.c.l.s8.bf16 %v1052
        %v2761 = vunpack.c.l.s8.bf16 %v1053
        %v2762 = vunpack.c.h.s8.bf16 %v1050
        %v2763 = vunpack.c.h.s8.bf16 %v1051
        %v2764 = vunpack.c.h.s8.bf16 %v1052
        %v2765 = vunpack.c.h.s8.bf16 %v1053
        %v2766 = vunpack.c.l.s8.bf16 %v1054
        %v2767 = vunpack.c.l.s8.bf16 %v1055
        %v2768 = vunpack.c.l.s8.bf16 %v1056
        %v2769 = vunpack.c.l.s8.bf16 %v1057
        %v2770 = vunpack.c.h.s8.bf16 %v1054
        %v2771 = vunpack.c.h.s8.bf16 %v1055
        %v2772 = vunpack.c.h.s8.bf16 %v1056
        %v2773 = vunpack.c.h.s8.bf16 %v1057
        %v2774 = vunpack.c.l.s8.bf16 %v1058
        %v2775 = vunpack.c.l.s8.bf16 %v1059
        %v2776 = vunpack.c.l.s8.bf16 %v1060
        %v2777 = vunpack.c.l.s8.bf16 %v1061
        %v2778 = vunpack.c.h.s8.bf16 %v1058
        %v2779 = vunpack.c.h.s8.bf16 %v1059
        %v2780 = vunpack.c.h.s8.bf16 %v1060
        %v2781 = vunpack.c.h.s8.bf16 %v1061
        %v2782 = vunpack.c.l.s8.bf16 %v1062
        %v2783 = vunpack.c.l.s8.bf16 %v1063
        %v2784 = vunpack.c.l.s8.bf16 %v1064
        %v2785 = vunpack.c.l.s8.bf16 %v1065
        %v2786 = vunpack.c.h.s8.bf16 %v1062
        %v2787 = vunpack.c.h.s8.bf16 %v1063
        %v2788 = vunpack.c.h.s8.bf16 %v1064
        %v2789 = vunpack.c.h.s8.bf16 %v1065
        %v2790 = vunpack.c.l.s8.bf16 %v1066
        %v2791 = vunpack.c.l.s8.bf16 %v1067
        %v2792 = vunpack.c.l.s8.bf16 %v1068
        %v2793 = vunpack.c.l.s8.bf16 %v1069
        %v2794 = vunpack.c.h.s8.bf16 %v1066
        %v2795 = vunpack.c.h.s8.bf16 %v1067
        %v2796 = vunpack.c.h.s8.bf16 %v1068
        %v2797 = vunpack.c.h.s8.bf16 %v1069
        %v2798 = vunpack.c.l.s8.bf16 %v1070
        %v2799 = vunpack.c.l.s8.bf16 %v1071
        %v2800 = vunpack.c.l.s8.bf16 %v1072
        %v2801 = vunpack.c.l.s8.bf16 %v1073
        %v2802 = vunpack.c.h.s8.bf16 %v1070
        %v2803 = vunpack.c.h.s8.bf16 %v1071
        %v2804 = vunpack.c.h.s8.bf16 %v1072
        %v2805 = vunpack.c.h.s8.bf16 %v1073
        %v2806 = vunpack.c.l.s8.bf16 %v1074
        %v2807 = vunpack.c.l.s8.bf16 %v1075
        %v2808 = vunpack.c.l.s8.bf16 %v1076
        %v2809 = vunpack.c.l.s8.bf16 %v1077
        %v2810 = vunpack.c.h.s8.bf16 %v1074
        %v2811 = vunpack.c.h.s8.bf16 %v1075
        %v2812 = vunpack.c.h.s8.bf16 %v1076
        %v2813 = vunpack.c.h.s8.bf16 %v1077
        %v2814 = vunpack.c.l.s8.bf16 %v1078
        %v2815 = vunpack.c.l.s8.bf16 %v1079
        %v2816 = vunpack.c.l.s8.bf16 %v1080
        %v2817 = vunpack.c.l.s8.bf16 %v1081
        %v2818 = vunpack.c.h.s8.bf16 %v1078
        %v2819 = vunpack.c.h.s8.bf16 %v1079
        %v2820 = vunpack.c.h.s8.bf16 %v1080
        %v2821 = vunpack.c.h.s8.bf16 %v1081
        %v2822 = vunpack.c.l.s8.bf16 %v1082
        %v2823 = vunpack.c.l.s8.bf16 %v1083
        %v2824 = vunpack.c.l.s8.bf16 %v1084
        %v2825 = vunpack.c.l.s8.bf16 %v1085
        %v2826 = vunpack.c.h.s8.bf16 %v1082
        %v2827 = vunpack.c.h.s8.bf16 %v1083
        %v2828 = vunpack.c.h.s8.bf16 %v1084
        %v2829 = vunpack.c.h.s8.bf16 %v1085
        %v2830 = vunpack.c.l.s8.bf16 %v1086
        %v2831 = vunpack.c.l.s8.bf16 %v1087
        %v2832 = vunpack.c.l.s8.bf16 %v1088
        %v2833 = vunpack.c.l.s8.bf16 %v1089
        %v2834 = vunpack.c.h.s8.bf16 %v1086
        %v2835 = vunpack.c.h.s8.bf16 %v1087
        %v2836 = vunpack.c.h.s8.bf16 %v1088
        %v2837 = vunpack.c.h.s8.bf16 %v1089
        %v2838 = vunpack.c.l.s8.bf16 %v1090
        %v2839 = vunpack.c.l.s8.bf16 %v1091
        %v2840 = vunpack.c.l.s8.bf16 %v1092
        %v2841 = vunpack.c.l.s8.bf16 %v1093
        %v2842 = vunpack.c.h.s8.bf16 %v1090
        %v2843 = vunpack.c.h.s8.bf16 %v1091
        %v2844 = vunpack.c.h.s8.bf16 %v1092
        %v2845 = vunpack.c.h.s8.bf16 %v1093
        %v2846 = vunpack.c.l.s8.bf16 %v1094
        %v2847 = vunpack.c.l.s8.bf16 %v1095
        %v2848 = vunpack.c.l.s8.bf16 %v1096
        %v2849 = vunpack.c.l.s8.bf16 %v1097
        %v2850 = vunpack.c.h.s8.bf16 %v1094
        %v2851 = vunpack.c.h.s8.bf16 %v1095
        %v2852 = vunpack.c.h.s8.bf16 %v1096
        %v2853 = vunpack.c.h.s8.bf16 %v1097
        %v2854 = vunpack.c.l.s8.bf16 %v1098
        %v2855 = vunpack.c.l.s8.bf16 %v1099
        %v2856 = vunpack.c.l.s8.bf16 %v1100
        %v2857 = vunpack.c.l.s8.bf16 %v1101
        %v2858 = vunpack.c.h.s8.bf16 %v1098
        %v2859 = vunpack.c.h.s8.bf16 %v1099
        %v2860 = vunpack.c.h.s8.bf16 %v1100
        %v2861 = vunpack.c.h.s8.bf16 %v1101
        %v2862 = vunpack.c.l.s8.bf16 %v1102
        %v2863 = vunpack.c.l.s8.bf16 %v1103
        %v2864 = vunpack.c.l.s8.bf16 %v1104
        %v2865 = vunpack.c.l.s8.bf16 %v1105
        %v2866 = vunpack.c.h.s8.bf16 %v1102
        %v2867 = vunpack.c.h.s8.bf16 %v1103
        %v2868 = vunpack.c.h.s8.bf16 %v1104
        %v2869 = vunpack.c.h.s8.bf16 %v1105
        %v2870 = vunpack.c.l.s8.bf16 %v1106
        %v2871 = vunpack.c.l.s8.bf16 %v1107
        %v2872 = vunpack.c.l.s8.bf16 %v1108
        %v2873 = vunpack.c.l.s8.bf16 %v1109
        %v2874 = vunpack.c.h.s8.bf16 %v1106
        %v2875 = vunpack.c.h.s8.bf16 %v1107
        %v2876 = vunpack.c.h.s8.bf16 %v1108
        %v2877 = vunpack.c.h.s8.bf16 %v1109
        %v2878 = vunpack.c.l.s8.bf16 %v1110
        %v2879 = vunpack.c.l.s8.bf16 %v1111
        %v2880 = vunpack.c.l.s8.bf16 %v1112
        %v2881 = vunpack.c.l.s8.bf16 %v1113
        %v2882 = vunpack.c.h.s8.bf16 %v1110
        %v2883 = vunpack.c.h.s8.bf16 %v1111
        %v2884 = vunpack.c.h.s8.bf16 %v1112
        %v2885 = vunpack.c.h.s8.bf16 %v1113
        %v2886 = vunpack.c.l.s8.bf16 %v1114
        %v2887 = vunpack.c.l.s8.bf16 %v1115
        %v2888 = vunpack.c.l.s8.bf16 %v1116
        %v2889 = vunpack.c.l.s8.bf16 %v1117
        %v2890 = vunpack.c.h.s8.bf16 %v1114
        %v2891 = vunpack.c.h.s8.bf16 %v1115
        %v2892 = vunpack.c.h.s8.bf16 %v1116
        %v2893 = vunpack.c.h.s8.bf16 %v1117
        %v2894 = vunpack.c.l.s8.bf16 %v1118
        %v2895 = vunpack.c.l.s8.bf16 %v1119
        %v2896 = vunpack.c.l.s8.bf16 %v1120
        %v2897 = vunpack.c.l.s8.bf16 %v1121
        %v2898 = vunpack.c.h.s8.bf16 %v1118
        %v2899 = vunpack.c.h.s8.bf16 %v1119
        %v2900 = vunpack.c.h.s8.bf16 %v1120
        %v2901 = vunpack.c.h.s8.bf16 %v1121
        %v2902 = vunpack.c.l.s8.bf16 %v1122
        %v2903 = vunpack.c.l.s8.bf16 %v1123
        %v2904 = vunpack.c.l.s8.bf16 %v1124
        %v2905 = vunpack.c.l.s8.bf16 %v1125
        %v2906 = vunpack.c.h.s8.bf16 %v1122
        %v2907 = vunpack.c.h.s8.bf16 %v1123
        %v2908 = vunpack.c.h.s8.bf16 %v1124
        %v2909 = vunpack.c.h.s8.bf16 %v1125
        %v2910 = vunpack.c.l.s8.bf16 %v1126
        %v2911 = vunpack.c.l.s8.bf16 %v1127
        %v2912 = vunpack.c.l.s8.bf16 %v1128
        %v2913 = vunpack.c.l.s8.bf16 %v1129
        %v2914 = vunpack.c.h.s8.bf16 %v1126
        %v2915 = vunpack.c.h.s8.bf16 %v1127
        %v2916 = vunpack.c.h.s8.bf16 %v1128
        %v2917 = vunpack.c.h.s8.bf16 %v1129
        %v2918 = vunpack.c.l.s8.bf16 %v1130
        %v2919 = vunpack.c.l.s8.bf16 %v1131
        %v2920 = vunpack.c.l.s8.bf16 %v1132
        %v2921 = vunpack.c.l.s8.bf16 %v1133
        %v2922 = vunpack.c.h.s8.bf16 %v1130
        %v2923 = vunpack.c.h.s8.bf16 %v1131
        %v2924 = vunpack.c.h.s8.bf16 %v1132
        %v2925 = vunpack.c.h.s8.bf16 %v1133
        %v2926 = vunpack.c.l.s8.bf16 %v1134
        %v2927 = vunpack.c.l.s8.bf16 %v1135
        %v2928 = vunpack.c.l.s8.bf16 %v1136
        %v2929 = vunpack.c.l.s8.bf16 %v1137
        %v2930 = vunpack.c.h.s8.bf16 %v1134
        %v2931 = vunpack.c.h.s8.bf16 %v1135
        %v2932 = vunpack.c.h.s8.bf16 %v1136
        %v2933 = vunpack.c.h.s8.bf16 %v1137
        %v2934 = vunpack.c.l.s8.bf16 %v1138
        %v2935 = vunpack.c.l.s8.bf16 %v1139
        %v2936 = vunpack.c.l.s8.bf16 %v1140
        %v2937 = vunpack.c.l.s8.bf16 %v1141
        %v2938 = vunpack.c.h.s8.bf16 %v1138
        %v2939 = vunpack.c.h.s8.bf16 %v1139
        %v2940 = vunpack.c.h.s8.bf16 %v1140
        %v2941 = vunpack.c.h.s8.bf16 %v1141
        %v2942 = vunpack.c.l.s8.bf16 %v1142
        %v2943 = vunpack.c.l.s8.bf16 %v1143
        %v2944 = vunpack.c.l.s8.bf16 %v1144
        %v2945 = vunpack.c.l.s8.bf16 %v1145
        %v2946 = vunpack.c.h.s8.bf16 %v1142
        %v2947 = vunpack.c.h.s8.bf16 %v1143
        %v2948 = vunpack.c.h.s8.bf16 %v1144
        %v2949 = vunpack.c.h.s8.bf16 %v1145
        %v2950 = vunpack.c.l.s8.bf16 %v1146
        %v2951 = vunpack.c.l.s8.bf16 %v1147
        %v2952 = vunpack.c.l.s8.bf16 %v1148
        %v2953 = vunpack.c.l.s8.bf16 %v1149
        %v2954 = vunpack.c.h.s8.bf16 %v1146
        %v2955 = vunpack.c.h.s8.bf16 %v1147
        %v2956 = vunpack.c.h.s8.bf16 %v1148
        %v2957 = vunpack.c.h.s8.bf16 %v1149
        %v2958 = vunpack.c.l.s8.bf16 %v1150
        %v2959 = vunpack.c.l.s8.bf16 %v1151
        %v2960 = vunpack.c.l.s8.bf16 %v1152
        %v2961 = vunpack.c.l.s8.bf16 %v1153
        %v2962 = vunpack.c.h.s8.bf16 %v1150
        %v2963 = vunpack.c.h.s8.bf16 %v1151
        %v2964 = vunpack.c.h.s8.bf16 %v1152
        %v2965 = vunpack.c.h.s8.bf16 %v1153
        %v2966 = vunpack.c.l.s8.bf16 %v1154
        %v2967 = vunpack.c.l.s8.bf16 %v1155
        %v2968 = vunpack.c.l.s8.bf16 %v1156
        %v2969 = vunpack.c.l.s8.bf16 %v1157
        %v2970 = vunpack.c.h.s8.bf16 %v1154
        %v2971 = vunpack.c.h.s8.bf16 %v1155
        %v2972 = vunpack.c.h.s8.bf16 %v1156
        %v2973 = vunpack.c.h.s8.bf16 %v1157
        %v2974 = vunpack.c.l.s8.bf16 %v1158
        %v2975 = vunpack.c.l.s8.bf16 %v1159
        %v2976 = vunpack.c.l.s8.bf16 %v1160
        %v2977 = vunpack.c.l.s8.bf16 %v1161
        %v2978 = vunpack.c.h.s8.bf16 %v1158
        %v2979 = vunpack.c.h.s8.bf16 %v1159
        %v2980 = vunpack.c.h.s8.bf16 %v1160
        %v2981 = vunpack.c.h.s8.bf16 %v1161
        %v2982 = vunpack.c.l.s8.bf16 %v1162
        %v2983 = vunpack.c.l.s8.bf16 %v1163
        %v2984 = vunpack.c.l.s8.bf16 %v1164
        %v2985 = vunpack.c.l.s8.bf16 %v1165
        %v2986 = vunpack.c.h.s8.bf16 %v1162
        %v2987 = vunpack.c.h.s8.bf16 %v1163
        %v2988 = vunpack.c.h.s8.bf16 %v1164
        %v2989 = vunpack.c.h.s8.bf16 %v1165
        %v2990 = vunpack.c.l.s8.bf16 %v1166
        %v2991 = vunpack.c.l.s8.bf16 %v1167
        %v2992 = vunpack.c.l.s8.bf16 %v1168
        %v2993 = vunpack.c.l.s8.bf16 %v1169
        %v2994 = vunpack.c.h.s8.bf16 %v1166
        %v2995 = vunpack.c.h.s8.bf16 %v1167
        %v2996 = vunpack.c.h.s8.bf16 %v1168
        %v2997 = vunpack.c.h.s8.bf16 %v1169
        %v2998 = vunpack.c.l.s8.bf16 %v1170
        %v2999 = vunpack.c.l.s8.bf16 %v1171
        %v3000 = vunpack.c.l.s8.bf16 %v1172
        %v3001 = vunpack.c.l.s8.bf16 %v1173
        %v3002 = vunpack.c.h.s8.bf16 %v1170
        %v3003 = vunpack.c.h.s8.bf16 %v1171
        %v3004 = vunpack.c.h.s8.bf16 %v1172
        %v3005 = vunpack.c.h.s8.bf16 %v1173
        %v3006 = vunpack.c.l.s8.bf16 %v1174
        %v3007 = vunpack.c.l.s8.bf16 %v1175
        %v3008 = vunpack.c.l.s8.bf16 %v1176
        %v3009 = vunpack.c.l.s8.bf16 %v1177
        %v3010 = vunpack.c.h.s8.bf16 %v1174
        %v3011 = vunpack.c.h.s8.bf16 %v1175
        %v3012 = vunpack.c.h.s8.bf16 %v1176
        %v3013 = vunpack.c.h.s8.bf16 %v1177
        %v3014 = vunpack.c.l.s8.bf16 %v1178
        %v3015 = vunpack.c.l.s8.bf16 %v1179
        %v3016 = vunpack.c.l.s8.bf16 %v1180
        %v3017 = vunpack.c.l.s8.bf16 %v1181
        %v3018 = vunpack.c.h.s8.bf16 %v1178
        %v3019 = vunpack.c.h.s8.bf16 %v1179
        %v3020 = vunpack.c.h.s8.bf16 %v1180
        %v3021 = vunpack.c.h.s8.bf16 %v1181
        %v3022 = vunpack.c.l.s8.bf16 %v1182
        %v3023 = vunpack.c.l.s8.bf16 %v1183
        %v3024 = vunpack.c.l.s8.bf16 %v1184
        %v3025 = vunpack.c.l.s8.bf16 %v1185
        %v3026 = vunpack.c.h.s8.bf16 %v1182
        %v3027 = vunpack.c.h.s8.bf16 %v1183
        %v3028 = vunpack.c.h.s8.bf16 %v1184
        %v3029 = vunpack.c.h.s8.bf16 %v1185
        %v3030 = vunpack.c.l.s8.bf16 %v1186
        %v3031 = vunpack.c.l.s8.bf16 %v1187
        %v3032 = vunpack.c.l.s8.bf16 %v1188
        %v3033 = vunpack.c.l.s8.bf16 %v1189
        %v3034 = vunpack.c.h.s8.bf16 %v1186
        %v3035 = vunpack.c.h.s8.bf16 %v1187
        %v3036 = vunpack.c.h.s8.bf16 %v1188
        %v3037 = vunpack.c.h.s8.bf16 %v1189
        %v3038 = vunpack.c.l.s8.bf16 %v1190
        %v3039 = vunpack.c.l.s8.bf16 %v1191
        %v3040 = vunpack.c.l.s8.bf16 %v1192
        %v3041 = vunpack.c.l.s8.bf16 %v1193
        %v3042 = vunpack.c.h.s8.bf16 %v1190
        %v3043 = vunpack.c.h.s8.bf16 %v1191
        %v3044 = vunpack.c.h.s8.bf16 %v1192
        %v3045 = vunpack.c.h.s8.bf16 %v1193
        %v3046 = vunpack.c.l.s8.bf16 %v1194
        %v3047 = vunpack.c.l.s8.bf16 %v1195
        %v3048 = vunpack.c.l.s8.bf16 %v1196
        %v3049 = vunpack.c.l.s8.bf16 %v1197
        %v3050 = vunpack.c.h.s8.bf16 %v1194
        %v3051 = vunpack.c.h.s8.bf16 %v1195
        %v3052 = vunpack.c.h.s8.bf16 %v1196
        %v3053 = vunpack.c.h.s8.bf16 %v1197
        %v3054 = vunpack.c.l.s8.bf16 %v1198
        %v3055 = vunpack.c.l.s8.bf16 %v1199
        %v3056 = vunpack.c.l.s8.bf16 %v1200
        %v3057 = vunpack.c.l.s8.bf16 %v1201
        %v3058 = vunpack.c.h.s8.bf16 %v1198
        %v3059 = vunpack.c.h.s8.bf16 %v1199
        %v3060 = vunpack.c.h.s8.bf16 %v1200
        %v3061 = vunpack.c.h.s8.bf16 %v1201
        %v3062 = vunpack.c.l.s8.bf16 %v1202
        %v3063 = vunpack.c.l.s8.bf16 %v1203
        %v3064 = vunpack.c.l.s8.bf16 %v1204
        %v3065 = vunpack.c.l.s8.bf16 %v1205
        %v3066 = vunpack.c.h.s8.bf16 %v1202
        %v3067 = vunpack.c.h.s8.bf16 %v1203
        %v3068 = vunpack.c.h.s8.bf16 %v1204
        %v3069 = vunpack.c.h.s8.bf16 %v1205
        %v3070 = vunpack.c.l.s8.bf16 %v1206
        %v3071 = vunpack.c.l.s8.bf16 %v1207
        %v3072 = vunpack.c.l.s8.bf16 %v1208
        %v3073 = vunpack.c.l.s8.bf16 %v1209
        %v3074 = vunpack.c.h.s8.bf16 %v1206
        %v3075 = vunpack.c.h.s8.bf16 %v1207
        %v3076 = vunpack.c.h.s8.bf16 %v1208
        %v3077 = vunpack.c.h.s8.bf16 %v1209
        %v3078 = vunpack.c.l.s8.bf16 %v1210
        %v3079 = vunpack.c.l.s8.bf16 %v1211
        %v3080 = vunpack.c.l.s8.bf16 %v1212
        %v3081 = vunpack.c.l.s8.bf16 %v1213
        %v3082 = vunpack.c.h.s8.bf16 %v1210
        %v3083 = vunpack.c.h.s8.bf16 %v1211
        %v3084 = vunpack.c.h.s8.bf16 %v1212
        %v3085 = vunpack.c.h.s8.bf16 %v1213
        %v3086 = vunpack.c.l.s8.bf16 %v1214
        %v3087 = vunpack.c.l.s8.bf16 %v1215
        %v3088 = vunpack.c.l.s8.bf16 %v1216
        %v3089 = vunpack.c.l.s8.bf16 %v1217
        %v3090 = vunpack.c.h.s8.bf16 %v1214
        %v3091 = vunpack.c.h.s8.bf16 %v1215
        %v3092 = vunpack.c.h.s8.bf16 %v1216
        %v3093 = vunpack.c.h.s8.bf16 %v1217
        %v3094 = vunpack.c.l.s8.bf16 %v1218
        %v3095 = vunpack.c.l.s8.bf16 %v1219
        %v3096 = vunpack.c.l.s8.bf16 %v1220
        %v3097 = vunpack.c.l.s8.bf16 %v1221
        %v3098 = vunpack.c.h.s8.bf16 %v1218
        %v3099 = vunpack.c.h.s8.bf16 %v1219
        %v3100 = vunpack.c.h.s8.bf16 %v1220
        %v3101 = vunpack.c.h.s8.bf16 %v1221
        %v3102 = vunpack.c.l.s8.bf16 %v1222
        %v3103 = vunpack.c.l.s8.bf16 %v1223
        %v3104 = vunpack.c.l.s8.bf16 %v1224
        %v3105 = vunpack.c.l.s8.bf16 %v1225
        %v3106 = vunpack.c.h.s8.bf16 %v1222
        %v3107 = vunpack.c.h.s8.bf16 %v1223
        %v3108 = vunpack.c.h.s8.bf16 %v1224
        %v3109 = vunpack.c.h.s8.bf16 %v1225
        %v3110 = vunpack.c.l.s8.bf16 %v1226
        %v3111 = vunpack.c.l.s8.bf16 %v1227
        %v3112 = vunpack.c.l.s8.bf16 %v1228
        %v3113 = vunpack.c.l.s8.bf16 %v1229
        %v3114 = vunpack.c.h.s8.bf16 %v1226
        %v3115 = vunpack.c.h.s8.bf16 %v1227
        %v3116 = vunpack.c.h.s8.bf16 %v1228
        %v3117 = vunpack.c.h.s8.bf16 %v1229
        %v3118 = vunpack.c.l.s8.bf16 %v1230
        %v3119 = vunpack.c.l.s8.bf16 %v1231
        %v3120 = vunpack.c.l.s8.bf16 %v1232
        %v3121 = vunpack.c.l.s8.bf16 %v1233
        %v3122 = vunpack.c.h.s8.bf16 %v1230
        %v3123 = vunpack.c.h.s8.bf16 %v1231
        %v3124 = vunpack.c.h.s8.bf16 %v1232
        %v3125 = vunpack.c.h.s8.bf16 %v1233
        %v3126 = vunpack.c.l.s8.bf16 %v1234
        %v3127 = vunpack.c.l.s8.bf16 %v1235
        %v3128 = vunpack.c.l.s8.bf16 %v1236
        %v3129 = vunpack.c.l.s8.bf16 %v1237
        %v3130 = vunpack.c.h.s8.bf16 %v1234
        %v3131 = vunpack.c.h.s8.bf16 %v1235
        %v3132 = vunpack.c.h.s8.bf16 %v1236
        %v3133 = vunpack.c.h.s8.bf16 %v1237
        %v3134 = vunpack.c.l.s8.bf16 %v1238
        %v3135 = vunpack.c.l.s8.bf16 %v1239
        %v3136 = vunpack.c.l.s8.bf16 %v1240
        %v3137 = vunpack.c.l.s8.bf16 %v1241
        %v3138 = vunpack.c.h.s8.bf16 %v1238
        %v3139 = vunpack.c.h.s8.bf16 %v1239
        %v3140 = vunpack.c.h.s8.bf16 %v1240
        %v3141 = vunpack.c.h.s8.bf16 %v1241
        %v3142 = vunpack.c.l.s8.bf16 %v1242
        %v3143 = vunpack.c.l.s8.bf16 %v1243
        %v3144 = vunpack.c.l.s8.bf16 %v1244
        %v3145 = vunpack.c.l.s8.bf16 %v1245
        %v3146 = vunpack.c.h.s8.bf16 %v1242
        %v3147 = vunpack.c.h.s8.bf16 %v1243
        %v3148 = vunpack.c.h.s8.bf16 %v1244
        %v3149 = vunpack.c.h.s8.bf16 %v1245
        %v3150 = vunpack.c.l.s8.bf16 %v1246
        %v3151 = vunpack.c.l.s8.bf16 %v1247
        %v3152 = vunpack.c.l.s8.bf16 %v1248
        %v3153 = vunpack.c.l.s8.bf16 %v1249
        %v3154 = vunpack.c.h.s8.bf16 %v1246
        %v3155 = vunpack.c.h.s8.bf16 %v1247
        %v3156 = vunpack.c.h.s8.bf16 %v1248
        %v3157 = vunpack.c.h.s8.bf16 %v1249
        %v3158 = vunpack.c.l.s8.bf16 %v1250
        %v3159 = vunpack.c.l.s8.bf16 %v1251
        %v3160 = vunpack.c.l.s8.bf16 %v1252
        %v3161 = vunpack.c.l.s8.bf16 %v1253
        %v3162 = vunpack.c.h.s8.bf16 %v1250
        %v3163 = vunpack.c.h.s8.bf16 %v1251
        %v3164 = vunpack.c.h.s8.bf16 %v1252
        %v3165 = vunpack.c.h.s8.bf16 %v1253
        %v3166 = vunpack.c.l.s8.bf16 %v1254
        %v3167 = vunpack.c.l.s8.bf16 %v1255
        %v3168 = vunpack.c.l.s8.bf16 %v1256
        %v3169 = vunpack.c.l.s8.bf16 %v1257
        %v3170 = vunpack.c.h.s8.bf16 %v1254
        %v3171 = vunpack.c.h.s8.bf16 %v1255
        %v3172 = vunpack.c.h.s8.bf16 %v1256
        %v3173 = vunpack.c.h.s8.bf16 %v1257
        %v3174 = vunpack.c.l.s8.bf16 %v1258
        %v3175 = vunpack.c.l.s8.bf16 %v1259
        %v3176 = vunpack.c.l.s8.bf16 %v1260
        %v3177 = vunpack.c.l.s8.bf16 %v1261
        %v3178 = vunpack.c.h.s8.bf16 %v1258
        %v3179 = vunpack.c.h.s8.bf16 %v1259
        %v3180 = vunpack.c.h.s8.bf16 %v1260
        %v3181 = vunpack.c.h.s8.bf16 %v1261
        %v3182 = vunpack.c.l.s8.bf16 %v1262
        %v3183 = vunpack.c.l.s8.bf16 %v1263
        %v3184 = vunpack.c.l.s8.bf16 %v1264
        %v3185 = vunpack.c.l.s8.bf16 %v1265
        %v3186 = vunpack.c.h.s8.bf16 %v1262
        %v3187 = vunpack.c.h.s8.bf16 %v1263
        %v3188 = vunpack.c.h.s8.bf16 %v1264
        %v3189 = vunpack.c.h.s8.bf16 %v1265
        %v3190 = vunpack.c.l.s8.bf16 %v1266
        %v3191 = vunpack.c.l.s8.bf16 %v1267
        %v3192 = vunpack.c.l.s8.bf16 %v1268
        %v3193 = vunpack.c.l.s8.bf16 %v1269
        %v3194 = vunpack.c.h.s8.bf16 %v1266
        %v3195 = vunpack.c.h.s8.bf16 %v1267
        %v3196 = vunpack.c.h.s8.bf16 %v1268
        %v3197 = vunpack.c.h.s8.bf16 %v1269
        %v3198 = vunpack.c.l.s8.bf16 %v1270
        %v3199 = vunpack.c.l.s8.bf16 %v1271
        %v3200 = vunpack.c.l.s8.bf16 %v1272
        %v3201 = vunpack.c.l.s8.bf16 %v1273
        %v3202 = vunpack.c.h.s8.bf16 %v1270
        %v3203 = vunpack.c.h.s8.bf16 %v1271
        %v3204 = vunpack.c.h.s8.bf16 %v1272
        %v3205 = vunpack.c.h.s8.bf16 %v1273
        %v3206 = vunpack.c.l.s8.bf16 %v1274
        %v3207 = vunpack.c.l.s8.bf16 %v1275
        %v3208 = vunpack.c.l.s8.bf16 %v1276
        %v3209 = vunpack.c.l.s8.bf16 %v1277
        %v3210 = vunpack.c.h.s8.bf16 %v1274
        %v3211 = vunpack.c.h.s8.bf16 %v1275
        %v3212 = vunpack.c.h.s8.bf16 %v1276
        %v3213 = vunpack.c.h.s8.bf16 %v1277
        %v3214 = vunpack.c.l.s8.bf16 %v1278
        %v3215 = vunpack.c.l.s8.bf16 %v1279
        %v3216 = vunpack.c.l.s8.bf16 %v1280
        %v3217 = vunpack.c.l.s8.bf16 %v1281
        %v3218 = vunpack.c.h.s8.bf16 %v1278
        %v3219 = vunpack.c.h.s8.bf16 %v1279
        %v3220 = vunpack.c.h.s8.bf16 %v1280
        %v3221 = vunpack.c.h.s8.bf16 %v1281
        %v3222 = vunpack.c.l.s8.bf16 %v1282
        %v3223 = vunpack.c.l.s8.bf16 %v1283
        %v3224 = vunpack.c.l.s8.bf16 %v1284
        %v3225 = vunpack.c.l.s8.bf16 %v1285
        %v3226 = vunpack.c.h.s8.bf16 %v1282
        %v3227 = vunpack.c.h.s8.bf16 %v1283
        %v3228 = vunpack.c.h.s8.bf16 %v1284
        %v3229 = vunpack.c.h.s8.bf16 %v1285
        %v3230 = vunpack.c.l.s8.bf16 %v1286
        %v3231 = vunpack.c.l.s8.bf16 %v1287
        %v3232 = vunpack.c.l.s8.bf16 %v1288
        %v3233 = vunpack.c.l.s8.bf16 %v1289
        %v3234 = vunpack.c.h.s8.bf16 %v1286
        %v3235 = vunpack.c.h.s8.bf16 %v1287
        %v3236 = vunpack.c.h.s8.bf16 %v1288
        %v3237 = vunpack.c.h.s8.bf16 %v1289
        %v3238 = vunpack.c.l.s8.bf16 %v1290
        %v3239 = vunpack.c.l.s8.bf16 %v1291
        %v3240 = vunpack.c.l.s8.bf16 %v1292
        %v3241 = vunpack.c.l.s8.bf16 %v1293
        %v3242 = vunpack.c.h.s8.bf16 %v1290
        %v3243 = vunpack.c.h.s8.bf16 %v1291
        %v3244 = vunpack.c.h.s8.bf16 %v1292
        %v3245 = vunpack.c.h.s8.bf16 %v1293
        %v3246 = vunpack.c.l.s8.bf16 %v1294
        %v3247 = vunpack.c.l.s8.bf16 %v1295
        %v3248 = vunpack.c.l.s8.bf16 %v1296
        %v3249 = vunpack.c.l.s8.bf16 %v1297
        %v3250 = vunpack.c.h.s8.bf16 %v1294
        %v3251 = vunpack.c.h.s8.bf16 %v1295
        %v3252 = vunpack.c.h.s8.bf16 %v1296
        %v3253 = vunpack.c.h.s8.bf16 %v1297
        %v3254 = vunpack.c.l.s8.bf16 %v1298
        %v3255 = vunpack.c.l.s8.bf16 %v1299
        %v3256 = vunpack.c.l.s8.bf16 %v1300
        %v3257 = vunpack.c.l.s8.bf16 %v1301
        %v3258 = vunpack.c.h.s8.bf16 %v1298
        %v3259 = vunpack.c.h.s8.bf16 %v1299
        %v3260 = vunpack.c.h.s8.bf16 %v1300
        %v3261 = vunpack.c.h.s8.bf16 %v1301
        %v3262 = vunpack.c.l.s8.bf16 %v1302
        %v3263 = vunpack.c.l.s8.bf16 %v1303
        %v3264 = vunpack.c.l.s8.bf16 %v1304
        %v3265 = vunpack.c.l.s8.bf16 %v1305
        %v3266 = vunpack.c.h.s8.bf16 %v1302
        %v3267 = vunpack.c.h.s8.bf16 %v1303
        %v3268 = vunpack.c.h.s8.bf16 %v1304
        %v3269 = vunpack.c.h.s8.bf16 %v1305
        %v3270 = vunpack.c.l.s8.bf16 %v1306
        %v3271 = vunpack.c.l.s8.bf16 %v1307
        %v3272 = vunpack.c.l.s8.bf16 %v1308
        %v3273 = vunpack.c.l.s8.bf16 %v1309
        %v3274 = vunpack.c.h.s8.bf16 %v1306
        %v3275 = vunpack.c.h.s8.bf16 %v1307
        %v3276 = vunpack.c.h.s8.bf16 %v1308
        %v3277 = vunpack.c.h.s8.bf16 %v1309
        %v3278 = vunpack.c.l.s8.bf16 %v1310
        %v3279 = vunpack.c.l.s8.bf16 %v1311
        %v3280 = vunpack.c.l.s8.bf16 %v1312
        %v3281 = vunpack.c.l.s8.bf16 %v1313
        %v3282 = vunpack.c.h.s8.bf16 %v1310
        %v3283 = vunpack.c.h.s8.bf16 %v1311
        %v3284 = vunpack.c.h.s8.bf16 %v1312
        %v3285 = vunpack.c.h.s8.bf16 %v1313
        %v3286 = vunpack.c.l.s8.bf16 %v1314
        %v3287 = vunpack.c.l.s8.bf16 %v1315
        %v3288 = vunpack.c.l.s8.bf16 %v1316
        %v3289 = vunpack.c.l.s8.bf16 %v1317
        %v3290 = vunpack.c.h.s8.bf16 %v1314
        %v3291 = vunpack.c.h.s8.bf16 %v1315
        %v3292 = vunpack.c.h.s8.bf16 %v1316
        %v3293 = vunpack.c.h.s8.bf16 %v1317
        %v3294 = vunpack.c.l.s8.bf16 %v1318
        %v3295 = vunpack.c.l.s8.bf16 %v1319
        %v3296 = vunpack.c.l.s8.bf16 %v1320
        %v3297 = vunpack.c.l.s8.bf16 %v1321
        %v3298 = vunpack.c.h.s8.bf16 %v1318
        %v3299 = vunpack.c.h.s8.bf16 %v1319
        %v3300 = vunpack.c.h.s8.bf16 %v1320
        %v3301 = vunpack.c.h.s8.bf16 %v1321
        %v3302 = vunpack.c.l.s8.bf16 %v1322
        %v3303 = vunpack.c.l.s8.bf16 %v1323
        %v3304 = vunpack.c.l.s8.bf16 %v1324
        %v3305 = vunpack.c.l.s8.bf16 %v1325
        %v3306 = vunpack.c.h.s8.bf16 %v1322
        %v3307 = vunpack.c.h.s8.bf16 %v1323
        %v3308 = vunpack.c.h.s8.bf16 %v1324
        %v3309 = vunpack.c.h.s8.bf16 %v1325
        %v3310 = vunpack.c.l.s8.bf16 %v1326
        %v3311 = vunpack.c.l.s8.bf16 %v1327
        %v3312 = vunpack.c.l.s8.bf16 %v1328
        %v3313 = vunpack.c.l.s8.bf16 %v1329
        %v3314 = vunpack.c.h.s8.bf16 %v1326
        %v3315 = vunpack.c.h.s8.bf16 %v1327
        %v3316 = vunpack.c.h.s8.bf16 %v1328
        %v3317 = vunpack.c.h.s8.bf16 %v1329
        %v3318 = vunpack.c.l.s8.bf16 %v1330
        %v3319 = vunpack.c.l.s8.bf16 %v1331
        %v3320 = vunpack.c.l.s8.bf16 %v1332
        %v3321 = vunpack.c.l.s8.bf16 %v1333
        %v3322 = vunpack.c.h.s8.bf16 %v1330
        %v3323 = vunpack.c.h.s8.bf16 %v1331
        %v3324 = vunpack.c.h.s8.bf16 %v1332
        %v3325 = vunpack.c.h.s8.bf16 %v1333
        %v3326 = vunpack.c.l.s8.bf16 %v1334
        %v3327 = vunpack.c.l.s8.bf16 %v1335
        %v3328 = vunpack.c.l.s8.bf16 %v1336
        %v3329 = vunpack.c.l.s8.bf16 %v1337
        %v3330 = vunpack.c.h.s8.bf16 %v1334
        %v3331 = vunpack.c.h.s8.bf16 %v1335
        %v3332 = vunpack.c.h.s8.bf16 %v1336
        %v3333 = vunpack.c.h.s8.bf16 %v1337
        %v3334 = vunpack.c.l.s8.bf16 %v1338
        %v3335 = vunpack.c.l.s8.bf16 %v1339
        %v3336 = vunpack.c.l.s8.bf16 %v1340
        %v3337 = vunpack.c.l.s8.bf16 %v1341
        %v3338 = vunpack.c.h.s8.bf16 %v1338
        %v3339 = vunpack.c.h.s8.bf16 %v1339
        %v3340 = vunpack.c.h.s8.bf16 %v1340
        %v3341 = vunpack.c.h.s8.bf16 %v1341
        %v3342 = vunpack.c.l.s8.bf16 %v1342
        %v3343 = vunpack.c.l.s8.bf16 %v1343
        %v3344 = vunpack.c.l.s8.bf16 %v1344
        %v3345 = vunpack.c.l.s8.bf16 %v1345
        %v3346 = vunpack.c.h.s8.bf16 %v1342
        %v3347 = vunpack.c.h.s8.bf16 %v1343
        %v3348 = vunpack.c.h.s8.bf16 %v1344
        %v3349 = vunpack.c.h.s8.bf16 %v1345
        %v3350 = vunpack.c.l.s8.bf16 %v1346
        %v3351 = vunpack.c.l.s8.bf16 %v1347
        %v3352 = vunpack.c.l.s8.bf16 %v1348
        %v3353 = vunpack.c.l.s8.bf16 %v1349
        %v3354 = vunpack.c.h.s8.bf16 %v1346
        %v3355 = vunpack.c.h.s8.bf16 %v1347
        %v3356 = vunpack.c.h.s8.bf16 %v1348
        %v3357 = vunpack.c.h.s8.bf16 %v1349
        %v3358 = vunpack.c.l.s8.bf16 %v1350
        %v3359 = vunpack.c.l.s8.bf16 %v1351
        %v3360 = vunpack.c.l.s8.bf16 %v1352
        %v3361 = vunpack.c.l.s8.bf16 %v1353
        %v3362 = vunpack.c.h.s8.bf16 %v1350
        %v3363 = vunpack.c.h.s8.bf16 %v1351
        %v3364 = vunpack.c.h.s8.bf16 %v1352
        %v3365 = vunpack.c.h.s8.bf16 %v1353
        %v3366 = vunpack.c.l.s8.bf16 %v1354
        %v3367 = vunpack.c.l.s8.bf16 %v1355
        %v3368 = vunpack.c.l.s8.bf16 %v1356
        %v3369 = vunpack.c.l.s8.bf16 %v1357
        %v3370 = vunpack.c.h.s8.bf16 %v1354
        %v3371 = vunpack.c.h.s8.bf16 %v1355
        %v3372 = vunpack.c.h.s8.bf16 %v1356
        %v3373 = vunpack.c.h.s8.bf16 %v1357
        %v3374 = vunpack.c.l.s8.bf16 %v1358
        %v3375 = vunpack.c.l.s8.bf16 %v1359
        %v3376 = vunpack.c.l.s8.bf16 %v1360
        %v3377 = vunpack.c.l.s8.bf16 %v1361
        %v3378 = vunpack.c.h.s8.bf16 %v1358
        %v3379 = vunpack.c.h.s8.bf16 %v1359
        %v3380 = vunpack.c.h.s8.bf16 %v1360
        %v3381 = vunpack.c.h.s8.bf16 %v1361
        %v3382 = vunpack.c.l.s8.bf16 %v1362
        %v3383 = vunpack.c.l.s8.bf16 %v1363
        %v3384 = vunpack.c.l.s8.bf16 %v1364
        %v3385 = vunpack.c.l.s8.bf16 %v1365
        %v3386 = vunpack.c.h.s8.bf16 %v1362
        %v3387 = vunpack.c.h.s8.bf16 %v1363
        %v3388 = vunpack.c.h.s8.bf16 %v1364
        %v3389 = vunpack.c.h.s8.bf16 %v1365
        %v3390 = vunpack.c.l.s8.bf16 %v1366
        %v3391 = vunpack.c.l.s8.bf16 %v1367
        %v3392 = vunpack.c.l.s8.bf16 %v1368
        %v3393 = vunpack.c.l.s8.bf16 %v1369
        %v3394 = vunpack.c.h.s8.bf16 %v1366
        %v3395 = vunpack.c.h.s8.bf16 %v1367
        %v3396 = vunpack.c.h.s8.bf16 %v1368
        %v3397 = vunpack.c.h.s8.bf16 %v1369
        %v3398 = vunpack.c.l.s8.bf16 %v1370
        %v3399 = vunpack.c.l.s8.bf16 %v1371
        %v3400 = vunpack.c.l.s8.bf16 %v1372
        %v3401 = vunpack.c.l.s8.bf16 %v1373
        %v3402 = vunpack.c.h.s8.bf16 %v1370
        %v3403 = vunpack.c.h.s8.bf16 %v1371
        %v3404 = vunpack.c.h.s8.bf16 %v1372
        %v3405 = vunpack.c.h.s8.bf16 %v1373
        %v3406 = vunpack.c.l.s8.bf16 %v1374
        %v3407 = vunpack.c.l.s8.bf16 %v1375
        %v3408 = vunpack.c.l.s8.bf16 %v1376
        %v3409 = vunpack.c.l.s8.bf16 %v1377
        %v3410 = vunpack.c.h.s8.bf16 %v1374
        %v3411 = vunpack.c.h.s8.bf16 %v1375
        %v3412 = vunpack.c.h.s8.bf16 %v1376
        %v3413 = vunpack.c.h.s8.bf16 %v1377
        %v3414 = vunpack.c.l.s8.bf16 %v1378
        %v3415 = vunpack.c.l.s8.bf16 %v1379
        %v3416 = vunpack.c.l.s8.bf16 %v1380
        %v3417 = vunpack.c.l.s8.bf16 %v1381
        %v3418 = vunpack.c.h.s8.bf16 %v1378
        %v3419 = vunpack.c.h.s8.bf16 %v1379
        %v3420 = vunpack.c.h.s8.bf16 %v1380
        %v3421 = vunpack.c.h.s8.bf16 %v1381
        %v3422 = vunpack.c.l.s8.bf16 %v1382
        %v3423 = vunpack.c.l.s8.bf16 %v1383
        %v3424 = vunpack.c.l.s8.bf16 %v1384
        %v3425 = vunpack.c.l.s8.bf16 %v1385
        %v3426 = vunpack.c.h.s8.bf16 %v1382
        %v3427 = vunpack.c.h.s8.bf16 %v1383
        %v3428 = vunpack.c.h.s8.bf16 %v1384
        %v3429 = vunpack.c.h.s8.bf16 %v1385
        %v3430 = vunpack.c.l.s8.bf16 %v1386
        %v3431 = vunpack.c.l.s8.bf16 %v1387
        %v3432 = vunpack.c.l.s8.bf16 %v1388
        %v3433 = vunpack.c.l.s8.bf16 %v1389
        %v3434 = vunpack.c.h.s8.bf16 %v1386
        %v3435 = vunpack.c.h.s8.bf16 %v1387
        %v3436 = vunpack.c.h.s8.bf16 %v1388
        %v3437 = vunpack.c.h.s8.bf16 %v1389
        %v3438 = vld [vmem:[#allocation2] sm:$0xff]
        %v3439 = vld [vmem:[#allocation2 + $0x8] sm:$0xff]
        %v3440 = vld [vmem:[#allocation2 + $0x10] sm:$0xff]
        %v3441 = vld [vmem:[#allocation2 + $0x18] sm:$0xff]
        %v3474 = vunpack.c.l.b16 %v334
        %v3475 = vunpack.c.h.b16 %v334
        %v3476 = vunpack.c.l.b16 %v335
        %v3477 = vunpack.c.h.b16 %v335
        %v3478 = vunpack.c.l.b16 %v336
        %v3479 = vunpack.c.h.b16 %v336
        %v3480 = vunpack.c.l.b16 %v337
        %v3481 = vunpack.c.h.b16 %v337
        %v3482 = vunpack.c.l.b16 %v338
        %v3483 = vunpack.c.h.b16 %v338
        %v3484 = vunpack.c.l.b16 %v339
        %v3485 = vunpack.c.h.b16 %v339
        %v3486 = vunpack.c.l.b16 %v340
        %v3487 = vunpack.c.h.b16 %v340
        %v3488 = vunpack.c.l.b16 %v341
        %v3489 = vunpack.c.h.b16 %v341
        %v3490 = vunpack.c.l.b16 %v342
        %v3491 = vunpack.c.h.b16 %v342
        %v3492 = vunpack.c.l.b16 %v343
        %v3493 = vunpack.c.h.b16 %v343
        %v3494 = vunpack.c.l.b16 %v344
        %v3495 = vunpack.c.h.b16 %v344
        %v3496 = vunpack.c.l.b16 %v345
        %v3497 = vunpack.c.h.b16 %v345
        %v3498 = vunpack.c.l.b16 %v346
        %v3499 = vunpack.c.h.b16 %v346
        %v3500 = vunpack.c.l.b16 %v347
        %v3501 = vunpack.c.h.b16 %v347
        %v3502 = vunpack.c.l.b16 %v348
        %v3503 = vunpack.c.h.b16 %v348
        %v3504 = vunpack.c.l.b16 %v349
        %v3505 = vunpack.c.h.b16 %v349
        %v3506 = vunpack.c.l.b16 %v350
        %v3507 = vunpack.c.h.b16 %v350
        %v3508 = vunpack.c.l.b16 %v351
        %v3509 = vunpack.c.h.b16 %v351
        %v3510 = vunpack.c.l.b16 %v352
        %v3511 = vunpack.c.h.b16 %v352
        %v3512 = vunpack.c.l.b16 %v353
        %v3513 = vunpack.c.h.b16 %v353
        %v3514 = vunpack.c.l.b16 %v354
        %v3515 = vunpack.c.h.b16 %v354
        %v3516 = vunpack.c.l.b16 %v355
        %v3517 = vunpack.c.h.b16 %v355
        %v3518 = vunpack.c.l.b16 %v356
        %v3519 = vunpack.c.h.b16 %v356
        %v3520 = vunpack.c.l.b16 %v357
        %v3521 = vunpack.c.h.b16 %v357
        %v3522 = vunpack.c.l.b16 %v358
        %v3523 = vunpack.c.h.b16 %v358
        %v3524 = vunpack.c.l.b16 %v359
        %v3525 = vunpack.c.h.b16 %v359
        %v3526 = vunpack.c.l.b16 %v360
        %v3527 = vunpack.c.h.b16 %v360
        %v3528 = vunpack.c.l.b16 %v361
        %v3529 = vunpack.c.h.b16 %v361
        %v3530 = vunpack.c.l.b16 %v362
        %v3531 = vunpack.c.h.b16 %v362
        %v3532 = vunpack.c.l.b16 %v363
        %v3533 = vunpack.c.h.b16 %v363
        %v3534 = vunpack.c.l.b16 %v364
        %v3535 = vunpack.c.h.b16 %v364
        %v3536 = vunpack.c.l.b16 %v365
        %v3537 = vunpack.c.h.b16 %v365
        %v3538 = vpack.c.b16 %v3474, %v3474
        %v3539 = vpack.c.b16 %v3475, %v3475
        %v3540 = vpack.c.b16 %v3476, %v3476
        %v3541 = vpack.c.b16 %v3477, %v3477
        %v3542 = vpack.c.b16 %v3478, %v3478
        %v3543 = vpack.c.b16 %v3479, %v3479
        %v3544 = vpack.c.b16 %v3480, %v3480
        %v3545 = vpack.c.b16 %v3481, %v3481
        %v3546 = vpack.c.b16 %v3482, %v3482
        %v3547 = vpack.c.b16 %v3483, %v3483
        %v3548 = vpack.c.b16 %v3484, %v3484
        %v3549 = vpack.c.b16 %v3485, %v3485
        %v3550 = vpack.c.b16 %v3486, %v3486
        %v3551 = vpack.c.b16 %v3487, %v3487
        %v3552 = vpack.c.b16 %v3488, %v3488
        %v3553 = vpack.c.b16 %v3489, %v3489
        %v3554 = vpack.c.b16 %v3490, %v3490
        %v3555 = vpack.c.b16 %v3491, %v3491
        %v3556 = vpack.c.b16 %v3492, %v3492
        %v3557 = vpack.c.b16 %v3493, %v3493
        %v3558 = vpack.c.b16 %v3494, %v3494
        %v3559 = vpack.c.b16 %v3495, %v3495
        %v3560 = vpack.c.b16 %v3496, %v3496
        %v3561 = vpack.c.b16 %v3497, %v3497
        %v3562 = vpack.c.b16 %v3498, %v3498
        %v3563 = vpack.c.b16 %v3499, %v3499
        %v3564 = vpack.c.b16 %v3500, %v3500
        %v3565 = vpack.c.b16 %v3501, %v3501
        %v3566 = vpack.c.b16 %v3502, %v3502
        %v3567 = vpack.c.b16 %v3503, %v3503
        %v3568 = vpack.c.b16 %v3504, %v3504
        %v3569 = vpack.c.b16 %v3505, %v3505
        %v3570 = vpack.c.b16 %v3506, %v3506
        %v3571 = vpack.c.b16 %v3507, %v3507
        %v3572 = vpack.c.b16 %v3508, %v3508
        %v3573 = vpack.c.b16 %v3509, %v3509
        %v3574 = vpack.c.b16 %v3510, %v3510
        %v3575 = vpack.c.b16 %v3511, %v3511
        %v3576 = vpack.c.b16 %v3512, %v3512
        %v3577 = vpack.c.b16 %v3513, %v3513
        %v3578 = vpack.c.b16 %v3514, %v3514
        %v3579 = vpack.c.b16 %v3515, %v3515
        %v3580 = vpack.c.b16 %v3516, %v3516
        %v3581 = vpack.c.b16 %v3517, %v3517
        %v3582 = vpack.c.b16 %v3518, %v3518
        %v3583 = vpack.c.b16 %v3519, %v3519
        %v3584 = vpack.c.b16 %v3520, %v3520
        %v3585 = vpack.c.b16 %v3521, %v3521
        %v3586 = vpack.c.b16 %v3522, %v3522
        %v3587 = vpack.c.b16 %v3523, %v3523
        %v3588 = vpack.c.b16 %v3524, %v3524
        %v3589 = vpack.c.b16 %v3525, %v3525
        %v3590 = vpack.c.b16 %v3526, %v3526
        %v3591 = vpack.c.b16 %v3527, %v3527
        %v3592 = vpack.c.b16 %v3528, %v3528
        %v3593 = vpack.c.b16 %v3529, %v3529
        %v3594 = vpack.c.b16 %v3530, %v3530
        %v3595 = vpack.c.b16 %v3531, %v3531
        %v3596 = vpack.c.b16 %v3532, %v3532
        %v3597 = vpack.c.b16 %v3533, %v3533
        %v3598 = vpack.c.b16 %v3534, %v3534
        %v3599 = vpack.c.b16 %v3535, %v3535
        %v3600 = vpack.c.b16 %v3536, %v3536
        %v3601 = vpack.c.b16 %v3537, %v3537
        %3666 = vmatprep.subr.bf16.mxu0 %v1419
        %3667 = vmatpush1.bf16.msra.mxu0 %v1418
        %3668 = vmatprep.subr.bf16.mxu0 %v1415
        %3669 = vmatpush1.bf16.msra.mxu0 %v1414
        %3670 = vmatprep.subr.bf16.mxu0 %v1411
        %3671 = vmatpush1.bf16.msra.mxu0 %v1410
        %3672 = vmatprep.subr.bf16.mxu0 %v1407
        %3673 = vmatpush1.bf16.msra.mxu0 %v1406
        %3674 = vmatprep.subr.bf16.mxu0 %v1403
        %3675 = vmatpush1.bf16.msra.mxu0 %v1402
        %3676 = vmatprep.subr.bf16.mxu0 %v1399
        %3677 = vmatpush1.bf16.msra.mxu0 %v1398
        %3678 = vmatprep.subr.bf16.mxu0 %v1395
        %3679 = vmatpush1.bf16.msra.mxu0 %v1394
        %3680 = vmatprep.subr.bf16.mxu0 %v1391
        %3681 = vmatpush1.bf16.msra.mxu0 %v1390
        %3682 = vmatprep.subr.bf16.mxu0 %v1451
        %3683 = vmatpush2.bf16.msra.mxu0 %v1450
        %3684 = vmatprep.subr.bf16.mxu0 %v1447
        %3685 = vmatpush2.bf16.msra.mxu0 %v1446
        %3686 = vmatprep.subr.bf16.mxu0 %v1443
        %3687 = vmatpush2.bf16.msra.mxu0 %v1442
        %3688 = vmatprep.subr.bf16.mxu0 %v1439
        %3689 = vmatpush2.bf16.msra.mxu0 %v1438
        %3690 = vmatprep.subr.bf16.mxu0 %v1435
        %3691 = vmatpush2.bf16.msra.mxu0 %v1434
        %3692 = vmatprep.subr.bf16.mxu0 %v1431
        %3693 = vmatpush2.bf16.msra.mxu0 %v1430
        %3694 = vmatprep.subr.bf16.mxu0 %v1427
        %3695 = vmatpush2.bf16.msra.mxu0 %v1426
        %3696 = vmatprep.subr.bf16.mxu0 %v1423
        %3697 = vmatpush2.bf16.msra.mxu0 %v1422
        %3698 = vmatprep.mubr.bf16.mxu0 %v3539
        %3699 = vmatmul.mubr.bf16.gmra.mxu0 %v3538
        %v3700 = vpop.f32.mrf.mxu0
        %v3701 = vadd.f32 0.0, %v3700
        %v3702 = vpop.f32.mrf.mxu0
        %v3703 = vadd.f32 0.0, %v3702
        %v3704 = vpop.f32.mrf.mxu0
        %v3705 = vpop.f32.mrf.mxu0
        %3706 = vdwg.mxu0
        %3707 = vmatprep.subr.bf16.mxu0 %v1483
        %3708 = vmatpush1.bf16.msra.mxu0 %v1482
        %3709 = vmatprep.subr.bf16.mxu0 %v1479
        %3710 = vmatpush1.bf16.msra.mxu0 %v1478
        %3711 = vmatprep.subr.bf16.mxu0 %v1475
        %3712 = vmatpush1.bf16.msra.mxu0 %v1474
        %3713 = vmatprep.subr.bf16.mxu0 %v1471
        %3714 = vmatpush1.bf16.msra.mxu0 %v1470
        %3715 = vmatprep.subr.bf16.mxu0 %v1467
        %3716 = vmatpush1.bf16.msra.mxu0 %v1466
        %3717 = vmatprep.subr.bf16.mxu0 %v1463
        %3718 = vmatpush1.bf16.msra.mxu0 %v1462
        %3719 = vmatprep.subr.bf16.mxu0 %v1459
        %3720 = vmatpush1.bf16.msra.mxu0 %v1458
        %3721 = vmatprep.subr.bf16.mxu0 %v1455
        %3722 = vmatpush1.bf16.msra.mxu0 %v1454
        %3723 = vmatprep.subr.bf16.mxu0 %v1515
        %3724 = vmatpush2.bf16.msra.mxu0 %v1514
        %3725 = vmatprep.subr.bf16.mxu0 %v1511
        %3726 = vmatpush2.bf16.msra.mxu0 %v1510
        %3727 = vmatprep.subr.bf16.mxu0 %v1507
        %3728 = vmatpush2.bf16.msra.mxu0 %v1506
        %3729 = vmatprep.subr.bf16.mxu0 %v1503
        %3730 = vmatpush2.bf16.msra.mxu0 %v1502
        %3731 = vmatprep.subr.bf16.mxu0 %v1499
        %3732 = vmatpush2.bf16.msra.mxu0 %v1498
        %3733 = vmatprep.subr.bf16.mxu0 %v1495
        %3734 = vmatpush2.bf16.msra.mxu0 %v1494
        %3735 = vmatprep.subr.bf16.mxu0 %v1491
        %3736 = vmatpush2.bf16.msra.mxu0 %v1490
        %3737 = vmatprep.subr.bf16.mxu0 %v1487
        %3738 = vmatpush2.bf16.msra.mxu0 %v1486
        %3739 = vmatprep.mubr.bf16.mxu0 %v3541
        %3740 = vmatmul.mubr.bf16.gmra.mxu0 %v3540
        %v3741 = vpop.f32.mrf.mxu0
        %v3742 = vadd.f32 %v3701, %v3741
        %v3743 = vpop.f32.mrf.mxu0
        %v3744 = vadd.f32 %v3703, %v3743
        %v3745 = vpop.f32.mrf.mxu0
        %v3746 = vpop.f32.mrf.mxu0
        %3747 = vdwg.mxu0
        %3748 = vmatprep.subr.bf16.mxu0 %v1547
        %3749 = vmatpush1.bf16.msra.mxu0 %v1546
        %3750 = vmatprep.subr.bf16.mxu0 %v1543
        %3751 = vmatpush1.bf16.msra.mxu0 %v1542
        %3752 = vmatprep.subr.bf16.mxu0 %v1539
        %3753 = vmatpush1.bf16.msra.mxu0 %v1538
        %3754 = vmatprep.subr.bf16.mxu0 %v1535
        %3755 = vmatpush1.bf16.msra.mxu0 %v1534
        %3756 = vmatprep.subr.bf16.mxu0 %v1531
        %3757 = vmatpush1.bf16.msra.mxu0 %v1530
        %3758 = vmatprep.subr.bf16.mxu0 %v1527
        %3759 = vmatpush1.bf16.msra.mxu0 %v1526
        %3760 = vmatprep.subr.bf16.mxu0 %v1523
        %3761 = vmatpush1.bf16.msra.mxu0 %v1522
        %3762 = vmatprep.subr.bf16.mxu0 %v1519
        %3763 = vmatpush1.bf16.msra.mxu0 %v1518
        %3764 = vmatprep.subr.bf16.mxu0 %v1579
        %3765 = vmatpush2.bf16.msra.mxu0 %v1578
        %3766 = vmatprep.subr.bf16.mxu0 %v1575
        %3767 = vmatpush2.bf16.msra.mxu0 %v1574
        %3768 = vmatprep.subr.bf16.mxu0 %v1571
        %3769 = vmatpush2.bf16.msra.mxu0 %v1570
        %3770 = vmatprep.subr.bf16.mxu0 %v1567
        %3771 = vmatpush2.bf16.msra.mxu0 %v1566
        %3772 = vmatprep.subr.bf16.mxu0 %v1563
        %3773 = vmatpush2.bf16.msra.mxu0 %v1562
        %3774 = vmatprep.subr.bf16.mxu0 %v1559
        %3775 = vmatpush2.bf16.msra.mxu0 %v1558
        %3776 = vmatprep.subr.bf16.mxu0 %v1555
        %3777 = vmatpush2.bf16.msra.mxu0 %v1554
        %3778 = vmatprep.subr.bf16.mxu0 %v1551
        %3779 = vmatpush2.bf16.msra.mxu0 %v1550
        %3780 = vmatprep.mubr.bf16.mxu0 %v3543
        %3781 = vmatmul.mubr.bf16.gmra.mxu0 %v3542
        %v3782 = vpop.f32.mrf.mxu0
        %v3783 = vadd.f32 %v3742, %v3782
        %v3784 = vpop.f32.mrf.mxu0
        %v3785 = vadd.f32 %v3744, %v3784
        %v3786 = vpop.f32.mrf.mxu0
        %v3787 = vpop.f32.mrf.mxu0
        %3788 = vdwg.mxu0
        %3789 = vmatprep.subr.bf16.mxu0 %v1611
        %3790 = vmatpush1.bf16.msra.mxu0 %v1610
        %3791 = vmatprep.subr.bf16.mxu0 %v1607
        %3792 = vmatpush1.bf16.msra.mxu0 %v1606
        %3793 = vmatprep.subr.bf16.mxu0 %v1603
        %3794 = vmatpush1.bf16.msra.mxu0 %v1602
        %3795 = vmatprep.subr.bf16.mxu0 %v1599
        %3796 = vmatpush1.bf16.msra.mxu0 %v1598
        %3797 = vmatprep.subr.bf16.mxu0 %v1595
        %3798 = vmatpush1.bf16.msra.mxu0 %v1594
        %3799 = vmatprep.subr.bf16.mxu0 %v1591
        %3800 = vmatpush1.bf16.msra.mxu0 %v1590
        %3801 = vmatprep.subr.bf16.mxu0 %v1587
        %3802 = vmatpush1.bf16.msra.mxu0 %v1586
        %3803 = vmatprep.subr.bf16.mxu0 %v1583
        %3804 = vmatpush1.bf16.msra.mxu0 %v1582
        %3805 = vmatprep.subr.bf16.mxu0 %v1643
        %3806 = vmatpush2.bf16.msra.mxu0 %v1642
        %3807 = vmatprep.subr.bf16.mxu0 %v1639
        %3808 = vmatpush2.bf16.msra.mxu0 %v1638
        %3809 = vmatprep.subr.bf16.mxu0 %v1635
        %3810 = vmatpush2.bf16.msra.mxu0 %v1634
        %3811 = vmatprep.subr.bf16.mxu0 %v1631
        %3812 = vmatpush2.bf16.msra.mxu0 %v1630
        %3813 = vmatprep.subr.bf16.mxu0 %v1627
        %3814 = vmatpush2.bf16.msra.mxu0 %v1626
        %3815 = vmatprep.subr.bf16.mxu0 %v1623
        %3816 = vmatpush2.bf16.msra.mxu0 %v1622
        %3817 = vmatprep.subr.bf16.mxu0 %v1619
        %3818 = vmatpush2.bf16.msra.mxu0 %v1618
        %3819 = vmatprep.subr.bf16.mxu0 %v1615
        %3820 = vmatpush2.bf16.msra.mxu0 %v1614
        %3821 = vmatprep.mubr.bf16.mxu0 %v3545
        %3822 = vmatmul.mubr.bf16.gmra.mxu0 %v3544
        %v3823 = vpop.f32.mrf.mxu0
        %v3824 = vadd.f32 %v3783, %v3823
        %v3825 = vpop.f32.mrf.mxu0
        %v3826 = vadd.f32 %v3785, %v3825
        %v3827 = vpop.f32.mrf.mxu0
        %v3828 = vpop.f32.mrf.mxu0
        %3829 = vdwg.mxu0
        %3830 = vmatprep.subr.bf16.mxu0 %v1675
        %3831 = vmatpush1.bf16.msra.mxu0 %v1674
        %3832 = vmatprep.subr.bf16.mxu0 %v1671
        %3833 = vmatpush1.bf16.msra.mxu0 %v1670
        %3834 = vmatprep.subr.bf16.mxu0 %v1667
        %3835 = vmatpush1.bf16.msra.mxu0 %v1666
        %3836 = vmatprep.subr.bf16.mxu0 %v1663
        %3837 = vmatpush1.bf16.msra.mxu0 %v1662
        %3838 = vmatprep.subr.bf16.mxu0 %v1659
        %3839 = vmatpush1.bf16.msra.mxu0 %v1658
        %3840 = vmatprep.subr.bf16.mxu0 %v1655
        %3841 = vmatpush1.bf16.msra.mxu0 %v1654
        %3842 = vmatprep.subr.bf16.mxu0 %v1651
        %3843 = vmatpush1.bf16.msra.mxu0 %v1650
        %3844 = vmatprep.subr.bf16.mxu0 %v1647
        %3845 = vmatpush1.bf16.msra.mxu0 %v1646
        %3846 = vmatprep.subr.bf16.mxu0 %v1707
        %3847 = vmatpush2.bf16.msra.mxu0 %v1706
        %3848 = vmatprep.subr.bf16.mxu0 %v1703
        %3849 = vmatpush2.bf16.msra.mxu0 %v1702
        %3850 = vmatprep.subr.bf16.mxu0 %v1699
        %3851 = vmatpush2.bf16.msra.mxu0 %v1698
        %3852 = vmatprep.subr.bf16.mxu0 %v1695
        %3853 = vmatpush2.bf16.msra.mxu0 %v1694
        %3854 = vmatprep.subr.bf16.mxu0 %v1691
        %3855 = vmatpush2.bf16.msra.mxu0 %v1690
        %3856 = vmatprep.subr.bf16.mxu0 %v1687
        %3857 = vmatpush2.bf16.msra.mxu0 %v1686
        %3858 = vmatprep.subr.bf16.mxu0 %v1683
        %3859 = vmatpush2.bf16.msra.mxu0 %v1682
        %3860 = vmatprep.subr.bf16.mxu0 %v1679
        %3861 = vmatpush2.bf16.msra.mxu0 %v1678
        %3862 = vmatprep.mubr.bf16.mxu0 %v3547
        %3863 = vmatmul.mubr.bf16.gmra.mxu0 %v3546
        %v3864 = vpop.f32.mrf.mxu0
        %v3865 = vadd.f32 %v3824, %v3864
        %v3866 = vpop.f32.mrf.mxu0
        %v3867 = vadd.f32 %v3826, %v3866
        %v3868 = vpop.f32.mrf.mxu0
        %v3869 = vpop.f32.mrf.mxu0
        %3870 = vdwg.mxu0
        %3871 = vmatprep.subr.bf16.mxu0 %v1739
        %3872 = vmatpush1.bf16.msra.mxu0 %v1738
        %3873 = vmatprep.subr.bf16.mxu0 %v1735
        %3874 = vmatpush1.bf16.msra.mxu0 %v1734
        %3875 = vmatprep.subr.bf16.mxu0 %v1731
        %3876 = vmatpush1.bf16.msra.mxu0 %v1730
        %3877 = vmatprep.subr.bf16.mxu0 %v1727
        %3878 = vmatpush1.bf16.msra.mxu0 %v1726
        %3879 = vmatprep.subr.bf16.mxu0 %v1723
        %3880 = vmatpush1.bf16.msra.mxu0 %v1722
        %3881 = vmatprep.subr.bf16.mxu0 %v1719
        %3882 = vmatpush1.bf16.msra.mxu0 %v1718
        %3883 = vmatprep.subr.bf16.mxu0 %v1715
        %3884 = vmatpush1.bf16.msra.mxu0 %v1714
        %3885 = vmatprep.subr.bf16.mxu0 %v1711
        %3886 = vmatpush1.bf16.msra.mxu0 %v1710
        %3887 = vmatprep.subr.bf16.mxu0 %v1771
        %3888 = vmatpush2.bf16.msra.mxu0 %v1770
        %3889 = vmatprep.subr.bf16.mxu0 %v1767
        %3890 = vmatpush2.bf16.msra.mxu0 %v1766
        %3891 = vmatprep.subr.bf16.mxu0 %v1763
        %3892 = vmatpush2.bf16.msra.mxu0 %v1762
        %3893 = vmatprep.subr.bf16.mxu0 %v1759
        %3894 = vmatpush2.bf16.msra.mxu0 %v1758
        %3895 = vmatprep.subr.bf16.mxu0 %v1755
        %3896 = vmatpush2.bf16.msra.mxu0 %v1754
        %3897 = vmatprep.subr.bf16.mxu0 %v1751
        %3898 = vmatpush2.bf16.msra.mxu0 %v1750
        %3899 = vmatprep.subr.bf16.mxu0 %v1747
        %3900 = vmatpush2.bf16.msra.mxu0 %v1746
        %3901 = vmatprep.subr.bf16.mxu0 %v1743
        %3902 = vmatpush2.bf16.msra.mxu0 %v1742
        %3903 = vmatprep.mubr.bf16.mxu0 %v3549
        %3904 = vmatmul.mubr.bf16.gmra.mxu0 %v3548
        %v3905 = vpop.f32.mrf.mxu0
        %v3906 = vadd.f32 %v3865, %v3905
        %v3907 = vpop.f32.mrf.mxu0
        %v3908 = vadd.f32 %v3867, %v3907
        %v3909 = vpop.f32.mrf.mxu0
        %v3910 = vpop.f32.mrf.mxu0
        %3911 = vdwg.mxu0
        %3912 = vmatprep.subr.bf16.mxu0 %v1803
        %3913 = vmatpush1.bf16.msra.mxu0 %v1802
        %3914 = vmatprep.subr.bf16.mxu0 %v1799
        %3915 = vmatpush1.bf16.msra.mxu0 %v1798
        %3916 = vmatprep.subr.bf16.mxu0 %v1795
        %3917 = vmatpush1.bf16.msra.mxu0 %v1794
        %3918 = vmatprep.subr.bf16.mxu0 %v1791
        %3919 = vmatpush1.bf16.msra.mxu0 %v1790
        %3920 = vmatprep.subr.bf16.mxu0 %v1787
        %3921 = vmatpush1.bf16.msra.mxu0 %v1786
        %3922 = vmatprep.subr.bf16.mxu0 %v1783
        %3923 = vmatpush1.bf16.msra.mxu0 %v1782
        %3924 = vmatprep.subr.bf16.mxu0 %v1779
        %3925 = vmatpush1.bf16.msra.mxu0 %v1778
        %3926 = vmatprep.subr.bf16.mxu0 %v1775
        %3927 = vmatpush1.bf16.msra.mxu0 %v1774
        %3928 = vmatprep.subr.bf16.mxu0 %v1835
        %3929 = vmatpush2.bf16.msra.mxu0 %v1834
        %3930 = vmatprep.subr.bf16.mxu0 %v1831
        %3931 = vmatpush2.bf16.msra.mxu0 %v1830
        %3932 = vmatprep.subr.bf16.mxu0 %v1827
        %3933 = vmatpush2.bf16.msra.mxu0 %v1826
        %3934 = vmatprep.subr.bf16.mxu0 %v1823
        %3935 = vmatpush2.bf16.msra.mxu0 %v1822
        %3936 = vmatprep.subr.bf16.mxu0 %v1819
        %3937 = vmatpush2.bf16.msra.mxu0 %v1818
        %3938 = vmatprep.subr.bf16.mxu0 %v1815
        %3939 = vmatpush2.bf16.msra.mxu0 %v1814
        %3940 = vmatprep.subr.bf16.mxu0 %v1811
        %3941 = vmatpush2.bf16.msra.mxu0 %v1810
        %3942 = vmatprep.subr.bf16.mxu0 %v1807
        %3943 = vmatpush2.bf16.msra.mxu0 %v1806
        %3944 = vmatprep.mubr.bf16.mxu0 %v3551
        %3945 = vmatmul.mubr.bf16.gmra.mxu0 %v3550
        %v3946 = vpop.f32.mrf.mxu0
        %v3947 = vadd.f32 %v3906, %v3946
        %v3948 = vpop.f32.mrf.mxu0
        %v3949 = vadd.f32 %v3908, %v3948
        %v3950 = vpop.f32.mrf.mxu0
        %v3951 = vpop.f32.mrf.mxu0
        %3952 = vdwg.mxu0
        %3953 = vmatprep.subr.bf16.mxu0 %v1867
        %3954 = vmatpush1.bf16.msra.mxu0 %v1866
        %3955 = vmatprep.subr.bf16.mxu0 %v1863
        %3956 = vmatpush1.bf16.msra.mxu0 %v1862
        %3957 = vmatprep.subr.bf16.mxu0 %v1859
        %3958 = vmatpush1.bf16.msra.mxu0 %v1858
        %3959 = vmatprep.subr.bf16.mxu0 %v1855
        %3960 = vmatpush1.bf16.msra.mxu0 %v1854
        %3961 = vmatprep.subr.bf16.mxu0 %v1851
        %3962 = vmatpush1.bf16.msra.mxu0 %v1850
        %3963 = vmatprep.subr.bf16.mxu0 %v1847
        %3964 = vmatpush1.bf16.msra.mxu0 %v1846
        %3965 = vmatprep.subr.bf16.mxu0 %v1843
        %3966 = vmatpush1.bf16.msra.mxu0 %v1842
        %3967 = vmatprep.subr.bf16.mxu0 %v1839
        %3968 = vmatpush1.bf16.msra.mxu0 %v1838
        %3969 = vmatprep.subr.bf16.mxu0 %v1899
        %3970 = vmatpush2.bf16.msra.mxu0 %v1898
        %3971 = vmatprep.subr.bf16.mxu0 %v1895
        %3972 = vmatpush2.bf16.msra.mxu0 %v1894
        %3973 = vmatprep.subr.bf16.mxu0 %v1891
        %3974 = vmatpush2.bf16.msra.mxu0 %v1890
        %3975 = vmatprep.subr.bf16.mxu0 %v1887
        %3976 = vmatpush2.bf16.msra.mxu0 %v1886
        %3977 = vmatprep.subr.bf16.mxu0 %v1883
        %3978 = vmatpush2.bf16.msra.mxu0 %v1882
        %3979 = vmatprep.subr.bf16.mxu0 %v1879
        %3980 = vmatpush2.bf16.msra.mxu0 %v1878
        %3981 = vmatprep.subr.bf16.mxu0 %v1875
        %3982 = vmatpush2.bf16.msra.mxu0 %v1874
        %3983 = vmatprep.subr.bf16.mxu0 %v1871
        %3984 = vmatpush2.bf16.msra.mxu0 %v1870
        %3985 = vmatprep.mubr.bf16.mxu0 %v3553
        %3986 = vmatmul.mubr.bf16.gmra.mxu0 %v3552
        %v3987 = vpop.f32.mrf.mxu0
        %v3988 = vadd.f32 %v3947, %v3987
        %v3989 = vpop.f32.mrf.mxu0
        %v3990 = vadd.f32 %v3949, %v3989
        %v3991 = vpop.f32.mrf.mxu0
        %v3992 = vpop.f32.mrf.mxu0
        %3993 = vdwg.mxu0
        %3994 = vmatprep.subr.bf16.mxu0 %v1931
        %3995 = vmatpush1.bf16.msra.mxu0 %v1930
        %3996 = vmatprep.subr.bf16.mxu0 %v1927
        %3997 = vmatpush1.bf16.msra.mxu0 %v1926
        %3998 = vmatprep.subr.bf16.mxu0 %v1923
        %3999 = vmatpush1.bf16.msra.mxu0 %v1922
        %4000 = vmatprep.subr.bf16.mxu0 %v1919
        %4001 = vmatpush1.bf16.msra.mxu0 %v1918
        %4002 = vmatprep.subr.bf16.mxu0 %v1915
        %4003 = vmatpush1.bf16.msra.mxu0 %v1914
        %4004 = vmatprep.subr.bf16.mxu0 %v1911
        %4005 = vmatpush1.bf16.msra.mxu0 %v1910
        %4006 = vmatprep.subr.bf16.mxu0 %v1907
        %4007 = vmatpush1.bf16.msra.mxu0 %v1906
        %4008 = vmatprep.subr.bf16.mxu0 %v1903
        %4009 = vmatpush1.bf16.msra.mxu0 %v1902
        %4010 = vmatprep.subr.bf16.mxu0 %v1963
        %4011 = vmatpush2.bf16.msra.mxu0 %v1962
        %4012 = vmatprep.subr.bf16.mxu0 %v1959
        %4013 = vmatpush2.bf16.msra.mxu0 %v1958
        %4014 = vmatprep.subr.bf16.mxu0 %v1955
        %4015 = vmatpush2.bf16.msra.mxu0 %v1954
        %4016 = vmatprep.subr.bf16.mxu0 %v1951
        %4017 = vmatpush2.bf16.msra.mxu0 %v1950
        %4018 = vmatprep.subr.bf16.mxu0 %v1947
        %4019 = vmatpush2.bf16.msra.mxu0 %v1946
        %4020 = vmatprep.subr.bf16.mxu0 %v1943
        %4021 = vmatpush2.bf16.msra.mxu0 %v1942
        %4022 = vmatprep.subr.bf16.mxu0 %v1939
        %4023 = vmatpush2.bf16.msra.mxu0 %v1938
        %4024 = vmatprep.subr.bf16.mxu0 %v1935
        %4025 = vmatpush2.bf16.msra.mxu0 %v1934
        %4026 = vmatprep.mubr.bf16.mxu0 %v3555
        %4027 = vmatmul.mubr.bf16.gmra.mxu0 %v3554
        %v4028 = vpop.f32.mrf.mxu0
        %v4029 = vadd.f32 %v3988, %v4028
        %v4030 = vpop.f32.mrf.mxu0
        %v4031 = vadd.f32 %v3990, %v4030
        %v4032 = vpop.f32.mrf.mxu0
        %v4033 = vpop.f32.mrf.mxu0
        %4034 = vdwg.mxu0
        %4035 = vmatprep.subr.bf16.mxu0 %v1995
        %4036 = vmatpush1.bf16.msra.mxu0 %v1994
        %4037 = vmatprep.subr.bf16.mxu0 %v1991
        %4038 = vmatpush1.bf16.msra.mxu0 %v1990
        %4039 = vmatprep.subr.bf16.mxu0 %v1987
        %4040 = vmatpush1.bf16.msra.mxu0 %v1986
        %4041 = vmatprep.subr.bf16.mxu0 %v1983
        %4042 = vmatpush1.bf16.msra.mxu0 %v1982
        %4043 = vmatprep.subr.bf16.mxu0 %v1979
        %4044 = vmatpush1.bf16.msra.mxu0 %v1978
        %4045 = vmatprep.subr.bf16.mxu0 %v1975
        %4046 = vmatpush1.bf16.msra.mxu0 %v1974
        %4047 = vmatprep.subr.bf16.mxu0 %v1971
        %4048 = vmatpush1.bf16.msra.mxu0 %v1970
        %4049 = vmatprep.subr.bf16.mxu0 %v1967
        %4050 = vmatpush1.bf16.msra.mxu0 %v1966
        %4051 = vmatprep.subr.bf16.mxu0 %v2027
        %4052 = vmatpush2.bf16.msra.mxu0 %v2026
        %4053 = vmatprep.subr.bf16.mxu0 %v2023
        %4054 = vmatpush2.bf16.msra.mxu0 %v2022
        %4055 = vmatprep.subr.bf16.mxu0 %v2019
        %4056 = vmatpush2.bf16.msra.mxu0 %v2018
        %4057 = vmatprep.subr.bf16.mxu0 %v2015
        %4058 = vmatpush2.bf16.msra.mxu0 %v2014
        %4059 = vmatprep.subr.bf16.mxu0 %v2011
        %4060 = vmatpush2.bf16.msra.mxu0 %v2010
        %4061 = vmatprep.subr.bf16.mxu0 %v2007
        %4062 = vmatpush2.bf16.msra.mxu0 %v2006
        %4063 = vmatprep.subr.bf16.mxu0 %v2003
        %4064 = vmatpush2.bf16.msra.mxu0 %v2002
        %4065 = vmatprep.subr.bf16.mxu0 %v1999
        %4066 = vmatpush2.bf16.msra.mxu0 %v1998
        %4067 = vmatprep.mubr.bf16.mxu0 %v3557
        %4068 = vmatmul.mubr.bf16.gmra.mxu0 %v3556
        %v4069 = vpop.f32.mrf.mxu0
        %v4070 = vadd.f32 %v4029, %v4069
        %v4071 = vpop.f32.mrf.mxu0
        %v4072 = vadd.f32 %v4031, %v4071
        %v4073 = vpop.f32.mrf.mxu0
        %v4074 = vpop.f32.mrf.mxu0
        %4075 = vdwg.mxu0
        %4076 = vmatprep.subr.bf16.mxu0 %v2059
        %4077 = vmatpush1.bf16.msra.mxu0 %v2058
        %4078 = vmatprep.subr.bf16.mxu0 %v2055
        %4079 = vmatpush1.bf16.msra.mxu0 %v2054
        %4080 = vmatprep.subr.bf16.mxu0 %v2051
        %4081 = vmatpush1.bf16.msra.mxu0 %v2050
        %4082 = vmatprep.subr.bf16.mxu0 %v2047
        %4083 = vmatpush1.bf16.msra.mxu0 %v2046
        %4084 = vmatprep.subr.bf16.mxu0 %v2043
        %4085 = vmatpush1.bf16.msra.mxu0 %v2042
        %4086 = vmatprep.subr.bf16.mxu0 %v2039
        %4087 = vmatpush1.bf16.msra.mxu0 %v2038
        %4088 = vmatprep.subr.bf16.mxu0 %v2035
        %4089 = vmatpush1.bf16.msra.mxu0 %v2034
        %4090 = vmatprep.subr.bf16.mxu0 %v2031
        %4091 = vmatpush1.bf16.msra.mxu0 %v2030
        %4092 = vmatprep.subr.bf16.mxu0 %v2091
        %4093 = vmatpush2.bf16.msra.mxu0 %v2090
        %4094 = vmatprep.subr.bf16.mxu0 %v2087
        %4095 = vmatpush2.bf16.msra.mxu0 %v2086
        %4096 = vmatprep.subr.bf16.mxu0 %v2083
        %4097 = vmatpush2.bf16.msra.mxu0 %v2082
        %4098 = vmatprep.subr.bf16.mxu0 %v2079
        %4099 = vmatpush2.bf16.msra.mxu0 %v2078
        %4100 = vmatprep.subr.bf16.mxu0 %v2075
        %4101 = vmatpush2.bf16.msra.mxu0 %v2074
        %4102 = vmatprep.subr.bf16.mxu0 %v2071
        %4103 = vmatpush2.bf16.msra.mxu0 %v2070
        %4104 = vmatprep.subr.bf16.mxu0 %v2067
        %4105 = vmatpush2.bf16.msra.mxu0 %v2066
        %4106 = vmatprep.subr.bf16.mxu0 %v2063
        %4107 = vmatpush2.bf16.msra.mxu0 %v2062
        %4108 = vmatprep.mubr.bf16.mxu0 %v3559
        %4109 = vmatmul.mubr.bf16.gmra.mxu0 %v3558
        %v4110 = vpop.f32.mrf.mxu0
        %v4111 = vadd.f32 %v4070, %v4110
        %v4112 = vpop.f32.mrf.mxu0
        %v4113 = vadd.f32 %v4072, %v4112
        %v4114 = vpop.f32.mrf.mxu0
        %v4115 = vpop.f32.mrf.mxu0
        %4116 = vdwg.mxu0
        %4117 = vmatprep.subr.bf16.mxu0 %v2123
        %4118 = vmatpush1.bf16.msra.mxu0 %v2122
        %4119 = vmatprep.subr.bf16.mxu0 %v2119
        %4120 = vmatpush1.bf16.msra.mxu0 %v2118
        %4121 = vmatprep.subr.bf16.mxu0 %v2115
        %4122 = vmatpush1.bf16.msra.mxu0 %v2114
        %4123 = vmatprep.subr.bf16.mxu0 %v2111
        %4124 = vmatpush1.bf16.msra.mxu0 %v2110
        %4125 = vmatprep.subr.bf16.mxu0 %v2107
        %4126 = vmatpush1.bf16.msra.mxu0 %v2106
        %4127 = vmatprep.subr.bf16.mxu0 %v2103
        %4128 = vmatpush1.bf16.msra.mxu0 %v2102
        %4129 = vmatprep.subr.bf16.mxu0 %v2099
        %4130 = vmatpush1.bf16.msra.mxu0 %v2098
        %4131 = vmatprep.subr.bf16.mxu0 %v2095
        %4132 = vmatpush1.bf16.msra.mxu0 %v2094
        %4133 = vmatprep.subr.bf16.mxu0 %v2155
        %4134 = vmatpush2.bf16.msra.mxu0 %v2154
        %4135 = vmatprep.subr.bf16.mxu0 %v2151
        %4136 = vmatpush2.bf16.msra.mxu0 %v2150
        %4137 = vmatprep.subr.bf16.mxu0 %v2147
        %4138 = vmatpush2.bf16.msra.mxu0 %v2146
        %4139 = vmatprep.subr.bf16.mxu0 %v2143
        %4140 = vmatpush2.bf16.msra.mxu0 %v2142
        %4141 = vmatprep.subr.bf16.mxu0 %v2139
        %4142 = vmatpush2.bf16.msra.mxu0 %v2138
        %4143 = vmatprep.subr.bf16.mxu0 %v2135
        %4144 = vmatpush2.bf16.msra.mxu0 %v2134
        %4145 = vmatprep.subr.bf16.mxu0 %v2131
        %4146 = vmatpush2.bf16.msra.mxu0 %v2130
        %4147 = vmatprep.subr.bf16.mxu0 %v2127
        %4148 = vmatpush2.bf16.msra.mxu0 %v2126
        %4149 = vmatprep.mubr.bf16.mxu0 %v3561
        %4150 = vmatmul.mubr.bf16.gmra.mxu0 %v3560
        %v4151 = vpop.f32.mrf.mxu0
        %v4152 = vadd.f32 %v4111, %v4151
        %v4153 = vpop.f32.mrf.mxu0
        %v4154 = vadd.f32 %v4113, %v4153
        %v4155 = vpop.f32.mrf.mxu0
        %v4156 = vpop.f32.mrf.mxu0
        %4157 = vdwg.mxu0
        %4158 = vmatprep.subr.bf16.mxu0 %v2187
        %4159 = vmatpush1.bf16.msra.mxu0 %v2186
        %4160 = vmatprep.subr.bf16.mxu0 %v2183
        %4161 = vmatpush1.bf16.msra.mxu0 %v2182
        %4162 = vmatprep.subr.bf16.mxu0 %v2179
        %4163 = vmatpush1.bf16.msra.mxu0 %v2178
        %4164 = vmatprep.subr.bf16.mxu0 %v2175
        %4165 = vmatpush1.bf16.msra.mxu0 %v2174
        %4166 = vmatprep.subr.bf16.mxu0 %v2171
        %4167 = vmatpush1.bf16.msra.mxu0 %v2170
        %4168 = vmatprep.subr.bf16.mxu0 %v2167
        %4169 = vmatpush1.bf16.msra.mxu0 %v2166
        %4170 = vmatprep.subr.bf16.mxu0 %v2163
        %4171 = vmatpush1.bf16.msra.mxu0 %v2162
        %4172 = vmatprep.subr.bf16.mxu0 %v2159
        %4173 = vmatpush1.bf16.msra.mxu0 %v2158
        %4174 = vmatprep.subr.bf16.mxu0 %v2219
        %4175 = vmatpush2.bf16.msra.mxu0 %v2218
        %4176 = vmatprep.subr.bf16.mxu0 %v2215
        %4177 = vmatpush2.bf16.msra.mxu0 %v2214
        %4178 = vmatprep.subr.bf16.mxu0 %v2211
        %4179 = vmatpush2.bf16.msra.mxu0 %v2210
        %4180 = vmatprep.subr.bf16.mxu0 %v2207
        %4181 = vmatpush2.bf16.msra.mxu0 %v2206
        %4182 = vmatprep.subr.bf16.mxu0 %v2203
        %4183 = vmatpush2.bf16.msra.mxu0 %v2202
        %4184 = vmatprep.subr.bf16.mxu0 %v2199
        %4185 = vmatpush2.bf16.msra.mxu0 %v2198
        %4186 = vmatprep.subr.bf16.mxu0 %v2195
        %4187 = vmatpush2.bf16.msra.mxu0 %v2194
        %4188 = vmatprep.subr.bf16.mxu0 %v2191
        %4189 = vmatpush2.bf16.msra.mxu0 %v2190
        %4190 = vmatprep.mubr.bf16.mxu0 %v3563
        %4191 = vmatmul.mubr.bf16.gmra.mxu0 %v3562
        %v4192 = vpop.f32.mrf.mxu0
        %v4193 = vadd.f32 %v4152, %v4192
        %v4194 = vpop.f32.mrf.mxu0
        %v4195 = vadd.f32 %v4154, %v4194
        %v4196 = vpop.f32.mrf.mxu0
        %v4197 = vpop.f32.mrf.mxu0
        %4198 = vdwg.mxu0
        %4199 = vmatprep.subr.bf16.mxu0 %v2251
        %4200 = vmatpush1.bf16.msra.mxu0 %v2250
        %4201 = vmatprep.subr.bf16.mxu0 %v2247
        %4202 = vmatpush1.bf16.msra.mxu0 %v2246
        %4203 = vmatprep.subr.bf16.mxu0 %v2243
        %4204 = vmatpush1.bf16.msra.mxu0 %v2242
        %4205 = vmatprep.subr.bf16.mxu0 %v2239
        %4206 = vmatpush1.bf16.msra.mxu0 %v2238
        %4207 = vmatprep.subr.bf16.mxu0 %v2235
        %4208 = vmatpush1.bf16.msra.mxu0 %v2234
        %4209 = vmatprep.subr.bf16.mxu0 %v2231
        %4210 = vmatpush1.bf16.msra.mxu0 %v2230
        %4211 = vmatprep.subr.bf16.mxu0 %v2227
        %4212 = vmatpush1.bf16.msra.mxu0 %v2226
        %4213 = vmatprep.subr.bf16.mxu0 %v2223
        %4214 = vmatpush1.bf16.msra.mxu0 %v2222
        %4215 = vmatprep.subr.bf16.mxu0 %v2283
        %4216 = vmatpush2.bf16.msra.mxu0 %v2282
        %4217 = vmatprep.subr.bf16.mxu0 %v2279
        %4218 = vmatpush2.bf16.msra.mxu0 %v2278
        %4219 = vmatprep.subr.bf16.mxu0 %v2275
        %4220 = vmatpush2.bf16.msra.mxu0 %v2274
        %4221 = vmatprep.subr.bf16.mxu0 %v2271
        %4222 = vmatpush2.bf16.msra.mxu0 %v2270
        %4223 = vmatprep.subr.bf16.mxu0 %v2267
        %4224 = vmatpush2.bf16.msra.mxu0 %v2266
        %4225 = vmatprep.subr.bf16.mxu0 %v2263
        %4226 = vmatpush2.bf16.msra.mxu0 %v2262
        %4227 = vmatprep.subr.bf16.mxu0 %v2259
        %4228 = vmatpush2.bf16.msra.mxu0 %v2258
        %4229 = vmatprep.subr.bf16.mxu0 %v2255
        %4230 = vmatpush2.bf16.msra.mxu0 %v2254
        %4231 = vmatprep.mubr.bf16.mxu0 %v3565
        %4232 = vmatmul.mubr.bf16.gmra.mxu0 %v3564
        %v4233 = vpop.f32.mrf.mxu0
        %v4234 = vadd.f32 %v4193, %v4233
        %v4235 = vpop.f32.mrf.mxu0
        %v4236 = vadd.f32 %v4195, %v4235
        %v4237 = vpop.f32.mrf.mxu0
        %v4238 = vpop.f32.mrf.mxu0
        %4239 = vdwg.mxu0
        %4240 = vmatprep.subr.bf16.mxu0 %v2315
        %4241 = vmatpush1.bf16.msra.mxu0 %v2314
        %4242 = vmatprep.subr.bf16.mxu0 %v2311
        %4243 = vmatpush1.bf16.msra.mxu0 %v2310
        %4244 = vmatprep.subr.bf16.mxu0 %v2307
        %4245 = vmatpush1.bf16.msra.mxu0 %v2306
        %4246 = vmatprep.subr.bf16.mxu0 %v2303
        %4247 = vmatpush1.bf16.msra.mxu0 %v2302
        %4248 = vmatprep.subr.bf16.mxu0 %v2299
        %4249 = vmatpush1.bf16.msra.mxu0 %v2298
        %4250 = vmatprep.subr.bf16.mxu0 %v2295
        %4251 = vmatpush1.bf16.msra.mxu0 %v2294
        %4252 = vmatprep.subr.bf16.mxu0 %v2291
        %4253 = vmatpush1.bf16.msra.mxu0 %v2290
        %4254 = vmatprep.subr.bf16.mxu0 %v2287
        %4255 = vmatpush1.bf16.msra.mxu0 %v2286
        %4256 = vmatprep.subr.bf16.mxu0 %v2347
        %4257 = vmatpush2.bf16.msra.mxu0 %v2346
        %4258 = vmatprep.subr.bf16.mxu0 %v2343
        %4259 = vmatpush2.bf16.msra.mxu0 %v2342
        %4260 = vmatprep.subr.bf16.mxu0 %v2339
        %4261 = vmatpush2.bf16.msra.mxu0 %v2338
        %4262 = vmatprep.subr.bf16.mxu0 %v2335
        %4263 = vmatpush2.bf16.msra.mxu0 %v2334
        %4264 = vmatprep.subr.bf16.mxu0 %v2331
        %4265 = vmatpush2.bf16.msra.mxu0 %v2330
        %4266 = vmatprep.subr.bf16.mxu0 %v2327
        %4267 = vmatpush2.bf16.msra.mxu0 %v2326
        %4268 = vmatprep.subr.bf16.mxu0 %v2323
        %4269 = vmatpush2.bf16.msra.mxu0 %v2322
        %4270 = vmatprep.subr.bf16.mxu0 %v2319
        %4271 = vmatpush2.bf16.msra.mxu0 %v2318
        %4272 = vmatprep.mubr.bf16.mxu0 %v3567
        %4273 = vmatmul.mubr.bf16.gmra.mxu0 %v3566
        %v4274 = vpop.f32.mrf.mxu0
        %v4275 = vadd.f32 %v4234, %v4274
        %v4276 = vpop.f32.mrf.mxu0
        %v4277 = vadd.f32 %v4236, %v4276
        %v4278 = vpop.f32.mrf.mxu0
        %v4279 = vpop.f32.mrf.mxu0
        %4280 = vdwg.mxu0
        %4281 = vmatprep.subr.bf16.mxu0 %v2379
        %4282 = vmatpush1.bf16.msra.mxu0 %v2378
        %4283 = vmatprep.subr.bf16.mxu0 %v2375
        %4284 = vmatpush1.bf16.msra.mxu0 %v2374
        %4285 = vmatprep.subr.bf16.mxu0 %v2371
        %4286 = vmatpush1.bf16.msra.mxu0 %v2370
        %4287 = vmatprep.subr.bf16.mxu0 %v2367
        %4288 = vmatpush1.bf16.msra.mxu0 %v2366
        %4289 = vmatprep.subr.bf16.mxu0 %v2363
        %4290 = vmatpush1.bf16.msra.mxu0 %v2362
        %4291 = vmatprep.subr.bf16.mxu0 %v2359
        %4292 = vmatpush1.bf16.msra.mxu0 %v2358
        %4293 = vmatprep.subr.bf16.mxu0 %v2355
        %4294 = vmatpush1.bf16.msra.mxu0 %v2354
        %4295 = vmatprep.subr.bf16.mxu0 %v2351
        %4296 = vmatpush1.bf16.msra.mxu0 %v2350
        %4297 = vmatprep.subr.bf16.mxu0 %v2411
        %4298 = vmatpush2.bf16.msra.mxu0 %v2410
        %4299 = vmatprep.subr.bf16.mxu0 %v2407
        %4300 = vmatpush2.bf16.msra.mxu0 %v2406
        %4301 = vmatprep.subr.bf16.mxu0 %v2403
        %4302 = vmatpush2.bf16.msra.mxu0 %v2402
        %4303 = vmatprep.subr.bf16.mxu0 %v2399
        %4304 = vmatpush2.bf16.msra.mxu0 %v2398
        %4305 = vmatprep.subr.bf16.mxu0 %v2395
        %4306 = vmatpush2.bf16.msra.mxu0 %v2394
        %4307 = vmatprep.subr.bf16.mxu0 %v2391
        %4308 = vmatpush2.bf16.msra.mxu0 %v2390
        %4309 = vmatprep.subr.bf16.mxu0 %v2387
        %4310 = vmatpush2.bf16.msra.mxu0 %v2386
        %4311 = vmatprep.subr.bf16.mxu0 %v2383
        %4312 = vmatpush2.bf16.msra.mxu0 %v2382
        %4313 = vmatprep.mubr.bf16.mxu0 %v3569
        %4314 = vmatmul.mubr.bf16.gmra.mxu0 %v3568
        %v4315 = vpop.f32.mrf.mxu0
        %v4316 = vadd.f32 %v4275, %v4315
        %v4317 = vpop.f32.mrf.mxu0
        %v4318 = vadd.f32 %v4277, %v4317
        %v4319 = vpop.f32.mrf.mxu0
        %v4320 = vpop.f32.mrf.mxu0
        %4321 = vdwg.mxu0
        %4322 = vmatprep.subr.bf16.mxu0 %v2443
        %4323 = vmatpush1.bf16.msra.mxu0 %v2442
        %4324 = vmatprep.subr.bf16.mxu0 %v2439
        %4325 = vmatpush1.bf16.msra.mxu0 %v2438
        %4326 = vmatprep.subr.bf16.mxu0 %v2435
        %4327 = vmatpush1.bf16.msra.mxu0 %v2434
        %4328 = vmatprep.subr.bf16.mxu0 %v2431
        %4329 = vmatpush1.bf16.msra.mxu0 %v2430
        %4330 = vmatprep.subr.bf16.mxu0 %v2427
        %4331 = vmatpush1.bf16.msra.mxu0 %v2426
        %4332 = vmatprep.subr.bf16.mxu0 %v2423
        %4333 = vmatpush1.bf16.msra.mxu0 %v2422
        %4334 = vmatprep.subr.bf16.mxu0 %v2419
        %4335 = vmatpush1.bf16.msra.mxu0 %v2418
        %4336 = vmatprep.subr.bf16.mxu0 %v2415
        %4337 = vmatpush1.bf16.msra.mxu0 %v2414
        %4338 = vmatprep.subr.bf16.mxu0 %v2475
        %4339 = vmatpush2.bf16.msra.mxu0 %v2474
        %4340 = vmatprep.subr.bf16.mxu0 %v2471
        %4341 = vmatpush2.bf16.msra.mxu0 %v2470
        %4342 = vmatprep.subr.bf16.mxu0 %v2467
        %4343 = vmatpush2.bf16.msra.mxu0 %v2466
        %4344 = vmatprep.subr.bf16.mxu0 %v2463
        %4345 = vmatpush2.bf16.msra.mxu0 %v2462
        %4346 = vmatprep.subr.bf16.mxu0 %v2459
        %4347 = vmatpush2.bf16.msra.mxu0 %v2458
        %4348 = vmatprep.subr.bf16.mxu0 %v2455
        %4349 = vmatpush2.bf16.msra.mxu0 %v2454
        %4350 = vmatprep.subr.bf16.mxu0 %v2451
        %4351 = vmatpush2.bf16.msra.mxu0 %v2450
        %4352 = vmatprep.subr.bf16.mxu0 %v2447
        %4353 = vmatpush2.bf16.msra.mxu0 %v2446
        %4354 = vmatprep.mubr.bf16.mxu0 %v3571
        %4355 = vmatmul.mubr.bf16.gmra.mxu0 %v3570
        %v4356 = vpop.f32.mrf.mxu0
        %v4357 = vadd.f32 %v4316, %v4356
        %v4358 = vpop.f32.mrf.mxu0
        %v4359 = vadd.f32 %v4318, %v4358
        %v4360 = vpop.f32.mrf.mxu0
        %v4361 = vpop.f32.mrf.mxu0
        %4362 = vdwg.mxu0
        %4363 = vmatprep.subr.bf16.mxu0 %v2507
        %4364 = vmatpush1.bf16.msra.mxu0 %v2506
        %4365 = vmatprep.subr.bf16.mxu0 %v2503
        %4366 = vmatpush1.bf16.msra.mxu0 %v2502
        %4367 = vmatprep.subr.bf16.mxu0 %v2499
        %4368 = vmatpush1.bf16.msra.mxu0 %v2498
        %4369 = vmatprep.subr.bf16.mxu0 %v2495
        %4370 = vmatpush1.bf16.msra.mxu0 %v2494
        %4371 = vmatprep.subr.bf16.mxu0 %v2491
        %4372 = vmatpush1.bf16.msra.mxu0 %v2490
        %4373 = vmatprep.subr.bf16.mxu0 %v2487
        %4374 = vmatpush1.bf16.msra.mxu0 %v2486
        %4375 = vmatprep.subr.bf16.mxu0 %v2483
        %4376 = vmatpush1.bf16.msra.mxu0 %v2482
        %4377 = vmatprep.subr.bf16.mxu0 %v2479
        %4378 = vmatpush1.bf16.msra.mxu0 %v2478
        %4379 = vmatprep.subr.bf16.mxu0 %v2539
        %4380 = vmatpush2.bf16.msra.mxu0 %v2538
        %4381 = vmatprep.subr.bf16.mxu0 %v2535
        %4382 = vmatpush2.bf16.msra.mxu0 %v2534
        %4383 = vmatprep.subr.bf16.mxu0 %v2531
        %4384 = vmatpush2.bf16.msra.mxu0 %v2530
        %4385 = vmatprep.subr.bf16.mxu0 %v2527
        %4386 = vmatpush2.bf16.msra.mxu0 %v2526
        %4387 = vmatprep.subr.bf16.mxu0 %v2523
        %4388 = vmatpush2.bf16.msra.mxu0 %v2522
        %4389 = vmatprep.subr.bf16.mxu0 %v2519
        %4390 = vmatpush2.bf16.msra.mxu0 %v2518
        %4391 = vmatprep.subr.bf16.mxu0 %v2515
        %4392 = vmatpush2.bf16.msra.mxu0 %v2514
        %4393 = vmatprep.subr.bf16.mxu0 %v2511
        %4394 = vmatpush2.bf16.msra.mxu0 %v2510
        %4395 = vmatprep.mubr.bf16.mxu0 %v3573
        %4396 = vmatmul.mubr.bf16.gmra.mxu0 %v3572
        %v4397 = vpop.f32.mrf.mxu0
        %v4398 = vadd.f32 %v4357, %v4397
        %v4399 = vpop.f32.mrf.mxu0
        %v4400 = vadd.f32 %v4359, %v4399
        %v4401 = vpop.f32.mrf.mxu0
        %v4402 = vpop.f32.mrf.mxu0
        %4403 = vdwg.mxu0
        %4404 = vmatprep.subr.bf16.mxu0 %v2571
        %4405 = vmatpush1.bf16.msra.mxu0 %v2570
        %4406 = vmatprep.subr.bf16.mxu0 %v2567
        %4407 = vmatpush1.bf16.msra.mxu0 %v2566
        %4408 = vmatprep.subr.bf16.mxu0 %v2563
        %4409 = vmatpush1.bf16.msra.mxu0 %v2562
        %4410 = vmatprep.subr.bf16.mxu0 %v2559
        %4411 = vmatpush1.bf16.msra.mxu0 %v2558
        %4412 = vmatprep.subr.bf16.mxu0 %v2555
        %4413 = vmatpush1.bf16.msra.mxu0 %v2554
        %4414 = vmatprep.subr.bf16.mxu0 %v2551
        %4415 = vmatpush1.bf16.msra.mxu0 %v2550
        %4416 = vmatprep.subr.bf16.mxu0 %v2547
        %4417 = vmatpush1.bf16.msra.mxu0 %v2546
        %4418 = vmatprep.subr.bf16.mxu0 %v2543
        %4419 = vmatpush1.bf16.msra.mxu0 %v2542
        %4420 = vmatprep.subr.bf16.mxu0 %v2603
        %4421 = vmatpush2.bf16.msra.mxu0 %v2602
        %4422 = vmatprep.subr.bf16.mxu0 %v2599
        %4423 = vmatpush2.bf16.msra.mxu0 %v2598
        %4424 = vmatprep.subr.bf16.mxu0 %v2595
        %4425 = vmatpush2.bf16.msra.mxu0 %v2594
        %4426 = vmatprep.subr.bf16.mxu0 %v2591
        %4427 = vmatpush2.bf16.msra.mxu0 %v2590
        %4428 = vmatprep.subr.bf16.mxu0 %v2587
        %4429 = vmatpush2.bf16.msra.mxu0 %v2586
        %4430 = vmatprep.subr.bf16.mxu0 %v2583
        %4431 = vmatpush2.bf16.msra.mxu0 %v2582
        %4432 = vmatprep.subr.bf16.mxu0 %v2579
        %4433 = vmatpush2.bf16.msra.mxu0 %v2578
        %4434 = vmatprep.subr.bf16.mxu0 %v2575
        %4435 = vmatpush2.bf16.msra.mxu0 %v2574
        %4436 = vmatprep.mubr.bf16.mxu0 %v3575
        %4437 = vmatmul.mubr.bf16.gmra.mxu0 %v3574
        %v4438 = vpop.f32.mrf.mxu0
        %v4439 = vadd.f32 %v4398, %v4438
        %v4440 = vpop.f32.mrf.mxu0
        %v4441 = vadd.f32 %v4400, %v4440
        %v4442 = vpop.f32.mrf.mxu0
        %v4443 = vpop.f32.mrf.mxu0
        %4444 = vdwg.mxu0
        %4445 = vmatprep.subr.bf16.mxu0 %v2635
        %4446 = vmatpush1.bf16.msra.mxu0 %v2634
        %4447 = vmatprep.subr.bf16.mxu0 %v2631
        %4448 = vmatpush1.bf16.msra.mxu0 %v2630
        %4449 = vmatprep.subr.bf16.mxu0 %v2627
        %4450 = vmatpush1.bf16.msra.mxu0 %v2626
        %4451 = vmatprep.subr.bf16.mxu0 %v2623
        %4452 = vmatpush1.bf16.msra.mxu0 %v2622
        %4453 = vmatprep.subr.bf16.mxu0 %v2619
        %4454 = vmatpush1.bf16.msra.mxu0 %v2618
        %4455 = vmatprep.subr.bf16.mxu0 %v2615
        %4456 = vmatpush1.bf16.msra.mxu0 %v2614
        %4457 = vmatprep.subr.bf16.mxu0 %v2611
        %4458 = vmatpush1.bf16.msra.mxu0 %v2610
        %4459 = vmatprep.subr.bf16.mxu0 %v2607
        %4460 = vmatpush1.bf16.msra.mxu0 %v2606
        %4461 = vmatprep.subr.bf16.mxu0 %v2667
        %4462 = vmatpush2.bf16.msra.mxu0 %v2666
        %4463 = vmatprep.subr.bf16.mxu0 %v2663
        %4464 = vmatpush2.bf16.msra.mxu0 %v2662
        %4465 = vmatprep.subr.bf16.mxu0 %v2659
        %4466 = vmatpush2.bf16.msra.mxu0 %v2658
        %4467 = vmatprep.subr.bf16.mxu0 %v2655
        %4468 = vmatpush2.bf16.msra.mxu0 %v2654
        %4469 = vmatprep.subr.bf16.mxu0 %v2651
        %4470 = vmatpush2.bf16.msra.mxu0 %v2650
        %4471 = vmatprep.subr.bf16.mxu0 %v2647
        %4472 = vmatpush2.bf16.msra.mxu0 %v2646
        %4473 = vmatprep.subr.bf16.mxu0 %v2643
        %4474 = vmatpush2.bf16.msra.mxu0 %v2642
        %4475 = vmatprep.subr.bf16.mxu0 %v2639
        %4476 = vmatpush2.bf16.msra.mxu0 %v2638
        %4477 = vmatprep.mubr.bf16.mxu0 %v3577
        %4478 = vmatmul.mubr.bf16.gmra.mxu0 %v3576
        %v4479 = vpop.f32.mrf.mxu0
        %v4480 = vadd.f32 %v4439, %v4479
        %v4481 = vpop.f32.mrf.mxu0
        %v4482 = vadd.f32 %v4441, %v4481
        %v4483 = vpop.f32.mrf.mxu0
        %v4484 = vpop.f32.mrf.mxu0
        %4485 = vdwg.mxu0
        %4486 = vmatprep.subr.bf16.mxu0 %v2699
        %4487 = vmatpush1.bf16.msra.mxu0 %v2698
        %4488 = vmatprep.subr.bf16.mxu0 %v2695
        %4489 = vmatpush1.bf16.msra.mxu0 %v2694
        %4490 = vmatprep.subr.bf16.mxu0 %v2691
        %4491 = vmatpush1.bf16.msra.mxu0 %v2690
        %4492 = vmatprep.subr.bf16.mxu0 %v2687
        %4493 = vmatpush1.bf16.msra.mxu0 %v2686
        %4494 = vmatprep.subr.bf16.mxu0 %v2683
        %4495 = vmatpush1.bf16.msra.mxu0 %v2682
        %4496 = vmatprep.subr.bf16.mxu0 %v2679
        %4497 = vmatpush1.bf16.msra.mxu0 %v2678
        %4498 = vmatprep.subr.bf16.mxu0 %v2675
        %4499 = vmatpush1.bf16.msra.mxu0 %v2674
        %4500 = vmatprep.subr.bf16.mxu0 %v2671
        %4501 = vmatpush1.bf16.msra.mxu0 %v2670
        %4502 = vmatprep.subr.bf16.mxu0 %v2731
        %4503 = vmatpush2.bf16.msra.mxu0 %v2730
        %4504 = vmatprep.subr.bf16.mxu0 %v2727
        %4505 = vmatpush2.bf16.msra.mxu0 %v2726
        %4506 = vmatprep.subr.bf16.mxu0 %v2723
        %4507 = vmatpush2.bf16.msra.mxu0 %v2722
        %4508 = vmatprep.subr.bf16.mxu0 %v2719
        %4509 = vmatpush2.bf16.msra.mxu0 %v2718
        %4510 = vmatprep.subr.bf16.mxu0 %v2715
        %4511 = vmatpush2.bf16.msra.mxu0 %v2714
        %4512 = vmatprep.subr.bf16.mxu0 %v2711
        %4513 = vmatpush2.bf16.msra.mxu0 %v2710
        %4514 = vmatprep.subr.bf16.mxu0 %v2707
        %4515 = vmatpush2.bf16.msra.mxu0 %v2706
        %4516 = vmatprep.subr.bf16.mxu0 %v2703
        %4517 = vmatpush2.bf16.msra.mxu0 %v2702
        %4518 = vmatprep.mubr.bf16.mxu0 %v3579
        %4519 = vmatmul.mubr.bf16.gmra.mxu0 %v3578
        %v4520 = vpop.f32.mrf.mxu0
        %v4521 = vadd.f32 %v4480, %v4520
        %v4522 = vpop.f32.mrf.mxu0
        %v4523 = vadd.f32 %v4482, %v4522
        %v4524 = vpop.f32.mrf.mxu0
        %v4525 = vpop.f32.mrf.mxu0
        %4526 = vdwg.mxu0
        %4527 = vmatprep.subr.bf16.mxu0 %v2763
        %4528 = vmatpush1.bf16.msra.mxu0 %v2762
        %4529 = vmatprep.subr.bf16.mxu0 %v2759
        %4530 = vmatpush1.bf16.msra.mxu0 %v2758
        %4531 = vmatprep.subr.bf16.mxu0 %v2755
        %4532 = vmatpush1.bf16.msra.mxu0 %v2754
        %4533 = vmatprep.subr.bf16.mxu0 %v2751
        %4534 = vmatpush1.bf16.msra.mxu0 %v2750
        %4535 = vmatprep.subr.bf16.mxu0 %v2747
        %4536 = vmatpush1.bf16.msra.mxu0 %v2746
        %4537 = vmatprep.subr.bf16.mxu0 %v2743
        %4538 = vmatpush1.bf16.msra.mxu0 %v2742
        %4539 = vmatprep.subr.bf16.mxu0 %v2739
        %4540 = vmatpush1.bf16.msra.mxu0 %v2738
        %4541 = vmatprep.subr.bf16.mxu0 %v2735
        %4542 = vmatpush1.bf16.msra.mxu0 %v2734
        %4543 = vmatprep.subr.bf16.mxu0 %v2795
        %4544 = vmatpush2.bf16.msra.mxu0 %v2794
        %4545 = vmatprep.subr.bf16.mxu0 %v2791
        %4546 = vmatpush2.bf16.msra.mxu0 %v2790
        %4547 = vmatprep.subr.bf16.mxu0 %v2787
        %4548 = vmatpush2.bf16.msra.mxu0 %v2786
        %4549 = vmatprep.subr.bf16.mxu0 %v2783
        %4550 = vmatpush2.bf16.msra.mxu0 %v2782
        %4551 = vmatprep.subr.bf16.mxu0 %v2779
        %4552 = vmatpush2.bf16.msra.mxu0 %v2778
        %4553 = vmatprep.subr.bf16.mxu0 %v2775
        %4554 = vmatpush2.bf16.msra.mxu0 %v2774
        %4555 = vmatprep.subr.bf16.mxu0 %v2771
        %4556 = vmatpush2.bf16.msra.mxu0 %v2770
        %4557 = vmatprep.subr.bf16.mxu0 %v2767
        %4558 = vmatpush2.bf16.msra.mxu0 %v2766
        %4559 = vmatprep.mubr.bf16.mxu0 %v3581
        %4560 = vmatmul.mubr.bf16.gmra.mxu0 %v3580
        %v4561 = vpop.f32.mrf.mxu0
        %v4562 = vadd.f32 %v4521, %v4561
        %v4563 = vpop.f32.mrf.mxu0
        %v4564 = vadd.f32 %v4523, %v4563
        %v4565 = vpop.f32.mrf.mxu0
        %v4566 = vpop.f32.mrf.mxu0
        %4567 = vdwg.mxu0
        %4568 = vmatprep.subr.bf16.mxu0 %v2827
        %4569 = vmatpush1.bf16.msra.mxu0 %v2826
        %4570 = vmatprep.subr.bf16.mxu0 %v2823
        %4571 = vmatpush1.bf16.msra.mxu0 %v2822
        %4572 = vmatprep.subr.bf16.mxu0 %v2819
        %4573 = vmatpush1.bf16.msra.mxu0 %v2818
        %4574 = vmatprep.subr.bf16.mxu0 %v2815
        %4575 = vmatpush1.bf16.msra.mxu0 %v2814
        %4576 = vmatprep.subr.bf16.mxu0 %v2811
        %4577 = vmatpush1.bf16.msra.mxu0 %v2810
        %4578 = vmatprep.subr.bf16.mxu0 %v2807
        %4579 = vmatpush1.bf16.msra.mxu0 %v2806
        %4580 = vmatprep.subr.bf16.mxu0 %v2803
        %4581 = vmatpush1.bf16.msra.mxu0 %v2802
        %4582 = vmatprep.subr.bf16.mxu0 %v2799
        %4583 = vmatpush1.bf16.msra.mxu0 %v2798
        %4584 = vmatprep.subr.bf16.mxu0 %v2859
        %4585 = vmatpush2.bf16.msra.mxu0 %v2858
        %4586 = vmatprep.subr.bf16.mxu0 %v2855
        %4587 = vmatpush2.bf16.msra.mxu0 %v2854
        %4588 = vmatprep.subr.bf16.mxu0 %v2851
        %4589 = vmatpush2.bf16.msra.mxu0 %v2850
        %4590 = vmatprep.subr.bf16.mxu0 %v2847
        %4591 = vmatpush2.bf16.msra.mxu0 %v2846
        %4592 = vmatprep.subr.bf16.mxu0 %v2843
        %4593 = vmatpush2.bf16.msra.mxu0 %v2842
        %4594 = vmatprep.subr.bf16.mxu0 %v2839
        %4595 = vmatpush2.bf16.msra.mxu0 %v2838
        %4596 = vmatprep.subr.bf16.mxu0 %v2835
        %4597 = vmatpush2.bf16.msra.mxu0 %v2834
        %4598 = vmatprep.subr.bf16.mxu0 %v2831
        %4599 = vmatpush2.bf16.msra.mxu0 %v2830
        %4600 = vmatprep.mubr.bf16.mxu0 %v3583
        %4601 = vmatmul.mubr.bf16.gmra.mxu0 %v3582
        %v4602 = vpop.f32.mrf.mxu0
        %v4603 = vadd.f32 %v4562, %v4602
        %v4604 = vpop.f32.mrf.mxu0
        %v4605 = vadd.f32 %v4564, %v4604
        %v4606 = vpop.f32.mrf.mxu0
        %v4607 = vpop.f32.mrf.mxu0
        %4608 = vdwg.mxu0
        %4609 = vmatprep.subr.bf16.mxu0 %v2891
        %4610 = vmatpush1.bf16.msra.mxu0 %v2890
        %4611 = vmatprep.subr.bf16.mxu0 %v2887
        %4612 = vmatpush1.bf16.msra.mxu0 %v2886
        %4613 = vmatprep.subr.bf16.mxu0 %v2883
        %4614 = vmatpush1.bf16.msra.mxu0 %v2882
        %4615 = vmatprep.subr.bf16.mxu0 %v2879
        %4616 = vmatpush1.bf16.msra.mxu0 %v2878
        %4617 = vmatprep.subr.bf16.mxu0 %v2875
        %4618 = vmatpush1.bf16.msra.mxu0 %v2874
        %4619 = vmatprep.subr.bf16.mxu0 %v2871
        %4620 = vmatpush1.bf16.msra.mxu0 %v2870
        %4621 = vmatprep.subr.bf16.mxu0 %v2867
        %4622 = vmatpush1.bf16.msra.mxu0 %v2866
        %4623 = vmatprep.subr.bf16.mxu0 %v2863
        %4624 = vmatpush1.bf16.msra.mxu0 %v2862
        %4625 = vmatprep.subr.bf16.mxu0 %v2923
        %4626 = vmatpush2.bf16.msra.mxu0 %v2922
        %4627 = vmatprep.subr.bf16.mxu0 %v2919
        %4628 = vmatpush2.bf16.msra.mxu0 %v2918
        %4629 = vmatprep.subr.bf16.mxu0 %v2915
        %4630 = vmatpush2.bf16.msra.mxu0 %v2914
        %4631 = vmatprep.subr.bf16.mxu0 %v2911
        %4632 = vmatpush2.bf16.msra.mxu0 %v2910
        %4633 = vmatprep.subr.bf16.mxu0 %v2907
        %4634 = vmatpush2.bf16.msra.mxu0 %v2906
        %4635 = vmatprep.subr.bf16.mxu0 %v2903
        %4636 = vmatpush2.bf16.msra.mxu0 %v2902
        %4637 = vmatprep.subr.bf16.mxu0 %v2899
        %4638 = vmatpush2.bf16.msra.mxu0 %v2898
        %4639 = vmatprep.subr.bf16.mxu0 %v2895
        %4640 = vmatpush2.bf16.msra.mxu0 %v2894
        %4641 = vmatprep.mubr.bf16.mxu0 %v3585
        %4642 = vmatmul.mubr.bf16.gmra.mxu0 %v3584
        %v4643 = vpop.f32.mrf.mxu0
        %v4644 = vadd.f32 %v4603, %v4643
        %v4645 = vpop.f32.mrf.mxu0
        %v4646 = vadd.f32 %v4605, %v4645
        %v4647 = vpop.f32.mrf.mxu0
        %v4648 = vpop.f32.mrf.mxu0
        %4649 = vdwg.mxu0
        %4650 = vmatprep.subr.bf16.mxu0 %v2955
        %4651 = vmatpush1.bf16.msra.mxu0 %v2954
        %4652 = vmatprep.subr.bf16.mxu0 %v2951
        %4653 = vmatpush1.bf16.msra.mxu0 %v2950
        %4654 = vmatprep.subr.bf16.mxu0 %v2947
        %4655 = vmatpush1.bf16.msra.mxu0 %v2946
        %4656 = vmatprep.subr.bf16.mxu0 %v2943
        %4657 = vmatpush1.bf16.msra.mxu0 %v2942
        %4658 = vmatprep.subr.bf16.mxu0 %v2939
        %4659 = vmatpush1.bf16.msra.mxu0 %v2938
        %4660 = vmatprep.subr.bf16.mxu0 %v2935
        %4661 = vmatpush1.bf16.msra.mxu0 %v2934
        %4662 = vmatprep.subr.bf16.mxu0 %v2931
        %4663 = vmatpush1.bf16.msra.mxu0 %v2930
        %4664 = vmatprep.subr.bf16.mxu0 %v2927
        %4665 = vmatpush1.bf16.msra.mxu0 %v2926
        %4666 = vmatprep.subr.bf16.mxu0 %v2987
        %4667 = vmatpush2.bf16.msra.mxu0 %v2986
        %4668 = vmatprep.subr.bf16.mxu0 %v2983
        %4669 = vmatpush2.bf16.msra.mxu0 %v2982
        %4670 = vmatprep.subr.bf16.mxu0 %v2979
        %4671 = vmatpush2.bf16.msra.mxu0 %v2978
        %4672 = vmatprep.subr.bf16.mxu0 %v2975
        %4673 = vmatpush2.bf16.msra.mxu0 %v2974
        %4674 = vmatprep.subr.bf16.mxu0 %v2971
        %4675 = vmatpush2.bf16.msra.mxu0 %v2970
        %4676 = vmatprep.subr.bf16.mxu0 %v2967
        %4677 = vmatpush2.bf16.msra.mxu0 %v2966
        %4678 = vmatprep.subr.bf16.mxu0 %v2963
        %4679 = vmatpush2.bf16.msra.mxu0 %v2962
        %4680 = vmatprep.subr.bf16.mxu0 %v2959
        %4681 = vmatpush2.bf16.msra.mxu0 %v2958
        %4682 = vmatprep.mubr.bf16.mxu0 %v3587
        %4683 = vmatmul.mubr.bf16.gmra.mxu0 %v3586
        %v4684 = vpop.f32.mrf.mxu0
        %v4685 = vadd.f32 %v4644, %v4684
        %v4686 = vpop.f32.mrf.mxu0
        %v4687 = vadd.f32 %v4646, %v4686
        %v4688 = vpop.f32.mrf.mxu0
        %v4689 = vpop.f32.mrf.mxu0
        %4690 = vdwg.mxu0
        %4691 = vmatprep.subr.bf16.mxu0 %v3019
        %4692 = vmatpush1.bf16.msra.mxu0 %v3018
        %4693 = vmatprep.subr.bf16.mxu0 %v3015
        %4694 = vmatpush1.bf16.msra.mxu0 %v3014
        %4695 = vmatprep.subr.bf16.mxu0 %v3011
        %4696 = vmatpush1.bf16.msra.mxu0 %v3010
        %4697 = vmatprep.subr.bf16.mxu0 %v3007
        %4698 = vmatpush1.bf16.msra.mxu0 %v3006
        %4699 = vmatprep.subr.bf16.mxu0 %v3003
        %4700 = vmatpush1.bf16.msra.mxu0 %v3002
        %4701 = vmatprep.subr.bf16.mxu0 %v2999
        %4702 = vmatpush1.bf16.msra.mxu0 %v2998
        %4703 = vmatprep.subr.bf16.mxu0 %v2995
        %4704 = vmatpush1.bf16.msra.mxu0 %v2994
        %4705 = vmatprep.subr.bf16.mxu0 %v2991
        %4706 = vmatpush1.bf16.msra.mxu0 %v2990
        %4707 = vmatprep.subr.bf16.mxu0 %v3051
        %4708 = vmatpush2.bf16.msra.mxu0 %v3050
        %4709 = vmatprep.subr.bf16.mxu0 %v3047
        %4710 = vmatpush2.bf16.msra.mxu0 %v3046
        %4711 = vmatprep.subr.bf16.mxu0 %v3043
        %4712 = vmatpush2.bf16.msra.mxu0 %v3042
        %4713 = vmatprep.subr.bf16.mxu0 %v3039
        %4714 = vmatpush2.bf16.msra.mxu0 %v3038
        %4715 = vmatprep.subr.bf16.mxu0 %v3035
        %4716 = vmatpush2.bf16.msra.mxu0 %v3034
        %4717 = vmatprep.subr.bf16.mxu0 %v3031
        %4718 = vmatpush2.bf16.msra.mxu0 %v3030
        %4719 = vmatprep.subr.bf16.mxu0 %v3027
        %4720 = vmatpush2.bf16.msra.mxu0 %v3026
        %4721 = vmatprep.subr.bf16.mxu0 %v3023
        %4722 = vmatpush2.bf16.msra.mxu0 %v3022
        %4723 = vmatprep.mubr.bf16.mxu0 %v3589
        %4724 = vmatmul.mubr.bf16.gmra.mxu0 %v3588
        %v4725 = vpop.f32.mrf.mxu0
        %v4726 = vadd.f32 %v4685, %v4725
        %v4727 = vpop.f32.mrf.mxu0
        %v4728 = vadd.f32 %v4687, %v4727
        %v4729 = vpop.f32.mrf.mxu0
        %v4730 = vpop.f32.mrf.mxu0
        %4731 = vdwg.mxu0
        %4732 = vmatprep.subr.bf16.mxu0 %v3083
        %4733 = vmatpush1.bf16.msra.mxu0 %v3082
        %4734 = vmatprep.subr.bf16.mxu0 %v3079
        %4735 = vmatpush1.bf16.msra.mxu0 %v3078
        %4736 = vmatprep.subr.bf16.mxu0 %v3075
        %4737 = vmatpush1.bf16.msra.mxu0 %v3074
        %4738 = vmatprep.subr.bf16.mxu0 %v3071
        %4739 = vmatpush1.bf16.msra.mxu0 %v3070
        %4740 = vmatprep.subr.bf16.mxu0 %v3067
        %4741 = vmatpush1.bf16.msra.mxu0 %v3066
        %4742 = vmatprep.subr.bf16.mxu0 %v3063
        %4743 = vmatpush1.bf16.msra.mxu0 %v3062
        %4744 = vmatprep.subr.bf16.mxu0 %v3059
        %4745 = vmatpush1.bf16.msra.mxu0 %v3058
        %4746 = vmatprep.subr.bf16.mxu0 %v3055
        %4747 = vmatpush1.bf16.msra.mxu0 %v3054
        %4748 = vmatprep.subr.bf16.mxu0 %v3115
        %4749 = vmatpush2.bf16.msra.mxu0 %v3114
        %4750 = vmatprep.subr.bf16.mxu0 %v3111
        %4751 = vmatpush2.bf16.msra.mxu0 %v3110
        %4752 = vmatprep.subr.bf16.mxu0 %v3107
        %4753 = vmatpush2.bf16.msra.mxu0 %v3106
        %4754 = vmatprep.subr.bf16.mxu0 %v3103
        %4755 = vmatpush2.bf16.msra.mxu0 %v3102
        %4756 = vmatprep.subr.bf16.mxu0 %v3099
        %4757 = vmatpush2.bf16.msra.mxu0 %v3098
        %4758 = vmatprep.subr.bf16.mxu0 %v3095
        %4759 = vmatpush2.bf16.msra.mxu0 %v3094
        %4760 = vmatprep.subr.bf16.mxu0 %v3091
        %4761 = vmatpush2.bf16.msra.mxu0 %v3090
        %4762 = vmatprep.subr.bf16.mxu0 %v3087
        %4763 = vmatpush2.bf16.msra.mxu0 %v3086
        %4764 = vmatprep.mubr.bf16.mxu0 %v3591
        %4765 = vmatmul.mubr.bf16.gmra.mxu0 %v3590
        %v4766 = vpop.f32.mrf.mxu0
        %v4767 = vadd.f32 %v4726, %v4766
        %v4768 = vpop.f32.mrf.mxu0
        %v4769 = vadd.f32 %v4728, %v4768
        %v4770 = vpop.f32.mrf.mxu0
        %v4771 = vpop.f32.mrf.mxu0
        %4772 = vdwg.mxu0
        %4773 = vmatprep.subr.bf16.mxu0 %v3147
        %4774 = vmatpush1.bf16.msra.mxu0 %v3146
        %4775 = vmatprep.subr.bf16.mxu0 %v3143
        %4776 = vmatpush1.bf16.msra.mxu0 %v3142
        %4777 = vmatprep.subr.bf16.mxu0 %v3139
        %4778 = vmatpush1.bf16.msra.mxu0 %v3138
        %4779 = vmatprep.subr.bf16.mxu0 %v3135
        %4780 = vmatpush1.bf16.msra.mxu0 %v3134
        %4781 = vmatprep.subr.bf16.mxu0 %v3131
        %4782 = vmatpush1.bf16.msra.mxu0 %v3130
        %4783 = vmatprep.subr.bf16.mxu0 %v3127
        %4784 = vmatpush1.bf16.msra.mxu0 %v3126
        %4785 = vmatprep.subr.bf16.mxu0 %v3123
        %4786 = vmatpush1.bf16.msra.mxu0 %v3122
        %4787 = vmatprep.subr.bf16.mxu0 %v3119
        %4788 = vmatpush1.bf16.msra.mxu0 %v3118
        %4789 = vmatprep.subr.bf16.mxu0 %v3179
        %4790 = vmatpush2.bf16.msra.mxu0 %v3178
        %4791 = vmatprep.subr.bf16.mxu0 %v3175
        %4792 = vmatpush2.bf16.msra.mxu0 %v3174
        %4793 = vmatprep.subr.bf16.mxu0 %v3171
        %4794 = vmatpush2.bf16.msra.mxu0 %v3170
        %4795 = vmatprep.subr.bf16.mxu0 %v3167
        %4796 = vmatpush2.bf16.msra.mxu0 %v3166
        %4797 = vmatprep.subr.bf16.mxu0 %v3163
        %4798 = vmatpush2.bf16.msra.mxu0 %v3162
        %4799 = vmatprep.subr.bf16.mxu0 %v3159
        %4800 = vmatpush2.bf16.msra.mxu0 %v3158
        %4801 = vmatprep.subr.bf16.mxu0 %v3155
        %4802 = vmatpush2.bf16.msra.mxu0 %v3154
        %4803 = vmatprep.subr.bf16.mxu0 %v3151
        %4804 = vmatpush2.bf16.msra.mxu0 %v3150
        %4805 = vmatprep.mubr.bf16.mxu0 %v3593
        %4806 = vmatmul.mubr.bf16.gmra.mxu0 %v3592
        %v4807 = vpop.f32.mrf.mxu0
        %v4808 = vadd.f32 %v4767, %v4807
        %v4809 = vpop.f32.mrf.mxu0
        %v4810 = vadd.f32 %v4769, %v4809
        %v4811 = vpop.f32.mrf.mxu0
        %v4812 = vpop.f32.mrf.mxu0
        %4813 = vdwg.mxu0
        %4814 = vmatprep.subr.bf16.mxu0 %v3211
        %4815 = vmatpush1.bf16.msra.mxu0 %v3210
        %4816 = vmatprep.subr.bf16.mxu0 %v3207
        %4817 = vmatpush1.bf16.msra.mxu0 %v3206
        %4818 = vmatprep.subr.bf16.mxu0 %v3203
        %4819 = vmatpush1.bf16.msra.mxu0 %v3202
        %4820 = vmatprep.subr.bf16.mxu0 %v3199
        %4821 = vmatpush1.bf16.msra.mxu0 %v3198
        %4822 = vmatprep.subr.bf16.mxu0 %v3195
        %4823 = vmatpush1.bf16.msra.mxu0 %v3194
        %4824 = vmatprep.subr.bf16.mxu0 %v3191
        %4825 = vmatpush1.bf16.msra.mxu0 %v3190
        %4826 = vmatprep.subr.bf16.mxu0 %v3187
        %4827 = vmatpush1.bf16.msra.mxu0 %v3186
        %4828 = vmatprep.subr.bf16.mxu0 %v3183
        %4829 = vmatpush1.bf16.msra.mxu0 %v3182
        %4830 = vmatprep.subr.bf16.mxu0 %v3243
        %4831 = vmatpush2.bf16.msra.mxu0 %v3242
        %4832 = vmatprep.subr.bf16.mxu0 %v3239
        %4833 = vmatpush2.bf16.msra.mxu0 %v3238
        %4834 = vmatprep.subr.bf16.mxu0 %v3235
        %4835 = vmatpush2.bf16.msra.mxu0 %v3234
        %4836 = vmatprep.subr.bf16.mxu0 %v3231
        %4837 = vmatpush2.bf16.msra.mxu0 %v3230
        %4838 = vmatprep.subr.bf16.mxu0 %v3227
        %4839 = vmatpush2.bf16.msra.mxu0 %v3226
        %4840 = vmatprep.subr.bf16.mxu0 %v3223
        %4841 = vmatpush2.bf16.msra.mxu0 %v3222
        %4842 = vmatprep.subr.bf16.mxu0 %v3219
        %4843 = vmatpush2.bf16.msra.mxu0 %v3218
        %4844 = vmatprep.subr.bf16.mxu0 %v3215
        %4845 = vmatpush2.bf16.msra.mxu0 %v3214
        %4846 = vmatprep.mubr.bf16.mxu0 %v3595
        %4847 = vmatmul.mubr.bf16.gmra.mxu0 %v3594
        %v4848 = vpop.f32.mrf.mxu0
        %v4849 = vadd.f32 %v4808, %v4848
        %v4850 = vpop.f32.mrf.mxu0
        %v4851 = vadd.f32 %v4810, %v4850
        %v4852 = vpop.f32.mrf.mxu0
        %v4853 = vpop.f32.mrf.mxu0
        %4854 = vdwg.mxu0
        %4855 = vmatprep.subr.bf16.mxu0 %v3275
        %4856 = vmatpush1.bf16.msra.mxu0 %v3274
        %4857 = vmatprep.subr.bf16.mxu0 %v3271
        %4858 = vmatpush1.bf16.msra.mxu0 %v3270
        %4859 = vmatprep.subr.bf16.mxu0 %v3267
        %4860 = vmatpush1.bf16.msra.mxu0 %v3266
        %4861 = vmatprep.subr.bf16.mxu0 %v3263
        %4862 = vmatpush1.bf16.msra.mxu0 %v3262
        %4863 = vmatprep.subr.bf16.mxu0 %v3259
        %4864 = vmatpush1.bf16.msra.mxu0 %v3258
        %4865 = vmatprep.subr.bf16.mxu0 %v3255
        %4866 = vmatpush1.bf16.msra.mxu0 %v3254
        %4867 = vmatprep.subr.bf16.mxu0 %v3251
        %4868 = vmatpush1.bf16.msra.mxu0 %v3250
        %4869 = vmatprep.subr.bf16.mxu0 %v3247
        %4870 = vmatpush1.bf16.msra.mxu0 %v3246
        %4871 = vmatprep.subr.bf16.mxu0 %v3307
        %4872 = vmatpush2.bf16.msra.mxu0 %v3306
        %4873 = vmatprep.subr.bf16.mxu0 %v3303
        %4874 = vmatpush2.bf16.msra.mxu0 %v3302
        %4875 = vmatprep.subr.bf16.mxu0 %v3299
        %4876 = vmatpush2.bf16.msra.mxu0 %v3298
        %4877 = vmatprep.subr.bf16.mxu0 %v3295
        %4878 = vmatpush2.bf16.msra.mxu0 %v3294
        %4879 = vmatprep.subr.bf16.mxu0 %v3291
        %4880 = vmatpush2.bf16.msra.mxu0 %v3290
        %4881 = vmatprep.subr.bf16.mxu0 %v3287
        %4882 = vmatpush2.bf16.msra.mxu0 %v3286
        %4883 = vmatprep.subr.bf16.mxu0 %v3283
        %4884 = vmatpush2.bf16.msra.mxu0 %v3282
        %4885 = vmatprep.subr.bf16.mxu0 %v3279
        %4886 = vmatpush2.bf16.msra.mxu0 %v3278
        %4887 = vmatprep.mubr.bf16.mxu0 %v3597
        %4888 = vmatmul.mubr.bf16.gmra.mxu0 %v3596
        %v4889 = vpop.f32.mrf.mxu0
        %v4890 = vadd.f32 %v4849, %v4889
        %v4891 = vpop.f32.mrf.mxu0
        %v4892 = vadd.f32 %v4851, %v4891
        %v4893 = vpop.f32.mrf.mxu0
        %v4894 = vpop.f32.mrf.mxu0
        %4895 = vdwg.mxu0
        %4896 = vmatprep.subr.bf16.mxu0 %v3339
        %4897 = vmatpush1.bf16.msra.mxu0 %v3338
        %4898 = vmatprep.subr.bf16.mxu0 %v3335
        %4899 = vmatpush1.bf16.msra.mxu0 %v3334
        %4900 = vmatprep.subr.bf16.mxu0 %v3331
        %4901 = vmatpush1.bf16.msra.mxu0 %v3330
        %4902 = vmatprep.subr.bf16.mxu0 %v3327
        %4903 = vmatpush1.bf16.msra.mxu0 %v3326
        %4904 = vmatprep.subr.bf16.mxu0 %v3323
        %4905 = vmatpush1.bf16.msra.mxu0 %v3322
        %4906 = vmatprep.subr.bf16.mxu0 %v3319
        %4907 = vmatpush1.bf16.msra.mxu0 %v3318
        %4908 = vmatprep.subr.bf16.mxu0 %v3315
        %4909 = vmatpush1.bf16.msra.mxu0 %v3314
        %4910 = vmatprep.subr.bf16.mxu0 %v3311
        %4911 = vmatpush1.bf16.msra.mxu0 %v3310
        %4912 = vmatprep.subr.bf16.mxu0 %v3371
        %4913 = vmatpush2.bf16.msra.mxu0 %v3370
        %4914 = vmatprep.subr.bf16.mxu0 %v3367
        %4915 = vmatpush2.bf16.msra.mxu0 %v3366
        %4916 = vmatprep.subr.bf16.mxu0 %v3363
        %4917 = vmatpush2.bf16.msra.mxu0 %v3362
        %4918 = vmatprep.subr.bf16.mxu0 %v3359
        %4919 = vmatpush2.bf16.msra.mxu0 %v3358
        %4920 = vmatprep.subr.bf16.mxu0 %v3355
        %4921 = vmatpush2.bf16.msra.mxu0 %v3354
        %4922 = vmatprep.subr.bf16.mxu0 %v3351
        %4923 = vmatpush2.bf16.msra.mxu0 %v3350
        %4924 = vmatprep.subr.bf16.mxu0 %v3347
        %4925 = vmatpush2.bf16.msra.mxu0 %v3346
        %4926 = vmatprep.subr.bf16.mxu0 %v3343
        %4927 = vmatpush2.bf16.msra.mxu0 %v3342
        %4928 = vmatprep.mubr.bf16.mxu0 %v3599
        %4929 = vmatmul.mubr.bf16.gmra.mxu0 %v3598
        %v4930 = vpop.f32.mrf.mxu0
        %v4931 = vadd.f32 %v4890, %v4930
        %v4932 = vpop.f32.mrf.mxu0
        %v4933 = vadd.f32 %v4892, %v4932
        %v4934 = vpop.f32.mrf.mxu0
        %v4935 = vpop.f32.mrf.mxu0
        %4936 = vdwg.mxu0
        %4937 = vmatprep.subr.bf16.mxu0 %v3403
        %4938 = vmatpush1.bf16.msra.mxu0 %v3402
        %4939 = vmatprep.subr.bf16.mxu0 %v3399
        %4940 = vmatpush1.bf16.msra.mxu0 %v3398
        %4941 = vmatprep.subr.bf16.mxu0 %v3395
        %4942 = vmatpush1.bf16.msra.mxu0 %v3394
        %4943 = vmatprep.subr.bf16.mxu0 %v3391
        %4944 = vmatpush1.bf16.msra.mxu0 %v3390
        %4945 = vmatprep.subr.bf16.mxu0 %v3387
        %4946 = vmatpush1.bf16.msra.mxu0 %v3386
        %4947 = vmatprep.subr.bf16.mxu0 %v3383
        %4948 = vmatpush1.bf16.msra.mxu0 %v3382
        %4949 = vmatprep.subr.bf16.mxu0 %v3379
        %4950 = vmatpush1.bf16.msra.mxu0 %v3378
        %4951 = vmatprep.subr.bf16.mxu0 %v3375
        %4952 = vmatpush1.bf16.msra.mxu0 %v3374
        %4953 = vmatprep.subr.bf16.mxu0 %v3435
        %4954 = vmatpush2.bf16.msra.mxu0 %v3434
        %4955 = vmatprep.subr.bf16.mxu0 %v3431
        %4956 = vmatpush2.bf16.msra.mxu0 %v3430
        %4957 = vmatprep.subr.bf16.mxu0 %v3427
        %4958 = vmatpush2.bf16.msra.mxu0 %v3426
        %4959 = vmatprep.subr.bf16.mxu0 %v3423
        %4960 = vmatpush2.bf16.msra.mxu0 %v3422
        %4961 = vmatprep.subr.bf16.mxu0 %v3419
        %4962 = vmatpush2.bf16.msra.mxu0 %v3418
        %4963 = vmatprep.subr.bf16.mxu0 %v3415
        %4964 = vmatpush2.bf16.msra.mxu0 %v3414
        %4965 = vmatprep.subr.bf16.mxu0 %v3411
        %4966 = vmatpush2.bf16.msra.mxu0 %v3410
        %4967 = vmatprep.subr.bf16.mxu0 %v3407
        %4968 = vmatpush2.bf16.msra.mxu0 %v3406
        %4969 = vmatprep.mubr.bf16.mxu0 %v3601
        %4970 = vmatmul.mubr.bf16.gmra.mxu0 %v3600
        %v4971 = vpop.f32.mrf.mxu0
        %v4972 = vadd.f32 %v4931, %v4971
        %v4973 = vpop.f32.mrf.mxu0
        %v4974 = vadd.f32 %v4933, %v4973
        %v4975 = vpop.f32.mrf.mxu0
        %v4976 = vpop.f32.mrf.mxu0
        %4977 = vdwg.mxu0
        %4978 = vmatprep.subr.bf16.mxu0 %v1421
        %4979 = vmatpush1.bf16.msra.mxu0 %v1420
        %4980 = vmatprep.subr.bf16.mxu0 %v1417
        %4981 = vmatpush1.bf16.msra.mxu0 %v1416
        %4982 = vmatprep.subr.bf16.mxu0 %v1413
        %4983 = vmatpush1.bf16.msra.mxu0 %v1412
        %4984 = vmatprep.subr.bf16.mxu0 %v1409
        %4985 = vmatpush1.bf16.msra.mxu0 %v1408
        %4986 = vmatprep.subr.bf16.mxu0 %v1405
        %4987 = vmatpush1.bf16.msra.mxu0 %v1404
        %4988 = vmatprep.subr.bf16.mxu0 %v1401
        %4989 = vmatpush1.bf16.msra.mxu0 %v1400
        %4990 = vmatprep.subr.bf16.mxu0 %v1397
        %4991 = vmatpush1.bf16.msra.mxu0 %v1396
        %4992 = vmatprep.subr.bf16.mxu0 %v1393
        %4993 = vmatpush1.bf16.msra.mxu0 %v1392
        %4994 = vmatprep.subr.bf16.mxu0 %v1453
        %4995 = vmatpush2.bf16.msra.mxu0 %v1452
        %4996 = vmatprep.subr.bf16.mxu0 %v1449
        %4997 = vmatpush2.bf16.msra.mxu0 %v1448
        %4998 = vmatprep.subr.bf16.mxu0 %v1445
        %4999 = vmatpush2.bf16.msra.mxu0 %v1444
        %5000 = vmatprep.subr.bf16.mxu0 %v1441
        %5001 = vmatpush2.bf16.msra.mxu0 %v1440
        %5002 = vmatprep.subr.bf16.mxu0 %v1437
        %5003 = vmatpush2.bf16.msra.mxu0 %v1436
        %5004 = vmatprep.subr.bf16.mxu0 %v1433
        %5005 = vmatpush2.bf16.msra.mxu0 %v1432
        %5006 = vmatprep.subr.bf16.mxu0 %v1429
        %5007 = vmatpush2.bf16.msra.mxu0 %v1428
        %5008 = vmatprep.subr.bf16.mxu0 %v1425
        %5009 = vmatpush2.bf16.msra.mxu0 %v1424
        %5010 = vmatprep.mubr.bf16.mxu0 %v3539
        %5011 = vmatmul.mubr.bf16.gmra.mxu0 %v3538
        %v5012 = vpop.f32.mrf.mxu0
        %v5013 = vadd.f32 0.0, %v5012
        %v5014 = vpop.f32.mrf.mxu0
        %v5015 = vadd.f32 0.0, %v5014
        %v5016 = vpop.f32.mrf.mxu0
        %v5017 = vpop.f32.mrf.mxu0
        %5018 = vdwg.mxu0
        %5019 = vmatprep.subr.bf16.mxu0 %v1485
        %5020 = vmatpush1.bf16.msra.mxu0 %v1484
        %5021 = vmatprep.subr.bf16.mxu0 %v1481
        %5022 = vmatpush1.bf16.msra.mxu0 %v1480
        %5023 = vmatprep.subr.bf16.mxu0 %v1477
        %5024 = vmatpush1.bf16.msra.mxu0 %v1476
        %5025 = vmatprep.subr.bf16.mxu0 %v1473
        %5026 = vmatpush1.bf16.msra.mxu0 %v1472
        %5027 = vmatprep.subr.bf16.mxu0 %v1469
        %5028 = vmatpush1.bf16.msra.mxu0 %v1468
        %5029 = vmatprep.subr.bf16.mxu0 %v1465
        %5030 = vmatpush1.bf16.msra.mxu0 %v1464
        %5031 = vmatprep.subr.bf16.mxu0 %v1461
        %5032 = vmatpush1.bf16.msra.mxu0 %v1460
        %5033 = vmatprep.subr.bf16.mxu0 %v1457
        %5034 = vmatpush1.bf16.msra.mxu0 %v1456
        %5035 = vmatprep.subr.bf16.mxu0 %v1517
        %5036 = vmatpush2.bf16.msra.mxu0 %v1516
        %5037 = vmatprep.subr.bf16.mxu0 %v1513
        %5038 = vmatpush2.bf16.msra.mxu0 %v1512
        %5039 = vmatprep.subr.bf16.mxu0 %v1509
        %5040 = vmatpush2.bf16.msra.mxu0 %v1508
        %5041 = vmatprep.subr.bf16.mxu0 %v1505
        %5042 = vmatpush2.bf16.msra.mxu0 %v1504
        %5043 = vmatprep.subr.bf16.mxu0 %v1501
        %5044 = vmatpush2.bf16.msra.mxu0 %v1500
        %5045 = vmatprep.subr.bf16.mxu0 %v1497
        %5046 = vmatpush2.bf16.msra.mxu0 %v1496
        %5047 = vmatprep.subr.bf16.mxu0 %v1493
        %5048 = vmatpush2.bf16.msra.mxu0 %v1492
        %5049 = vmatprep.subr.bf16.mxu0 %v1489
        %5050 = vmatpush2.bf16.msra.mxu0 %v1488
        %5051 = vmatprep.mubr.bf16.mxu0 %v3541
        %5052 = vmatmul.mubr.bf16.gmra.mxu0 %v3540
        %v5053 = vpop.f32.mrf.mxu0
        %v5054 = vadd.f32 %v5013, %v5053
        %v5055 = vpop.f32.mrf.mxu0
        %v5056 = vadd.f32 %v5015, %v5055
        %v5057 = vpop.f32.mrf.mxu0
        %v5058 = vpop.f32.mrf.mxu0
        %5059 = vdwg.mxu0
        %5060 = vmatprep.subr.bf16.mxu0 %v1549
        %5061 = vmatpush1.bf16.msra.mxu0 %v1548
        %5062 = vmatprep.subr.bf16.mxu0 %v1545
        %5063 = vmatpush1.bf16.msra.mxu0 %v1544
        %5064 = vmatprep.subr.bf16.mxu0 %v1541
        %5065 = vmatpush1.bf16.msra.mxu0 %v1540
        %5066 = vmatprep.subr.bf16.mxu0 %v1537
        %5067 = vmatpush1.bf16.msra.mxu0 %v1536
        %5068 = vmatprep.subr.bf16.mxu0 %v1533
        %5069 = vmatpush1.bf16.msra.mxu0 %v1532
        %5070 = vmatprep.subr.bf16.mxu0 %v1529
        %5071 = vmatpush1.bf16.msra.mxu0 %v1528
        %5072 = vmatprep.subr.bf16.mxu0 %v1525
        %5073 = vmatpush1.bf16.msra.mxu0 %v1524
        %5074 = vmatprep.subr.bf16.mxu0 %v1521
        %5075 = vmatpush1.bf16.msra.mxu0 %v1520
        %5076 = vmatprep.subr.bf16.mxu0 %v1581
        %5077 = vmatpush2.bf16.msra.mxu0 %v1580
        %5078 = vmatprep.subr.bf16.mxu0 %v1577
        %5079 = vmatpush2.bf16.msra.mxu0 %v1576
        %5080 = vmatprep.subr.bf16.mxu0 %v1573
        %5081 = vmatpush2.bf16.msra.mxu0 %v1572
        %5082 = vmatprep.subr.bf16.mxu0 %v1569
        %5083 = vmatpush2.bf16.msra.mxu0 %v1568
        %5084 = vmatprep.subr.bf16.mxu0 %v1565
        %5085 = vmatpush2.bf16.msra.mxu0 %v1564
        %5086 = vmatprep.subr.bf16.mxu0 %v1561
        %5087 = vmatpush2.bf16.msra.mxu0 %v1560
        %5088 = vmatprep.subr.bf16.mxu0 %v1557
        %5089 = vmatpush2.bf16.msra.mxu0 %v1556
        %5090 = vmatprep.subr.bf16.mxu0 %v1553
        %5091 = vmatpush2.bf16.msra.mxu0 %v1552
        %5092 = vmatprep.mubr.bf16.mxu0 %v3543
        %5093 = vmatmul.mubr.bf16.gmra.mxu0 %v3542
        %v5094 = vpop.f32.mrf.mxu0
        %v5095 = vadd.f32 %v5054, %v5094
        %v5096 = vpop.f32.mrf.mxu0
        %v5097 = vadd.f32 %v5056, %v5096
        %v5098 = vpop.f32.mrf.mxu0
        %v5099 = vpop.f32.mrf.mxu0
        %5100 = vdwg.mxu0
        %5101 = vmatprep.subr.bf16.mxu0 %v1613
        %5102 = vmatpush1.bf16.msra.mxu0 %v1612
        %5103 = vmatprep.subr.bf16.mxu0 %v1609
        %5104 = vmatpush1.bf16.msra.mxu0 %v1608
        %5105 = vmatprep.subr.bf16.mxu0 %v1605
        %5106 = vmatpush1.bf16.msra.mxu0 %v1604
        %5107 = vmatprep.subr.bf16.mxu0 %v1601
        %5108 = vmatpush1.bf16.msra.mxu0 %v1600
        %5109 = vmatprep.subr.bf16.mxu0 %v1597
        %5110 = vmatpush1.bf16.msra.mxu0 %v1596
        %5111 = vmatprep.subr.bf16.mxu0 %v1593
        %5112 = vmatpush1.bf16.msra.mxu0 %v1592
        %5113 = vmatprep.subr.bf16.mxu0 %v1589
        %5114 = vmatpush1.bf16.msra.mxu0 %v1588
        %5115 = vmatprep.subr.bf16.mxu0 %v1585
        %5116 = vmatpush1.bf16.msra.mxu0 %v1584
        %5117 = vmatprep.subr.bf16.mxu0 %v1645
        %5118 = vmatpush2.bf16.msra.mxu0 %v1644
        %5119 = vmatprep.subr.bf16.mxu0 %v1641
        %5120 = vmatpush2.bf16.msra.mxu0 %v1640
        %5121 = vmatprep.subr.bf16.mxu0 %v1637
        %5122 = vmatpush2.bf16.msra.mxu0 %v1636
        %5123 = vmatprep.subr.bf16.mxu0 %v1633
        %5124 = vmatpush2.bf16.msra.mxu0 %v1632
        %5125 = vmatprep.subr.bf16.mxu0 %v1629
        %5126 = vmatpush2.bf16.msra.mxu0 %v1628
        %5127 = vmatprep.subr.bf16.mxu0 %v1625
        %5128 = vmatpush2.bf16.msra.mxu0 %v1624
        %5129 = vmatprep.subr.bf16.mxu0 %v1621
        %5130 = vmatpush2.bf16.msra.mxu0 %v1620
        %5131 = vmatprep.subr.bf16.mxu0 %v1617
        %5132 = vmatpush2.bf16.msra.mxu0 %v1616
        %5133 = vmatprep.mubr.bf16.mxu0 %v3545
        %5134 = vmatmul.mubr.bf16.gmra.mxu0 %v3544
        %v5135 = vpop.f32.mrf.mxu0
        %v5136 = vadd.f32 %v5095, %v5135
        %v5137 = vpop.f32.mrf.mxu0
        %v5138 = vadd.f32 %v5097, %v5137
        %v5139 = vpop.f32.mrf.mxu0
        %v5140 = vpop.f32.mrf.mxu0
        %5141 = vdwg.mxu0
        %5142 = vmatprep.subr.bf16.mxu0 %v1677
        %5143 = vmatpush1.bf16.msra.mxu0 %v1676
        %5144 = vmatprep.subr.bf16.mxu0 %v1673
        %5145 = vmatpush1.bf16.msra.mxu0 %v1672
        %5146 = vmatprep.subr.bf16.mxu0 %v1669
        %5147 = vmatpush1.bf16.msra.mxu0 %v1668
        %5148 = vmatprep.subr.bf16.mxu0 %v1665
        %5149 = vmatpush1.bf16.msra.mxu0 %v1664
        %5150 = vmatprep.subr.bf16.mxu0 %v1661
        %5151 = vmatpush1.bf16.msra.mxu0 %v1660
        %5152 = vmatprep.subr.bf16.mxu0 %v1657
        %5153 = vmatpush1.bf16.msra.mxu0 %v1656
        %5154 = vmatprep.subr.bf16.mxu0 %v1653
        %5155 = vmatpush1.bf16.msra.mxu0 %v1652
        %5156 = vmatprep.subr.bf16.mxu0 %v1649
        %5157 = vmatpush1.bf16.msra.mxu0 %v1648
        %5158 = vmatprep.subr.bf16.mxu0 %v1709
        %5159 = vmatpush2.bf16.msra.mxu0 %v1708
        %5160 = vmatprep.subr.bf16.mxu0 %v1705
        %5161 = vmatpush2.bf16.msra.mxu0 %v1704
        %5162 = vmatprep.subr.bf16.mxu0 %v1701
        %5163 = vmatpush2.bf16.msra.mxu0 %v1700
        %5164 = vmatprep.subr.bf16.mxu0 %v1697
        %5165 = vmatpush2.bf16.msra.mxu0 %v1696
        %5166 = vmatprep.subr.bf16.mxu0 %v1693
        %5167 = vmatpush2.bf16.msra.mxu0 %v1692
        %5168 = vmatprep.subr.bf16.mxu0 %v1689
        %5169 = vmatpush2.bf16.msra.mxu0 %v1688
        %5170 = vmatprep.subr.bf16.mxu0 %v1685
        %5171 = vmatpush2.bf16.msra.mxu0 %v1684
        %5172 = vmatprep.subr.bf16.mxu0 %v1681
        %5173 = vmatpush2.bf16.msra.mxu0 %v1680
        %5174 = vmatprep.mubr.bf16.mxu0 %v3547
        %5175 = vmatmul.mubr.bf16.gmra.mxu0 %v3546
        %v5176 = vpop.f32.mrf.mxu0
        %v5177 = vadd.f32 %v5136, %v5176
        %v5178 = vpop.f32.mrf.mxu0
        %v5179 = vadd.f32 %v5138, %v5178
        %v5180 = vpop.f32.mrf.mxu0
        %v5181 = vpop.f32.mrf.mxu0
        %5182 = vdwg.mxu0
        %5183 = vmatprep.subr.bf16.mxu0 %v1741
        %5184 = vmatpush1.bf16.msra.mxu0 %v1740
        %5185 = vmatprep.subr.bf16.mxu0 %v1737
        %5186 = vmatpush1.bf16.msra.mxu0 %v1736
        %5187 = vmatprep.subr.bf16.mxu0 %v1733
        %5188 = vmatpush1.bf16.msra.mxu0 %v1732
        %5189 = vmatprep.subr.bf16.mxu0 %v1729
        %5190 = vmatpush1.bf16.msra.mxu0 %v1728
        %5191 = vmatprep.subr.bf16.mxu0 %v1725
        %5192 = vmatpush1.bf16.msra.mxu0 %v1724
        %5193 = vmatprep.subr.bf16.mxu0 %v1721
        %5194 = vmatpush1.bf16.msra.mxu0 %v1720
        %5195 = vmatprep.subr.bf16.mxu0 %v1717
        %5196 = vmatpush1.bf16.msra.mxu0 %v1716
        %5197 = vmatprep.subr.bf16.mxu0 %v1713
        %5198 = vmatpush1.bf16.msra.mxu0 %v1712
        %5199 = vmatprep.subr.bf16.mxu0 %v1773
        %5200 = vmatpush2.bf16.msra.mxu0 %v1772
        %5201 = vmatprep.subr.bf16.mxu0 %v1769
        %5202 = vmatpush2.bf16.msra.mxu0 %v1768
        %5203 = vmatprep.subr.bf16.mxu0 %v1765
        %5204 = vmatpush2.bf16.msra.mxu0 %v1764
        %5205 = vmatprep.subr.bf16.mxu0 %v1761
        %5206 = vmatpush2.bf16.msra.mxu0 %v1760
        %5207 = vmatprep.subr.bf16.mxu0 %v1757
        %5208 = vmatpush2.bf16.msra.mxu0 %v1756
        %5209 = vmatprep.subr.bf16.mxu0 %v1753
        %5210 = vmatpush2.bf16.msra.mxu0 %v1752
        %5211 = vmatprep.subr.bf16.mxu0 %v1749
        %5212 = vmatpush2.bf16.msra.mxu0 %v1748
        %5213 = vmatprep.subr.bf16.mxu0 %v1745
        %5214 = vmatpush2.bf16.msra.mxu0 %v1744
        %5215 = vmatprep.mubr.bf16.mxu0 %v3549
        %5216 = vmatmul.mubr.bf16.gmra.mxu0 %v3548
        %v5217 = vpop.f32.mrf.mxu0
        %v5218 = vadd.f32 %v5177, %v5217
        %v5219 = vpop.f32.mrf.mxu0
        %v5220 = vadd.f32 %v5179, %v5219
        %v5221 = vpop.f32.mrf.mxu0
        %v5222 = vpop.f32.mrf.mxu0
        %5223 = vdwg.mxu0
        %5224 = vmatprep.subr.bf16.mxu0 %v1805
        %5225 = vmatpush1.bf16.msra.mxu0 %v1804
        %5226 = vmatprep.subr.bf16.mxu0 %v1801
        %5227 = vmatpush1.bf16.msra.mxu0 %v1800
        %5228 = vmatprep.subr.bf16.mxu0 %v1797
        %5229 = vmatpush1.bf16.msra.mxu0 %v1796
        %5230 = vmatprep.subr.bf16.mxu0 %v1793
        %5231 = vmatpush1.bf16.msra.mxu0 %v1792
        %5232 = vmatprep.subr.bf16.mxu0 %v1789
        %5233 = vmatpush1.bf16.msra.mxu0 %v1788
        %5234 = vmatprep.subr.bf16.mxu0 %v1785
        %5235 = vmatpush1.bf16.msra.mxu0 %v1784
        %5236 = vmatprep.subr.bf16.mxu0 %v1781
        %5237 = vmatpush1.bf16.msra.mxu0 %v1780
        %5238 = vmatprep.subr.bf16.mxu0 %v1777
        %5239 = vmatpush1.bf16.msra.mxu0 %v1776
        %5240 = vmatprep.subr.bf16.mxu0 %v1837
        %5241 = vmatpush2.bf16.msra.mxu0 %v1836
        %5242 = vmatprep.subr.bf16.mxu0 %v1833
        %5243 = vmatpush2.bf16.msra.mxu0 %v1832
        %5244 = vmatprep.subr.bf16.mxu0 %v1829
        %5245 = vmatpush2.bf16.msra.mxu0 %v1828
        %5246 = vmatprep.subr.bf16.mxu0 %v1825
        %5247 = vmatpush2.bf16.msra.mxu0 %v1824
        %5248 = vmatprep.subr.bf16.mxu0 %v1821
        %5249 = vmatpush2.bf16.msra.mxu0 %v1820
        %5250 = vmatprep.subr.bf16.mxu0 %v1817
        %5251 = vmatpush2.bf16.msra.mxu0 %v1816
        %5252 = vmatprep.subr.bf16.mxu0 %v1813
        %5253 = vmatpush2.bf16.msra.mxu0 %v1812
        %5254 = vmatprep.subr.bf16.mxu0 %v1809
        %5255 = vmatpush2.bf16.msra.mxu0 %v1808
        %5256 = vmatprep.mubr.bf16.mxu0 %v3551
        %5257 = vmatmul.mubr.bf16.gmra.mxu0 %v3550
        %v5258 = vpop.f32.mrf.mxu0
        %v5259 = vadd.f32 %v5218, %v5258
        %v5260 = vpop.f32.mrf.mxu0
        %v5261 = vadd.f32 %v5220, %v5260
        %v5262 = vpop.f32.mrf.mxu0
        %v5263 = vpop.f32.mrf.mxu0
        %5264 = vdwg.mxu0
        %5265 = vmatprep.subr.bf16.mxu0 %v1869
        %5266 = vmatpush1.bf16.msra.mxu0 %v1868
        %5267 = vmatprep.subr.bf16.mxu0 %v1865
        %5268 = vmatpush1.bf16.msra.mxu0 %v1864
        %5269 = vmatprep.subr.bf16.mxu0 %v1861
        %5270 = vmatpush1.bf16.msra.mxu0 %v1860
        %5271 = vmatprep.subr.bf16.mxu0 %v1857
        %5272 = vmatpush1.bf16.msra.mxu0 %v1856
        %5273 = vmatprep.subr.bf16.mxu0 %v1853
        %5274 = vmatpush1.bf16.msra.mxu0 %v1852
        %5275 = vmatprep.subr.bf16.mxu0 %v1849
        %5276 = vmatpush1.bf16.msra.mxu0 %v1848
        %5277 = vmatprep.subr.bf16.mxu0 %v1845
        %5278 = vmatpush1.bf16.msra.mxu0 %v1844
        %5279 = vmatprep.subr.bf16.mxu0 %v1841
        %5280 = vmatpush1.bf16.msra.mxu0 %v1840
        %5281 = vmatprep.subr.bf16.mxu0 %v1901
        %5282 = vmatpush2.bf16.msra.mxu0 %v1900
        %5283 = vmatprep.subr.bf16.mxu0 %v1897
        %5284 = vmatpush2.bf16.msra.mxu0 %v1896
        %5285 = vmatprep.subr.bf16.mxu0 %v1893
        %5286 = vmatpush2.bf16.msra.mxu0 %v1892
        %5287 = vmatprep.subr.bf16.mxu0 %v1889
        %5288 = vmatpush2.bf16.msra.mxu0 %v1888
        %5289 = vmatprep.subr.bf16.mxu0 %v1885
        %5290 = vmatpush2.bf16.msra.mxu0 %v1884
        %5291 = vmatprep.subr.bf16.mxu0 %v1881
        %5292 = vmatpush2.bf16.msra.mxu0 %v1880
        %5293 = vmatprep.subr.bf16.mxu0 %v1877
        %5294 = vmatpush2.bf16.msra.mxu0 %v1876
        %5295 = vmatprep.subr.bf16.mxu0 %v1873
        %5296 = vmatpush2.bf16.msra.mxu0 %v1872
        %5297 = vmatprep.mubr.bf16.mxu0 %v3553
        %5298 = vmatmul.mubr.bf16.gmra.mxu0 %v3552
        %v5299 = vpop.f32.mrf.mxu0
        %v5300 = vadd.f32 %v5259, %v5299
        %v5301 = vpop.f32.mrf.mxu0
        %v5302 = vadd.f32 %v5261, %v5301
        %v5303 = vpop.f32.mrf.mxu0
        %v5304 = vpop.f32.mrf.mxu0
        %5305 = vdwg.mxu0
        %5306 = vmatprep.subr.bf16.mxu0 %v1933
        %5307 = vmatpush1.bf16.msra.mxu0 %v1932
        %5308 = vmatprep.subr.bf16.mxu0 %v1929
        %5309 = vmatpush1.bf16.msra.mxu0 %v1928
        %5310 = vmatprep.subr.bf16.mxu0 %v1925
        %5311 = vmatpush1.bf16.msra.mxu0 %v1924
        %5312 = vmatprep.subr.bf16.mxu0 %v1921
        %5313 = vmatpush1.bf16.msra.mxu0 %v1920
        %5314 = vmatprep.subr.bf16.mxu0 %v1917
        %5315 = vmatpush1.bf16.msra.mxu0 %v1916
        %5316 = vmatprep.subr.bf16.mxu0 %v1913
        %5317 = vmatpush1.bf16.msra.mxu0 %v1912
        %5318 = vmatprep.subr.bf16.mxu0 %v1909
        %5319 = vmatpush1.bf16.msra.mxu0 %v1908
        %5320 = vmatprep.subr.bf16.mxu0 %v1905
        %5321 = vmatpush1.bf16.msra.mxu0 %v1904
        %5322 = vmatprep.subr.bf16.mxu0 %v1965
        %5323 = vmatpush2.bf16.msra.mxu0 %v1964
        %5324 = vmatprep.subr.bf16.mxu0 %v1961
        %5325 = vmatpush2.bf16.msra.mxu0 %v1960
        %5326 = vmatprep.subr.bf16.mxu0 %v1957
        %5327 = vmatpush2.bf16.msra.mxu0 %v1956
        %5328 = vmatprep.subr.bf16.mxu0 %v1953
        %5329 = vmatpush2.bf16.msra.mxu0 %v1952
        %5330 = vmatprep.subr.bf16.mxu0 %v1949
        %5331 = vmatpush2.bf16.msra.mxu0 %v1948
        %5332 = vmatprep.subr.bf16.mxu0 %v1945
        %5333 = vmatpush2.bf16.msra.mxu0 %v1944
        %5334 = vmatprep.subr.bf16.mxu0 %v1941
        %5335 = vmatpush2.bf16.msra.mxu0 %v1940
        %5336 = vmatprep.subr.bf16.mxu0 %v1937
        %5337 = vmatpush2.bf16.msra.mxu0 %v1936
        %5338 = vmatprep.mubr.bf16.mxu0 %v3555
        %5339 = vmatmul.mubr.bf16.gmra.mxu0 %v3554
        %v5340 = vpop.f32.mrf.mxu0
        %v5341 = vadd.f32 %v5300, %v5340
        %v5342 = vpop.f32.mrf.mxu0
        %v5343 = vadd.f32 %v5302, %v5342
        %v5344 = vpop.f32.mrf.mxu0
        %v5345 = vpop.f32.mrf.mxu0
        %5346 = vdwg.mxu0
        %5347 = vmatprep.subr.bf16.mxu0 %v1997
        %5348 = vmatpush1.bf16.msra.mxu0 %v1996
        %5349 = vmatprep.subr.bf16.mxu0 %v1993
        %5350 = vmatpush1.bf16.msra.mxu0 %v1992
        %5351 = vmatprep.subr.bf16.mxu0 %v1989
        %5352 = vmatpush1.bf16.msra.mxu0 %v1988
        %5353 = vmatprep.subr.bf16.mxu0 %v1985
        %5354 = vmatpush1.bf16.msra.mxu0 %v1984
        %5355 = vmatprep.subr.bf16.mxu0 %v1981
        %5356 = vmatpush1.bf16.msra.mxu0 %v1980
        %5357 = vmatprep.subr.bf16.mxu0 %v1977
        %5358 = vmatpush1.bf16.msra.mxu0 %v1976
        %5359 = vmatprep.subr.bf16.mxu0 %v1973
        %5360 = vmatpush1.bf16.msra.mxu0 %v1972
        %5361 = vmatprep.subr.bf16.mxu0 %v1969
        %5362 = vmatpush1.bf16.msra.mxu0 %v1968
        %5363 = vmatprep.subr.bf16.mxu0 %v2029
        %5364 = vmatpush2.bf16.msra.mxu0 %v2028
        %5365 = vmatprep.subr.bf16.mxu0 %v2025
        %5366 = vmatpush2.bf16.msra.mxu0 %v2024
        %5367 = vmatprep.subr.bf16.mxu0 %v2021
        %5368 = vmatpush2.bf16.msra.mxu0 %v2020
        %5369 = vmatprep.subr.bf16.mxu0 %v2017
        %5370 = vmatpush2.bf16.msra.mxu0 %v2016
        %5371 = vmatprep.subr.bf16.mxu0 %v2013
        %5372 = vmatpush2.bf16.msra.mxu0 %v2012
        %5373 = vmatprep.subr.bf16.mxu0 %v2009
        %5374 = vmatpush2.bf16.msra.mxu0 %v2008
        %5375 = vmatprep.subr.bf16.mxu0 %v2005
        %5376 = vmatpush2.bf16.msra.mxu0 %v2004
        %5377 = vmatprep.subr.bf16.mxu0 %v2001
        %5378 = vmatpush2.bf16.msra.mxu0 %v2000
        %5379 = vmatprep.mubr.bf16.mxu0 %v3557
        %5380 = vmatmul.mubr.bf16.gmra.mxu0 %v3556
        %v5381 = vpop.f32.mrf.mxu0
        %v5382 = vadd.f32 %v5341, %v5381
        %v5383 = vpop.f32.mrf.mxu0
        %v5384 = vadd.f32 %v5343, %v5383
        %v5385 = vpop.f32.mrf.mxu0
        %v5386 = vpop.f32.mrf.mxu0
        %5387 = vdwg.mxu0
        %5388 = vmatprep.subr.bf16.mxu0 %v2061
        %5389 = vmatpush1.bf16.msra.mxu0 %v2060
        %5390 = vmatprep.subr.bf16.mxu0 %v2057
        %5391 = vmatpush1.bf16.msra.mxu0 %v2056
        %5392 = vmatprep.subr.bf16.mxu0 %v2053
        %5393 = vmatpush1.bf16.msra.mxu0 %v2052
        %5394 = vmatprep.subr.bf16.mxu0 %v2049
        %5395 = vmatpush1.bf16.msra.mxu0 %v2048
        %5396 = vmatprep.subr.bf16.mxu0 %v2045
        %5397 = vmatpush1.bf16.msra.mxu0 %v2044
        %5398 = vmatprep.subr.bf16.mxu0 %v2041
        %5399 = vmatpush1.bf16.msra.mxu0 %v2040
        %5400 = vmatprep.subr.bf16.mxu0 %v2037
        %5401 = vmatpush1.bf16.msra.mxu0 %v2036
        %5402 = vmatprep.subr.bf16.mxu0 %v2033
        %5403 = vmatpush1.bf16.msra.mxu0 %v2032
        %5404 = vmatprep.subr.bf16.mxu0 %v2093
        %5405 = vmatpush2.bf16.msra.mxu0 %v2092
        %5406 = vmatprep.subr.bf16.mxu0 %v2089
        %5407 = vmatpush2.bf16.msra.mxu0 %v2088
        %5408 = vmatprep.subr.bf16.mxu0 %v2085
        %5409 = vmatpush2.bf16.msra.mxu0 %v2084
        %5410 = vmatprep.subr.bf16.mxu0 %v2081
        %5411 = vmatpush2.bf16.msra.mxu0 %v2080
        %5412 = vmatprep.subr.bf16.mxu0 %v2077
        %5413 = vmatpush2.bf16.msra.mxu0 %v2076
        %5414 = vmatprep.subr.bf16.mxu0 %v2073
        %5415 = vmatpush2.bf16.msra.mxu0 %v2072
        %5416 = vmatprep.subr.bf16.mxu0 %v2069
        %5417 = vmatpush2.bf16.msra.mxu0 %v2068
        %5418 = vmatprep.subr.bf16.mxu0 %v2065
        %5419 = vmatpush2.bf16.msra.mxu0 %v2064
        %5420 = vmatprep.mubr.bf16.mxu0 %v3559
        %5421 = vmatmul.mubr.bf16.gmra.mxu0 %v3558
        %v5422 = vpop.f32.mrf.mxu0
        %v5423 = vadd.f32 %v5382, %v5422
        %v5424 = vpop.f32.mrf.mxu0
        %v5425 = vadd.f32 %v5384, %v5424
        %v5426 = vpop.f32.mrf.mxu0
        %v5427 = vpop.f32.mrf.mxu0
        %5428 = vdwg.mxu0
        %5429 = vmatprep.subr.bf16.mxu0 %v2125
        %5430 = vmatpush1.bf16.msra.mxu0 %v2124
        %5431 = vmatprep.subr.bf16.mxu0 %v2121
        %5432 = vmatpush1.bf16.msra.mxu0 %v2120
        %5433 = vmatprep.subr.bf16.mxu0 %v2117
        %5434 = vmatpush1.bf16.msra.mxu0 %v2116
        %5435 = vmatprep.subr.bf16.mxu0 %v2113
        %5436 = vmatpush1.bf16.msra.mxu0 %v2112
        %5437 = vmatprep.subr.bf16.mxu0 %v2109
        %5438 = vmatpush1.bf16.msra.mxu0 %v2108
        %5439 = vmatprep.subr.bf16.mxu0 %v2105
        %5440 = vmatpush1.bf16.msra.mxu0 %v2104
        %5441 = vmatprep.subr.bf16.mxu0 %v2101
        %5442 = vmatpush1.bf16.msra.mxu0 %v2100
        %5443 = vmatprep.subr.bf16.mxu0 %v2097
        %5444 = vmatpush1.bf16.msra.mxu0 %v2096
        %5445 = vmatprep.subr.bf16.mxu0 %v2157
        %5446 = vmatpush2.bf16.msra.mxu0 %v2156
        %5447 = vmatprep.subr.bf16.mxu0 %v2153
        %5448 = vmatpush2.bf16.msra.mxu0 %v2152
        %5449 = vmatprep.subr.bf16.mxu0 %v2149
        %5450 = vmatpush2.bf16.msra.mxu0 %v2148
        %5451 = vmatprep.subr.bf16.mxu0 %v2145
        %5452 = vmatpush2.bf16.msra.mxu0 %v2144
        %5453 = vmatprep.subr.bf16.mxu0 %v2141
        %5454 = vmatpush2.bf16.msra.mxu0 %v2140
        %5455 = vmatprep.subr.bf16.mxu0 %v2137
        %5456 = vmatpush2.bf16.msra.mxu0 %v2136
        %5457 = vmatprep.subr.bf16.mxu0 %v2133
        %5458 = vmatpush2.bf16.msra.mxu0 %v2132
        %5459 = vmatprep.subr.bf16.mxu0 %v2129
        %5460 = vmatpush2.bf16.msra.mxu0 %v2128
        %5461 = vmatprep.mubr.bf16.mxu0 %v3561
        %5462 = vmatmul.mubr.bf16.gmra.mxu0 %v3560
        %v5463 = vpop.f32.mrf.mxu0
        %v5464 = vadd.f32 %v5423, %v5463
        %v5465 = vpop.f32.mrf.mxu0
        %v5466 = vadd.f32 %v5425, %v5465
        %v5467 = vpop.f32.mrf.mxu0
        %v5468 = vpop.f32.mrf.mxu0
        %5469 = vdwg.mxu0
        %5470 = vmatprep.subr.bf16.mxu0 %v2189
        %5471 = vmatpush1.bf16.msra.mxu0 %v2188
        %5472 = vmatprep.subr.bf16.mxu0 %v2185
        %5473 = vmatpush1.bf16.msra.mxu0 %v2184
        %5474 = vmatprep.subr.bf16.mxu0 %v2181
        %5475 = vmatpush1.bf16.msra.mxu0 %v2180
        %5476 = vmatprep.subr.bf16.mxu0 %v2177
        %5477 = vmatpush1.bf16.msra.mxu0 %v2176
        %5478 = vmatprep.subr.bf16.mxu0 %v2173
        %5479 = vmatpush1.bf16.msra.mxu0 %v2172
        %5480 = vmatprep.subr.bf16.mxu0 %v2169
        %5481 = vmatpush1.bf16.msra.mxu0 %v2168
        %5482 = vmatprep.subr.bf16.mxu0 %v2165
        %5483 = vmatpush1.bf16.msra.mxu0 %v2164
        %5484 = vmatprep.subr.bf16.mxu0 %v2161
        %5485 = vmatpush1.bf16.msra.mxu0 %v2160
        %5486 = vmatprep.subr.bf16.mxu0 %v2221
        %5487 = vmatpush2.bf16.msra.mxu0 %v2220
        %5488 = vmatprep.subr.bf16.mxu0 %v2217
        %5489 = vmatpush2.bf16.msra.mxu0 %v2216
        %5490 = vmatprep.subr.bf16.mxu0 %v2213
        %5491 = vmatpush2.bf16.msra.mxu0 %v2212
        %5492 = vmatprep.subr.bf16.mxu0 %v2209
        %5493 = vmatpush2.bf16.msra.mxu0 %v2208
        %5494 = vmatprep.subr.bf16.mxu0 %v2205
        %5495 = vmatpush2.bf16.msra.mxu0 %v2204
        %5496 = vmatprep.subr.bf16.mxu0 %v2201
        %5497 = vmatpush2.bf16.msra.mxu0 %v2200
        %5498 = vmatprep.subr.bf16.mxu0 %v2197
        %5499 = vmatpush2.bf16.msra.mxu0 %v2196
        %5500 = vmatprep.subr.bf16.mxu0 %v2193
        %5501 = vmatpush2.bf16.msra.mxu0 %v2192
        %5502 = vmatprep.mubr.bf16.mxu0 %v3563
        %5503 = vmatmul.mubr.bf16.gmra.mxu0 %v3562
        %v5504 = vpop.f32.mrf.mxu0
        %v5505 = vadd.f32 %v5464, %v5504
        %v5506 = vpop.f32.mrf.mxu0
        %v5507 = vadd.f32 %v5466, %v5506
        %v5508 = vpop.f32.mrf.mxu0
        %v5509 = vpop.f32.mrf.mxu0
        %5510 = vdwg.mxu0
        %5511 = vmatprep.subr.bf16.mxu0 %v2253
        %5512 = vmatpush1.bf16.msra.mxu0 %v2252
        %5513 = vmatprep.subr.bf16.mxu0 %v2249
        %5514 = vmatpush1.bf16.msra.mxu0 %v2248
        %5515 = vmatprep.subr.bf16.mxu0 %v2245
        %5516 = vmatpush1.bf16.msra.mxu0 %v2244
        %5517 = vmatprep.subr.bf16.mxu0 %v2241
        %5518 = vmatpush1.bf16.msra.mxu0 %v2240
        %5519 = vmatprep.subr.bf16.mxu0 %v2237
        %5520 = vmatpush1.bf16.msra.mxu0 %v2236
        %5521 = vmatprep.subr.bf16.mxu0 %v2233
        %5522 = vmatpush1.bf16.msra.mxu0 %v2232
        %5523 = vmatprep.subr.bf16.mxu0 %v2229
        %5524 = vmatpush1.bf16.msra.mxu0 %v2228
        %5525 = vmatprep.subr.bf16.mxu0 %v2225
        %5526 = vmatpush1.bf16.msra.mxu0 %v2224
        %5527 = vmatprep.subr.bf16.mxu0 %v2285
        %5528 = vmatpush2.bf16.msra.mxu0 %v2284
        %5529 = vmatprep.subr.bf16.mxu0 %v2281
        %5530 = vmatpush2.bf16.msra.mxu0 %v2280
        %5531 = vmatprep.subr.bf16.mxu0 %v2277
        %5532 = vmatpush2.bf16.msra.mxu0 %v2276
        %5533 = vmatprep.subr.bf16.mxu0 %v2273
        %5534 = vmatpush2.bf16.msra.mxu0 %v2272
        %5535 = vmatprep.subr.bf16.mxu0 %v2269
        %5536 = vmatpush2.bf16.msra.mxu0 %v2268
        %5537 = vmatprep.subr.bf16.mxu0 %v2265
        %5538 = vmatpush2.bf16.msra.mxu0 %v2264
        %5539 = vmatprep.subr.bf16.mxu0 %v2261
        %5540 = vmatpush2.bf16.msra.mxu0 %v2260
        %5541 = vmatprep.subr.bf16.mxu0 %v2257
        %5542 = vmatpush2.bf16.msra.mxu0 %v2256
        %5543 = vmatprep.mubr.bf16.mxu0 %v3565
        %5544 = vmatmul.mubr.bf16.gmra.mxu0 %v3564
        %v5545 = vpop.f32.mrf.mxu0
        %v5546 = vadd.f32 %v5505, %v5545
        %v5547 = vpop.f32.mrf.mxu0
        %v5548 = vadd.f32 %v5507, %v5547
        %v5549 = vpop.f32.mrf.mxu0
        %v5550 = vpop.f32.mrf.mxu0
        %5551 = vdwg.mxu0
        %5552 = vmatprep.subr.bf16.mxu0 %v2317
        %5553 = vmatpush1.bf16.msra.mxu0 %v2316
        %5554 = vmatprep.subr.bf16.mxu0 %v2313
        %5555 = vmatpush1.bf16.msra.mxu0 %v2312
        %5556 = vmatprep.subr.bf16.mxu0 %v2309
        %5557 = vmatpush1.bf16.msra.mxu0 %v2308
        %5558 = vmatprep.subr.bf16.mxu0 %v2305
        %5559 = vmatpush1.bf16.msra.mxu0 %v2304
        %5560 = vmatprep.subr.bf16.mxu0 %v2301
        %5561 = vmatpush1.bf16.msra.mxu0 %v2300
        %5562 = vmatprep.subr.bf16.mxu0 %v2297
        %5563 = vmatpush1.bf16.msra.mxu0 %v2296
        %5564 = vmatprep.subr.bf16.mxu0 %v2293
        %5565 = vmatpush1.bf16.msra.mxu0 %v2292
        %5566 = vmatprep.subr.bf16.mxu0 %v2289
        %5567 = vmatpush1.bf16.msra.mxu0 %v2288
        %5568 = vmatprep.subr.bf16.mxu0 %v2349
        %5569 = vmatpush2.bf16.msra.mxu0 %v2348
        %5570 = vmatprep.subr.bf16.mxu0 %v2345
        %5571 = vmatpush2.bf16.msra.mxu0 %v2344
        %5572 = vmatprep.subr.bf16.mxu0 %v2341
        %5573 = vmatpush2.bf16.msra.mxu0 %v2340
        %5574 = vmatprep.subr.bf16.mxu0 %v2337
        %5575 = vmatpush2.bf16.msra.mxu0 %v2336
        %5576 = vmatprep.subr.bf16.mxu0 %v2333
        %5577 = vmatpush2.bf16.msra.mxu0 %v2332
        %5578 = vmatprep.subr.bf16.mxu0 %v2329
        %5579 = vmatpush2.bf16.msra.mxu0 %v2328
        %5580 = vmatprep.subr.bf16.mxu0 %v2325
        %5581 = vmatpush2.bf16.msra.mxu0 %v2324
        %5582 = vmatprep.subr.bf16.mxu0 %v2321
        %5583 = vmatpush2.bf16.msra.mxu0 %v2320
        %5584 = vmatprep.mubr.bf16.mxu0 %v3567
        %5585 = vmatmul.mubr.bf16.gmra.mxu0 %v3566
        %v5586 = vpop.f32.mrf.mxu0
        %v5587 = vadd.f32 %v5546, %v5586
        %v5588 = vpop.f32.mrf.mxu0
        %v5589 = vadd.f32 %v5548, %v5588
        %v5590 = vpop.f32.mrf.mxu0
        %v5591 = vpop.f32.mrf.mxu0
        %5592 = vdwg.mxu0
        %5593 = vmatprep.subr.bf16.mxu0 %v2381
        %5594 = vmatpush1.bf16.msra.mxu0 %v2380
        %5595 = vmatprep.subr.bf16.mxu0 %v2377
        %5596 = vmatpush1.bf16.msra.mxu0 %v2376
        %5597 = vmatprep.subr.bf16.mxu0 %v2373
        %5598 = vmatpush1.bf16.msra.mxu0 %v2372
        %5599 = vmatprep.subr.bf16.mxu0 %v2369
        %5600 = vmatpush1.bf16.msra.mxu0 %v2368
        %5601 = vmatprep.subr.bf16.mxu0 %v2365
        %5602 = vmatpush1.bf16.msra.mxu0 %v2364
        %5603 = vmatprep.subr.bf16.mxu0 %v2361
        %5604 = vmatpush1.bf16.msra.mxu0 %v2360
        %5605 = vmatprep.subr.bf16.mxu0 %v2357
        %5606 = vmatpush1.bf16.msra.mxu0 %v2356
        %5607 = vmatprep.subr.bf16.mxu0 %v2353
        %5608 = vmatpush1.bf16.msra.mxu0 %v2352
        %5609 = vmatprep.subr.bf16.mxu0 %v2413
        %5610 = vmatpush2.bf16.msra.mxu0 %v2412
        %5611 = vmatprep.subr.bf16.mxu0 %v2409
        %5612 = vmatpush2.bf16.msra.mxu0 %v2408
        %5613 = vmatprep.subr.bf16.mxu0 %v2405
        %5614 = vmatpush2.bf16.msra.mxu0 %v2404
        %5615 = vmatprep.subr.bf16.mxu0 %v2401
        %5616 = vmatpush2.bf16.msra.mxu0 %v2400
        %5617 = vmatprep.subr.bf16.mxu0 %v2397
        %5618 = vmatpush2.bf16.msra.mxu0 %v2396
        %5619 = vmatprep.subr.bf16.mxu0 %v2393
        %5620 = vmatpush2.bf16.msra.mxu0 %v2392
        %5621 = vmatprep.subr.bf16.mxu0 %v2389
        %5622 = vmatpush2.bf16.msra.mxu0 %v2388
        %5623 = vmatprep.subr.bf16.mxu0 %v2385
        %5624 = vmatpush2.bf16.msra.mxu0 %v2384
        %5625 = vmatprep.mubr.bf16.mxu0 %v3569
        %5626 = vmatmul.mubr.bf16.gmra.mxu0 %v3568
        %v5627 = vpop.f32.mrf.mxu0
        %v5628 = vadd.f32 %v5587, %v5627
        %v5629 = vpop.f32.mrf.mxu0
        %v5630 = vadd.f32 %v5589, %v5629
        %v5631 = vpop.f32.mrf.mxu0
        %v5632 = vpop.f32.mrf.mxu0
        %5633 = vdwg.mxu0
        %5634 = vmatprep.subr.bf16.mxu0 %v2445
        %5635 = vmatpush1.bf16.msra.mxu0 %v2444
        %5636 = vmatprep.subr.bf16.mxu0 %v2441
        %5637 = vmatpush1.bf16.msra.mxu0 %v2440
        %5638 = vmatprep.subr.bf16.mxu0 %v2437
        %5639 = vmatpush1.bf16.msra.mxu0 %v2436
        %5640 = vmatprep.subr.bf16.mxu0 %v2433
        %5641 = vmatpush1.bf16.msra.mxu0 %v2432
        %5642 = vmatprep.subr.bf16.mxu0 %v2429
        %5643 = vmatpush1.bf16.msra.mxu0 %v2428
        %5644 = vmatprep.subr.bf16.mxu0 %v2425
        %5645 = vmatpush1.bf16.msra.mxu0 %v2424
        %5646 = vmatprep.subr.bf16.mxu0 %v2421
        %5647 = vmatpush1.bf16.msra.mxu0 %v2420
        %5648 = vmatprep.subr.bf16.mxu0 %v2417
        %5649 = vmatpush1.bf16.msra.mxu0 %v2416
        %5650 = vmatprep.subr.bf16.mxu0 %v2477
        %5651 = vmatpush2.bf16.msra.mxu0 %v2476
        %5652 = vmatprep.subr.bf16.mxu0 %v2473
        %5653 = vmatpush2.bf16.msra.mxu0 %v2472
        %5654 = vmatprep.subr.bf16.mxu0 %v2469
        %5655 = vmatpush2.bf16.msra.mxu0 %v2468
        %5656 = vmatprep.subr.bf16.mxu0 %v2465
        %5657 = vmatpush2.bf16.msra.mxu0 %v2464
        %5658 = vmatprep.subr.bf16.mxu0 %v2461
        %5659 = vmatpush2.bf16.msra.mxu0 %v2460
        %5660 = vmatprep.subr.bf16.mxu0 %v2457
        %5661 = vmatpush2.bf16.msra.mxu0 %v2456
        %5662 = vmatprep.subr.bf16.mxu0 %v2453
        %5663 = vmatpush2.bf16.msra.mxu0 %v2452
        %5664 = vmatprep.subr.bf16.mxu0 %v2449
        %5665 = vmatpush2.bf16.msra.mxu0 %v2448
        %5666 = vmatprep.mubr.bf16.mxu0 %v3571
        %5667 = vmatmul.mubr.bf16.gmra.mxu0 %v3570
        %v5668 = vpop.f32.mrf.mxu0
        %v5669 = vadd.f32 %v5628, %v5668
        %v5670 = vpop.f32.mrf.mxu0
        %v5671 = vadd.f32 %v5630, %v5670
        %v5672 = vpop.f32.mrf.mxu0
        %v5673 = vpop.f32.mrf.mxu0
        %5674 = vdwg.mxu0
        %5675 = vmatprep.subr.bf16.mxu0 %v2509
        %5676 = vmatpush1.bf16.msra.mxu0 %v2508
        %5677 = vmatprep.subr.bf16.mxu0 %v2505
        %5678 = vmatpush1.bf16.msra.mxu0 %v2504
        %5679 = vmatprep.subr.bf16.mxu0 %v2501
        %5680 = vmatpush1.bf16.msra.mxu0 %v2500
        %5681 = vmatprep.subr.bf16.mxu0 %v2497
        %5682 = vmatpush1.bf16.msra.mxu0 %v2496
        %5683 = vmatprep.subr.bf16.mxu0 %v2493
        %5684 = vmatpush1.bf16.msra.mxu0 %v2492
        %5685 = vmatprep.subr.bf16.mxu0 %v2489
        %5686 = vmatpush1.bf16.msra.mxu0 %v2488
        %5687 = vmatprep.subr.bf16.mxu0 %v2485
        %5688 = vmatpush1.bf16.msra.mxu0 %v2484
        %5689 = vmatprep.subr.bf16.mxu0 %v2481
        %5690 = vmatpush1.bf16.msra.mxu0 %v2480
        %5691 = vmatprep.subr.bf16.mxu0 %v2541
        %5692 = vmatpush2.bf16.msra.mxu0 %v2540
        %5693 = vmatprep.subr.bf16.mxu0 %v2537
        %5694 = vmatpush2.bf16.msra.mxu0 %v2536
        %5695 = vmatprep.subr.bf16.mxu0 %v2533
        %5696 = vmatpush2.bf16.msra.mxu0 %v2532
        %5697 = vmatprep.subr.bf16.mxu0 %v2529
        %5698 = vmatpush2.bf16.msra.mxu0 %v2528
        %5699 = vmatprep.subr.bf16.mxu0 %v2525
        %5700 = vmatpush2.bf16.msra.mxu0 %v2524
        %5701 = vmatprep.subr.bf16.mxu0 %v2521
        %5702 = vmatpush2.bf16.msra.mxu0 %v2520
        %5703 = vmatprep.subr.bf16.mxu0 %v2517
        %5704 = vmatpush2.bf16.msra.mxu0 %v2516
        %5705 = vmatprep.subr.bf16.mxu0 %v2513
        %5706 = vmatpush2.bf16.msra.mxu0 %v2512
        %5707 = vmatprep.mubr.bf16.mxu0 %v3573
        %5708 = vmatmul.mubr.bf16.gmra.mxu0 %v3572
        %v5709 = vpop.f32.mrf.mxu0
        %v5710 = vadd.f32 %v5669, %v5709
        %v5711 = vpop.f32.mrf.mxu0
        %v5712 = vadd.f32 %v5671, %v5711
        %v5713 = vpop.f32.mrf.mxu0
        %v5714 = vpop.f32.mrf.mxu0
        %5715 = vdwg.mxu0
        %5716 = vmatprep.subr.bf16.mxu0 %v2573
        %5717 = vmatpush1.bf16.msra.mxu0 %v2572
        %5718 = vmatprep.subr.bf16.mxu0 %v2569
        %5719 = vmatpush1.bf16.msra.mxu0 %v2568
        %5720 = vmatprep.subr.bf16.mxu0 %v2565
        %5721 = vmatpush1.bf16.msra.mxu0 %v2564
        %5722 = vmatprep.subr.bf16.mxu0 %v2561
        %5723 = vmatpush1.bf16.msra.mxu0 %v2560
        %5724 = vmatprep.subr.bf16.mxu0 %v2557
        %5725 = vmatpush1.bf16.msra.mxu0 %v2556
        %5726 = vmatprep.subr.bf16.mxu0 %v2553
        %5727 = vmatpush1.bf16.msra.mxu0 %v2552
        %5728 = vmatprep.subr.bf16.mxu0 %v2549
        %5729 = vmatpush1.bf16.msra.mxu0 %v2548
        %5730 = vmatprep.subr.bf16.mxu0 %v2545
        %5731 = vmatpush1.bf16.msra.mxu0 %v2544
        %5732 = vmatprep.subr.bf16.mxu0 %v2605
        %5733 = vmatpush2.bf16.msra.mxu0 %v2604
        %5734 = vmatprep.subr.bf16.mxu0 %v2601
        %5735 = vmatpush2.bf16.msra.mxu0 %v2600
        %5736 = vmatprep.subr.bf16.mxu0 %v2597
        %5737 = vmatpush2.bf16.msra.mxu0 %v2596
        %5738 = vmatprep.subr.bf16.mxu0 %v2593
        %5739 = vmatpush2.bf16.msra.mxu0 %v2592
        %5740 = vmatprep.subr.bf16.mxu0 %v2589
        %5741 = vmatpush2.bf16.msra.mxu0 %v2588
        %5742 = vmatprep.subr.bf16.mxu0 %v2585
        %5743 = vmatpush2.bf16.msra.mxu0 %v2584
        %5744 = vmatprep.subr.bf16.mxu0 %v2581
        %5745 = vmatpush2.bf16.msra.mxu0 %v2580
        %5746 = vmatprep.subr.bf16.mxu0 %v2577
        %5747 = vmatpush2.bf16.msra.mxu0 %v2576
        %5748 = vmatprep.mubr.bf16.mxu0 %v3575
        %5749 = vmatmul.mubr.bf16.gmra.mxu0 %v3574
        %v5750 = vpop.f32.mrf.mxu0
        %v5751 = vadd.f32 %v5710, %v5750
        %v5752 = vpop.f32.mrf.mxu0
        %v5753 = vadd.f32 %v5712, %v5752
        %v5754 = vpop.f32.mrf.mxu0
        %v5755 = vpop.f32.mrf.mxu0
        %5756 = vdwg.mxu0
        %5757 = vmatprep.subr.bf16.mxu0 %v2637
        %5758 = vmatpush1.bf16.msra.mxu0 %v2636
        %5759 = vmatprep.subr.bf16.mxu0 %v2633
        %5760 = vmatpush1.bf16.msra.mxu0 %v2632
        %5761 = vmatprep.subr.bf16.mxu0 %v2629
        %5762 = vmatpush1.bf16.msra.mxu0 %v2628
        %5763 = vmatprep.subr.bf16.mxu0 %v2625
        %5764 = vmatpush1.bf16.msra.mxu0 %v2624
        %5765 = vmatprep.subr.bf16.mxu0 %v2621
        %5766 = vmatpush1.bf16.msra.mxu0 %v2620
        %5767 = vmatprep.subr.bf16.mxu0 %v2617
        %5768 = vmatpush1.bf16.msra.mxu0 %v2616
        %5769 = vmatprep.subr.bf16.mxu0 %v2613
        %5770 = vmatpush1.bf16.msra.mxu0 %v2612
        %5771 = vmatprep.subr.bf16.mxu0 %v2609
        %5772 = vmatpush1.bf16.msra.mxu0 %v2608
        %5773 = vmatprep.subr.bf16.mxu0 %v2669
        %5774 = vmatpush2.bf16.msra.mxu0 %v2668
        %5775 = vmatprep.subr.bf16.mxu0 %v2665
        %5776 = vmatpush2.bf16.msra.mxu0 %v2664
        %5777 = vmatprep.subr.bf16.mxu0 %v2661
        %5778 = vmatpush2.bf16.msra.mxu0 %v2660
        %5779 = vmatprep.subr.bf16.mxu0 %v2657
        %5780 = vmatpush2.bf16.msra.mxu0 %v2656
        %5781 = vmatprep.subr.bf16.mxu0 %v2653
        %5782 = vmatpush2.bf16.msra.mxu0 %v2652
        %5783 = vmatprep.subr.bf16.mxu0 %v2649
        %5784 = vmatpush2.bf16.msra.mxu0 %v2648
        %5785 = vmatprep.subr.bf16.mxu0 %v2645
        %5786 = vmatpush2.bf16.msra.mxu0 %v2644
        %5787 = vmatprep.subr.bf16.mxu0 %v2641
        %5788 = vmatpush2.bf16.msra.mxu0 %v2640
        %5789 = vmatprep.mubr.bf16.mxu0 %v3577
        %5790 = vmatmul.mubr.bf16.gmra.mxu0 %v3576
        %v5791 = vpop.f32.mrf.mxu0
        %v5792 = vadd.f32 %v5751, %v5791
        %v5793 = vpop.f32.mrf.mxu0
        %v5794 = vadd.f32 %v5753, %v5793
        %v5795 = vpop.f32.mrf.mxu0
        %v5796 = vpop.f32.mrf.mxu0
        %5797 = vdwg.mxu0
        %5798 = vmatprep.subr.bf16.mxu0 %v2701
        %5799 = vmatpush1.bf16.msra.mxu0 %v2700
        %5800 = vmatprep.subr.bf16.mxu0 %v2697
        %5801 = vmatpush1.bf16.msra.mxu0 %v2696
        %5802 = vmatprep.subr.bf16.mxu0 %v2693
        %5803 = vmatpush1.bf16.msra.mxu0 %v2692
        %5804 = vmatprep.subr.bf16.mxu0 %v2689
        %5805 = vmatpush1.bf16.msra.mxu0 %v2688
        %5806 = vmatprep.subr.bf16.mxu0 %v2685
        %5807 = vmatpush1.bf16.msra.mxu0 %v2684
        %5808 = vmatprep.subr.bf16.mxu0 %v2681
        %5809 = vmatpush1.bf16.msra.mxu0 %v2680
        %5810 = vmatprep.subr.bf16.mxu0 %v2677
        %5811 = vmatpush1.bf16.msra.mxu0 %v2676
        %5812 = vmatprep.subr.bf16.mxu0 %v2673
        %5813 = vmatpush1.bf16.msra.mxu0 %v2672
        %5814 = vmatprep.subr.bf16.mxu0 %v2733
        %5815 = vmatpush2.bf16.msra.mxu0 %v2732
        %5816 = vmatprep.subr.bf16.mxu0 %v2729
        %5817 = vmatpush2.bf16.msra.mxu0 %v2728
        %5818 = vmatprep.subr.bf16.mxu0 %v2725
        %5819 = vmatpush2.bf16.msra.mxu0 %v2724
        %5820 = vmatprep.subr.bf16.mxu0 %v2721
        %5821 = vmatpush2.bf16.msra.mxu0 %v2720
        %5822 = vmatprep.subr.bf16.mxu0 %v2717
        %5823 = vmatpush2.bf16.msra.mxu0 %v2716
        %5824 = vmatprep.subr.bf16.mxu0 %v2713
        %5825 = vmatpush2.bf16.msra.mxu0 %v2712
        %5826 = vmatprep.subr.bf16.mxu0 %v2709
        %5827 = vmatpush2.bf16.msra.mxu0 %v2708
        %5828 = vmatprep.subr.bf16.mxu0 %v2705
        %5829 = vmatpush2.bf16.msra.mxu0 %v2704
        %5830 = vmatprep.mubr.bf16.mxu0 %v3579
        %5831 = vmatmul.mubr.bf16.gmra.mxu0 %v3578
        %v5832 = vpop.f32.mrf.mxu0
        %v5833 = vadd.f32 %v5792, %v5832
        %v5834 = vpop.f32.mrf.mxu0
        %v5835 = vadd.f32 %v5794, %v5834
        %v5836 = vpop.f32.mrf.mxu0
        %v5837 = vpop.f32.mrf.mxu0
        %5838 = vdwg.mxu0
        %5839 = vmatprep.subr.bf16.mxu0 %v2765
        %5840 = vmatpush1.bf16.msra.mxu0 %v2764
        %5841 = vmatprep.subr.bf16.mxu0 %v2761
        %5842 = vmatpush1.bf16.msra.mxu0 %v2760
        %5843 = vmatprep.subr.bf16.mxu0 %v2757
        %5844 = vmatpush1.bf16.msra.mxu0 %v2756
        %5845 = vmatprep.subr.bf16.mxu0 %v2753
        %5846 = vmatpush1.bf16.msra.mxu0 %v2752
        %5847 = vmatprep.subr.bf16.mxu0 %v2749
        %5848 = vmatpush1.bf16.msra.mxu0 %v2748
        %5849 = vmatprep.subr.bf16.mxu0 %v2745
        %5850 = vmatpush1.bf16.msra.mxu0 %v2744
        %5851 = vmatprep.subr.bf16.mxu0 %v2741
        %5852 = vmatpush1.bf16.msra.mxu0 %v2740
        %5853 = vmatprep.subr.bf16.mxu0 %v2737
        %5854 = vmatpush1.bf16.msra.mxu0 %v2736
        %5855 = vmatprep.subr.bf16.mxu0 %v2797
        %5856 = vmatpush2.bf16.msra.mxu0 %v2796
        %5857 = vmatprep.subr.bf16.mxu0 %v2793
        %5858 = vmatpush2.bf16.msra.mxu0 %v2792
        %5859 = vmatprep.subr.bf16.mxu0 %v2789
        %5860 = vmatpush2.bf16.msra.mxu0 %v2788
        %5861 = vmatprep.subr.bf16.mxu0 %v2785
        %5862 = vmatpush2.bf16.msra.mxu0 %v2784
        %5863 = vmatprep.subr.bf16.mxu0 %v2781
        %5864 = vmatpush2.bf16.msra.mxu0 %v2780
        %5865 = vmatprep.subr.bf16.mxu0 %v2777
        %5866 = vmatpush2.bf16.msra.mxu0 %v2776
        %5867 = vmatprep.subr.bf16.mxu0 %v2773
        %5868 = vmatpush2.bf16.msra.mxu0 %v2772
        %5869 = vmatprep.subr.bf16.mxu0 %v2769
        %5870 = vmatpush2.bf16.msra.mxu0 %v2768
        %5871 = vmatprep.mubr.bf16.mxu0 %v3581
        %5872 = vmatmul.mubr.bf16.gmra.mxu0 %v3580
        %v5873 = vpop.f32.mrf.mxu0
        %v5874 = vadd.f32 %v5833, %v5873
        %v5875 = vpop.f32.mrf.mxu0
        %v5876 = vadd.f32 %v5835, %v5875
        %v5877 = vpop.f32.mrf.mxu0
        %v5878 = vpop.f32.mrf.mxu0
        %5879 = vdwg.mxu0
        %5880 = vmatprep.subr.bf16.mxu0 %v2829
        %5881 = vmatpush1.bf16.msra.mxu0 %v2828
        %5882 = vmatprep.subr.bf16.mxu0 %v2825
        %5883 = vmatpush1.bf16.msra.mxu0 %v2824
        %5884 = vmatprep.subr.bf16.mxu0 %v2821
        %5885 = vmatpush1.bf16.msra.mxu0 %v2820
        %5886 = vmatprep.subr.bf16.mxu0 %v2817
        %5887 = vmatpush1.bf16.msra.mxu0 %v2816
        %5888 = vmatprep.subr.bf16.mxu0 %v2813
        %5889 = vmatpush1.bf16.msra.mxu0 %v2812
        %5890 = vmatprep.subr.bf16.mxu0 %v2809
        %5891 = vmatpush1.bf16.msra.mxu0 %v2808
        %5892 = vmatprep.subr.bf16.mxu0 %v2805
        %5893 = vmatpush1.bf16.msra.mxu0 %v2804
        %5894 = vmatprep.subr.bf16.mxu0 %v2801
        %5895 = vmatpush1.bf16.msra.mxu0 %v2800
        %5896 = vmatprep.subr.bf16.mxu0 %v2861
        %5897 = vmatpush2.bf16.msra.mxu0 %v2860
        %5898 = vmatprep.subr.bf16.mxu0 %v2857
        %5899 = vmatpush2.bf16.msra.mxu0 %v2856
        %5900 = vmatprep.subr.bf16.mxu0 %v2853
        %5901 = vmatpush2.bf16.msra.mxu0 %v2852
        %5902 = vmatprep.subr.bf16.mxu0 %v2849
        %5903 = vmatpush2.bf16.msra.mxu0 %v2848
        %5904 = vmatprep.subr.bf16.mxu0 %v2845
        %5905 = vmatpush2.bf16.msra.mxu0 %v2844
        %5906 = vmatprep.subr.bf16.mxu0 %v2841
        %5907 = vmatpush2.bf16.msra.mxu0 %v2840
        %5908 = vmatprep.subr.bf16.mxu0 %v2837
        %5909 = vmatpush2.bf16.msra.mxu0 %v2836
        %5910 = vmatprep.subr.bf16.mxu0 %v2833
        %5911 = vmatpush2.bf16.msra.mxu0 %v2832
        %5912 = vmatprep.mubr.bf16.mxu0 %v3583
        %5913 = vmatmul.mubr.bf16.gmra.mxu0 %v3582
        %v5914 = vpop.f32.mrf.mxu0
        %v5915 = vadd.f32 %v5874, %v5914
        %v5916 = vpop.f32.mrf.mxu0
        %v5917 = vadd.f32 %v5876, %v5916
        %v5918 = vpop.f32.mrf.mxu0
        %v5919 = vpop.f32.mrf.mxu0
        %5920 = vdwg.mxu0
        %5921 = vmatprep.subr.bf16.mxu0 %v2893
        %5922 = vmatpush1.bf16.msra.mxu0 %v2892
        %5923 = vmatprep.subr.bf16.mxu0 %v2889
        %5924 = vmatpush1.bf16.msra.mxu0 %v2888
        %5925 = vmatprep.subr.bf16.mxu0 %v2885
        %5926 = vmatpush1.bf16.msra.mxu0 %v2884
        %5927 = vmatprep.subr.bf16.mxu0 %v2881
        %5928 = vmatpush1.bf16.msra.mxu0 %v2880
        %5929 = vmatprep.subr.bf16.mxu0 %v2877
        %5930 = vmatpush1.bf16.msra.mxu0 %v2876
        %5931 = vmatprep.subr.bf16.mxu0 %v2873
        %5932 = vmatpush1.bf16.msra.mxu0 %v2872
        %5933 = vmatprep.subr.bf16.mxu0 %v2869
        %5934 = vmatpush1.bf16.msra.mxu0 %v2868
        %5935 = vmatprep.subr.bf16.mxu0 %v2865
        %5936 = vmatpush1.bf16.msra.mxu0 %v2864
        %5937 = vmatprep.subr.bf16.mxu0 %v2925
        %5938 = vmatpush2.bf16.msra.mxu0 %v2924
        %5939 = vmatprep.subr.bf16.mxu0 %v2921
        %5940 = vmatpush2.bf16.msra.mxu0 %v2920
        %5941 = vmatprep.subr.bf16.mxu0 %v2917
        %5942 = vmatpush2.bf16.msra.mxu0 %v2916
        %5943 = vmatprep.subr.bf16.mxu0 %v2913
        %5944 = vmatpush2.bf16.msra.mxu0 %v2912
        %5945 = vmatprep.subr.bf16.mxu0 %v2909
        %5946 = vmatpush2.bf16.msra.mxu0 %v2908
        %5947 = vmatprep.subr.bf16.mxu0 %v2905
        %5948 = vmatpush2.bf16.msra.mxu0 %v2904
        %5949 = vmatprep.subr.bf16.mxu0 %v2901
        %5950 = vmatpush2.bf16.msra.mxu0 %v2900
        %5951 = vmatprep.subr.bf16.mxu0 %v2897
        %5952 = vmatpush2.bf16.msra.mxu0 %v2896
        %5953 = vmatprep.mubr.bf16.mxu0 %v3585
        %5954 = vmatmul.mubr.bf16.gmra.mxu0 %v3584
        %v5955 = vpop.f32.mrf.mxu0
        %v5956 = vadd.f32 %v5915, %v5955
        %v5957 = vpop.f32.mrf.mxu0
        %v5958 = vadd.f32 %v5917, %v5957
        %v5959 = vpop.f32.mrf.mxu0
        %v5960 = vpop.f32.mrf.mxu0
        %5961 = vdwg.mxu0
        %5962 = vmatprep.subr.bf16.mxu0 %v2957
        %5963 = vmatpush1.bf16.msra.mxu0 %v2956
        %5964 = vmatprep.subr.bf16.mxu0 %v2953
        %5965 = vmatpush1.bf16.msra.mxu0 %v2952
        %5966 = vmatprep.subr.bf16.mxu0 %v2949
        %5967 = vmatpush1.bf16.msra.mxu0 %v2948
        %5968 = vmatprep.subr.bf16.mxu0 %v2945
        %5969 = vmatpush1.bf16.msra.mxu0 %v2944
        %5970 = vmatprep.subr.bf16.mxu0 %v2941
        %5971 = vmatpush1.bf16.msra.mxu0 %v2940
        %5972 = vmatprep.subr.bf16.mxu0 %v2937
        %5973 = vmatpush1.bf16.msra.mxu0 %v2936
        %5974 = vmatprep.subr.bf16.mxu0 %v2933
        %5975 = vmatpush1.bf16.msra.mxu0 %v2932
        %5976 = vmatprep.subr.bf16.mxu0 %v2929
        %5977 = vmatpush1.bf16.msra.mxu0 %v2928
        %5978 = vmatprep.subr.bf16.mxu0 %v2989
        %5979 = vmatpush2.bf16.msra.mxu0 %v2988
        %5980 = vmatprep.subr.bf16.mxu0 %v2985
        %5981 = vmatpush2.bf16.msra.mxu0 %v2984
        %5982 = vmatprep.subr.bf16.mxu0 %v2981
        %5983 = vmatpush2.bf16.msra.mxu0 %v2980
        %5984 = vmatprep.subr.bf16.mxu0 %v2977
        %5985 = vmatpush2.bf16.msra.mxu0 %v2976
        %5986 = vmatprep.subr.bf16.mxu0 %v2973
        %5987 = vmatpush2.bf16.msra.mxu0 %v2972
        %5988 = vmatprep.subr.bf16.mxu0 %v2969
        %5989 = vmatpush2.bf16.msra.mxu0 %v2968
        %5990 = vmatprep.subr.bf16.mxu0 %v2965
        %5991 = vmatpush2.bf16.msra.mxu0 %v2964
        %5992 = vmatprep.subr.bf16.mxu0 %v2961
        %5993 = vmatpush2.bf16.msra.mxu0 %v2960
        %5994 = vmatprep.mubr.bf16.mxu0 %v3587
        %5995 = vmatmul.mubr.bf16.gmra.mxu0 %v3586
        %v5996 = vpop.f32.mrf.mxu0
        %v5997 = vadd.f32 %v5956, %v5996
        %v5998 = vpop.f32.mrf.mxu0
        %v5999 = vadd.f32 %v5958, %v5998
        %v6000 = vpop.f32.mrf.mxu0
        %v6001 = vpop.f32.mrf.mxu0
        %6002 = vdwg.mxu0
        %6003 = vmatprep.subr.bf16.mxu0 %v3021
        %6004 = vmatpush1.bf16.msra.mxu0 %v3020
        %6005 = vmatprep.subr.bf16.mxu0 %v3017
        %6006 = vmatpush1.bf16.msra.mxu0 %v3016
        %6007 = vmatprep.subr.bf16.mxu0 %v3013
        %6008 = vmatpush1.bf16.msra.mxu0 %v3012
        %6009 = vmatprep.subr.bf16.mxu0 %v3009
        %6010 = vmatpush1.bf16.msra.mxu0 %v3008
        %6011 = vmatprep.subr.bf16.mxu0 %v3005
        %6012 = vmatpush1.bf16.msra.mxu0 %v3004
        %6013 = vmatprep.subr.bf16.mxu0 %v3001
        %6014 = vmatpush1.bf16.msra.mxu0 %v3000
        %6015 = vmatprep.subr.bf16.mxu0 %v2997
        %6016 = vmatpush1.bf16.msra.mxu0 %v2996
        %6017 = vmatprep.subr.bf16.mxu0 %v2993
        %6018 = vmatpush1.bf16.msra.mxu0 %v2992
        %6019 = vmatprep.subr.bf16.mxu0 %v3053
        %6020 = vmatpush2.bf16.msra.mxu0 %v3052
        %6021 = vmatprep.subr.bf16.mxu0 %v3049
        %6022 = vmatpush2.bf16.msra.mxu0 %v3048
        %6023 = vmatprep.subr.bf16.mxu0 %v3045
        %6024 = vmatpush2.bf16.msra.mxu0 %v3044
        %6025 = vmatprep.subr.bf16.mxu0 %v3041
        %6026 = vmatpush2.bf16.msra.mxu0 %v3040
        %6027 = vmatprep.subr.bf16.mxu0 %v3037
        %6028 = vmatpush2.bf16.msra.mxu0 %v3036
        %6029 = vmatprep.subr.bf16.mxu0 %v3033
        %6030 = vmatpush2.bf16.msra.mxu0 %v3032
        %6031 = vmatprep.subr.bf16.mxu0 %v3029
        %6032 = vmatpush2.bf16.msra.mxu0 %v3028
        %6033 = vmatprep.subr.bf16.mxu0 %v3025
        %6034 = vmatpush2.bf16.msra.mxu0 %v3024
        %6035 = vmatprep.mubr.bf16.mxu0 %v3589
        %6036 = vmatmul.mubr.bf16.gmra.mxu0 %v3588
        %v6037 = vpop.f32.mrf.mxu0
        %v6038 = vadd.f32 %v5997, %v6037
        %v6039 = vpop.f32.mrf.mxu0
        %v6040 = vadd.f32 %v5999, %v6039
        %v6041 = vpop.f32.mrf.mxu0
        %v6042 = vpop.f32.mrf.mxu0
        %6043 = vdwg.mxu0
        %6044 = vmatprep.subr.bf16.mxu0 %v3085
        %6045 = vmatpush1.bf16.msra.mxu0 %v3084
        %6046 = vmatprep.subr.bf16.mxu0 %v3081
        %6047 = vmatpush1.bf16.msra.mxu0 %v3080
        %6048 = vmatprep.subr.bf16.mxu0 %v3077
        %6049 = vmatpush1.bf16.msra.mxu0 %v3076
        %6050 = vmatprep.subr.bf16.mxu0 %v3073
        %6051 = vmatpush1.bf16.msra.mxu0 %v3072
        %6052 = vmatprep.subr.bf16.mxu0 %v3069
        %6053 = vmatpush1.bf16.msra.mxu0 %v3068
        %6054 = vmatprep.subr.bf16.mxu0 %v3065
        %6055 = vmatpush1.bf16.msra.mxu0 %v3064
        %6056 = vmatprep.subr.bf16.mxu0 %v3061
        %6057 = vmatpush1.bf16.msra.mxu0 %v3060
        %6058 = vmatprep.subr.bf16.mxu0 %v3057
        %6059 = vmatpush1.bf16.msra.mxu0 %v3056
        %6060 = vmatprep.subr.bf16.mxu0 %v3117
        %6061 = vmatpush2.bf16.msra.mxu0 %v3116
        %6062 = vmatprep.subr.bf16.mxu0 %v3113
        %6063 = vmatpush2.bf16.msra.mxu0 %v3112
        %6064 = vmatprep.subr.bf16.mxu0 %v3109
        %6065 = vmatpush2.bf16.msra.mxu0 %v3108
        %6066 = vmatprep.subr.bf16.mxu0 %v3105
        %6067 = vmatpush2.bf16.msra.mxu0 %v3104
        %6068 = vmatprep.subr.bf16.mxu0 %v3101
        %6069 = vmatpush2.bf16.msra.mxu0 %v3100
        %6070 = vmatprep.subr.bf16.mxu0 %v3097
        %6071 = vmatpush2.bf16.msra.mxu0 %v3096
        %6072 = vmatprep.subr.bf16.mxu0 %v3093
        %6073 = vmatpush2.bf16.msra.mxu0 %v3092
        %6074 = vmatprep.subr.bf16.mxu0 %v3089
        %6075 = vmatpush2.bf16.msra.mxu0 %v3088
        %6076 = vmatprep.mubr.bf16.mxu0 %v3591
        %6077 = vmatmul.mubr.bf16.gmra.mxu0 %v3590
        %v6078 = vpop.f32.mrf.mxu0
        %v6079 = vadd.f32 %v6038, %v6078
        %v6080 = vpop.f32.mrf.mxu0
        %v6081 = vadd.f32 %v6040, %v6080
        %v6082 = vpop.f32.mrf.mxu0
        %v6083 = vpop.f32.mrf.mxu0
        %6084 = vdwg.mxu0
        %6085 = vmatprep.subr.bf16.mxu0 %v3149
        %6086 = vmatpush1.bf16.msra.mxu0 %v3148
        %6087 = vmatprep.subr.bf16.mxu0 %v3145
        %6088 = vmatpush1.bf16.msra.mxu0 %v3144
        %6089 = vmatprep.subr.bf16.mxu0 %v3141
        %6090 = vmatpush1.bf16.msra.mxu0 %v3140
        %6091 = vmatprep.subr.bf16.mxu0 %v3137
        %6092 = vmatpush1.bf16.msra.mxu0 %v3136
        %6093 = vmatprep.subr.bf16.mxu0 %v3133
        %6094 = vmatpush1.bf16.msra.mxu0 %v3132
        %6095 = vmatprep.subr.bf16.mxu0 %v3129
        %6096 = vmatpush1.bf16.msra.mxu0 %v3128
        %6097 = vmatprep.subr.bf16.mxu0 %v3125
        %6098 = vmatpush1.bf16.msra.mxu0 %v3124
        %6099 = vmatprep.subr.bf16.mxu0 %v3121
        %6100 = vmatpush1.bf16.msra.mxu0 %v3120
        %6101 = vmatprep.subr.bf16.mxu0 %v3181
        %6102 = vmatpush2.bf16.msra.mxu0 %v3180
        %6103 = vmatprep.subr.bf16.mxu0 %v3177
        %6104 = vmatpush2.bf16.msra.mxu0 %v3176
        %6105 = vmatprep.subr.bf16.mxu0 %v3173
        %6106 = vmatpush2.bf16.msra.mxu0 %v3172
        %6107 = vmatprep.subr.bf16.mxu0 %v3169
        %6108 = vmatpush2.bf16.msra.mxu0 %v3168
        %6109 = vmatprep.subr.bf16.mxu0 %v3165
        %6110 = vmatpush2.bf16.msra.mxu0 %v3164
        %6111 = vmatprep.subr.bf16.mxu0 %v3161
        %6112 = vmatpush2.bf16.msra.mxu0 %v3160
        %6113 = vmatprep.subr.bf16.mxu0 %v3157
        %6114 = vmatpush2.bf16.msra.mxu0 %v3156
        %6115 = vmatprep.subr.bf16.mxu0 %v3153
        %6116 = vmatpush2.bf16.msra.mxu0 %v3152
        %6117 = vmatprep.mubr.bf16.mxu0 %v3593
        %6118 = vmatmul.mubr.bf16.gmra.mxu0 %v3592
        %v6119 = vpop.f32.mrf.mxu0
        %v6120 = vadd.f32 %v6079, %v6119
        %v6121 = vpop.f32.mrf.mxu0
        %v6122 = vadd.f32 %v6081, %v6121
        %v6123 = vpop.f32.mrf.mxu0
        %v6124 = vpop.f32.mrf.mxu0
        %6125 = vdwg.mxu0
        %6126 = vmatprep.subr.bf16.mxu0 %v3213
        %6127 = vmatpush1.bf16.msra.mxu0 %v3212
        %6128 = vmatprep.subr.bf16.mxu0 %v3209
        %6129 = vmatpush1.bf16.msra.mxu0 %v3208
        %6130 = vmatprep.subr.bf16.mxu0 %v3205
        %6131 = vmatpush1.bf16.msra.mxu0 %v3204
        %6132 = vmatprep.subr.bf16.mxu0 %v3201
        %6133 = vmatpush1.bf16.msra.mxu0 %v3200
        %6134 = vmatprep.subr.bf16.mxu0 %v3197
        %6135 = vmatpush1.bf16.msra.mxu0 %v3196
        %6136 = vmatprep.subr.bf16.mxu0 %v3193
        %6137 = vmatpush1.bf16.msra.mxu0 %v3192
        %6138 = vmatprep.subr.bf16.mxu0 %v3189
        %6139 = vmatpush1.bf16.msra.mxu0 %v3188
        %6140 = vmatprep.subr.bf16.mxu0 %v3185
        %6141 = vmatpush1.bf16.msra.mxu0 %v3184
        %6142 = vmatprep.subr.bf16.mxu0 %v3245
        %6143 = vmatpush2.bf16.msra.mxu0 %v3244
        %6144 = vmatprep.subr.bf16.mxu0 %v3241
        %6145 = vmatpush2.bf16.msra.mxu0 %v3240
        %6146 = vmatprep.subr.bf16.mxu0 %v3237
        %6147 = vmatpush2.bf16.msra.mxu0 %v3236
        %6148 = vmatprep.subr.bf16.mxu0 %v3233
        %6149 = vmatpush2.bf16.msra.mxu0 %v3232
        %6150 = vmatprep.subr.bf16.mxu0 %v3229
        %6151 = vmatpush2.bf16.msra.mxu0 %v3228
        %6152 = vmatprep.subr.bf16.mxu0 %v3225
        %6153 = vmatpush2.bf16.msra.mxu0 %v3224
        %6154 = vmatprep.subr.bf16.mxu0 %v3221
        %6155 = vmatpush2.bf16.msra.mxu0 %v3220
        %6156 = vmatprep.subr.bf16.mxu0 %v3217
        %6157 = vmatpush2.bf16.msra.mxu0 %v3216
        %6158 = vmatprep.mubr.bf16.mxu0 %v3595
        %6159 = vmatmul.mubr.bf16.gmra.mxu0 %v3594
        %v6160 = vpop.f32.mrf.mxu0
        %v6161 = vadd.f32 %v6120, %v6160
        %v6162 = vpop.f32.mrf.mxu0
        %v6163 = vadd.f32 %v6122, %v6162
        %v6164 = vpop.f32.mrf.mxu0
        %v6165 = vpop.f32.mrf.mxu0
        %6166 = vdwg.mxu0
        %6167 = vmatprep.subr.bf16.mxu0 %v3277
        %6168 = vmatpush1.bf16.msra.mxu0 %v3276
        %6169 = vmatprep.subr.bf16.mxu0 %v3273
        %6170 = vmatpush1.bf16.msra.mxu0 %v3272
        %6171 = vmatprep.subr.bf16.mxu0 %v3269
        %6172 = vmatpush1.bf16.msra.mxu0 %v3268
        %6173 = vmatprep.subr.bf16.mxu0 %v3265
        %6174 = vmatpush1.bf16.msra.mxu0 %v3264
        %6175 = vmatprep.subr.bf16.mxu0 %v3261
        %6176 = vmatpush1.bf16.msra.mxu0 %v3260
        %6177 = vmatprep.subr.bf16.mxu0 %v3257
        %6178 = vmatpush1.bf16.msra.mxu0 %v3256
        %6179 = vmatprep.subr.bf16.mxu0 %v3253
        %6180 = vmatpush1.bf16.msra.mxu0 %v3252
        %6181 = vmatprep.subr.bf16.mxu0 %v3249
        %6182 = vmatpush1.bf16.msra.mxu0 %v3248
        %6183 = vmatprep.subr.bf16.mxu0 %v3309
        %6184 = vmatpush2.bf16.msra.mxu0 %v3308
        %6185 = vmatprep.subr.bf16.mxu0 %v3305
        %6186 = vmatpush2.bf16.msra.mxu0 %v3304
        %6187 = vmatprep.subr.bf16.mxu0 %v3301
        %6188 = vmatpush2.bf16.msra.mxu0 %v3300
        %6189 = vmatprep.subr.bf16.mxu0 %v3297
        %6190 = vmatpush2.bf16.msra.mxu0 %v3296
        %6191 = vmatprep.subr.bf16.mxu0 %v3293
        %6192 = vmatpush2.bf16.msra.mxu0 %v3292
        %6193 = vmatprep.subr.bf16.mxu0 %v3289
        %6194 = vmatpush2.bf16.msra.mxu0 %v3288
        %6195 = vmatprep.subr.bf16.mxu0 %v3285
        %6196 = vmatpush2.bf16.msra.mxu0 %v3284
        %6197 = vmatprep.subr.bf16.mxu0 %v3281
        %6198 = vmatpush2.bf16.msra.mxu0 %v3280
        %6199 = vmatprep.mubr.bf16.mxu0 %v3597
        %6200 = vmatmul.mubr.bf16.gmra.mxu0 %v3596
        %v6201 = vpop.f32.mrf.mxu0
        %v6202 = vadd.f32 %v6161, %v6201
        %v6203 = vpop.f32.mrf.mxu0
        %v6204 = vadd.f32 %v6163, %v6203
        %v6205 = vpop.f32.mrf.mxu0
        %v6206 = vpop.f32.mrf.mxu0
        %6207 = vdwg.mxu0
        %6208 = vmatprep.subr.bf16.mxu0 %v3341
        %6209 = vmatpush1.bf16.msra.mxu0 %v3340
        %6210 = vmatprep.subr.bf16.mxu0 %v3337
        %6211 = vmatpush1.bf16.msra.mxu0 %v3336
        %6212 = vmatprep.subr.bf16.mxu0 %v3333
        %6213 = vmatpush1.bf16.msra.mxu0 %v3332
        %6214 = vmatprep.subr.bf16.mxu0 %v3329
        %6215 = vmatpush1.bf16.msra.mxu0 %v3328
        %6216 = vmatprep.subr.bf16.mxu0 %v3325
        %6217 = vmatpush1.bf16.msra.mxu0 %v3324
        %6218 = vmatprep.subr.bf16.mxu0 %v3321
        %6219 = vmatpush1.bf16.msra.mxu0 %v3320
        %6220 = vmatprep.subr.bf16.mxu0 %v3317
        %6221 = vmatpush1.bf16.msra.mxu0 %v3316
        %6222 = vmatprep.subr.bf16.mxu0 %v3313
        %6223 = vmatpush1.bf16.msra.mxu0 %v3312
        %6224 = vmatprep.subr.bf16.mxu0 %v3373
        %6225 = vmatpush2.bf16.msra.mxu0 %v3372
        %6226 = vmatprep.subr.bf16.mxu0 %v3369
        %6227 = vmatpush2.bf16.msra.mxu0 %v3368
        %6228 = vmatprep.subr.bf16.mxu0 %v3365
        %6229 = vmatpush2.bf16.msra.mxu0 %v3364
        %6230 = vmatprep.subr.bf16.mxu0 %v3361
        %6231 = vmatpush2.bf16.msra.mxu0 %v3360
        %6232 = vmatprep.subr.bf16.mxu0 %v3357
        %6233 = vmatpush2.bf16.msra.mxu0 %v3356
        %6234 = vmatprep.subr.bf16.mxu0 %v3353
        %6235 = vmatpush2.bf16.msra.mxu0 %v3352
        %6236 = vmatprep.subr.bf16.mxu0 %v3349
        %6237 = vmatpush2.bf16.msra.mxu0 %v3348
        %6238 = vmatprep.subr.bf16.mxu0 %v3345
        %6239 = vmatpush2.bf16.msra.mxu0 %v3344
        %6240 = vmatprep.mubr.bf16.mxu0 %v3599
        %6241 = vmatmul.mubr.bf16.gmra.mxu0 %v3598
        %v6242 = vpop.f32.mrf.mxu0
        %v6243 = vadd.f32 %v6202, %v6242
        %v6244 = vpop.f32.mrf.mxu0
        %v6245 = vadd.f32 %v6204, %v6244
        %v6246 = vpop.f32.mrf.mxu0
        %v6247 = vpop.f32.mrf.mxu0
        %6248 = vdwg.mxu0
        %6249 = vmatprep.subr.bf16.mxu0 %v3405
        %6250 = vmatpush1.bf16.msra.mxu0 %v3404
        %6251 = vmatprep.subr.bf16.mxu0 %v3401
        %6252 = vmatpush1.bf16.msra.mxu0 %v3400
        %6253 = vmatprep.subr.bf16.mxu0 %v3397
        %6254 = vmatpush1.bf16.msra.mxu0 %v3396
        %6255 = vmatprep.subr.bf16.mxu0 %v3393
        %6256 = vmatpush1.bf16.msra.mxu0 %v3392
        %6257 = vmatprep.subr.bf16.mxu0 %v3389
        %6258 = vmatpush1.bf16.msra.mxu0 %v3388
        %6259 = vmatprep.subr.bf16.mxu0 %v3385
        %6260 = vmatpush1.bf16.msra.mxu0 %v3384
        %6261 = vmatprep.subr.bf16.mxu0 %v3381
        %6262 = vmatpush1.bf16.msra.mxu0 %v3380
        %6263 = vmatprep.subr.bf16.mxu0 %v3377
        %6264 = vmatpush1.bf16.msra.mxu0 %v3376
        %6265 = vmatprep.subr.bf16.mxu0 %v3437
        %6266 = vmatpush2.bf16.msra.mxu0 %v3436
        %6267 = vmatprep.subr.bf16.mxu0 %v3433
        %6268 = vmatpush2.bf16.msra.mxu0 %v3432
        %6269 = vmatprep.subr.bf16.mxu0 %v3429
        %6270 = vmatpush2.bf16.msra.mxu0 %v3428
        %6271 = vmatprep.subr.bf16.mxu0 %v3425
        %6272 = vmatpush2.bf16.msra.mxu0 %v3424
        %6273 = vmatprep.subr.bf16.mxu0 %v3421
        %6274 = vmatpush2.bf16.msra.mxu0 %v3420
        %6275 = vmatprep.subr.bf16.mxu0 %v3417
        %6276 = vmatpush2.bf16.msra.mxu0 %v3416
        %6277 = vmatprep.subr.bf16.mxu0 %v3413
        %6278 = vmatpush2.bf16.msra.mxu0 %v3412
        %6279 = vmatprep.subr.bf16.mxu0 %v3409
        %6280 = vmatpush2.bf16.msra.mxu0 %v3408
        %6281 = vmatprep.mubr.bf16.mxu0 %v3601
        %6282 = vmatmul.mubr.bf16.gmra.mxu0 %v3600
        %v6283 = vpop.f32.mrf.mxu0
        %v6284 = vadd.f32 %v6243, %v6283
        %v6285 = vpop.f32.mrf.mxu0
        %v6286 = vadd.f32 %v6245, %v6285
        %v6287 = vpop.f32.mrf.mxu0
        %v6288 = vpop.f32.mrf.mxu0
        %6289 = vdwg.mxu0
        %v6290 = vadd.f32 %v3438, %v4972
        %v6291 = vadd.f32 %v3439, %v4974
        %v6292 = vadd.f32 %v3440, %v6284
        %v6293 = vadd.f32 %v3441, %v6286
        %6294 = vst [vmem:[#allocation2] sm:$0xff] %v6290
        %6295 = vst [vmem:[#allocation2 + $0x8] sm:$0xff] %v6291
        %6296 = vst [vmem:[#allocation2 + $0x10] sm:$0xff] %v6292
        %6297 = vst [vmem:[#allocation2 + $0x18] sm:$0xff] %v6293
        %p6298 = scmp.eq.s32.totalorder %s30, 5
        // Predicated region
        $region57: #{tpu_custom_call.1} parent=35 // pred_check
          %p6299 = pneg %p6298
        $region58: #{tpu_custom_call.1} parent=35 // pred_check_branch
          %6301 = sbr.rel (%p6299) target = $region60
        $region59: #{tpu_custom_call.1} parent=35 // pred_region
          %v6302 = vld [vmem:[#allocation2] sm:$0xff]
          %v6303 = vld [vmem:[#allocation2 + $0x8] sm:$0xff]
          %v6304 = vld [vmem:[#allocation2 + $0x10] sm:$0xff]
          %v6305 = vld [vmem:[#allocation2 + $0x18] sm:$0xff]
          %v6306 = vld [vmem:[%s275] sm:$0xf]
          %v6308 = vlaneseq
          %v6309 = vshrl.u32 %v6308, 7
          %v6310 = vsub.s32 0, %v6309
          %v6311 = vrot.slane %v6306, %v6310
          %v6312 = vlaneseq
          %v6313 = vshrl.u32 %v6312, 7
          %v6314 = vsub.s32 1, %v6313
          %v6315 = vrot.slane %v6306, %v6314
          %v6316 = vlaneseq
          %v6317 = vshrl.u32 %v6316, 7
          %v6318 = vsub.s32 2, %v6317
          %v6319 = vrot.slane %v6306, %v6318
          %v6320 = vlaneseq
          %v6321 = vshrl.u32 %v6320, 7
          %v6322 = vsub.s32 3, %v6321
          %v6323 = vrot.slane %v6306, %v6322
          %v6328 = vmul.f32 %v6302, %v6311
          %v6329 = vmul.f32 %v6303, %v6315
          %v6330 = vmul.f32 %v6304, %v6319
          %v6331 = vmul.f32 %v6305, %v6323
          %v6332 = vld [vmem:[%s284] sm:$0xf]
          %v6334 = vlaneseq
          %v6335 = vshrl.u32 %v6334, 7
          %v6336 = vsub.s32 0, %v6335
          %v6337 = vrot.slane %v6332, %v6336
          %v6338 = vlaneseq
          %v6339 = vshrl.u32 %v6338, 7
          %v6340 = vsub.s32 1, %v6339
          %v6341 = vrot.slane %v6332, %v6340
          %v6342 = vlaneseq
          %v6343 = vshrl.u32 %v6342, 7
          %v6344 = vsub.s32 2, %v6343
          %v6345 = vrot.slane %v6332, %v6344
          %v6346 = vlaneseq
          %v6347 = vshrl.u32 %v6346, 7
          %v6348 = vsub.s32 3, %v6347
          %v6349 = vrot.slane %v6332, %v6348
          %v6354 = vadd.f32 %v6328, %v6337
          %v6355 = vadd.f32 %v6329, %v6341
          %v6356 = vadd.f32 %v6330, %v6345
          %v6357 = vadd.f32 %v6331, %v6349
          %v6358 = vmax.f32 %v6354, 0.0
          %v6359 = vmax.f32 %v6355, 0.0
          %v6360 = vmax.f32 %v6356, 0.0
          %v6361 = vmax.f32 %v6357, 0.0
          %6362 = vst [vmem:[%s318] sm:$0xff] %v6358
          %6363 = vst [vmem:[%s318 + $0x8] sm:$0xff] %v6359
          %6364 = vst [vmem:[%s318 + $0x10] sm:$0xff] %v6360
          %6365 = vst [vmem:[%s318 + $0x18] sm:$0xff] %v6361
        $region60: #{tpu_custom_call.1} parent=35 // pred_fallthru
          _
        %s6366 = sand.u32 %s146, 1
        %s6367 = scalar_lea.sflag [#allocation5], %s6366
        %s6368 = sand.u32 %s146, 1
        %s6369 = smul.addr %s6368, 32
        %s6370 = scalar_lea.vmem [#allocation11], %s6369
        // Predicated region
        $region61: #{tpu_custom_call.1} parent=35 // pred_check
          %p6371 = pneg %p156
        $region62: #{tpu_custom_call.1} parent=35 // pred_check_branch
          %6373 = sbr.rel (%p6371) target = $region64
        $region63: #{tpu_custom_call.1} parent=35 // pred_region
          %s6374 = smul.u32 4, %s29
          %s6376 = ssub.s32 512, 512
          %6377 = vsyncadd %s6367, %s6376
          %s6378 = smul.addr %s6374, 128
          %s6379 = scalar_lea.hbm %s4, %s6378
          %s6381 = sshll.u32 %s6370, 4
          %s6382 = int_to_ptr.vmem [resolvable:$true] %s6381
          %6384 = dma.vmem_to_hbm [thread:$0]  %s6382, 512, %s6379, %s6367
        $region64: #{tpu_custom_call.1} parent=35 // pred_fallthru
          _
      $region36: #{tpu_custom_call.1} parent=5 // pred_fallthru
        _
      %p6385 = scmp.le.s32.totalorder 2, %s20
      // Predicated region
      $region65: #{tpu_custom_call.1} parent=5 // pred_check
        %p6386 = pneg %p6385
      $region66: #{tpu_custom_call.1} parent=5 // pred_check_branch
        %6388 = sbr.rel (%p6386) target = $region68
      $region67: #{tpu_custom_call.1} parent=5 // pred_region
        %s6389 = ssub.s32 %s20, 2
        // Predicated region
        $region69: #{tpu_custom_call.1} parent=67 // pred_check
          %p6390 = pneg %p162
        $region70: #{tpu_custom_call.1} parent=67 // pred_check_branch
          %6392 = sbr.rel (%p6390) target = $region72
        $region71: #{tpu_custom_call.1} parent=67 // pred_region
          %s6393 = sand.u32 %s147, 1
          %s6394 = scalar_lea.sflag [#allocation5], %s6393
          %s6395 = sand.u32 %s147, 1
          %s6396 = smul.addr %s6395, 32
          %s6397 = scalar_lea.vmem [#allocation11], %s6396
          %6398 = dma.done %s6394, 512
        $region72: #{tpu_custom_call.1} parent=67 // pred_fallthru
          _
      $region68: #{tpu_custom_call.1} parent=5 // pred_fallthru
        _
    $region6: #{tpu_custom_call.1} parent=1 // loop_footer
      %s24 = sadd.s32 1, %s20
    $region7: #{tpu_custom_call.1} parent=1 // loop_footer_branch
      %19 = sbr.rel target = $region3
    $region8: #{tpu_custom_call.1} parent=1 // loop_exit
      _
    %6399 = vsyncpa [#allocation4], 1
    %s6400 = scalar_lea.sflag [#allocation4], 1
    %6401 = vsyncpa %s6400, 1
    %6402 = vsyncpa [#allocation7], 1
    %s6403 = scalar_lea.sflag [#allocation7], 1
    %6404 = vsyncpa %s6403, 1
    %6405 = vsyncpa [#allocation10], 1
    %s6406 = scalar_lea.sflag [#allocation10], 1
    %6407 = vsyncpa %s6406, 1
    %6408 = vsyncpa [#allocation5], 1
    %s6409 = scalar_lea.sflag [#allocation5], 1
    %6410 = vsyncpa %s6409, 1

</llo_original>
